<compile_context>
chip_gen: v7x
topology: tpu7x:2x2x1
jax: 0.10.0
libtpu: 0.0.40
codegen_flags: <defaults>
</compile_context>

<pallas_src>
import functools

import jax
import jax.numpy as jnp
from jax.experimental import pallas as pl
from jax.experimental.pallas import tpu as pltpu

EPS = 1e-5
HIDDEN = 32


# ----------------------------------------------------------------------------
# Stage 1: box-filter statistics (plane layout, W on lanes)
# ----------------------------------------------------------------------------
def _stats_kernel(x_ref, y_ref, tw_ref, th_ref, invn_ref, s_ref):
    P, H, W = x_ref.shape
    x = x_ref[...]                                   # (P, H, W)
    y = y_ref[...]
    # Banded all-ones matrices, hoisted/broadcast once.
    tw_b = jnp.broadcast_to(tw_ref[...], (P, W, W))  # (P, W, W)
    th_b = jnp.broadcast_to(th_ref[...], (P, H, H))  # (P, H, H)
    inv_n = invn_ref[...]                            # (1, H, W) == 1 / box(ones)

    def box(v):
        # Separable 3x3 zero-padded box sum, fully on the MXU:
        #   W direction: V @ Tw  (batched over planes)
        #   H direction: Th @ (V @ Tw)
        vw = jnp.einsum('phw,pwk->phk', v, tw_b,
                        preferred_element_type=jnp.float32)
        return jnp.einsum('phk,pkw->phw', th_b, vw,
                          preferred_element_type=jnp.float32)

    mean_x = box(x) * inv_n
    mean_y = box(y) * inv_n
    cov_xy = box(x * y) * inv_n - mean_x * mean_y
    # var_x may go slightly negative from fp cancellation; torch does not clamp
    # either (it is only fed to a conv), so keep it faithful.
    var_x = box(x * x) * inv_n - mean_x * mean_x

    s_ref[0] = mean_x
    s_ref[1] = mean_y
    s_ref[2] = cov_xy
    s_ref[3] = var_x


# ----------------------------------------------------------------------------
# Stage 2: 1x1-conv / BN / ReLU chain (lane-dense (B, ch, H*W) operands)
# ----------------------------------------------------------------------------
def _conv_kernel(s_ref, w1c_ref, w1v_ref, g1_ref, b1_ref,
                 w2_ref, g2_ref, b2_ref, w3_ref, ab_ref):
    _, B, C, HW = s_ref.shape
    hid = w2_ref.shape[0]

    mean_x = s_ref[0]                                # (B, C, HW)
    mean_y = s_ref[1]
    cov = s_ref[2]
    var = s_ref[3]

    def bn_relu(h, g, b):
        # BatchNorm2d with batch statistics: one pass (sum & sum-of-squares).
        s1 = jnp.sum(jnp.sum(h, axis=2, keepdims=True), axis=0, keepdims=True)
        s2 = jnp.sum(jnp.sum(h * h, axis=2, keepdims=True), axis=0,
                     keepdims=True)
        inv_cnt = 1.0 / (B * HW)
        m = s1 * inv_cnt
        v = s2 * inv_cnt - m * m
        h = (h - m) * jax.lax.rsqrt(v + EPS) * g + b
        return jnp.maximum(h, 0.0)

    # conv_a[0]: 1x1 conv over concat([cov_xy, var_x]) channels (2C -> 32).
    w1c = jnp.broadcast_to(w1c_ref[...], (B, hid, C))
    w1v = jnp.broadcast_to(w1v_ref[...], (B, hid, C))
    h1 = (jnp.einsum('boi,bis->bos', w1c, cov,
                     preferred_element_type=jnp.float32) +
          jnp.einsum('boi,bis->bos', w1v, var,
                     preferred_element_type=jnp.float32))
    h1 = bn_relu(h1, g1_ref[...], b1_ref[...])       # (B, 32, HW)

    w2_b = jnp.broadcast_to(w2_ref[...], (B, hid, hid))
    h2 = jnp.einsum('boi,bis->bos', w2_b, h1,
                    preferred_element_type=jnp.float32)
    h2 = bn_relu(h2, g2_ref[...], b2_ref[...])

    w3_b = jnp.broadcast_to(w3_ref[...], (B, C, hid))
    a = jnp.einsum('boi,bis->bos', w3_b, h2,
                   preferred_element_type=jnp.float32)   # (B, C, HW)

    ab_ref[0] = a
    ab_ref[1] = mean_y - a * mean_x


# ----------------------------------------------------------------------------
# Stage 3: bilinear (align_corners=True) upsample of A and b + A*x_hr + b
# ----------------------------------------------------------------------------
def _up_kernel(ab_ref, x_ref, whm_ref, wwt_ref, o_ref):
    _, pb, h_lr, w_lr = ab_ref.shape                 # (2, PB, H, W)
    _, h_hr, w_hr = x_ref.shape                      # (PB, Hh, Wh)
    n = 2 * pb

    # A and b travel stacked so both interpolation matmuls are shared.
    ab = ab_ref[...].reshape(n, h_lr, w_lr)          # leading-dims merge (free)

    wwt_b = jnp.broadcast_to(wwt_ref[...], (n, w_lr, w_hr))
    t = jnp.einsum('phw,pwk->phk', ab, wwt_b,
                   preferred_element_type=jnp.float32)       # (n, H, Wh)
    whm_b = jnp.broadcast_to(whm_ref[...], (n, h_hr, h_lr))
    t = jnp.einsum('pih,phk->pik', whm_b, t,
                   preferred_element_type=jnp.float32)       # (n, Hh, Wh)

    # Fused final op: out = A_hr * x_hr + b_hr.
    o_ref[...] = t[:pb] * x_ref[...] + t[pb:]


# ----------------------------------------------------------------------------
# Glue
# ----------------------------------------------------------------------------
def _band_matrix(n, radius=1):
    i = jnp.arange(n)
    return (jnp.abs(i[:, None] - i[None, :]) <= radius).astype(jnp.float32)


def _interp_matrix(n_out, n_in):
    """Rows of 1-D bilinear interpolation weights, align_corners=True."""
    if n_in == 1:
        return jnp.ones((n_out, 1), jnp.float32)
    if n_out == 1:
        return jnp.zeros((1, n_in), jnp.float32).at[0, 0].set(1.0)
    idx = jnp.arange(n_out, dtype=jnp.float32)
    src = idx * (n_in - 1) / (n_out - 1)
    p0 = jnp.clip(jnp.floor(src), 0.0, n_in - 2.0)
    frac = src - p0
    cols = jnp.arange(n_in, dtype=jnp.float32)[None, :]
    return (jnp.where(cols == p0[:, None], 1.0 - frac[:, None], 0.0) +
            jnp.where(cols == p0[:, None] + 1.0, frac[:, None], 0.0))


def init_params(key, C):
    k1, k2, k3, k4, k5, k6, k7 = jax.random.split(key, 7)
    return dict(
        # 1x1-conv weights in [out, in] layout.
        w1=0.3 * jax.random.normal(k1, (HIDDEN, 2 * C), jnp.float32),
        g1=1.0 + 0.1 * jax.random.normal(k2, (1, HIDDEN, 1), jnp.float32),
        b1=0.1 * jax.random.normal(k3, (1, HIDDEN, 1), jnp.float32),
        w2=0.2 * jax.random.normal(k4, (HIDDEN, HIDDEN), jnp.float32),
        g2=1.0 + 0.1 * jax.random.normal(k5, (1, HIDDEN, 1), jnp.float32),
        b2=0.1 * jax.random.normal(k6, (1, HIDDEN, 1), jnp.float32),
        w3=0.2 * jax.random.normal(k7, (C, HIDDEN), jnp.float32),
    )


def conv_guided_filter(params, x_lr, y_lr, x_hr):
    B, C, H, W = x_lr.shape
    _, _, Hh, Wh = x_hr.shape
    P = B * C
    HW = H * W

    # Plane layout; all wrapper-side rearrangements below are free reshapes.
    x_pl = x_lr.astype(jnp.float32).reshape(P, H, W)
    y_pl = y_lr.astype(jnp.float32).reshape(P, H, W)
    x_hr_pl = x_hr.astype(jnp.float32).reshape(P, Hh, Wh)

    # Banded all-ones matrices implementing the zero-padded 3x3 box filter,
    # and the precomputed reciprocal of the normalizer N = box(ones).
    th = _band_matrix(H)
    tw = _band_matrix(W)
    inv_n = (1.0 / (jnp.sum(th, axis=1)[:, None] *
                    jnp.sum(tw, axis=0)[None, :]))[None]     # (1, H, W)

    vmem = pl.BlockSpec(memory_space=pltpu.MemorySpace.VMEM)

    # TODO(synk): for very large low-res inputs, tile stages 1/2 over rows with
    # a two-pass BatchNorm (sum/sumsq accumulation) and raise vmem_limit_bytes;
    # the single-invocation versions below target typical small low-res sizes.

    # --- stage 1: guided-filter statistics ----------------------------------
    stats = pl.pallas_call(
        _stats_kernel,
        out_shape=jax.ShapeDtypeStruct((4, P, H, W), jnp.float32),
        in_specs=[vmem] * 5,
        out_specs=vmem,
    )(x_pl, y_pl, tw, th, inv_n)

    # --- stage 2: 1x1-conv / BN / ReLU chain -> A, b -------------------------
    stats_f = stats.reshape(4, B, C, HW)            # free metadata reshape
    w1 = params["w1"]
    ab = pl.pallas_call(
        _conv_kernel,
        out_shape=jax.ShapeDtypeStruct((2, B, C, HW), jnp.float32),
        in_specs=[vmem] * 9,
        out_specs=vmem,
    )(stats_f, w1[:, :C], w1[:, C:],
      params["g1"], params["b1"], params["w2"],
      params["g2"], params["b2"], params["w3"])

    # --- stage 3: bilinear upsample + final fuse -----------------------------
    ab_pl = ab.reshape(2, P, H, W)                  # free metadata reshape
    wh_mat = _interp_matrix(Hh, H)                  # (Hh, H)
    ww_t = _interp_matrix(Wh, W).T                  # (W, Wh)

    PB = P if P <= 8 else next(d for d in (8, 4, 2, 1) if P % d == 0)
    out = pl.pallas_call(
        _up_kernel,
        grid=(P // PB,),
        out_shape=jax.ShapeDtypeStruct((P, Hh, Wh), jnp.float32),
        in_specs=[
            pl.BlockSpec((2, PB, H, W), lambda i: (0, i, 0, 0)),
            pl.BlockSpec((PB, Hh, Wh), lambda i: (i, 0, 0)),
            pl.BlockSpec((Hh, H), lambda i: (0, 0)),
            pl.BlockSpec((W, Wh), lambda i: (0, 0)),
        ],
        out_specs=pl.BlockSpec((PB, Hh, Wh), lambda i: (i, 0, 0)),
        compiler_params=pltpu.CompilerParams(
            dimension_semantics=("parallel",)),
    )(ab_pl, x_hr_pl, wh_mat, ww_t)

    return out.reshape(B, C, Hh, Wh)                # NCHW, same as PyTorch


if __name__ == "__main__":
    key = jax.random.PRNGKey(0)
    kx, ky, kh, kp = jax.random.split(key, 4)

    B, C = 2, 3                 # module default chans=3
    H, W = 16, 16               # low-res spatial
    Hh, Wh = 32, 32             # high-res spatial

    x_lr = jax.random.uniform(kx, (B, C, H, W), jnp.float32)
    y_lr = jax.random.uniform(ky, (B, C, H, W), jnp.float32)
    x_hr = jax.random.uniform(kh, (B, C, Hh, Wh), jnp.float32)
    params = init_params(kp, C)

    fwd = jax.jit(functools.partial(conv_guided_filter, params))
    out = jax.block_until_ready(fwd(x_lr, y_lr, x_hr))

    assert out.shape == (B, C, Hh, Wh), out.shape
    assert bool(jnp.all(jnp.isfinite(out)))
    print("KERNEL_OK")
</pallas_src>

<mosaic_0001>
module attributes {stable_mosaic.version = 11 : i64} {
  func.func @_stats_kernel(%arg0: memref<6x16x16xf32, #tpu.memory_space<vmem>>, %arg1: memref<6x16x16xf32, #tpu.memory_space<vmem>>, %arg2: memref<16x16xf32, #tpu.memory_space<vmem>>, %arg3: memref<16x16xf32, #tpu.memory_space<vmem>>, %arg4: memref<1x16x16xf32, #tpu.memory_space<vmem>>, %arg5: memref<4x6x16x16xf32, #tpu.memory_space<vmem>>) attributes {dimension_semantics = [], scalar_prefetch = 0 : i64, scratch_operands = 0 : i64, tpu.core_type = #tpu.core_type<tc>} {
    %c0 = arith.constant 0 : index
    %c0_0 = arith.constant 0 : index
    %c0_1 = arith.constant 0 : index
    %0 = vector.load %arg0[%c0, %c0_0, %c0_1] : memref<6x16x16xf32, #tpu.memory_space<vmem>>, vector<6x16x16xf32>
    %c0_2 = arith.constant 0 : index
    %c0_3 = arith.constant 0 : index
    %c0_4 = arith.constant 0 : index
    %1 = vector.load %arg1[%c0_2, %c0_3, %c0_4] : memref<6x16x16xf32, #tpu.memory_space<vmem>>, vector<6x16x16xf32>
    %c0_5 = arith.constant 0 : index
    %c0_6 = arith.constant 0 : index
    %2 = vector.load %arg2[%c0_5, %c0_6] : memref<16x16xf32, #tpu.memory_space<vmem>>, vector<16x16xf32>
    %3 = vector.shape_cast %2 : vector<16x16xf32> to vector<1x16x16xf32>
    %4 = vector.broadcast %3 : vector<1x16x16xf32> to vector<6x16x16xf32>
    %c0_7 = arith.constant 0 : index
    %c0_8 = arith.constant 0 : index
    %5 = vector.load %arg3[%c0_7, %c0_8] : memref<16x16xf32, #tpu.memory_space<vmem>>, vector<16x16xf32>
    %6 = vector.shape_cast %5 : vector<16x16xf32> to vector<1x16x16xf32>
    %7 = vector.broadcast %6 : vector<1x16x16xf32> to vector<6x16x16xf32>
    %c0_9 = arith.constant 0 : index
    %c0_10 = arith.constant 0 : index
    %c0_11 = arith.constant 0 : index
    %8 = vector.load %arg4[%c0_9, %c0_10, %c0_11] : memref<1x16x16xf32, #tpu.memory_space<vmem>>, vector<1x16x16xf32>
    "tpu.trace_start"() <{level = 10 : i32, message = "phw,pwk->phk"}> : () -> ()
    %cst = arith.constant dense<0.000000e+00> : vector<6x16x16xf32>
    %9 = tpu.matmul %0, %4, %cst {dimension_numbers = #tpu.dot_dimension_numbers<[2], [1], [1], [2], [0, 0, 0, 1, 1, 2], [0], [0]>} : vector<6x16x16xf32>, vector<6x16x16xf32>, vector<6x16x16xf32> -> vector<6x16x16xf32>
    "tpu.trace_stop"() : () -> ()
    "tpu.trace_start"() <{level = 10 : i32, message = "phk,pkw->phw"}> : () -> ()
    %cst_12 = arith.constant dense<0.000000e+00> : vector<6x16x16xf32>
    %10 = tpu.matmul %7, %9, %cst_12 {dimension_numbers = #tpu.dot_dimension_numbers<[2], [1], [1], [2], [0, 0, 0, 1, 1, 2], [0], [0]>} : vector<6x16x16xf32>, vector<6x16x16xf32>, vector<6x16x16xf32> -> vector<6x16x16xf32>
    "tpu.trace_stop"() : () -> ()
    %11 = vector.broadcast %8 : vector<1x16x16xf32> to vector<6x16x16xf32>
    %12 = arith.mulf %10, %11 : vector<6x16x16xf32>
    "tpu.trace_start"() <{level = 10 : i32, message = "phw,pwk->phk"}> : () -> ()
    %cst_13 = arith.constant dense<0.000000e+00> : vector<6x16x16xf32>
    %13 = tpu.matmul %1, %4, %cst_13 {dimension_numbers = #tpu.dot_dimension_numbers<[2], [1], [1], [2], [0, 0, 0, 1, 1, 2], [0], [0]>} : vector<6x16x16xf32>, vector<6x16x16xf32>, vector<6x16x16xf32> -> vector<6x16x16xf32>
    "tpu.trace_stop"() : () -> ()
    "tpu.trace_start"() <{level = 10 : i32, message = "phk,pkw->phw"}> : () -> ()
    %cst_14 = arith.constant dense<0.000000e+00> : vector<6x16x16xf32>
    %14 = tpu.matmul %7, %13, %cst_14 {dimension_numbers = #tpu.dot_dimension_numbers<[2], [1], [1], [2], [0, 0, 0, 1, 1, 2], [0], [0]>} : vector<6x16x16xf32>, vector<6x16x16xf32>, vector<6x16x16xf32> -> vector<6x16x16xf32>
    "tpu.trace_stop"() : () -> ()
    %15 = vector.broadcast %8 : vector<1x16x16xf32> to vector<6x16x16xf32>
    %16 = arith.mulf %14, %15 : vector<6x16x16xf32>
    %17 = arith.mulf %0, %1 : vector<6x16x16xf32>
    "tpu.trace_start"() <{level = 10 : i32, message = "phw,pwk->phk"}> : () -> ()
    %cst_15 = arith.constant dense<0.000000e+00> : vector<6x16x16xf32>
    %18 = tpu.matmul %17, %4, %cst_15 {dimension_numbers = #tpu.dot_dimension_numbers<[2], [1], [1], [2], [0, 0, 0, 1, 1, 2], [0], [0]>} : vector<6x16x16xf32>, vector<6x16x16xf32>, vector<6x16x16xf32> -> vector<6x16x16xf32>
    "tpu.trace_stop"() : () -> ()
    "tpu.trace_start"() <{level = 10 : i32, message = "phk,pkw->phw"}> : () -> ()
    %cst_16 = arith.constant dense<0.000000e+00> : vector<6x16x16xf32>
    %19 = tpu.matmul %7, %18, %cst_16 {dimension_numbers = #tpu.dot_dimension_numbers<[2], [1], [1], [2], [0, 0, 0, 1, 1, 2], [0], [0]>} : vector<6x16x16xf32>, vector<6x16x16xf32>, vector<6x16x16xf32> -> vector<6x16x16xf32>
    "tpu.trace_stop"() : () -> ()
    %20 = vector.broadcast %8 : vector<1x16x16xf32> to vector<6x16x16xf32>
    %21 = arith.mulf %19, %20 : vector<6x16x16xf32>
    %22 = arith.mulf %12, %16 : vector<6x16x16xf32>
    %23 = arith.subf %21, %22 : vector<6x16x16xf32>
    %24 = arith.mulf %0, %0 : vector<6x16x16xf32>
    "tpu.trace_start"() <{level = 10 : i32, message = "phw,pwk->phk"}> : () -> ()
    %cst_17 = arith.constant dense<0.000000e+00> : vector<6x16x16xf32>
    %25 = tpu.matmul %24, %4, %cst_17 {dimension_numbers = #tpu.dot_dimension_numbers<[2], [1], [1], [2], [0, 0, 0, 1, 1, 2], [0], [0]>} : vector<6x16x16xf32>, vector<6x16x16xf32>, vector<6x16x16xf32> -> vector<6x16x16xf32>
    "tpu.trace_stop"() : () -> ()
    "tpu.trace_start"() <{level = 10 : i32, message = "phk,pkw->phw"}> : () -> ()
    %cst_18 = arith.constant dense<0.000000e+00> : vector<6x16x16xf32>
    %26 = tpu.matmul %7, %25, %cst_18 {dimension_numbers = #tpu.dot_dimension_numbers<[2], [1], [1], [2], [0, 0, 0, 1, 1, 2], [0], [0]>} : vector<6x16x16xf32>, vector<6x16x16xf32>, vector<6x16x16xf32> -> vector<6x16x16xf32>
    "tpu.trace_stop"() : () -> ()
    %27 = vector.broadcast %8 : vector<1x16x16xf32> to vector<6x16x16xf32>
    %28 = arith.mulf %26, %27 : vector<6x16x16xf32>
    %29 = arith.mulf %12, %12 : vector<6x16x16xf32>
    %30 = arith.subf %28, %29 : vector<6x16x16xf32>
    %c0_19 = arith.constant 0 : index
    %c0_20 = arith.constant 0 : index
    %c0_21 = arith.constant 0 : index
    %c0_22 = arith.constant 0 : index
    %31 = vector.load %arg5[%c0_19, %c0_20, %c0_21, %c0_22] : memref<4x6x16x16xf32, #tpu.memory_space<vmem>>, vector<1x6x16x16xf32>
    %32 = vector.shape_cast %31 : vector<1x6x16x16xf32> to vector<6x16x16xf32>
    %33 = vector.shape_cast %12 : vector<6x16x16xf32> to vector<1x6x16x16xf32>
    tpu.vector_store %arg5[%c0_19, %c0_20, %c0_21, %c0_22], %33 {strides = array<i32>} : memref<4x6x16x16xf32, #tpu.memory_space<vmem>>, vector<1x6x16x16xf32>,
    %c1 = arith.constant 1 : index
    %c0_23 = arith.constant 0 : index
    %c0_24 = arith.constant 0 : index
    %c0_25 = arith.constant 0 : index
    %34 = vector.load %arg5[%c1, %c0_23, %c0_24, %c0_25] : memref<4x6x16x16xf32, #tpu.memory_space<vmem>>, vector<1x6x16x16xf32>
    %35 = vector.shape_cast %34 : vector<1x6x16x16xf32> to vector<6x16x16xf32>
    %36 = vector.shape_cast %16 : vector<6x16x16xf32> to vector<1x6x16x16xf32>
    tpu.vector_store %arg5[%c1, %c0_23, %c0_24, %c0_25], %36 {strides = array<i32>} : memref<4x6x16x16xf32, #tpu.memory_space<vmem>>, vector<1x6x16x16xf32>,
    %c2 = arith.constant 2 : index
    %c0_26 = arith.constant 0 : index
    %c0_27 = arith.constant 0 : index
    %c0_28 = arith.constant 0 : index
    %37 = vector.load %arg5[%c2, %c0_26, %c0_27, %c0_28] : memref<4x6x16x16xf32, #tpu.memory_space<vmem>>, vector<1x6x16x16xf32>
    %38 = vector.shape_cast %37 : vector<1x6x16x16xf32> to vector<6x16x16xf32>
    %39 = vector.shape_cast %23 : vector<6x16x16xf32> to vector<1x6x16x16xf32>
    tpu.vector_store %arg5[%c2, %c0_26, %c0_27, %c0_28], %39 {strides = array<i32>} : memref<4x6x16x16xf32, #tpu.memory_space<vmem>>, vector<1x6x16x16xf32>,
    %c3 = arith.constant 3 : index
    %c0_29 = arith.constant 0 : index
    %c0_30 = arith.constant 0 : index
    %c0_31 = arith.constant 0 : index
    %40 = vector.load %arg5[%c3, %c0_29, %c0_30, %c0_31] : memref<4x6x16x16xf32, #tpu.memory_space<vmem>>, vector<1x6x16x16xf32>
    %41 = vector.shape_cast %40 : vector<1x6x16x16xf32> to vector<6x16x16xf32>
    %42 = vector.shape_cast %30 : vector<6x16x16xf32> to vector<1x6x16x16xf32>
    tpu.vector_store %arg5[%c3, %c0_29, %c0_30, %c0_31], %42 {strides = array<i32>} : memref<4x6x16x16xf32, #tpu.memory_space<vmem>>, vector<1x6x16x16xf32>,
    return
  }
}

module attributes {stable_mosaic.version = 11 : i64} {
  func.func @_conv_kernel(%arg0: memref<4x2x3x256xf32, #tpu.memory_space<vmem>>, %arg1: memref<32x3xf32, #tpu.memory_space<vmem>>, %arg2: memref<32x3xf32, #tpu.memory_space<vmem>>, %arg3: memref<1x32x1xf32, #tpu.memory_space<vmem>>, %arg4: memref<1x32x1xf32, #tpu.memory_space<vmem>>, %arg5: memref<32x32xf32, #tpu.memory_space<vmem>>, %arg6: memref<1x32x1xf32, #tpu.memory_space<vmem>>, %arg7: memref<1x32x1xf32, #tpu.memory_space<vmem>>, %arg8: memref<3x32xf32, #tpu.memory_space<vmem>>, %arg9: memref<2x2x3x256xf32, #tpu.memory_space<vmem>>) attributes {dimension_semantics = [], scalar_prefetch = 0 : i64, scratch_operands = 0 : i64, tpu.core_type = #tpu.core_type<tc>} {
    %c0 = arith.constant 0 : index
    %c0_0 = arith.constant 0 : index
    %c0_1 = arith.constant 0 : index
    %c0_2 = arith.constant 0 : index
    %0 = vector.load %arg0[%c0, %c0_0, %c0_1, %c0_2] : memref<4x2x3x256xf32, #tpu.memory_space<vmem>>, vector<1x2x3x256xf32>
    %1 = vector.shape_cast %0 : vector<1x2x3x256xf32> to vector<2x3x256xf32>
    %c1 = arith.constant 1 : index
    %c0_3 = arith.constant 0 : index
    %c0_4 = arith.constant 0 : index
    %c0_5 = arith.constant 0 : index
    %2 = vector.load %arg0[%c1, %c0_3, %c0_4, %c0_5] : memref<4x2x3x256xf32, #tpu.memory_space<vmem>>, vector<1x2x3x256xf32>
    %3 = vector.shape_cast %2 : vector<1x2x3x256xf32> to vector<2x3x256xf32>
    %c2 = arith.constant 2 : index
    %c0_6 = arith.constant 0 : index
    %c0_7 = arith.constant 0 : index
    %c0_8 = arith.constant 0 : index
    %4 = vector.load %arg0[%c2, %c0_6, %c0_7, %c0_8] : memref<4x2x3x256xf32, #tpu.memory_space<vmem>>, vector<1x2x3x256xf32>
    %5 = vector.shape_cast %4 : vector<1x2x3x256xf32> to vector<2x3x256xf32>
    %c3 = arith.constant 3 : index
    %c0_9 = arith.constant 0 : index
    %c0_10 = arith.constant 0 : index
    %c0_11 = arith.constant 0 : index
    %6 = vector.load %arg0[%c3, %c0_9, %c0_10, %c0_11] : memref<4x2x3x256xf32, #tpu.memory_space<vmem>>, vector<1x2x3x256xf32>
    %7 = vector.shape_cast %6 : vector<1x2x3x256xf32> to vector<2x3x256xf32>
    %c0_12 = arith.constant 0 : index
    %c0_13 = arith.constant 0 : index
    %8 = vector.load %arg1[%c0_12, %c0_13] : memref<32x3xf32, #tpu.memory_space<vmem>>, vector<32x3xf32>
    %9 = vector.shape_cast %8 : vector<32x3xf32> to vector<1x32x3xf32>
    %10 = vector.broadcast %9 : vector<1x32x3xf32> to vector<2x32x3xf32>
    %c0_14 = arith.constant 0 : index
    %c0_15 = arith.constant 0 : index
    %11 = vector.load %arg2[%c0_14, %c0_15] : memref<32x3xf32, #tpu.memory_space<vmem>>, vector<32x3xf32>
    %12 = vector.shape_cast %11 : vector<32x3xf32> to vector<1x32x3xf32>
    %13 = vector.broadcast %12 : vector<1x32x3xf32> to vector<2x32x3xf32>
    "tpu.trace_start"() <{level = 10 : i32, message = "boi,bis->bos"}> : () -> ()
    %cst = arith.constant dense<0.000000e+00> : vector<2x32x256xf32>
    %14 = tpu.matmul %10, %5, %cst {dimension_numbers = #tpu.dot_dimension_numbers<[2], [1], [1], [2], [0, 0, 0, 1, 1, 2], [0], [0]>} : vector<2x32x3xf32>, vector<2x3x256xf32>, vector<2x32x256xf32> -> vector<2x32x256xf32>
    %cst_16 = arith.constant dense<0.000000e+00> : vector<2x32x256xf32>
    %15 = tpu.matmul %13, %7, %cst_16 {dimension_numbers = #tpu.dot_dimension_numbers<[2], [1], [1], [2], [0, 0, 0, 1, 1, 2], [0], [0]>} : vector<2x32x3xf32>, vector<2x3x256xf32>, vector<2x32x256xf32> -> vector<2x32x256xf32>
    "tpu.trace_stop"() : () -> ()
    %16 = arith.addf %14, %15 : vector<2x32x256xf32>
    %c0_17 = arith.constant 0 : index
    %c0_18 = arith.constant 0 : index
    %c0_19 = arith.constant 0 : index
    %17 = vector.load %arg3[%c0_17, %c0_18, %c0_19] : memref<1x32x1xf32, #tpu.memory_space<vmem>>, vector<1x32x1xf32>
    %c0_20 = arith.constant 0 : index
    %c0_21 = arith.constant 0 : index
    %c0_22 = arith.constant 0 : index
    %18 = vector.load %arg4[%c0_20, %c0_21, %c0_22] : memref<1x32x1xf32, #tpu.memory_space<vmem>>, vector<1x32x1xf32>
    %cst_23 = arith.constant dense<0.000000e+00> : vector<2x32xf32>
    %19 = vector.multi_reduction <add>, %16, %cst_23 [2] : vector<2x32x256xf32> to vector<2x32xf32>
    %20 = vector.shape_cast %19 : vector<2x32xf32> to vector<2x32x1xf32>
    %cst_24 = arith.constant dense<0.000000e+00> : vector<32x1xf32>
    %21 = vector.multi_reduction <add>, %20, %cst_24 [0] : vector<2x32x1xf32> to vector<32x1xf32>
    %22 = vector.shape_cast %21 : vector<32x1xf32> to vector<1x32x1xf32>
    %23 = arith.mulf %16, %16 : vector<2x32x256xf32>
    %cst_25 = arith.constant dense<0.000000e+00> : vector<2x32xf32>
    %24 = vector.multi_reduction <add>, %23, %cst_25 [2] : vector<2x32x256xf32> to vector<2x32xf32>
    %25 = vector.shape_cast %24 : vector<2x32xf32> to vector<2x32x1xf32>
    %cst_26 = arith.constant dense<0.000000e+00> : vector<32x1xf32>
    %26 = vector.multi_reduction <add>, %25, %cst_26 [0] : vector<2x32x1xf32> to vector<32x1xf32>
    %27 = vector.shape_cast %26 : vector<32x1xf32> to vector<1x32x1xf32>
    %cst_27 = arith.constant 0.001953125 : f32
    %28 = vector.broadcast %cst_27 : f32 to vector<1x32x1xf32>
    %29 = arith.mulf %22, %28 : vector<1x32x1xf32>
    %cst_28 = arith.constant 0.001953125 : f32
    %30 = vector.broadcast %cst_28 : f32 to vector<1x32x1xf32>
    %31 = arith.mulf %27, %30 : vector<1x32x1xf32>
    %32 = arith.mulf %29, %29 : vector<1x32x1xf32>
    %33 = arith.subf %31, %32 : vector<1x32x1xf32>
    %34 = vector.broadcast %29 : vector<1x32x1xf32> to vector<2x32x256xf32>
    %35 = arith.subf %16, %34 : vector<2x32x256xf32>
    %cst_29 = arith.constant 9.99999974E-6 : f32
    %36 = vector.broadcast %cst_29 : f32 to vector<1x32x1xf32>
    %37 = arith.addf %33, %36 : vector<1x32x1xf32>
    %38 = math.rsqrt %37 : vector<1x32x1xf32>
    %39 = vector.broadcast %38 : vector<1x32x1xf32> to vector<2x32x256xf32>
    %40 = arith.mulf %35, %39 : vector<2x32x256xf32>
    %41 = vector.broadcast %17 : vector<1x32x1xf32> to vector<2x32x256xf32>
    %42 = arith.mulf %40, %41 : vector<2x32x256xf32>
    %43 = vector.broadcast %18 : vector<1x32x1xf32> to vector<2x32x256xf32>
    %44 = arith.addf %42, %43 : vector<2x32x256xf32>
    %cst_30 = arith.constant 0.000000e+00 : f32
    %45 = vector.broadcast %cst_30 : f32 to vector<2x32x256xf32>
    %46 = arith.maximumf %44, %45 : vector<2x32x256xf32>
    %c0_31 = arith.constant 0 : index
    %c0_32 = arith.constant 0 : index
    %47 = vector.load %arg5[%c0_31, %c0_32] : memref<32x32xf32, #tpu.memory_space<vmem>>, vector<32x32xf32>
    %48 = vector.shape_cast %47 : vector<32x32xf32> to vector<1x32x32xf32>
    %49 = vector.broadcast %48 : vector<1x32x32xf32> to vector<2x32x32xf32>
    "tpu.trace_start"() <{level = 10 : i32, message = "boi,bis->bos"}> : () -> ()
    %cst_33 = arith.constant dense<0.000000e+00> : vector<2x32x256xf32>
    %50 = tpu.matmul %49, %46, %cst_33 {dimension_numbers = #tpu.dot_dimension_numbers<[2], [1], [1], [2], [0, 0, 0, 1, 1, 2], [0], [0]>} : vector<2x32x32xf32>, vector<2x32x256xf32>, vector<2x32x256xf32> -> vector<2x32x256xf32>
    "tpu.trace_stop"() : () -> ()
    %c0_34 = arith.constant 0 : index
    %c0_35 = arith.constant 0 : index
    %c0_36 = arith.constant 0 : index
    %51 = vector.load %arg6[%c0_34, %c0_35, %c0_36] : memref<1x32x1xf32, #tpu.memory_space<vmem>>, vector<1x32x1xf32>
    %c0_37 = arith.constant 0 : index
    %c0_38 = arith.constant 0 : index
    %c0_39 = arith.constant 0 : index
    %52 = vector.load %arg7[%c0_37, %c0_38, %c0_39] : memref<1x32x1xf32, #tpu.memory_space<vmem>>, vector<1x32x1xf32>
    %cst_40 = arith.constant dense<0.000000e+00> : vector<2x32xf32>
    %53 = vector.multi_reduction <add>, %50, %cst_40 [2] : vector<2x32x256xf32> to vector<2x32xf32>
    %54 = vector.shape_cast %53 : vector<2x32xf32> to vector<2x32x1xf32>
    %cst_41 = arith.constant dense<0.000000e+00> : vector<32x1xf32>
    %55 = vector.multi_reduction <add>, %54, %cst_41 [0] : vector<2x32x1xf32> to vector<32x1xf32>
    %56 = vector.shape_cast %55 : vector<32x1xf32> to vector<1x32x1xf32>
    %57 = arith.mulf %50, %50 : vector<2x32x256xf32>
    %cst_42 = arith.constant dense<0.000000e+00> : vector<2x32xf32>
    %58 = vector.multi_reduction <add>, %57, %cst_42 [2] : vector<2x32x256xf32> to vector<2x32xf32>
    %59 = vector.shape_cast %58 : vector<2x32xf32> to vector<2x32x1xf32>
    %cst_43 = arith.constant dense<0.000000e+00> : vector<32x1xf32>
    %60 = vector.multi_reduction <add>, %59, %cst_43 [0] : vector<2x32x1xf32> to vector<32x1xf32>
    %61 = vector.shape_cast %60 : vector<32x1xf32> to vector<1x32x1xf32>
    %cst_44 = arith.constant 0.001953125 : f32
    %62 = vector.broadcast %cst_44 : f32 to vector<1x32x1xf32>
    %63 = arith.mulf %56, %62 : vector<1x32x1xf32>
    %cst_45 = arith.constant 0.001953125 : f32
    %64 = vector.broadcast %cst_45 : f32 to vector<1x32x1xf32>
    %65 = arith.mulf %61, %64 : vector<1x32x1xf32>
    %66 = arith.mulf %63, %63 : vector<1x32x1xf32>
    %67 = arith.subf %65, %66 : vector<1x32x1xf32>
    %68 = vector.broadcast %63 : vector<1x32x1xf32> to vector<2x32x256xf32>
    %69 = arith.subf %50, %68 : vector<2x32x256xf32>
    %cst_46 = arith.constant 9.99999974E-6 : f32
    %70 = vector.broadcast %cst_46 : f32 to vector<1x32x1xf32>
    %71 = arith.addf %67, %70 : vector<1x32x1xf32>
    %72 = math.rsqrt %71 : vector<1x32x1xf32>
    %73 = vector.broadcast %72 : vector<1x32x1xf32> to vector<2x32x256xf32>
    %74 = arith.mulf %69, %73 : vector<2x32x256xf32>
    %75 = vector.broadcast %51 : vector<1x32x1xf32> to vector<2x32x256xf32>
    %76 = arith.mulf %74, %75 : vector<2x32x256xf32>
    %77 = vector.broadcast %52 : vector<1x32x1xf32> to vector<2x32x256xf32>
    %78 = arith.addf %76, %77 : vector<2x32x256xf32>
    %cst_47 = arith.constant 0.000000e+00 : f32
    %79 = vector.broadcast %cst_47 : f32 to vector<2x32x256xf32>
    %80 = arith.maximumf %78, %79 : vector<2x32x256xf32>
    %c0_48 = arith.constant 0 : index
    %c0_49 = arith.constant 0 : index
    %81 = vector.load %arg8[%c0_48, %c0_49] : memref<3x32xf32, #tpu.memory_space<vmem>>, vector<3x32xf32>
    %82 = vector.shape_cast %81 : vector<3x32xf32> to vector<1x3x32xf32>
    %83 = vector.broadcast %82 : vector<1x3x32xf32> to vector<2x3x32xf32>
    "tpu.trace_start"() <{level = 10 : i32, message = "boi,bis->bos"}> : () -> ()
    %cst_50 = arith.constant dense<0.000000e+00> : vector<2x3x256xf32>
    %84 = tpu.matmul %83, %80, %cst_50 {dimension_numbers = #tpu.dot_dimension_numbers<[2], [1], [1], [2], [0, 0, 0, 1, 1, 2], [0], [0]>} : vector<2x3x32xf32>, vector<2x32x256xf32>, vector<2x3x256xf32> -> vector<2x3x256xf32>
    "tpu.trace_stop"() : () -> ()
    %c0_51 = arith.constant 0 : index
    %c0_52 = arith.constant 0 : index
    %c0_53 = arith.constant 0 : index
    %c0_54 = arith.constant 0 : index
    %85 = vector.load %arg9[%c0_51, %c0_52, %c0_53, %c0_54] : memref<2x2x3x256xf32, #tpu.memory_space<vmem>>, vector<1x2x3x256xf32>
    %86 = vector.shape_cast %85 : vector<1x2x3x256xf32> to vector<2x3x256xf32>
    %87 = vector.shape_cast %84 : vector<2x3x256xf32> to vector<1x2x3x256xf32>
    tpu.vector_store %arg9[%c0_51, %c0_52, %c0_53, %c0_54], %87 {strides = array<i32>} : memref<2x2x3x256xf32, #tpu.memory_space<vmem>>, vector<1x2x3x256xf32>,
    %88 = arith.mulf %84, %1 : vector<2x3x256xf32>
    %89 = arith.subf %3, %88 : vector<2x3x256xf32>
    %c1_55 = arith.constant 1 : index
    %c0_56 = arith.constant 0 : index
    %c0_57 = arith.constant 0 : index
    %c0_58 = arith.constant 0 : index
    %90 = vector.load %arg9[%c1_55, %c0_56, %c0_57, %c0_58] : memref<2x2x3x256xf32, #tpu.memory_space<vmem>>, vector<1x2x3x256xf32>
    %91 = vector.shape_cast %90 : vector<1x2x3x256xf32> to vector<2x3x256xf32>
    %92 = vector.shape_cast %89 : vector<2x3x256xf32> to vector<1x2x3x256xf32>
    tpu.vector_store %arg9[%c1_55, %c0_56, %c0_57, %c0_58], %92 {strides = array<i32>} : memref<2x2x3x256xf32, #tpu.memory_space<vmem>>, vector<1x2x3x256xf32>,
    return
  }
}

module attributes {stable_mosaic.version = 11 : i64} {
  func.func @_up_kernel(%arg0: i32, %arg1: memref<2x6x16x16xf32, #tpu.memory_space<vmem>>, %arg2: memref<6x32x32xf32, #tpu.memory_space<vmem>>, %arg3: memref<32x16xf32, #tpu.memory_space<vmem>>, %arg4: memref<16x32xf32, #tpu.memory_space<vmem>>, %arg5: memref<6x32x32xf32, #tpu.memory_space<vmem>>) attributes {dimension_semantics = [#tpu.dimension_semantics<parallel>], iteration_bounds = array<i64: 1>, scalar_prefetch = 0 : i64, scratch_operands = 0 : i64, tpu.core_type = #tpu.core_type<tc>, window_params = [{transform_indices = @transform_0, window_bounds = array<i64: 2, 6, 16, 16>}, {transform_indices = @transform_1, window_bounds = array<i64: 6, 32, 32>}, {pipeline_mode = #tpu.pipeline_mode<synchronous>, transform_indices = @transform_2, window_bounds = array<i64: 32, 16>}, {pipeline_mode = #tpu.pipeline_mode<synchronous>, transform_indices = @transform_3, window_bounds = array<i64: 16, 32>}, {transform_indices = @transform_4, window_bounds = array<i64: 6, 32, 32>}]} {
    %c0 = arith.constant 0 : index
    %c0_0 = arith.constant 0 : index
    %c0_1 = arith.constant 0 : index
    %c0_2 = arith.constant 0 : index
    %0 = vector.load %arg1[%c0, %c0_0, %c0_1, %c0_2] : memref<2x6x16x16xf32, #tpu.memory_space<vmem>>, vector<2x6x16x16xf32>
    %1 = vector.shape_cast %0 : vector<2x6x16x16xf32> to vector<12x16x16xf32>
    %c0_3 = arith.constant 0 : index
    %c0_4 = arith.constant 0 : index
    %2 = vector.load %arg4[%c0_3, %c0_4] : memref<16x32xf32, #tpu.memory_space<vmem>>, vector<16x32xf32>
    %3 = vector.shape_cast %2 : vector<16x32xf32> to vector<1x16x32xf32>
    %4 = vector.broadcast %3 : vector<1x16x32xf32> to vector<12x16x32xf32>
    "tpu.trace_start"() <{level = 10 : i32, message = "phw,pwk->phk"}> : () -> ()
    %cst = arith.constant dense<0.000000e+00> : vector<12x16x32xf32>
    %5 = tpu.matmul %1, %4, %cst {dimension_numbers = #tpu.dot_dimension_numbers<[2], [1], [1], [2], [0, 0, 0, 1, 1, 2], [0], [0]>} : vector<12x16x16xf32>, vector<12x16x32xf32>, vector<12x16x32xf32> -> vector<12x16x32xf32>
    "tpu.trace_stop"() : () -> ()
    %c0_5 = arith.constant 0 : index
    %c0_6 = arith.constant 0 : index
    %6 = vector.load %arg3[%c0_5, %c0_6] : memref<32x16xf32, #tpu.memory_space<vmem>>, vector<32x16xf32>
    %7 = vector.shape_cast %6 : vector<32x16xf32> to vector<1x32x16xf32>
    %8 = vector.broadcast %7 : vector<1x32x16xf32> to vector<12x32x16xf32>
    "tpu.trace_start"() <{level = 10 : i32, message = "pih,phk->pik"}> : () -> ()
    %cst_7 = arith.constant dense<0.000000e+00> : vector<12x32x32xf32>
    %9 = tpu.matmul %8, %5, %cst_7 {dimension_numbers = #tpu.dot_dimension_numbers<[2], [1], [1], [2], [0, 0, 0, 1, 1, 2], [0], [0]>} : vector<12x32x16xf32>, vector<12x16x32xf32>, vector<12x32x32xf32> -> vector<12x32x32xf32>
    "tpu.trace_stop"() : () -> ()
    %10 = vector.extract_strided_slice %9 {offsets = [0, 0, 0], sizes = [6, 32, 32], strides = [1, 1, 1]} : vector<12x32x32xf32> to vector<6x32x32xf32>
    %c0_8 = arith.constant 0 : index
    %c0_9 = arith.constant 0 : index
    %c0_10 = arith.constant 0 : index
    %11 = vector.load %arg2[%c0_8, %c0_9, %c0_10] : memref<6x32x32xf32, #tpu.memory_space<vmem>>, vector<6x32x32xf32>
    %12 = arith.mulf %10, %11 : vector<6x32x32xf32>
    %13 = vector.extract_strided_slice %9 {offsets = [6, 0, 0], sizes = [6, 32, 32], strides = [1, 1, 1]} : vector<12x32x32xf32> to vector<6x32x32xf32>
    %14 = arith.addf %12, %13 : vector<6x32x32xf32>
    %c0_11 = arith.constant 0 : index
    %c0_12 = arith.constant 0 : index
    %c0_13 = arith.constant 0 : index
    %15 = vector.load %arg5[%c0_11, %c0_12, %c0_13] : memref<6x32x32xf32, #tpu.memory_space<vmem>>, vector<6x32x32xf32>
    tpu.vector_store %arg5[%c0_11, %c0_12, %c0_13], %14 {strides = array<i32>} : memref<6x32x32xf32, #tpu.memory_space<vmem>>, vector<6x32x32xf32>,
    return
  }
  func.func @transform_0(%arg0: i32) -> (i32, i32, i32, i32) {
    %c0_i32 = arith.constant 0 : i32
    %c0_i32_0 = arith.constant 0 : i32
    %c0_i32_1 = arith.constant 0 : i32
    %c0_i32_2 = arith.constant 0 : i32
    return %c0_i32, %arg0, %c0_i32_0, %c0_i32_1 : i32, i32, i32, i32
  }
  func.func @transform_1(%arg0: i32) -> (i32, i32, i32) {
    %c0_i32 = arith.constant 0 : i32
    %c0_i32_0 = arith.constant 0 : i32
    %c0_i32_1 = arith.constant 0 : i32
    return %arg0, %c0_i32, %c0_i32_0 : i32, i32, i32
  }
  func.func @transform_2(%arg0: i32) -> (i32, i32) {
    %c0_i32 = arith.constant 0 : i32
    %c0_i32_0 = arith.constant 0 : i32
    %c0_i32_1 = arith.constant 0 : i32
    return %c0_i32, %c0_i32_0 : i32, i32
  }
  func.func @transform_3(%arg0: i32) -> (i32, i32) {
    %c0_i32 = arith.constant 0 : i32
    %c0_i32_0 = arith.constant 0 : i32
    %c0_i32_1 = arith.constant 0 : i32
    return %c0_i32, %c0_i32_0 : i32, i32
  }
  func.func @transform_4(%arg0: i32) -> (i32, i32, i32) {
    %c0_i32 = arith.constant 0 : i32
    %c0_i32_0 = arith.constant 0 : i32
    %c0_i32_1 = arith.constant 0 : i32
    return %arg0, %c0_i32, %c0_i32_0 : i32, i32, i32
  }
}

</mosaic_0001>

<llo_original>
// kernel: conv_guided_filter.4
$region0: #{conv_guided_filter.4}
  #allocation0 [shape = 'u32[]', space=smem, size = 0x4, offset = 0x4, fixed_abs, tag = 'smem constant byte address 0x4 - core index']
  #allocation1 [shape = 'u32[144,128]{1,0:T(1,128)}', space=vmem, size = 0x12000, scoped, tag = 'internal scratch']
  %s0 = inlined_call_operand.vmem [shape: f32[4,2,3,256], index: 0, kind: input, shape index: {}]
  %s1 = inlined_call_operand.vmem [shape: f32[32,3], index: 1, kind: input, shape index: {}]
  %s2 = inlined_call_operand.vmem [shape: f32[32,3], index: 2, kind: input, shape index: {}]
  %s3 = inlined_call_operand.vmem [shape: f32[1,32,1], index: 3, kind: input, shape index: {}]
  %s4 = inlined_call_operand.vmem [shape: f32[1,32,1], index: 4, kind: input, shape index: {}]
  %s5 = inlined_call_operand.vmem [shape: f32[32,32], index: 5, kind: input, shape index: {}]
  %s6 = inlined_call_operand.vmem [shape: f32[1,32,1], index: 6, kind: input, shape index: {}]
  %s7 = inlined_call_operand.vmem [shape: f32[1,32,1], index: 7, kind: input, shape index: {}]
  %s8 = inlined_call_operand.vmem [shape: f32[3,32], index: 8, kind: input, shape index: {}]
  %s9 = inlined_call_operand.vmem [shape: f32[2,2,3,256], index: 9, kind: output, shape index: {}]
  %s10 = sld [smem:[#allocation0]]
  $region46: #{conv_guided_filter.4} parent=0
    _
  %s12 = ssub.s32 1, %s10
  %s13 = scalar_select 0, %s12, %s10
  // Predicated region
  $region2: #{conv_guided_filter.4} parent=0 // pred_check
    _
  $region3: #{conv_guided_filter.4} parent=0 // pred_check_branch
    %15 = sbr.rel (0) target = $region5
  $region4: #{conv_guided_filter.4} parent=0 // pred_region
    _
  $region5: #{conv_guided_filter.4} parent=0 // pred_fallthru
    _
  // Predicated region
  $region6: #{conv_guided_filter.4} parent=0 // pred_check
    _
  $region7: #{conv_guided_filter.4} parent=0 // pred_check_branch
    %17 = sbr.rel (0) target = $region9
  $region8: #{conv_guided_filter.4} parent=0 // pred_region
    _
  $region9: #{conv_guided_filter.4} parent=0 // pred_fallthru
    _
  // Predicated region
  $region10: #{conv_guided_filter.4} parent=0 // pred_check
    _
  $region11: #{conv_guided_filter.4} parent=0 // pred_check_branch
    %19 = sbr.rel (0) target = $region13
  $region12: #{conv_guided_filter.4} parent=0 // pred_region
    _
  $region13: #{conv_guided_filter.4} parent=0 // pred_fallthru
    _
  // Predicated region
  $region14: #{conv_guided_filter.4} parent=0 // pred_check
    _
  $region15: #{conv_guided_filter.4} parent=0 // pred_check_branch
    %21 = sbr.rel (0) target = $region17
  $region16: #{conv_guided_filter.4} parent=0 // pred_region
    _
  $region17: #{conv_guided_filter.4} parent=0 // pred_fallthru
    _
  // Predicated region
  $region18: #{conv_guided_filter.4} parent=0 // pred_check
    _
  $region19: #{conv_guided_filter.4} parent=0 // pred_check_branch
    %23 = sbr.rel (0) target = $region21
  $region20: #{conv_guided_filter.4} parent=0 // pred_region
    _
  $region21: #{conv_guided_filter.4} parent=0 // pred_fallthru
    _
  // Predicated region
  $region22: #{conv_guided_filter.4} parent=0 // pred_check
    _
  $region23: #{conv_guided_filter.4} parent=0 // pred_check_branch
    %25 = sbr.rel (0) target = $region25
  $region24: #{conv_guided_filter.4} parent=0 // pred_region
    _
  $region25: #{conv_guided_filter.4} parent=0 // pred_fallthru
    _
  // Predicated region
  $region26: #{conv_guided_filter.4} parent=0 // pred_check
    _
  $region27: #{conv_guided_filter.4} parent=0 // pred_check_branch
    %27 = sbr.rel (0) target = $region29
  $region28: #{conv_guided_filter.4} parent=0 // pred_region
    _
  $region29: #{conv_guided_filter.4} parent=0 // pred_fallthru
    _
  // Predicated region
  $region30: #{conv_guided_filter.4} parent=0 // pred_check
    _
  $region31: #{conv_guided_filter.4} parent=0 // pred_check_branch
    %29 = sbr.rel (0) target = $region33
  $region32: #{conv_guided_filter.4} parent=0 // pred_region
    _
  $region33: #{conv_guided_filter.4} parent=0 // pred_fallthru
    _
  // Predicated region
  $region34: #{conv_guided_filter.4} parent=0 // pred_check
    _
  $region35: #{conv_guided_filter.4} parent=0 // pred_check_branch
    %31 = sbr.rel (0) target = $region37
  $region36: #{conv_guided_filter.4} parent=0 // pred_region
    _
  $region37: #{conv_guided_filter.4} parent=0 // pred_fallthru
    _
  %v32 = vld [vmem:[%s0] sm:$0x77]
  %v33 = vld [vmem:[%s0 + $0x8] sm:$0x77]
  %s34 = scalar_lea.vmem %s0, 16
  %v35 = vld [vmem:[%s34] sm:$0x77]
  %v36 = vld [vmem:[%s34 + $0x8] sm:$0x77]
  %s37 = scalar_lea.vmem %s0, 32
  %v38 = vld [vmem:[%s37] sm:$0x77]
  %v39 = vld [vmem:[%s37 + $0x8] sm:$0x77]
  %s40 = scalar_lea.vmem %s0, 48
  %v41 = vld [vmem:[%s40] sm:$0x77]
  %v42 = vld [vmem:[%s40 + $0x8] sm:$0x77]
  %v43 = vld [vmem:[%s1] sm:$0xff]
  %v44 = vld [vmem:[%s1 + $0x8] sm:$0xff]
  %v45 = vld [vmem:[%s1 + $0x10] sm:$0xff]
  %v46 = vld [vmem:[%s1 + $0x18] sm:$0xff]
  %v47 = vld [vmem:[%s2] sm:$0xff]
  %v48 = vld [vmem:[%s2 + $0x8] sm:$0xff]
  %v49 = vld [vmem:[%s2 + $0x10] sm:$0xff]
  %v50 = vld [vmem:[%s2 + $0x18] sm:$0xff]
  %v52 = vcombine.high %v41, %v41
  %vm53 = vcmask 23552
  %v55 = vsel %vm53, %v47, 0
  %v58 = vsel %vm53, %v48, 0
  %v61 = vsel %vm53, %v49, 0
  %v64 = vsel %vm53, %v50, 0
  %vm66 = vcmask 1042432
  %v67 = vsel %vm66, %v41, 0
  %v69 = vsel %vm66, %v52, 0
  %71 = vmatprep.subr.mxu0 %v69
  %72 = vmatpush1.msra.mxu0 %v67
  %73 = vmatprep.subr.mxu0 0.0
  %74 = vmatpush1.msra.mxu0 0.0
  %75 = vmatprep.subr.mxu0 0.0
  %76 = vmatpush1.msra.mxu0 0.0
  %77 = vmatprep.subr.mxu0 0.0
  %78 = vmatpush1.msra.mxu0 0.0
  %79 = vmatprep.subr.mxu0 0.0
  %80 = vmatpush1.msra.mxu0 0.0
  %81 = vmatprep.subr.mxu0 0.0
  %82 = vmatpush1.msra.mxu0 0.0
  %83 = vmatprep.subr.mxu0 0.0
  %84 = vmatpush1.msra.mxu0 0.0
  %85 = vmatprep.subr.mxu0 0.0
  %86 = vmatpush1.msra.mxu0 0.0
  %87 = vmatprep.subr.mxu0 0.0
  %88 = vmatpush1.msra.mxu0 0.0
  %89 = vmatprep.subr.mxu0 0.0
  %90 = vmatpush1.msra.mxu0 0.0
  %91 = vmatprep.subr.mxu0 0.0
  %92 = vmatpush1.msra.mxu0 0.0
  %93 = vmatprep.subr.mxu0 0.0
  %94 = vmatpush1.msra.mxu0 0.0
  %95 = vmatprep.subr.mxu0 0.0
  %96 = vmatpush1.msra.mxu0 0.0
  %97 = vmatprep.subr.mxu0 0.0
  %98 = vmatpush1.msra.mxu0 0.0
  %99 = vmatprep.subr.mxu0 0.0
  %100 = vmatpush1.msra.mxu0 0.0
  %101 = vmatprep.subr.mxu0 0.0
  %102 = vmatpush1.msra.mxu0 0.0
  %103 = vmatprep.subr.mxu0 0.0
  %104 = vmatpush1.msra.mxu0 0.0
  %105 = vmatprep.subr.mxu0 0.0
  %106 = vmatpush1.msra.mxu0 0.0
  %107 = vmatprep.subr.mxu0 0.0
  %108 = vmatpush1.msra.mxu0 0.0
  %109 = vmatprep.subr.mxu0 0.0
  %110 = vmatpush1.msra.mxu0 0.0
  %111 = vmatprep.subr.mxu0 0.0
  %112 = vmatpush1.msra.mxu0 0.0
  %113 = vmatprep.subr.mxu0 0.0
  %114 = vmatpush1.msra.mxu0 0.0
  %115 = vmatprep.subr.mxu0 0.0
  %116 = vmatpush1.msra.mxu0 0.0
  %117 = vmatprep.subr.mxu0 0.0
  %118 = vmatpush1.msra.mxu0 0.0
  %119 = vmatprep.subr.mxu0 0.0
  %120 = vmatpush1.msra.mxu0 0.0
  %121 = vmatprep.subr.mxu0 0.0
  %122 = vmatpush1.msra.mxu0 0.0
  %123 = vmatprep.subr.mxu0 0.0
  %124 = vmatpush1.msra.mxu0 0.0
  %125 = vmatprep.subr.mxu0 0.0
  %126 = vmatpush1.msra.mxu0 0.0
  %127 = vmatprep.subr.mxu0 0.0
  %128 = vmatpush1.msra.mxu0 0.0
  %129 = vmatprep.subr.mxu0 0.0
  %130 = vmatpush1.msra.mxu0 0.0
  %131 = vmatprep.subr.mxu0 0.0
  %132 = vmatpush1.msra.mxu0 0.0
  %133 = vmatprep.subr.mxu0 0.0
  %134 = vmatpush1.msra.mxu0 0.0
  %135 = vmatprep.mubr.f32.mxu0 0.0
  %136 = vmatmul.mubr.f32.gmra.mrb[0].mxu0 %v55
  %v137 = vpop.f32.mrb[0].mxu0
  %v138 = vadd.f32 0.0, %v137
  %v139 = vpop.f32.mrb[0].mxu0
  %v140 = vadd.f32 0.0, %v139
  %141 = vmatprep.mubr.f32.mxu0 0.0
  %142 = vmatmul.mubr.f32.gmra.mrb[0].mxu0 %v58
  %v143 = vpop.f32.mrb[0].mxu0
  %v144 = vadd.f32 0.0, %v143
  %v145 = vpop.f32.mrb[0].mxu0
  %v146 = vadd.f32 0.0, %v145
  %147 = vmatprep.mubr.f32.mxu0 0.0
  %148 = vmatmul.mubr.f32.gmra.mrb[0].mxu0 %v61
  %v149 = vpop.f32.mrb[0].mxu0
  %v150 = vadd.f32 0.0, %v149
  %v151 = vpop.f32.mrb[0].mxu0
  %v152 = vadd.f32 0.0, %v151
  %153 = vmatprep.mubr.f32.mxu0 0.0
  %154 = vmatmul.mubr.f32.gmra.mrb[0].mxu0 %v64
  %v155 = vpop.f32.mrb[0].mxu0
  %v156 = vadd.f32 0.0, %v155
  %v157 = vpop.f32.mrb[0].mxu0
  %v158 = vadd.f32 0.0, %v157
  %159 = vdwg.mxu0
  %v161 = vcombine.high %v42, %v42
  %v162 = vsel %vm66, %v42, 0
  %v164 = vsel %vm66, %v161, 0
  %166 = vmatprep.subr.mxu0 %v164
  %167 = vmatpush1.msra.mxu0 %v162
  %168 = vmatprep.subr.mxu0 0.0
  %169 = vmatpush1.msra.mxu0 0.0
  %170 = vmatprep.subr.mxu0 0.0
  %171 = vmatpush1.msra.mxu0 0.0
  %172 = vmatprep.subr.mxu0 0.0
  %173 = vmatpush1.msra.mxu0 0.0
  %174 = vmatprep.subr.mxu0 0.0
  %175 = vmatpush1.msra.mxu0 0.0
  %176 = vmatprep.subr.mxu0 0.0
  %177 = vmatpush1.msra.mxu0 0.0
  %178 = vmatprep.subr.mxu0 0.0
  %179 = vmatpush1.msra.mxu0 0.0
  %180 = vmatprep.subr.mxu0 0.0
  %181 = vmatpush1.msra.mxu0 0.0
  %182 = vmatprep.subr.mxu0 0.0
  %183 = vmatpush1.msra.mxu0 0.0
  %184 = vmatprep.subr.mxu0 0.0
  %185 = vmatpush1.msra.mxu0 0.0
  %186 = vmatprep.subr.mxu0 0.0
  %187 = vmatpush1.msra.mxu0 0.0
  %188 = vmatprep.subr.mxu0 0.0
  %189 = vmatpush1.msra.mxu0 0.0
  %190 = vmatprep.subr.mxu0 0.0
  %191 = vmatpush1.msra.mxu0 0.0
  %192 = vmatprep.subr.mxu0 0.0
  %193 = vmatpush1.msra.mxu0 0.0
  %194 = vmatprep.subr.mxu0 0.0
  %195 = vmatpush1.msra.mxu0 0.0
  %196 = vmatprep.subr.mxu0 0.0
  %197 = vmatpush1.msra.mxu0 0.0
  %198 = vmatprep.subr.mxu0 0.0
  %199 = vmatpush1.msra.mxu0 0.0
  %200 = vmatprep.subr.mxu0 0.0
  %201 = vmatpush1.msra.mxu0 0.0
  %202 = vmatprep.subr.mxu0 0.0
  %203 = vmatpush1.msra.mxu0 0.0
  %204 = vmatprep.subr.mxu0 0.0
  %205 = vmatpush1.msra.mxu0 0.0
  %206 = vmatprep.subr.mxu0 0.0
  %207 = vmatpush1.msra.mxu0 0.0
  %208 = vmatprep.subr.mxu0 0.0
  %209 = vmatpush1.msra.mxu0 0.0
  %210 = vmatprep.subr.mxu0 0.0
  %211 = vmatpush1.msra.mxu0 0.0
  %212 = vmatprep.subr.mxu0 0.0
  %213 = vmatpush1.msra.mxu0 0.0
  %214 = vmatprep.subr.mxu0 0.0
  %215 = vmatpush1.msra.mxu0 0.0
  %216 = vmatprep.subr.mxu0 0.0
  %217 = vmatpush1.msra.mxu0 0.0
  %218 = vmatprep.subr.mxu0 0.0
  %219 = vmatpush1.msra.mxu0 0.0
  %220 = vmatprep.subr.mxu0 0.0
  %221 = vmatpush1.msra.mxu0 0.0
  %222 = vmatprep.subr.mxu0 0.0
  %223 = vmatpush1.msra.mxu0 0.0
  %224 = vmatprep.subr.mxu0 0.0
  %225 = vmatpush1.msra.mxu0 0.0
  %226 = vmatprep.subr.mxu0 0.0
  %227 = vmatpush1.msra.mxu0 0.0
  %228 = vmatprep.subr.mxu0 0.0
  %229 = vmatpush1.msra.mxu0 0.0
  %230 = vmatprep.mubr.f32.mxu0 0.0
  %231 = vmatmul.mubr.f32.gmra.mrb[0].mxu0 %v55
  %v232 = vpop.f32.mrb[0].mxu0
  %v233 = vadd.f32 0.0, %v232
  %v234 = vpop.f32.mrb[0].mxu0
  %v235 = vadd.f32 0.0, %v234
  %236 = vmatprep.mubr.f32.mxu0 0.0
  %237 = vmatmul.mubr.f32.gmra.mrb[0].mxu0 %v58
  %v238 = vpop.f32.mrb[0].mxu0
  %v239 = vadd.f32 0.0, %v238
  %v240 = vpop.f32.mrb[0].mxu0
  %v241 = vadd.f32 0.0, %v240
  %242 = vmatprep.mubr.f32.mxu0 0.0
  %243 = vmatmul.mubr.f32.gmra.mrb[0].mxu0 %v61
  %v244 = vpop.f32.mrb[0].mxu0
  %v245 = vadd.f32 0.0, %v244
  %v246 = vpop.f32.mrb[0].mxu0
  %v247 = vadd.f32 0.0, %v246
  %248 = vmatprep.mubr.f32.mxu0 0.0
  %249 = vmatmul.mubr.f32.gmra.mrb[0].mxu0 %v64
  %v250 = vpop.f32.mrb[0].mxu0
  %v251 = vadd.f32 0.0, %v250
  %v252 = vpop.f32.mrb[0].mxu0
  %v253 = vadd.f32 0.0, %v252
  %254 = vdwg.mxu0
  %v256 = vcombine.high %v38, %v38
  %v258 = vsel %vm53, %v43, 0
  %v261 = vsel %vm53, %v44, 0
  %v264 = vsel %vm53, %v45, 0
  %v267 = vsel %vm53, %v46, 0
  %v269 = vsel %vm66, %v38, 0
  %v271 = vsel %vm66, %v256, 0
  %273 = vmatprep.subr.mxu0 %v271
  %274 = vmatpush1.msra.mxu0 %v269
  %275 = vmatprep.subr.mxu0 0.0
  %276 = vmatpush1.msra.mxu0 0.0
  %277 = vmatprep.subr.mxu0 0.0
  %278 = vmatpush1.msra.mxu0 0.0
  %279 = vmatprep.subr.mxu0 0.0
  %280 = vmatpush1.msra.mxu0 0.0
  %281 = vmatprep.subr.mxu0 0.0
  %282 = vmatpush1.msra.mxu0 0.0
  %283 = vmatprep.subr.mxu0 0.0
  %284 = vmatpush1.msra.mxu0 0.0
  %285 = vmatprep.subr.mxu0 0.0
  %286 = vmatpush1.msra.mxu0 0.0
  %287 = vmatprep.subr.mxu0 0.0
  %288 = vmatpush1.msra.mxu0 0.0
  %289 = vmatprep.subr.mxu0 0.0
  %290 = vmatpush1.msra.mxu0 0.0
  %291 = vmatprep.subr.mxu0 0.0
  %292 = vmatpush1.msra.mxu0 0.0
  %293 = vmatprep.subr.mxu0 0.0
  %294 = vmatpush1.msra.mxu0 0.0
  %295 = vmatprep.subr.mxu0 0.0
  %296 = vmatpush1.msra.mxu0 0.0
  %297 = vmatprep.subr.mxu0 0.0
  %298 = vmatpush1.msra.mxu0 0.0
  %299 = vmatprep.subr.mxu0 0.0
  %300 = vmatpush1.msra.mxu0 0.0
  %301 = vmatprep.subr.mxu0 0.0
  %302 = vmatpush1.msra.mxu0 0.0
  %303 = vmatprep.subr.mxu0 0.0
  %304 = vmatpush1.msra.mxu0 0.0
  %305 = vmatprep.subr.mxu0 0.0
  %306 = vmatpush1.msra.mxu0 0.0
  %307 = vmatprep.subr.mxu0 0.0
  %308 = vmatpush1.msra.mxu0 0.0
  %309 = vmatprep.subr.mxu0 0.0
  %310 = vmatpush1.msra.mxu0 0.0
  %311 = vmatprep.subr.mxu0 0.0
  %312 = vmatpush1.msra.mxu0 0.0
  %313 = vmatprep.subr.mxu0 0.0
  %314 = vmatpush1.msra.mxu0 0.0
  %315 = vmatprep.subr.mxu0 0.0
  %316 = vmatpush1.msra.mxu0 0.0
  %317 = vmatprep.subr.mxu0 0.0
  %318 = vmatpush1.msra.mxu0 0.0
  %319 = vmatprep.subr.mxu0 0.0
  %320 = vmatpush1.msra.mxu0 0.0
  %321 = vmatprep.subr.mxu0 0.0
  %322 = vmatpush1.msra.mxu0 0.0
  %323 = vmatprep.subr.mxu0 0.0
  %324 = vmatpush1.msra.mxu0 0.0
  %325 = vmatprep.subr.mxu0 0.0
  %326 = vmatpush1.msra.mxu0 0.0
  %327 = vmatprep.subr.mxu0 0.0
  %328 = vmatpush1.msra.mxu0 0.0
  %329 = vmatprep.subr.mxu0 0.0
  %330 = vmatpush1.msra.mxu0 0.0
  %331 = vmatprep.subr.mxu0 0.0
  %332 = vmatpush1.msra.mxu0 0.0
  %333 = vmatprep.subr.mxu0 0.0
  %334 = vmatpush1.msra.mxu0 0.0
  %335 = vmatprep.subr.mxu0 0.0
  %336 = vmatpush1.msra.mxu0 0.0
  %337 = vmatprep.mubr.f32.mxu0 0.0
  %338 = vmatmul.mubr.f32.gmra.mrb[0].mxu0 %v258
  %v339 = vpop.f32.mrb[0].mxu0
  %v340 = vadd.f32 %v138, %v339
  %v341 = vpop.f32.mrb[0].mxu0
  %v342 = vadd.f32 %v140, %v341
  %343 = vmatprep.mubr.f32.mxu0 0.0
  %344 = vmatmul.mubr.f32.gmra.mrb[0].mxu0 %v261
  %v345 = vpop.f32.mrb[0].mxu0
  %v346 = vadd.f32 %v144, %v345
  %v347 = vpop.f32.mrb[0].mxu0
  %v348 = vadd.f32 %v146, %v347
  %349 = vmatprep.mubr.f32.mxu0 0.0
  %350 = vmatmul.mubr.f32.gmra.mrb[0].mxu0 %v264
  %v351 = vpop.f32.mrb[0].mxu0
  %v352 = vadd.f32 %v150, %v351
  %v353 = vpop.f32.mrb[0].mxu0
  %v354 = vadd.f32 %v152, %v353
  %355 = vmatprep.mubr.f32.mxu0 0.0
  %356 = vmatmul.mubr.f32.gmra.mrb[0].mxu0 %v267
  %v357 = vpop.f32.mrb[0].mxu0
  %v358 = vadd.f32 %v156, %v357
  %v359 = vpop.f32.mrb[0].mxu0
  %v360 = vadd.f32 %v158, %v359
  %361 = vdwg.mxu0
  %v363 = vcombine.high %v39, %v39
  %v364 = vsel %vm66, %v39, 0
  %v366 = vsel %vm66, %v363, 0
  %368 = vmatprep.subr.mxu0 %v366
  %369 = vmatpush1.msra.mxu0 %v364
  %370 = vmatprep.subr.mxu0 0.0
  %371 = vmatpush1.msra.mxu0 0.0
  %372 = vmatprep.subr.mxu0 0.0
  %373 = vmatpush1.msra.mxu0 0.0
  %374 = vmatprep.subr.mxu0 0.0
  %375 = vmatpush1.msra.mxu0 0.0
  %376 = vmatprep.subr.mxu0 0.0
  %377 = vmatpush1.msra.mxu0 0.0
  %378 = vmatprep.subr.mxu0 0.0
  %379 = vmatpush1.msra.mxu0 0.0
  %380 = vmatprep.subr.mxu0 0.0
  %381 = vmatpush1.msra.mxu0 0.0
  %382 = vmatprep.subr.mxu0 0.0
  %383 = vmatpush1.msra.mxu0 0.0
  %384 = vmatprep.subr.mxu0 0.0
  %385 = vmatpush1.msra.mxu0 0.0
  %386 = vmatprep.subr.mxu0 0.0
  %387 = vmatpush1.msra.mxu0 0.0
  %388 = vmatprep.subr.mxu0 0.0
  %389 = vmatpush1.msra.mxu0 0.0
  %390 = vmatprep.subr.mxu0 0.0
  %391 = vmatpush1.msra.mxu0 0.0
  %392 = vmatprep.subr.mxu0 0.0
  %393 = vmatpush1.msra.mxu0 0.0
  %394 = vmatprep.subr.mxu0 0.0
  %395 = vmatpush1.msra.mxu0 0.0
  %396 = vmatprep.subr.mxu0 0.0
  %397 = vmatpush1.msra.mxu0 0.0
  %398 = vmatprep.subr.mxu0 0.0
  %399 = vmatpush1.msra.mxu0 0.0
  %400 = vmatprep.subr.mxu0 0.0
  %401 = vmatpush1.msra.mxu0 0.0
  %402 = vmatprep.subr.mxu0 0.0
  %403 = vmatpush1.msra.mxu0 0.0
  %404 = vmatprep.subr.mxu0 0.0
  %405 = vmatpush1.msra.mxu0 0.0
  %406 = vmatprep.subr.mxu0 0.0
  %407 = vmatpush1.msra.mxu0 0.0
  %408 = vmatprep.subr.mxu0 0.0
  %409 = vmatpush1.msra.mxu0 0.0
  %410 = vmatprep.subr.mxu0 0.0
  %411 = vmatpush1.msra.mxu0 0.0
  %412 = vmatprep.subr.mxu0 0.0
  %413 = vmatpush1.msra.mxu0 0.0
  %414 = vmatprep.subr.mxu0 0.0
  %415 = vmatpush1.msra.mxu0 0.0
  %416 = vmatprep.subr.mxu0 0.0
  %417 = vmatpush1.msra.mxu0 0.0
  %418 = vmatprep.subr.mxu0 0.0
  %419 = vmatpush1.msra.mxu0 0.0
  %420 = vmatprep.subr.mxu0 0.0
  %421 = vmatpush1.msra.mxu0 0.0
  %422 = vmatprep.subr.mxu0 0.0
  %423 = vmatpush1.msra.mxu0 0.0
  %424 = vmatprep.subr.mxu0 0.0
  %425 = vmatpush1.msra.mxu0 0.0
  %426 = vmatprep.subr.mxu0 0.0
  %427 = vmatpush1.msra.mxu0 0.0
  %428 = vmatprep.subr.mxu0 0.0
  %429 = vmatpush1.msra.mxu0 0.0
  %430 = vmatprep.subr.mxu0 0.0
  %431 = vmatpush1.msra.mxu0 0.0
  %432 = vmatprep.mubr.f32.mxu0 0.0
  %433 = vmatmul.mubr.f32.gmra.mrb[0].mxu0 %v258
  %v434 = vpop.f32.mrb[0].mxu0
  %v435 = vadd.f32 %v233, %v434
  %v436 = vpop.f32.mrb[0].mxu0
  %v437 = vadd.f32 %v235, %v436
  %438 = vmatprep.mubr.f32.mxu0 0.0
  %439 = vmatmul.mubr.f32.gmra.mrb[0].mxu0 %v261
  %v440 = vpop.f32.mrb[0].mxu0
  %v441 = vadd.f32 %v239, %v440
  %v442 = vpop.f32.mrb[0].mxu0
  %v443 = vadd.f32 %v241, %v442
  %444 = vmatprep.mubr.f32.mxu0 0.0
  %445 = vmatmul.mubr.f32.gmra.mrb[0].mxu0 %v264
  %v446 = vpop.f32.mrb[0].mxu0
  %v447 = vadd.f32 %v245, %v446
  %v448 = vpop.f32.mrb[0].mxu0
  %v449 = vadd.f32 %v247, %v448
  %450 = vmatprep.mubr.f32.mxu0 0.0
  %451 = vmatmul.mubr.f32.gmra.mrb[0].mxu0 %v267
  %v452 = vpop.f32.mrb[0].mxu0
  %v453 = vadd.f32 %v251, %v452
  %v454 = vpop.f32.mrb[0].mxu0
  %v455 = vadd.f32 %v253, %v454
  %456 = vdwg.mxu0
  %v457 = vld [vmem:[%s3] sm:$0xff]
  %v458 = vld [vmem:[%s3 + $0x8] sm:$0xff]
  %v459 = vld [vmem:[%s3 + $0x10] sm:$0xff]
  %v460 = vld [vmem:[%s3 + $0x18] sm:$0xff]
  %v461 = vld [vmem:[%s4] sm:$0xff]
  %v462 = vld [vmem:[%s4 + $0x8] sm:$0xff]
  %v463 = vld [vmem:[%s4 + $0x10] sm:$0xff]
  %v464 = vld [vmem:[%s4 + $0x18] sm:$0xff]
  %v465 = vadd.f32 %v340, %v342
  %466 = vadd.xlane.f32.xlu0 %v465
  %v467 = vpop.xlane.xlu0 %466
  %v468 = vadd.f32 %v346, %v348
  %469 = vadd.xlane.f32.xlu0 %v468
  %v470 = vpop.xlane.xlu0 %469
  %v471 = vadd.f32 %v352, %v354
  %472 = vadd.xlane.f32.xlu0 %v471
  %v473 = vpop.xlane.xlu0 %472
  %v474 = vadd.f32 %v358, %v360
  %475 = vadd.xlane.f32.xlu0 %v474
  %v476 = vpop.xlane.xlu0 %475
  %v477 = vadd.f32 %v435, %v437
  %478 = vadd.xlane.f32.xlu0 %v477
  %v479 = vpop.xlane.xlu0 %478
  %v480 = vadd.f32 %v441, %v443
  %481 = vadd.xlane.f32.xlu0 %v480
  %v482 = vpop.xlane.xlu0 %481
  %v483 = vadd.f32 %v447, %v449
  %484 = vadd.xlane.f32.xlu0 %v483
  %v485 = vpop.xlane.xlu0 %484
  %v486 = vadd.f32 %v453, %v455
  %487 = vadd.xlane.f32.xlu0 %v486
  %v488 = vpop.xlane.xlu0 %487
  %v489 = vadd.f32 %v467, %v479
  %v490 = vadd.f32 %v470, %v482
  %v491 = vadd.f32 %v473, %v485
  %v492 = vadd.f32 %v476, %v488
  %v493 = vmul.f32 %v340, %v340
  %v494 = vmul.f32 %v342, %v342
  %v495 = vmul.f32 %v346, %v346
  %v496 = vmul.f32 %v348, %v348
  %v497 = vmul.f32 %v352, %v352
  %v498 = vmul.f32 %v354, %v354
  %v499 = vmul.f32 %v358, %v358
  %v500 = vmul.f32 %v360, %v360
  %v501 = vmul.f32 %v435, %v435
  %v502 = vmul.f32 %v437, %v437
  %v503 = vmul.f32 %v441, %v441
  %v504 = vmul.f32 %v443, %v443
  %v505 = vmul.f32 %v447, %v447
  %v506 = vmul.f32 %v449, %v449
  %v507 = vmul.f32 %v453, %v453
  %v508 = vmul.f32 %v455, %v455
  %v509 = vadd.f32 %v493, %v494
  %510 = vadd.xlane.f32.xlu0 %v509
  %v511 = vpop.xlane.xlu0 %510
  %v512 = vadd.f32 %v495, %v496
  %513 = vadd.xlane.f32.xlu0 %v512
  %v514 = vpop.xlane.xlu0 %513
  %v515 = vadd.f32 %v497, %v498
  %516 = vadd.xlane.f32.xlu0 %v515
  %v517 = vpop.xlane.xlu0 %516
  %v518 = vadd.f32 %v499, %v500
  %519 = vadd.xlane.f32.xlu0 %v518
  %v520 = vpop.xlane.xlu0 %519
  %v521 = vadd.f32 %v501, %v502
  %522 = vadd.xlane.f32.xlu0 %v521
  %v523 = vpop.xlane.xlu0 %522
  %v524 = vadd.f32 %v503, %v504
  %525 = vadd.xlane.f32.xlu0 %v524
  %v526 = vpop.xlane.xlu0 %525
  %v527 = vadd.f32 %v505, %v506
  %528 = vadd.xlane.f32.xlu0 %v527
  %v529 = vpop.xlane.xlu0 %528
  %v530 = vadd.f32 %v507, %v508
  %531 = vadd.xlane.f32.xlu0 %v530
  %v532 = vpop.xlane.xlu0 %531
  %v533 = vadd.f32 %v511, %v523
  %v534 = vadd.f32 %v514, %v526
  %v535 = vadd.f32 %v517, %v529
  %v536 = vadd.f32 %v520, %v532
  %v537 = vmul.f32 %v489, 0.001953125
  %v538 = vmul.f32 %v490, 0.001953125
  %v539 = vmul.f32 %v491, 0.001953125
  %v540 = vmul.f32 %v492, 0.001953125
  %v541 = vmul.f32 %v533, 0.001953125
  %v542 = vmul.f32 %v534, 0.001953125
  %v543 = vmul.f32 %v535, 0.001953125
  %v544 = vmul.f32 %v536, 0.001953125
  %v545 = vmul.f32 %v537, %v537
  %v546 = vmul.f32 %v538, %v538
  %v547 = vmul.f32 %v539, %v539
  %v548 = vmul.f32 %v540, %v540
  %v549 = vsub.f32 %v541, %v545
  %v550 = vsub.f32 %v542, %v546
  %v551 = vsub.f32 %v543, %v547
  %v552 = vsub.f32 %v544, %v548
  %v553 = vsub.f32 %v340, %v537
  %v554 = vsub.f32 %v342, %v537
  %v555 = vsub.f32 %v346, %v538
  %v556 = vsub.f32 %v348, %v538
  %v557 = vsub.f32 %v352, %v539
  %v558 = vsub.f32 %v354, %v539
  %v559 = vsub.f32 %v358, %v540
  %v560 = vsub.f32 %v360, %v540
  %v561 = vsub.f32 %v435, %v537
  %v562 = vsub.f32 %v437, %v537
  %v563 = vsub.f32 %v441, %v538
  %v564 = vsub.f32 %v443, %v538
  %v565 = vsub.f32 %v447, %v539
  %v566 = vsub.f32 %v449, %v539
  %v567 = vsub.f32 %v453, %v540
  %v568 = vsub.f32 %v455, %v540
  %v569 = vadd.f32 %v549, 1e-05
  %v570 = vadd.f32 %v550, 1e-05
  %v571 = vadd.f32 %v551, 1e-05
  %v572 = vadd.f32 %v552, 1e-05
  %v573 = vrsqrt.pop %v569
  %v574 = vrsqrt.pop %v570
  %v575 = vrsqrt.pop %v571
  %v576 = vrsqrt.pop %v572
  %v577 = vmul.f32 %v553, %v573
  %v578 = vmul.f32 %v554, %v573
  %v579 = vmul.f32 %v555, %v574
  %v580 = vmul.f32 %v556, %v574
  %v581 = vmul.f32 %v557, %v575
  %v582 = vmul.f32 %v558, %v575
  %v583 = vmul.f32 %v559, %v576
  %v584 = vmul.f32 %v560, %v576
  %v585 = vmul.f32 %v561, %v573
  %v586 = vmul.f32 %v562, %v573
  %v587 = vmul.f32 %v563, %v574
  %v588 = vmul.f32 %v564, %v574
  %v589 = vmul.f32 %v565, %v575
  %v590 = vmul.f32 %v566, %v575
  %v591 = vmul.f32 %v567, %v576
  %v592 = vmul.f32 %v568, %v576
  %594 = vset.pattern.permute.xlu0 0
  %595 = vperm.xlu0 %594, %v457
  %v596 = vpop.permute.xlu0 %595
  %599 = vset.pattern.permute.xlu0 0
  %600 = vperm.xlu0 %599, %v458
  %v601 = vpop.permute.xlu0 %600
  %604 = vset.pattern.permute.xlu0 0
  %605 = vperm.xlu0 %604, %v459
  %v606 = vpop.permute.xlu0 %605
  %609 = vset.pattern.permute.xlu0 0
  %610 = vperm.xlu0 %609, %v460
  %v611 = vpop.permute.xlu0 %610
  %v613 = vmul.f32 %v577, %v596
  %v614 = vmul.f32 %v578, %v596
  %v615 = vmul.f32 %v579, %v601
  %v616 = vmul.f32 %v580, %v601
  %v617 = vmul.f32 %v581, %v606
  %v618 = vmul.f32 %v582, %v606
  %v619 = vmul.f32 %v583, %v611
  %v620 = vmul.f32 %v584, %v611
  %v621 = vmul.f32 %v585, %v596
  %v622 = vmul.f32 %v586, %v596
  %v623 = vmul.f32 %v587, %v601
  %v624 = vmul.f32 %v588, %v601
  %v625 = vmul.f32 %v589, %v606
  %v626 = vmul.f32 %v590, %v606
  %v627 = vmul.f32 %v591, %v611
  %v628 = vmul.f32 %v592, %v611
  %630 = vset.pattern.permute.xlu0 0
  %631 = vperm.xlu0 %630, %v461
  %v632 = vpop.permute.xlu0 %631
  %635 = vset.pattern.permute.xlu0 0
  %636 = vperm.xlu0 %635, %v462
  %v637 = vpop.permute.xlu0 %636
  %640 = vset.pattern.permute.xlu0 0
  %641 = vperm.xlu0 %640, %v463
  %v642 = vpop.permute.xlu0 %641
  %645 = vset.pattern.permute.xlu0 0
  %646 = vperm.xlu0 %645, %v464
  %v647 = vpop.permute.xlu0 %646
  %v649 = vadd.f32 %v613, %v632
  %v650 = vadd.f32 %v614, %v632
  %v651 = vadd.f32 %v615, %v637
  %v652 = vadd.f32 %v616, %v637
  %v653 = vadd.f32 %v617, %v642
  %v654 = vadd.f32 %v618, %v642
  %v655 = vadd.f32 %v619, %v647
  %v656 = vadd.f32 %v620, %v647
  %v657 = vadd.f32 %v621, %v632
  %v658 = vadd.f32 %v622, %v632
  %v659 = vadd.f32 %v623, %v637
  %v660 = vadd.f32 %v624, %v637
  %v661 = vadd.f32 %v625, %v642
  %v662 = vadd.f32 %v626, %v642
  %v663 = vadd.f32 %v627, %v647
  %v664 = vadd.f32 %v628, %v647
  %v665 = vmax.f32 %v649, 0.0
  %v666 = vmax.f32 %v650, 0.0
  %v667 = vmax.f32 %v651, 0.0
  %v668 = vmax.f32 %v652, 0.0
  %v669 = vmax.f32 %v653, 0.0
  %v670 = vmax.f32 %v654, 0.0
  %v671 = vmax.f32 %v655, 0.0
  %v672 = vmax.f32 %v656, 0.0
  %v673 = vmax.f32 %v657, 0.0
  %v674 = vmax.f32 %v658, 0.0
  %v675 = vmax.f32 %v659, 0.0
  %v676 = vmax.f32 %v660, 0.0
  %v677 = vmax.f32 %v661, 0.0
  %v678 = vmax.f32 %v662, 0.0
  %v679 = vmax.f32 %v663, 0.0
  %v680 = vmax.f32 %v664, 0.0
  %v681 = vld [vmem:[%s5] sm:$0xff]
  %v682 = vld [vmem:[%s5 + $0x8] sm:$0xff]
  %v683 = vld [vmem:[%s5 + $0x10] sm:$0xff]
  %v684 = vld [vmem:[%s5 + $0x18] sm:$0xff]
  %vm685 = vcmask 261120
  %v687 = vsel %vm685, %v681, 0
  %v690 = vsel %vm685, %v682, 0
  %v693 = vsel %vm685, %v683, 0
  %v696 = vsel %vm685, %v684, 0
  %698 = vmatprep.subr.mxu0 %v666
  %699 = vmatpush1.msra.mxu0 %v665
  %700 = vmatprep.subr.mxu0 %v668
  %701 = vmatpush1.msra.mxu0 %v667
  %702 = vmatprep.subr.mxu0 %v670
  %703 = vmatpush1.msra.mxu0 %v669
  %704 = vmatprep.subr.mxu0 %v672
  %705 = vmatpush1.msra.mxu0 %v671
  %706 = vmatprep.subr.mxu0 0.0
  %707 = vmatpush1.msra.mxu0 0.0
  %708 = vmatprep.subr.mxu0 0.0
  %709 = vmatpush1.msra.mxu0 0.0
  %710 = vmatprep.subr.mxu0 0.0
  %711 = vmatpush1.msra.mxu0 0.0
  %712 = vmatprep.subr.mxu0 0.0
  %713 = vmatpush1.msra.mxu0 0.0
  %714 = vmatprep.subr.mxu0 0.0
  %715 = vmatpush1.msra.mxu0 0.0
  %716 = vmatprep.subr.mxu0 0.0
  %717 = vmatpush1.msra.mxu0 0.0
  %718 = vmatprep.subr.mxu0 0.0
  %719 = vmatpush1.msra.mxu0 0.0
  %720 = vmatprep.subr.mxu0 0.0
  %721 = vmatpush1.msra.mxu0 0.0
  %722 = vmatprep.subr.mxu0 0.0
  %723 = vmatpush1.msra.mxu0 0.0
  %724 = vmatprep.subr.mxu0 0.0
  %725 = vmatpush1.msra.mxu0 0.0
  %726 = vmatprep.subr.mxu0 0.0
  %727 = vmatpush1.msra.mxu0 0.0
  %728 = vmatprep.subr.mxu0 0.0
  %729 = vmatpush1.msra.mxu0 0.0
  %730 = vmatprep.subr.mxu0 0.0
  %731 = vmatpush1.msra.mxu0 0.0
  %732 = vmatprep.subr.mxu0 0.0
  %733 = vmatpush1.msra.mxu0 0.0
  %734 = vmatprep.subr.mxu0 0.0
  %735 = vmatpush1.msra.mxu0 0.0
  %736 = vmatprep.subr.mxu0 0.0
  %737 = vmatpush1.msra.mxu0 0.0
  %738 = vmatprep.subr.mxu0 0.0
  %739 = vmatpush1.msra.mxu0 0.0
  %740 = vmatprep.subr.mxu0 0.0
  %741 = vmatpush1.msra.mxu0 0.0
  %742 = vmatprep.subr.mxu0 0.0
  %743 = vmatpush1.msra.mxu0 0.0
  %744 = vmatprep.subr.mxu0 0.0
  %745 = vmatpush1.msra.mxu0 0.0
  %746 = vmatprep.subr.mxu0 0.0
  %747 = vmatpush1.msra.mxu0 0.0
  %748 = vmatprep.subr.mxu0 0.0
  %749 = vmatpush1.msra.mxu0 0.0
  %750 = vmatprep.subr.mxu0 0.0
  %751 = vmatpush1.msra.mxu0 0.0
  %752 = vmatprep.subr.mxu0 0.0
  %753 = vmatpush1.msra.mxu0 0.0
  %754 = vmatprep.subr.mxu0 0.0
  %755 = vmatpush1.msra.mxu0 0.0
  %756 = vmatprep.subr.mxu0 0.0
  %757 = vmatpush1.msra.mxu0 0.0
  %758 = vmatprep.subr.mxu0 0.0
  %759 = vmatpush1.msra.mxu0 0.0
  %760 = vmatprep.subr.mxu0 0.0
  %761 = vmatpush1.msra.mxu0 0.0
  %762 = vmatprep.mubr.f32.mxu0 0.0
  %763 = vmatmul.mubr.f32.gmra.mrb[0].mxu0 %v687
  %v764 = vpop.f32.mrb[0].mxu0
  %v765 = vadd.f32 0.0, %v764
  %v766 = vpop.f32.mrb[0].mxu0
  %v767 = vadd.f32 0.0, %v766
  %768 = vmatprep.mubr.f32.mxu0 0.0
  %769 = vmatmul.mubr.f32.gmra.mrb[0].mxu0 %v690
  %v770 = vpop.f32.mrb[0].mxu0
  %v771 = vadd.f32 0.0, %v770
  %v772 = vpop.f32.mrb[0].mxu0
  %v773 = vadd.f32 0.0, %v772
  %774 = vmatprep.mubr.f32.mxu0 0.0
  %775 = vmatmul.mubr.f32.gmra.mrb[0].mxu0 %v693
  %v776 = vpop.f32.mrb[0].mxu0
  %v777 = vadd.f32 0.0, %v776
  %v778 = vpop.f32.mrb[0].mxu0
  %v779 = vadd.f32 0.0, %v778
  %780 = vmatprep.mubr.f32.mxu0 0.0
  %781 = vmatmul.mubr.f32.gmra.mrb[0].mxu0 %v696
  %v782 = vpop.f32.mrb[0].mxu0
  %v783 = vadd.f32 0.0, %v782
  %v784 = vpop.f32.mrb[0].mxu0
  %v785 = vadd.f32 0.0, %v784
  %786 = vdwg.mxu0
  %787 = vmatprep.subr.mxu0 %v674
  %788 = vmatpush1.msra.mxu0 %v673
  %789 = vmatprep.subr.mxu0 %v676
  %790 = vmatpush1.msra.mxu0 %v675
  %791 = vmatprep.subr.mxu0 %v678
  %792 = vmatpush1.msra.mxu0 %v677
  %793 = vmatprep.subr.mxu0 %v680
  %794 = vmatpush1.msra.mxu0 %v679
  %795 = vmatprep.subr.mxu0 0.0
  %796 = vmatpush1.msra.mxu0 0.0
  %797 = vmatprep.subr.mxu0 0.0
  %798 = vmatpush1.msra.mxu0 0.0
  %799 = vmatprep.subr.mxu0 0.0
  %800 = vmatpush1.msra.mxu0 0.0
  %801 = vmatprep.subr.mxu0 0.0
  %802 = vmatpush1.msra.mxu0 0.0
  %803 = vmatprep.subr.mxu0 0.0
  %804 = vmatpush1.msra.mxu0 0.0
  %805 = vmatprep.subr.mxu0 0.0
  %806 = vmatpush1.msra.mxu0 0.0
  %807 = vmatprep.subr.mxu0 0.0
  %808 = vmatpush1.msra.mxu0 0.0
  %809 = vmatprep.subr.mxu0 0.0
  %810 = vmatpush1.msra.mxu0 0.0
  %811 = vmatprep.subr.mxu0 0.0
  %812 = vmatpush1.msra.mxu0 0.0
  %813 = vmatprep.subr.mxu0 0.0
  %814 = vmatpush1.msra.mxu0 0.0
  %815 = vmatprep.subr.mxu0 0.0
  %816 = vmatpush1.msra.mxu0 0.0
  %817 = vmatprep.subr.mxu0 0.0
  %818 = vmatpush1.msra.mxu0 0.0
  %819 = vmatprep.subr.mxu0 0.0
  %820 = vmatpush1.msra.mxu0 0.0
  %821 = vmatprep.subr.mxu0 0.0
  %822 = vmatpush1.msra.mxu0 0.0
  %823 = vmatprep.subr.mxu0 0.0
  %824 = vmatpush1.msra.mxu0 0.0
  %825 = vmatprep.subr.mxu0 0.0
  %826 = vmatpush1.msra.mxu0 0.0
  %827 = vmatprep.subr.mxu0 0.0
  %828 = vmatpush1.msra.mxu0 0.0
  %829 = vmatprep.subr.mxu0 0.0
  %830 = vmatpush1.msra.mxu0 0.0
  %831 = vmatprep.subr.mxu0 0.0
  %832 = vmatpush1.msra.mxu0 0.0
  %833 = vmatprep.subr.mxu0 0.0
  %834 = vmatpush1.msra.mxu0 0.0
  %835 = vmatprep.subr.mxu0 0.0
  %836 = vmatpush1.msra.mxu0 0.0
  %837 = vmatprep.subr.mxu0 0.0
  %838 = vmatpush1.msra.mxu0 0.0
  %839 = vmatprep.subr.mxu0 0.0
  %840 = vmatpush1.msra.mxu0 0.0
  %841 = vmatprep.subr.mxu0 0.0
  %842 = vmatpush1.msra.mxu0 0.0
  %843 = vmatprep.subr.mxu0 0.0
  %844 = vmatpush1.msra.mxu0 0.0
  %845 = vmatprep.subr.mxu0 0.0
  %846 = vmatpush1.msra.mxu0 0.0
  %847 = vmatprep.subr.mxu0 0.0
  %848 = vmatpush1.msra.mxu0 0.0
  %849 = vmatprep.subr.mxu0 0.0
  %850 = vmatpush1.msra.mxu0 0.0
  %851 = vmatprep.mubr.f32.mxu0 0.0
  %852 = vmatmul.mubr.f32.gmra.mrb[0].mxu0 %v687
  %v853 = vpop.f32.mrb[0].mxu0
  %v854 = vadd.f32 0.0, %v853
  %v855 = vpop.f32.mrb[0].mxu0
  %v856 = vadd.f32 0.0, %v855
  %857 = vmatprep.mubr.f32.mxu0 0.0
  %858 = vmatmul.mubr.f32.gmra.mrb[0].mxu0 %v690
  %v859 = vpop.f32.mrb[0].mxu0
  %v860 = vadd.f32 0.0, %v859
  %v861 = vpop.f32.mrb[0].mxu0
  %v862 = vadd.f32 0.0, %v861
  %863 = vmatprep.mubr.f32.mxu0 0.0
  %864 = vmatmul.mubr.f32.gmra.mrb[0].mxu0 %v693
  %v865 = vpop.f32.mrb[0].mxu0
  %v866 = vadd.f32 0.0, %v865
  %v867 = vpop.f32.mrb[0].mxu0
  %v868 = vadd.f32 0.0, %v867
  %869 = vmatprep.mubr.f32.mxu0 0.0
  %870 = vmatmul.mubr.f32.gmra.mrb[0].mxu0 %v696
  %v871 = vpop.f32.mrb[0].mxu0
  %v872 = vadd.f32 0.0, %v871
  %v873 = vpop.f32.mrb[0].mxu0
  %v874 = vadd.f32 0.0, %v873
  %875 = vdwg.mxu0
  %v876 = vld [vmem:[%s6] sm:$0xff]
  %v877 = vld [vmem:[%s6 + $0x8] sm:$0xff]
  %v878 = vld [vmem:[%s6 + $0x10] sm:$0xff]
  %v879 = vld [vmem:[%s6 + $0x18] sm:$0xff]
  %v880 = vld [vmem:[%s7] sm:$0xff]
  %v881 = vld [vmem:[%s7 + $0x8] sm:$0xff]
  %v882 = vld [vmem:[%s7 + $0x10] sm:$0xff]
  %v883 = vld [vmem:[%s7 + $0x18] sm:$0xff]
  %v884 = vadd.f32 %v765, %v767
  %885 = vadd.xlane.f32.xlu0 %v884
  %v886 = vpop.xlane.xlu0 %885
  %v887 = vadd.f32 %v771, %v773
  %888 = vadd.xlane.f32.xlu0 %v887
  %v889 = vpop.xlane.xlu0 %888
  %v890 = vadd.f32 %v777, %v779
  %891 = vadd.xlane.f32.xlu0 %v890
  %v892 = vpop.xlane.xlu0 %891
  %v893 = vadd.f32 %v783, %v785
  %894 = vadd.xlane.f32.xlu0 %v893
  %v895 = vpop.xlane.xlu0 %894
  %v896 = vadd.f32 %v854, %v856
  %897 = vadd.xlane.f32.xlu0 %v896
  %v898 = vpop.xlane.xlu0 %897
  %v899 = vadd.f32 %v860, %v862
  %900 = vadd.xlane.f32.xlu0 %v899
  %v901 = vpop.xlane.xlu0 %900
  %v902 = vadd.f32 %v866, %v868
  %903 = vadd.xlane.f32.xlu0 %v902
  %v904 = vpop.xlane.xlu0 %903
  %v905 = vadd.f32 %v872, %v874
  %906 = vadd.xlane.f32.xlu0 %v905
  %v907 = vpop.xlane.xlu0 %906
  %v908 = vadd.f32 %v886, %v898
  %v909 = vadd.f32 %v889, %v901
  %v910 = vadd.f32 %v892, %v904
  %v911 = vadd.f32 %v895, %v907
  %v912 = vmul.f32 %v765, %v765
  %v913 = vmul.f32 %v767, %v767
  %v914 = vmul.f32 %v771, %v771
  %v915 = vmul.f32 %v773, %v773
  %v916 = vmul.f32 %v777, %v777
  %v917 = vmul.f32 %v779, %v779
  %v918 = vmul.f32 %v783, %v783
  %v919 = vmul.f32 %v785, %v785
  %v920 = vmul.f32 %v854, %v854
  %v921 = vmul.f32 %v856, %v856
  %v922 = vmul.f32 %v860, %v860
  %v923 = vmul.f32 %v862, %v862
  %v924 = vmul.f32 %v866, %v866
  %v925 = vmul.f32 %v868, %v868
  %v926 = vmul.f32 %v872, %v872
  %v927 = vmul.f32 %v874, %v874
  %v928 = vadd.f32 %v912, %v913
  %929 = vadd.xlane.f32.xlu0 %v928
  %v930 = vpop.xlane.xlu0 %929
  %v931 = vadd.f32 %v914, %v915
  %932 = vadd.xlane.f32.xlu0 %v931
  %v933 = vpop.xlane.xlu0 %932
  %v934 = vadd.f32 %v916, %v917
  %935 = vadd.xlane.f32.xlu0 %v934
  %v936 = vpop.xlane.xlu0 %935
  %v937 = vadd.f32 %v918, %v919
  %938 = vadd.xlane.f32.xlu0 %v937
  %v939 = vpop.xlane.xlu0 %938
  %v940 = vadd.f32 %v920, %v921
  %941 = vadd.xlane.f32.xlu0 %v940
  %v942 = vpop.xlane.xlu0 %941
  %v943 = vadd.f32 %v922, %v923
  %944 = vadd.xlane.f32.xlu0 %v943
  %v945 = vpop.xlane.xlu0 %944
  %v946 = vadd.f32 %v924, %v925
  %947 = vadd.xlane.f32.xlu0 %v946
  %v948 = vpop.xlane.xlu0 %947
  %v949 = vadd.f32 %v926, %v927
  %950 = vadd.xlane.f32.xlu0 %v949
  %v951 = vpop.xlane.xlu0 %950
  %v952 = vadd.f32 %v930, %v942
  %v953 = vadd.f32 %v933, %v945
  %v954 = vadd.f32 %v936, %v948
  %v955 = vadd.f32 %v939, %v951
  %v956 = vmul.f32 %v908, 0.001953125
  %v957 = vmul.f32 %v909, 0.001953125
  %v958 = vmul.f32 %v910, 0.001953125
  %v959 = vmul.f32 %v911, 0.001953125
  %v960 = vmul.f32 %v952, 0.001953125
  %v961 = vmul.f32 %v953, 0.001953125
  %v962 = vmul.f32 %v954, 0.001953125
  %v963 = vmul.f32 %v955, 0.001953125
  %v964 = vmul.f32 %v956, %v956
  %v965 = vmul.f32 %v957, %v957
  %v966 = vmul.f32 %v958, %v958
  %v967 = vmul.f32 %v959, %v959
  %v968 = vsub.f32 %v960, %v964
  %v969 = vsub.f32 %v961, %v965
  %v970 = vsub.f32 %v962, %v966
  %v971 = vsub.f32 %v963, %v967
  %v972 = vsub.f32 %v765, %v956
  %v973 = vsub.f32 %v767, %v956
  %v974 = vsub.f32 %v771, %v957
  %v975 = vsub.f32 %v773, %v957
  %v976 = vsub.f32 %v777, %v958
  %v977 = vsub.f32 %v779, %v958
  %v978 = vsub.f32 %v783, %v959
  %v979 = vsub.f32 %v785, %v959
  %v980 = vsub.f32 %v854, %v956
  %v981 = vsub.f32 %v856, %v956
  %v982 = vsub.f32 %v860, %v957
  %v983 = vsub.f32 %v862, %v957
  %v984 = vsub.f32 %v866, %v958
  %v985 = vsub.f32 %v868, %v958
  %v986 = vsub.f32 %v872, %v959
  %v987 = vsub.f32 %v874, %v959
  %v988 = vadd.f32 %v968, 1e-05
  %v989 = vadd.f32 %v969, 1e-05
  %v990 = vadd.f32 %v970, 1e-05
  %v991 = vadd.f32 %v971, 1e-05
  %v992 = vrsqrt.pop %v988
  %v993 = vrsqrt.pop %v989
  %v994 = vrsqrt.pop %v990
  %v995 = vrsqrt.pop %v991
  %v996 = vmul.f32 %v972, %v992
  %v997 = vmul.f32 %v973, %v992
  %v998 = vmul.f32 %v974, %v993
  %v999 = vmul.f32 %v975, %v993
  %v1000 = vmul.f32 %v976, %v994
  %v1001 = vmul.f32 %v977, %v994
  %v1002 = vmul.f32 %v978, %v995
  %v1003 = vmul.f32 %v979, %v995
  %v1004 = vmul.f32 %v980, %v992
  %v1005 = vmul.f32 %v981, %v992
  %v1006 = vmul.f32 %v982, %v993
  %v1007 = vmul.f32 %v983, %v993
  %v1008 = vmul.f32 %v984, %v994
  %v1009 = vmul.f32 %v985, %v994
  %v1010 = vmul.f32 %v986, %v995
  %v1011 = vmul.f32 %v987, %v995
  %1013 = vset.pattern.permute.xlu0 0
  %1014 = vperm.xlu0 %1013, %v876
  %v1015 = vpop.permute.xlu0 %1014
  %1018 = vset.pattern.permute.xlu0 0
  %1019 = vperm.xlu0 %1018, %v877
  %v1020 = vpop.permute.xlu0 %1019
  %1023 = vset.pattern.permute.xlu0 0
  %1024 = vperm.xlu0 %1023, %v878
  %v1025 = vpop.permute.xlu0 %1024
  %1028 = vset.pattern.permute.xlu0 0
  %1029 = vperm.xlu0 %1028, %v879
  %v1030 = vpop.permute.xlu0 %1029
  %v1032 = vmul.f32 %v996, %v1015
  %v1033 = vmul.f32 %v997, %v1015
  %v1034 = vmul.f32 %v998, %v1020
  %v1035 = vmul.f32 %v999, %v1020
  %v1036 = vmul.f32 %v1000, %v1025
  %v1037 = vmul.f32 %v1001, %v1025
  %v1038 = vmul.f32 %v1002, %v1030
  %v1039 = vmul.f32 %v1003, %v1030
  %v1040 = vmul.f32 %v1004, %v1015
  %v1041 = vmul.f32 %v1005, %v1015
  %v1042 = vmul.f32 %v1006, %v1020
  %v1043 = vmul.f32 %v1007, %v1020
  %v1044 = vmul.f32 %v1008, %v1025
  %v1045 = vmul.f32 %v1009, %v1025
  %v1046 = vmul.f32 %v1010, %v1030
  %v1047 = vmul.f32 %v1011, %v1030
  %1049 = vset.pattern.permute.xlu0 0
  %1050 = vperm.xlu0 %1049, %v880
  %v1051 = vpop.permute.xlu0 %1050
  %1054 = vset.pattern.permute.xlu0 0
  %1055 = vperm.xlu0 %1054, %v881
  %v1056 = vpop.permute.xlu0 %1055
  %1059 = vset.pattern.permute.xlu0 0
  %1060 = vperm.xlu0 %1059, %v882
  %v1061 = vpop.permute.xlu0 %1060
  %1064 = vset.pattern.permute.xlu0 0
  %1065 = vperm.xlu0 %1064, %v883
  %v1066 = vpop.permute.xlu0 %1065
  %v1068 = vadd.f32 %v1032, %v1051
  %v1069 = vadd.f32 %v1033, %v1051
  %v1070 = vadd.f32 %v1034, %v1056
  %v1071 = vadd.f32 %v1035, %v1056
  %v1072 = vadd.f32 %v1036, %v1061
  %v1073 = vadd.f32 %v1037, %v1061
  %v1074 = vadd.f32 %v1038, %v1066
  %v1075 = vadd.f32 %v1039, %v1066
  %v1076 = vadd.f32 %v1040, %v1051
  %v1077 = vadd.f32 %v1041, %v1051
  %v1078 = vadd.f32 %v1042, %v1056
  %v1079 = vadd.f32 %v1043, %v1056
  %v1080 = vadd.f32 %v1044, %v1061
  %v1081 = vadd.f32 %v1045, %v1061
  %v1082 = vadd.f32 %v1046, %v1066
  %v1083 = vadd.f32 %v1047, %v1066
  %v1084 = vmax.f32 %v1068, 0.0
  %v1085 = vmax.f32 %v1069, 0.0
  %v1086 = vmax.f32 %v1070, 0.0
  %v1087 = vmax.f32 %v1071, 0.0
  %v1088 = vmax.f32 %v1072, 0.0
  %v1089 = vmax.f32 %v1073, 0.0
  %v1090 = vmax.f32 %v1074, 0.0
  %v1091 = vmax.f32 %v1075, 0.0
  %v1092 = vmax.f32 %v1076, 0.0
  %v1093 = vmax.f32 %v1077, 0.0
  %v1094 = vmax.f32 %v1078, 0.0
  %v1095 = vmax.f32 %v1079, 0.0
  %v1096 = vmax.f32 %v1080, 0.0
  %v1097 = vmax.f32 %v1081, 0.0
  %v1098 = vmax.f32 %v1082, 0.0
  %v1099 = vmax.f32 %v1083, 0.0
  %v1100 = vld [vmem:[%s8] sm:$0x7]
  %v1102 = vsel %vm685, %v1100, 0
  %1104 = vmatprep.subr.mxu0 %v1085
  %1105 = vmatpush1.msra.mxu0 %v1084
  %1106 = vmatprep.subr.mxu0 %v1087
  %1107 = vmatpush1.msra.mxu0 %v1086
  %1108 = vmatprep.subr.mxu0 %v1089
  %1109 = vmatpush1.msra.mxu0 %v1088
  %1110 = vmatprep.subr.mxu0 %v1091
  %1111 = vmatpush1.msra.mxu0 %v1090
  %1112 = vmatprep.subr.mxu0 0.0
  %1113 = vmatpush1.msra.mxu0 0.0
  %1114 = vmatprep.subr.mxu0 0.0
  %1115 = vmatpush1.msra.mxu0 0.0
  %1116 = vmatprep.subr.mxu0 0.0
  %1117 = vmatpush1.msra.mxu0 0.0
  %1118 = vmatprep.subr.mxu0 0.0
  %1119 = vmatpush1.msra.mxu0 0.0
  %1120 = vmatprep.subr.mxu0 0.0
  %1121 = vmatpush1.msra.mxu0 0.0
  %1122 = vmatprep.subr.mxu0 0.0
  %1123 = vmatpush1.msra.mxu0 0.0
  %1124 = vmatprep.subr.mxu0 0.0
  %1125 = vmatpush1.msra.mxu0 0.0
  %1126 = vmatprep.subr.mxu0 0.0
  %1127 = vmatpush1.msra.mxu0 0.0
  %1128 = vmatprep.subr.mxu0 0.0
  %1129 = vmatpush1.msra.mxu0 0.0
  %1130 = vmatprep.subr.mxu0 0.0
  %1131 = vmatpush1.msra.mxu0 0.0
  %1132 = vmatprep.subr.mxu0 0.0
  %1133 = vmatpush1.msra.mxu0 0.0
  %1134 = vmatprep.subr.mxu0 0.0
  %1135 = vmatpush1.msra.mxu0 0.0
  %1136 = vmatprep.subr.mxu0 0.0
  %1137 = vmatpush1.msra.mxu0 0.0
  %1138 = vmatprep.subr.mxu0 0.0
  %1139 = vmatpush1.msra.mxu0 0.0
  %1140 = vmatprep.subr.mxu0 0.0
  %1141 = vmatpush1.msra.mxu0 0.0
  %1142 = vmatprep.subr.mxu0 0.0
  %1143 = vmatpush1.msra.mxu0 0.0
  %1144 = vmatprep.subr.mxu0 0.0
  %1145 = vmatpush1.msra.mxu0 0.0
  %1146 = vmatprep.subr.mxu0 0.0
  %1147 = vmatpush1.msra.mxu0 0.0
  %1148 = vmatprep.subr.mxu0 0.0
  %1149 = vmatpush1.msra.mxu0 0.0
  %1150 = vmatprep.subr.mxu0 0.0
  %1151 = vmatpush1.msra.mxu0 0.0
  %1152 = vmatprep.subr.mxu0 0.0
  %1153 = vmatpush1.msra.mxu0 0.0
  %1154 = vmatprep.subr.mxu0 0.0
  %1155 = vmatpush1.msra.mxu0 0.0
  %1156 = vmatprep.subr.mxu0 0.0
  %1157 = vmatpush1.msra.mxu0 0.0
  %1158 = vmatprep.subr.mxu0 0.0
  %1159 = vmatpush1.msra.mxu0 0.0
  %1160 = vmatprep.subr.mxu0 0.0
  %1161 = vmatpush1.msra.mxu0 0.0
  %1162 = vmatprep.subr.mxu0 0.0
  %1163 = vmatpush1.msra.mxu0 0.0
  %1164 = vmatprep.subr.mxu0 0.0
  %1165 = vmatpush1.msra.mxu0 0.0
  %1166 = vmatprep.subr.mxu0 0.0
  %1167 = vmatpush1.msra.mxu0 0.0
  %1168 = vmatprep.mubr.f32.mxu0 0.0
  %1169 = vmatmul.mubr.f32.gmra.mrb[0].mxu0 %v1102
  %v1170 = vpop.f32.mrb[0].mxu0
  %v1171 = vadd.f32 0.0, %v1170
  %v1172 = vpop.f32.mrb[0].mxu0
  %v1173 = vadd.f32 0.0, %v1172
  %1174 = vdwg.mxu0
  %1175 = vmatprep.subr.mxu0 %v1093
  %1176 = vmatpush1.msra.mxu0 %v1092
  %1177 = vmatprep.subr.mxu0 %v1095
  %1178 = vmatpush1.msra.mxu0 %v1094
  %1179 = vmatprep.subr.mxu0 %v1097
  %1180 = vmatpush1.msra.mxu0 %v1096
  %1181 = vmatprep.subr.mxu0 %v1099
  %1182 = vmatpush1.msra.mxu0 %v1098
  %1183 = vmatprep.subr.mxu0 0.0
  %1184 = vmatpush1.msra.mxu0 0.0
  %1185 = vmatprep.subr.mxu0 0.0
  %1186 = vmatpush1.msra.mxu0 0.0
  %1187 = vmatprep.subr.mxu0 0.0
  %1188 = vmatpush1.msra.mxu0 0.0
  %1189 = vmatprep.subr.mxu0 0.0
  %1190 = vmatpush1.msra.mxu0 0.0
  %1191 = vmatprep.subr.mxu0 0.0
  %1192 = vmatpush1.msra.mxu0 0.0
  %1193 = vmatprep.subr.mxu0 0.0
  %1194 = vmatpush1.msra.mxu0 0.0
  %1195 = vmatprep.subr.mxu0 0.0
  %1196 = vmatpush1.msra.mxu0 0.0
  %1197 = vmatprep.subr.mxu0 0.0
  %1198 = vmatpush1.msra.mxu0 0.0
  %1199 = vmatprep.subr.mxu0 0.0
  %1200 = vmatpush1.msra.mxu0 0.0
  %1201 = vmatprep.subr.mxu0 0.0
  %1202 = vmatpush1.msra.mxu0 0.0
  %1203 = vmatprep.subr.mxu0 0.0
  %1204 = vmatpush1.msra.mxu0 0.0
  %1205 = vmatprep.subr.mxu0 0.0
  %1206 = vmatpush1.msra.mxu0 0.0
  %1207 = vmatprep.subr.mxu0 0.0
  %1208 = vmatpush1.msra.mxu0 0.0
  %1209 = vmatprep.subr.mxu0 0.0
  %1210 = vmatpush1.msra.mxu0 0.0
  %1211 = vmatprep.subr.mxu0 0.0
  %1212 = vmatpush1.msra.mxu0 0.0
  %1213 = vmatprep.subr.mxu0 0.0
  %1214 = vmatpush1.msra.mxu0 0.0
  %1215 = vmatprep.subr.mxu0 0.0
  %1216 = vmatpush1.msra.mxu0 0.0
  %1217 = vmatprep.subr.mxu0 0.0
  %1218 = vmatpush1.msra.mxu0 0.0
  %1219 = vmatprep.subr.mxu0 0.0
  %1220 = vmatpush1.msra.mxu0 0.0
  %1221 = vmatprep.subr.mxu0 0.0
  %1222 = vmatpush1.msra.mxu0 0.0
  %1223 = vmatprep.subr.mxu0 0.0
  %1224 = vmatpush1.msra.mxu0 0.0
  %1225 = vmatprep.subr.mxu0 0.0
  %1226 = vmatpush1.msra.mxu0 0.0
  %1227 = vmatprep.subr.mxu0 0.0
  %1228 = vmatpush1.msra.mxu0 0.0
  %1229 = vmatprep.subr.mxu0 0.0
  %1230 = vmatpush1.msra.mxu0 0.0
  %1231 = vmatprep.subr.mxu0 0.0
  %1232 = vmatpush1.msra.mxu0 0.0
  %1233 = vmatprep.subr.mxu0 0.0
  %1234 = vmatpush1.msra.mxu0 0.0
  %1235 = vmatprep.subr.mxu0 0.0
  %1236 = vmatpush1.msra.mxu0 0.0
  %1237 = vmatprep.subr.mxu0 0.0
  %1238 = vmatpush1.msra.mxu0 0.0
  %1239 = vmatprep.mubr.f32.mxu0 0.0
  %1240 = vmatmul.mubr.f32.gmra.mrb[0].mxu0 %v1102
  %v1241 = vpop.f32.mrb[0].mxu0
  %v1242 = vadd.f32 0.0, %v1241
  %v1243 = vpop.f32.mrb[0].mxu0
  %v1244 = vadd.f32 0.0, %v1243
  %1245 = vdwg.mxu0
  %v1250 = vcombine.low %v1171, %v1173
  %v1251 = vcombine.low %v1242, %v1244
  %1254 = vst [vmem:[%s9] sm:$0x77] %v1250
  %1255 = vst [vmem:[%s9 + $0x8] sm:$0x77] %v1251
  %v1258 = vcombine.high %v32, %v32
  %v1259 = vcombine.high %v33, %v33
  %v1262 = vmul.f32 %v1171, %v32
  %v1263 = vmul.f32 %v1173, %v1258
  %v1264 = vmul.f32 %v1242, %v33
  %v1265 = vmul.f32 %v1244, %v1259
  %v1270 = vcombine.low %v1262, %v1263
  %v1271 = vcombine.low %v1264, %v1265
  %v1274 = vsub.f32 %v35, %v1270
  %v1275 = vsub.f32 %v36, %v1271
  %s1276 = scalar_lea.vmem %s9, 16
  %1277 = vst [vmem:[%s1276] sm:$0x77] %v1274
  %1278 = vst [vmem:[%s1276 + $0x8] sm:$0x77] %v1275
  // Predicated region
  $region38: #{conv_guided_filter.4} parent=0 // pred_check
    _
  $region39: #{conv_guided_filter.4} parent=0 // pred_check_branch
    %1280 = sbr.rel (0) target = $region41
  $region40: #{conv_guided_filter.4} parent=0 // pred_region
    _
  $region41: #{conv_guided_filter.4} parent=0 // pred_fallthru
    _
  // Predicated region
  $region42: #{conv_guided_filter.4} parent=0 // pred_check
    _
  $region43: #{conv_guided_filter.4} parent=0 // pred_check_branch
    %1282 = sbr.rel (0) target = $region45
  $region44: #{conv_guided_filter.4} parent=0 // pred_region
    _
  $region45: #{conv_guided_filter.4} parent=0 // pred_fallthru
    _

// kernel: conv_guided_filter.5
$region0: #{conv_guided_filter.5}
  #allocation0 [shape = 'u32[]', space=smem, size = 0x4, offset = 0x4, fixed_abs, tag = 'smem constant byte address 0x4 - core index']
  #allocation1 [shape = 'u32[144,128]{1,0:T(1,128)}', space=vmem, size = 0x12000, scoped, tag = 'internal scratch']
  %s0 = inlined_call_operand.vmem [shape: f32[2,6,16,16], index: 0, kind: input, shape index: {}]
  %s1 = inlined_call_operand.vmem [shape: f32[6,32,32], index: 1, kind: input, shape index: {}]
  %s2 = inlined_call_operand.vmem [shape: f32[32,16], index: 2, kind: input, shape index: {}]
  %s3 = inlined_call_operand.vmem [shape: f32[16,32], index: 3, kind: input, shape index: {}]
  %s4 = inlined_call_operand.hbm [shape: f32[6,32,32], index: 4, kind: output, shape index: {}]
  %s5 = sld [smem:[#allocation0]]
  $region26: #{conv_guided_filter.5} parent=0
    _
  %s7 = ssub.s32 1, %s5
  %s8 = scalar_select 0, %s7, %s5
  $region1: #{conv_guided_filter.5} parent=0
    #allocation2 [shape = 'u8[98304]{0}', space=vmem, size = 0x18000, scoped, tag = 'output window, operand 0, single buffered']
    #allocation3 [shape = 's32[1]{0}', space=sflag, size = 0x4, scoped, tag = 'scoped memory for conv_guided_filter.5']
    %9 = vsyncpa [#allocation3], 0
    // Predicated region
    $region2: #{conv_guided_filter.5} parent=1 // pred_check
      _
    $region3: #{conv_guided_filter.5} parent=1 // pred_check_branch
      %11 = sbr.rel (0) target = $region5
    $region4: #{conv_guided_filter.5} parent=1 // pred_region
      _
    $region5: #{conv_guided_filter.5} parent=1 // pred_fallthru
      _
    // Predicated region
    $region6: #{conv_guided_filter.5} parent=1 // pred_check
      _
    $region7: #{conv_guided_filter.5} parent=1 // pred_check_branch
      %13 = sbr.rel (0) target = $region9
    $region8: #{conv_guided_filter.5} parent=1 // pred_region
      _
    $region9: #{conv_guided_filter.5} parent=1 // pred_fallthru
      _
    // Predicated region
    $region10: #{conv_guided_filter.5} parent=1 // pred_check
      _
    $region11: #{conv_guided_filter.5} parent=1 // pred_check_branch
      %15 = sbr.rel (0) target = $region13
    $region12: #{conv_guided_filter.5} parent=1 // pred_region
      _
    $region13: #{conv_guided_filter.5} parent=1 // pred_fallthru
      _
    // Predicated region
    $region14: #{conv_guided_filter.5} parent=1 // pred_check
      _
    $region15: #{conv_guided_filter.5} parent=1 // pred_check_branch
      %17 = sbr.rel (0) target = $region17
    $region16: #{conv_guided_filter.5} parent=1 // pred_region
      _
    $region17: #{conv_guided_filter.5} parent=1 // pred_fallthru
      _
    %v18 = vld [vmem:[%s0] sm:$0xff]
    %v19 = vld [vmem:[%s0 + $0x8] sm:$0xff]
    %v20 = vld [vmem:[%s0 + $0x10] sm:$0xff]
    %v21 = vld [vmem:[%s0 + $0x18] sm:$0xff]
    %v22 = vld [vmem:[%s0 + $0x20] sm:$0xff]
    %v23 = vld [vmem:[%s0 + $0x28] sm:$0xff]
    %v24 = vld [vmem:[%s0 + $0x30] sm:$0xff]
    %v25 = vld [vmem:[%s0 + $0x38] sm:$0xff]
    %v26 = vld [vmem:[%s0 + $0x40] sm:$0xff]
    %v27 = vld [vmem:[%s0 + $0x48] sm:$0xff]
    %v28 = vld [vmem:[%s0 + $0x50] sm:$0xff]
    %v29 = vld [vmem:[%s0 + $0x58] sm:$0xff]
    %v30 = vld [vmem:[%s0 + $0x60] sm:$0xff]
    %v31 = vld [vmem:[%s0 + $0x68] sm:$0xff]
    %v32 = vld [vmem:[%s0 + $0x70] sm:$0xff]
    %v33 = vld [vmem:[%s0 + $0x78] sm:$0xff]
    %v34 = vld [vmem:[%s0 + $0x80] sm:$0xff]
    %v35 = vld [vmem:[%s0 + $0x88] sm:$0xff]
    %v36 = vld [vmem:[%s0 + $0x90] sm:$0xff]
    %v37 = vld [vmem:[%s0 + $0x98] sm:$0xff]
    %v38 = vld [vmem:[%s0 + $0xa0] sm:$0xff]
    %v39 = vld [vmem:[%s0 + $0xa8] sm:$0xff]
    %v40 = vld [vmem:[%s0 + $0xb0] sm:$0xff]
    %v41 = vld [vmem:[%s0 + $0xb8] sm:$0xff]
    %v42 = vld [vmem:[%s3] sm:$0xff]
    %v43 = vld [vmem:[%s3 + $0x8] sm:$0xff]
    %vm44 = vcmask 130048
    %v46 = vsel %vm44, %v18, 0
    %v49 = vsel %vm44, %v19, 0
    %51 = vmatprep.subr.mxu0 0.0
    %52 = vmatpush1.msra.mxu0 %v42
    %53 = vmatprep.subr.mxu0 0.0
    %54 = vmatpush1.msra.mxu0 %v43
    %55 = vmatprep.subr.mxu0 0.0
    %56 = vmatpush1.msra.mxu0 0.0
    %57 = vmatprep.subr.mxu0 0.0
    %58 = vmatpush1.msra.mxu0 0.0
    %59 = vmatprep.subr.mxu0 0.0
    %60 = vmatpush1.msra.mxu0 0.0
    %61 = vmatprep.subr.mxu0 0.0
    %62 = vmatpush1.msra.mxu0 0.0
    %63 = vmatprep.subr.mxu0 0.0
    %64 = vmatpush1.msra.mxu0 0.0
    %65 = vmatprep.subr.mxu0 0.0
    %66 = vmatpush1.msra.mxu0 0.0
    %67 = vmatprep.subr.mxu0 0.0
    %68 = vmatpush1.msra.mxu0 0.0
    %69 = vmatprep.subr.mxu0 0.0
    %70 = vmatpush1.msra.mxu0 0.0
    %71 = vmatprep.subr.mxu0 0.0
    %72 = vmatpush1.msra.mxu0 0.0
    %73 = vmatprep.subr.mxu0 0.0
    %74 = vmatpush1.msra.mxu0 0.0
    %75 = vmatprep.subr.mxu0 0.0
    %76 = vmatpush1.msra.mxu0 0.0
    %77 = vmatprep.subr.mxu0 0.0
    %78 = vmatpush1.msra.mxu0 0.0
    %79 = vmatprep.subr.mxu0 0.0
    %80 = vmatpush1.msra.mxu0 0.0
    %81 = vmatprep.subr.mxu0 0.0
    %82 = vmatpush1.msra.mxu0 0.0
    %83 = vmatprep.subr.mxu0 0.0
    %84 = vmatpush1.msra.mxu0 0.0
    %85 = vmatprep.subr.mxu0 0.0
    %86 = vmatpush1.msra.mxu0 0.0
    %87 = vmatprep.subr.mxu0 0.0
    %88 = vmatpush1.msra.mxu0 0.0
    %89 = vmatprep.subr.mxu0 0.0
    %90 = vmatpush1.msra.mxu0 0.0
    %91 = vmatprep.subr.mxu0 0.0
    %92 = vmatpush1.msra.mxu0 0.0
    %93 = vmatprep.subr.mxu0 0.0
    %94 = vmatpush1.msra.mxu0 0.0
    %95 = vmatprep.subr.mxu0 0.0
    %96 = vmatpush1.msra.mxu0 0.0
    %97 = vmatprep.subr.mxu0 0.0
    %98 = vmatpush1.msra.mxu0 0.0
    %99 = vmatprep.subr.mxu0 0.0
    %100 = vmatpush1.msra.mxu0 0.0
    %101 = vmatprep.subr.mxu0 0.0
    %102 = vmatpush1.msra.mxu0 0.0
    %103 = vmatprep.subr.mxu0 0.0
    %104 = vmatpush1.msra.mxu0 0.0
    %105 = vmatprep.subr.mxu0 0.0
    %106 = vmatpush1.msra.mxu0 0.0
    %107 = vmatprep.subr.mxu0 0.0
    %108 = vmatpush1.msra.mxu0 0.0
    %109 = vmatprep.subr.mxu0 0.0
    %110 = vmatpush1.msra.mxu0 0.0
    %111 = vmatprep.subr.mxu0 0.0
    %112 = vmatpush1.msra.mxu0 0.0
    %113 = vmatprep.subr.mxu0 0.0
    %114 = vmatpush1.msra.mxu0 0.0
    %115 = vmatprep.mubr.f32.mxu0 0.0
    %116 = vmatmul.mubr.f32.gmra.mrb[0].mxu0 %v46
    %v117 = vpop.f32.mrb[0].mxu0
    %v118 = vadd.f32 0.0, %v117
    %v119 = vpop.f32.mrb[0].mxu0
    %120 = vmatprep.mubr.f32.mxu0 0.0
    %121 = vmatmul.mubr.f32.gmra.mrb[0].mxu0 %v49
    %v122 = vpop.f32.mrb[0].mxu0
    %v123 = vadd.f32 0.0, %v122
    %v124 = vpop.f32.mrb[0].mxu0
    %125 = vdwg.mxu0
    %v127 = vsel %vm44, %v20, 0
    %v130 = vsel %vm44, %v21, 0
    %132 = vmatprep.subr.mxu0 0.0
    %133 = vmatpush1.msra.mxu0 %v42
    %134 = vmatprep.subr.mxu0 0.0
    %135 = vmatpush1.msra.mxu0 %v43
    %136 = vmatprep.subr.mxu0 0.0
    %137 = vmatpush1.msra.mxu0 0.0
    %138 = vmatprep.subr.mxu0 0.0
    %139 = vmatpush1.msra.mxu0 0.0
    %140 = vmatprep.subr.mxu0 0.0
    %141 = vmatpush1.msra.mxu0 0.0
    %142 = vmatprep.subr.mxu0 0.0
    %143 = vmatpush1.msra.mxu0 0.0
    %144 = vmatprep.subr.mxu0 0.0
    %145 = vmatpush1.msra.mxu0 0.0
    %146 = vmatprep.subr.mxu0 0.0
    %147 = vmatpush1.msra.mxu0 0.0
    %148 = vmatprep.subr.mxu0 0.0
    %149 = vmatpush1.msra.mxu0 0.0
    %150 = vmatprep.subr.mxu0 0.0
    %151 = vmatpush1.msra.mxu0 0.0
    %152 = vmatprep.subr.mxu0 0.0
    %153 = vmatpush1.msra.mxu0 0.0
    %154 = vmatprep.subr.mxu0 0.0
    %155 = vmatpush1.msra.mxu0 0.0
    %156 = vmatprep.subr.mxu0 0.0
    %157 = vmatpush1.msra.mxu0 0.0
    %158 = vmatprep.subr.mxu0 0.0
    %159 = vmatpush1.msra.mxu0 0.0
    %160 = vmatprep.subr.mxu0 0.0
    %161 = vmatpush1.msra.mxu0 0.0
    %162 = vmatprep.subr.mxu0 0.0
    %163 = vmatpush1.msra.mxu0 0.0
    %164 = vmatprep.subr.mxu0 0.0
    %165 = vmatpush1.msra.mxu0 0.0
    %166 = vmatprep.subr.mxu0 0.0
    %167 = vmatpush1.msra.mxu0 0.0
    %168 = vmatprep.subr.mxu0 0.0
    %169 = vmatpush1.msra.mxu0 0.0
    %170 = vmatprep.subr.mxu0 0.0
    %171 = vmatpush1.msra.mxu0 0.0
    %172 = vmatprep.subr.mxu0 0.0
    %173 = vmatpush1.msra.mxu0 0.0
    %174 = vmatprep.subr.mxu0 0.0
    %175 = vmatpush1.msra.mxu0 0.0
    %176 = vmatprep.subr.mxu0 0.0
    %177 = vmatpush1.msra.mxu0 0.0
    %178 = vmatprep.subr.mxu0 0.0
    %179 = vmatpush1.msra.mxu0 0.0
    %180 = vmatprep.subr.mxu0 0.0
    %181 = vmatpush1.msra.mxu0 0.0
    %182 = vmatprep.subr.mxu0 0.0
    %183 = vmatpush1.msra.mxu0 0.0
    %184 = vmatprep.subr.mxu0 0.0
    %185 = vmatpush1.msra.mxu0 0.0
    %186 = vmatprep.subr.mxu0 0.0
    %187 = vmatpush1.msra.mxu0 0.0
    %188 = vmatprep.subr.mxu0 0.0
    %189 = vmatpush1.msra.mxu0 0.0
    %190 = vmatprep.subr.mxu0 0.0
    %191 = vmatpush1.msra.mxu0 0.0
    %192 = vmatprep.subr.mxu0 0.0
    %193 = vmatpush1.msra.mxu0 0.0
    %194 = vmatprep.subr.mxu0 0.0
    %195 = vmatpush1.msra.mxu0 0.0
    %196 = vmatprep.mubr.f32.mxu0 0.0
    %197 = vmatmul.mubr.f32.gmra.mrb[0].mxu0 %v127
    %v198 = vpop.f32.mrb[0].mxu0
    %v199 = vadd.f32 0.0, %v198
    %v200 = vpop.f32.mrb[0].mxu0
    %201 = vmatprep.mubr.f32.mxu0 0.0
    %202 = vmatmul.mubr.f32.gmra.mrb[0].mxu0 %v130
    %v203 = vpop.f32.mrb[0].mxu0
    %v204 = vadd.f32 0.0, %v203
    %v205 = vpop.f32.mrb[0].mxu0
    %206 = vdwg.mxu0
    %v208 = vsel %vm44, %v22, 0
    %v211 = vsel %vm44, %v23, 0
    %213 = vmatprep.subr.mxu0 0.0
    %214 = vmatpush1.msra.mxu0 %v42
    %215 = vmatprep.subr.mxu0 0.0
    %216 = vmatpush1.msra.mxu0 %v43
    %217 = vmatprep.subr.mxu0 0.0
    %218 = vmatpush1.msra.mxu0 0.0
    %219 = vmatprep.subr.mxu0 0.0
    %220 = vmatpush1.msra.mxu0 0.0
    %221 = vmatprep.subr.mxu0 0.0
    %222 = vmatpush1.msra.mxu0 0.0
    %223 = vmatprep.subr.mxu0 0.0
    %224 = vmatpush1.msra.mxu0 0.0
    %225 = vmatprep.subr.mxu0 0.0
    %226 = vmatpush1.msra.mxu0 0.0
    %227 = vmatprep.subr.mxu0 0.0
    %228 = vmatpush1.msra.mxu0 0.0
    %229 = vmatprep.subr.mxu0 0.0
    %230 = vmatpush1.msra.mxu0 0.0
    %231 = vmatprep.subr.mxu0 0.0
    %232 = vmatpush1.msra.mxu0 0.0
    %233 = vmatprep.subr.mxu0 0.0
    %234 = vmatpush1.msra.mxu0 0.0
    %235 = vmatprep.subr.mxu0 0.0
    %236 = vmatpush1.msra.mxu0 0.0
    %237 = vmatprep.subr.mxu0 0.0
    %238 = vmatpush1.msra.mxu0 0.0
    %239 = vmatprep.subr.mxu0 0.0
    %240 = vmatpush1.msra.mxu0 0.0
    %241 = vmatprep.subr.mxu0 0.0
    %242 = vmatpush1.msra.mxu0 0.0
    %243 = vmatprep.subr.mxu0 0.0
    %244 = vmatpush1.msra.mxu0 0.0
    %245 = vmatprep.subr.mxu0 0.0
    %246 = vmatpush1.msra.mxu0 0.0
    %247 = vmatprep.subr.mxu0 0.0
    %248 = vmatpush1.msra.mxu0 0.0
    %249 = vmatprep.subr.mxu0 0.0
    %250 = vmatpush1.msra.mxu0 0.0
    %251 = vmatprep.subr.mxu0 0.0
    %252 = vmatpush1.msra.mxu0 0.0
    %253 = vmatprep.subr.mxu0 0.0
    %254 = vmatpush1.msra.mxu0 0.0
    %255 = vmatprep.subr.mxu0 0.0
    %256 = vmatpush1.msra.mxu0 0.0
    %257 = vmatprep.subr.mxu0 0.0
    %258 = vmatpush1.msra.mxu0 0.0
    %259 = vmatprep.subr.mxu0 0.0
    %260 = vmatpush1.msra.mxu0 0.0
    %261 = vmatprep.subr.mxu0 0.0
    %262 = vmatpush1.msra.mxu0 0.0
    %263 = vmatprep.subr.mxu0 0.0
    %264 = vmatpush1.msra.mxu0 0.0
    %265 = vmatprep.subr.mxu0 0.0
    %266 = vmatpush1.msra.mxu0 0.0
    %267 = vmatprep.subr.mxu0 0.0
    %268 = vmatpush1.msra.mxu0 0.0
    %269 = vmatprep.subr.mxu0 0.0
    %270 = vmatpush1.msra.mxu0 0.0
    %271 = vmatprep.subr.mxu0 0.0
    %272 = vmatpush1.msra.mxu0 0.0
    %273 = vmatprep.subr.mxu0 0.0
    %274 = vmatpush1.msra.mxu0 0.0
    %275 = vmatprep.subr.mxu0 0.0
    %276 = vmatpush1.msra.mxu0 0.0
    %277 = vmatprep.mubr.f32.mxu0 0.0
    %278 = vmatmul.mubr.f32.gmra.mrb[0].mxu0 %v208
    %v279 = vpop.f32.mrb[0].mxu0
    %v280 = vadd.f32 0.0, %v279
    %v281 = vpop.f32.mrb[0].mxu0
    %282 = vmatprep.mubr.f32.mxu0 0.0
    %283 = vmatmul.mubr.f32.gmra.mrb[0].mxu0 %v211
    %v284 = vpop.f32.mrb[0].mxu0
    %v285 = vadd.f32 0.0, %v284
    %v286 = vpop.f32.mrb[0].mxu0
    %287 = vdwg.mxu0
    %v289 = vsel %vm44, %v24, 0
    %v292 = vsel %vm44, %v25, 0
    %294 = vmatprep.subr.mxu0 0.0
    %295 = vmatpush1.msra.mxu0 %v42
    %296 = vmatprep.subr.mxu0 0.0
    %297 = vmatpush1.msra.mxu0 %v43
    %298 = vmatprep.subr.mxu0 0.0
    %299 = vmatpush1.msra.mxu0 0.0
    %300 = vmatprep.subr.mxu0 0.0
    %301 = vmatpush1.msra.mxu0 0.0
    %302 = vmatprep.subr.mxu0 0.0
    %303 = vmatpush1.msra.mxu0 0.0
    %304 = vmatprep.subr.mxu0 0.0
    %305 = vmatpush1.msra.mxu0 0.0
    %306 = vmatprep.subr.mxu0 0.0
    %307 = vmatpush1.msra.mxu0 0.0
    %308 = vmatprep.subr.mxu0 0.0
    %309 = vmatpush1.msra.mxu0 0.0
    %310 = vmatprep.subr.mxu0 0.0
    %311 = vmatpush1.msra.mxu0 0.0
    %312 = vmatprep.subr.mxu0 0.0
    %313 = vmatpush1.msra.mxu0 0.0
    %314 = vmatprep.subr.mxu0 0.0
    %315 = vmatpush1.msra.mxu0 0.0
    %316 = vmatprep.subr.mxu0 0.0
    %317 = vmatpush1.msra.mxu0 0.0
    %318 = vmatprep.subr.mxu0 0.0
    %319 = vmatpush1.msra.mxu0 0.0
    %320 = vmatprep.subr.mxu0 0.0
    %321 = vmatpush1.msra.mxu0 0.0
    %322 = vmatprep.subr.mxu0 0.0
    %323 = vmatpush1.msra.mxu0 0.0
    %324 = vmatprep.subr.mxu0 0.0
    %325 = vmatpush1.msra.mxu0 0.0
    %326 = vmatprep.subr.mxu0 0.0
    %327 = vmatpush1.msra.mxu0 0.0
    %328 = vmatprep.subr.mxu0 0.0
    %329 = vmatpush1.msra.mxu0 0.0
    %330 = vmatprep.subr.mxu0 0.0
    %331 = vmatpush1.msra.mxu0 0.0
    %332 = vmatprep.subr.mxu0 0.0
    %333 = vmatpush1.msra.mxu0 0.0
    %334 = vmatprep.subr.mxu0 0.0
    %335 = vmatpush1.msra.mxu0 0.0
    %336 = vmatprep.subr.mxu0 0.0
    %337 = vmatpush1.msra.mxu0 0.0
    %338 = vmatprep.subr.mxu0 0.0
    %339 = vmatpush1.msra.mxu0 0.0
    %340 = vmatprep.subr.mxu0 0.0
    %341 = vmatpush1.msra.mxu0 0.0
    %342 = vmatprep.subr.mxu0 0.0
    %343 = vmatpush1.msra.mxu0 0.0
    %344 = vmatprep.subr.mxu0 0.0
    %345 = vmatpush1.msra.mxu0 0.0
    %346 = vmatprep.subr.mxu0 0.0
    %347 = vmatpush1.msra.mxu0 0.0
    %348 = vmatprep.subr.mxu0 0.0
    %349 = vmatpush1.msra.mxu0 0.0
    %350 = vmatprep.subr.mxu0 0.0
    %351 = vmatpush1.msra.mxu0 0.0
    %352 = vmatprep.subr.mxu0 0.0
    %353 = vmatpush1.msra.mxu0 0.0
    %354 = vmatprep.subr.mxu0 0.0
    %355 = vmatpush1.msra.mxu0 0.0
    %356 = vmatprep.subr.mxu0 0.0
    %357 = vmatpush1.msra.mxu0 0.0
    %358 = vmatprep.mubr.f32.mxu0 0.0
    %359 = vmatmul.mubr.f32.gmra.mrb[0].mxu0 %v289
    %v360 = vpop.f32.mrb[0].mxu0
    %v361 = vadd.f32 0.0, %v360
    %v362 = vpop.f32.mrb[0].mxu0
    %363 = vmatprep.mubr.f32.mxu0 0.0
    %364 = vmatmul.mubr.f32.gmra.mrb[0].mxu0 %v292
    %v365 = vpop.f32.mrb[0].mxu0
    %v366 = vadd.f32 0.0, %v365
    %v367 = vpop.f32.mrb[0].mxu0
    %368 = vdwg.mxu0
    %v370 = vsel %vm44, %v26, 0
    %v373 = vsel %vm44, %v27, 0
    %375 = vmatprep.subr.mxu0 0.0
    %376 = vmatpush1.msra.mxu0 %v42
    %377 = vmatprep.subr.mxu0 0.0
    %378 = vmatpush1.msra.mxu0 %v43
    %379 = vmatprep.subr.mxu0 0.0
    %380 = vmatpush1.msra.mxu0 0.0
    %381 = vmatprep.subr.mxu0 0.0
    %382 = vmatpush1.msra.mxu0 0.0
    %383 = vmatprep.subr.mxu0 0.0
    %384 = vmatpush1.msra.mxu0 0.0
    %385 = vmatprep.subr.mxu0 0.0
    %386 = vmatpush1.msra.mxu0 0.0
    %387 = vmatprep.subr.mxu0 0.0
    %388 = vmatpush1.msra.mxu0 0.0
    %389 = vmatprep.subr.mxu0 0.0
    %390 = vmatpush1.msra.mxu0 0.0
    %391 = vmatprep.subr.mxu0 0.0
    %392 = vmatpush1.msra.mxu0 0.0
    %393 = vmatprep.subr.mxu0 0.0
    %394 = vmatpush1.msra.mxu0 0.0
    %395 = vmatprep.subr.mxu0 0.0
    %396 = vmatpush1.msra.mxu0 0.0
    %397 = vmatprep.subr.mxu0 0.0
    %398 = vmatpush1.msra.mxu0 0.0
    %399 = vmatprep.subr.mxu0 0.0
    %400 = vmatpush1.msra.mxu0 0.0
    %401 = vmatprep.subr.mxu0 0.0
    %402 = vmatpush1.msra.mxu0 0.0
    %403 = vmatprep.subr.mxu0 0.0
    %404 = vmatpush1.msra.mxu0 0.0
    %405 = vmatprep.subr.mxu0 0.0
    %406 = vmatpush1.msra.mxu0 0.0
    %407 = vmatprep.subr.mxu0 0.0
    %408 = vmatpush1.msra.mxu0 0.0
    %409 = vmatprep.subr.mxu0 0.0
    %410 = vmatpush1.msra.mxu0 0.0
    %411 = vmatprep.subr.mxu0 0.0
    %412 = vmatpush1.msra.mxu0 0.0
    %413 = vmatprep.subr.mxu0 0.0
    %414 = vmatpush1.msra.mxu0 0.0
    %415 = vmatprep.subr.mxu0 0.0
    %416 = vmatpush1.msra.mxu0 0.0
    %417 = vmatprep.subr.mxu0 0.0
    %418 = vmatpush1.msra.mxu0 0.0
    %419 = vmatprep.subr.mxu0 0.0
    %420 = vmatpush1.msra.mxu0 0.0
    %421 = vmatprep.subr.mxu0 0.0
    %422 = vmatpush1.msra.mxu0 0.0
    %423 = vmatprep.subr.mxu0 0.0
    %424 = vmatpush1.msra.mxu0 0.0
    %425 = vmatprep.subr.mxu0 0.0
    %426 = vmatpush1.msra.mxu0 0.0
    %427 = vmatprep.subr.mxu0 0.0
    %428 = vmatpush1.msra.mxu0 0.0
    %429 = vmatprep.subr.mxu0 0.0
    %430 = vmatpush1.msra.mxu0 0.0
    %431 = vmatprep.subr.mxu0 0.0
    %432 = vmatpush1.msra.mxu0 0.0
    %433 = vmatprep.subr.mxu0 0.0
    %434 = vmatpush1.msra.mxu0 0.0
    %435 = vmatprep.subr.mxu0 0.0
    %436 = vmatpush1.msra.mxu0 0.0
    %437 = vmatprep.subr.mxu0 0.0
    %438 = vmatpush1.msra.mxu0 0.0
    %439 = vmatprep.mubr.f32.mxu0 0.0
    %440 = vmatmul.mubr.f32.gmra.mrb[0].mxu0 %v370
    %v441 = vpop.f32.mrb[0].mxu0
    %v442 = vadd.f32 0.0, %v441
    %v443 = vpop.f32.mrb[0].mxu0
    %444 = vmatprep.mubr.f32.mxu0 0.0
    %445 = vmatmul.mubr.f32.gmra.mrb[0].mxu0 %v373
    %v446 = vpop.f32.mrb[0].mxu0
    %v447 = vadd.f32 0.0, %v446
    %v448 = vpop.f32.mrb[0].mxu0
    %449 = vdwg.mxu0
    %v451 = vsel %vm44, %v28, 0
    %v454 = vsel %vm44, %v29, 0
    %456 = vmatprep.subr.mxu0 0.0
    %457 = vmatpush1.msra.mxu0 %v42
    %458 = vmatprep.subr.mxu0 0.0
    %459 = vmatpush1.msra.mxu0 %v43
    %460 = vmatprep.subr.mxu0 0.0
    %461 = vmatpush1.msra.mxu0 0.0
    %462 = vmatprep.subr.mxu0 0.0
    %463 = vmatpush1.msra.mxu0 0.0
    %464 = vmatprep.subr.mxu0 0.0
    %465 = vmatpush1.msra.mxu0 0.0
    %466 = vmatprep.subr.mxu0 0.0
    %467 = vmatpush1.msra.mxu0 0.0
    %468 = vmatprep.subr.mxu0 0.0
    %469 = vmatpush1.msra.mxu0 0.0
    %470 = vmatprep.subr.mxu0 0.0
    %471 = vmatpush1.msra.mxu0 0.0
    %472 = vmatprep.subr.mxu0 0.0
    %473 = vmatpush1.msra.mxu0 0.0
    %474 = vmatprep.subr.mxu0 0.0
    %475 = vmatpush1.msra.mxu0 0.0
    %476 = vmatprep.subr.mxu0 0.0
    %477 = vmatpush1.msra.mxu0 0.0
    %478 = vmatprep.subr.mxu0 0.0
    %479 = vmatpush1.msra.mxu0 0.0
    %480 = vmatprep.subr.mxu0 0.0
    %481 = vmatpush1.msra.mxu0 0.0
    %482 = vmatprep.subr.mxu0 0.0
    %483 = vmatpush1.msra.mxu0 0.0
    %484 = vmatprep.subr.mxu0 0.0
    %485 = vmatpush1.msra.mxu0 0.0
    %486 = vmatprep.subr.mxu0 0.0
    %487 = vmatpush1.msra.mxu0 0.0
    %488 = vmatprep.subr.mxu0 0.0
    %489 = vmatpush1.msra.mxu0 0.0
    %490 = vmatprep.subr.mxu0 0.0
    %491 = vmatpush1.msra.mxu0 0.0
    %492 = vmatprep.subr.mxu0 0.0
    %493 = vmatpush1.msra.mxu0 0.0
    %494 = vmatprep.subr.mxu0 0.0
    %495 = vmatpush1.msra.mxu0 0.0
    %496 = vmatprep.subr.mxu0 0.0
    %497 = vmatpush1.msra.mxu0 0.0
    %498 = vmatprep.subr.mxu0 0.0
    %499 = vmatpush1.msra.mxu0 0.0
    %500 = vmatprep.subr.mxu0 0.0
    %501 = vmatpush1.msra.mxu0 0.0
    %502 = vmatprep.subr.mxu0 0.0
    %503 = vmatpush1.msra.mxu0 0.0
    %504 = vmatprep.subr.mxu0 0.0
    %505 = vmatpush1.msra.mxu0 0.0
    %506 = vmatprep.subr.mxu0 0.0
    %507 = vmatpush1.msra.mxu0 0.0
    %508 = vmatprep.subr.mxu0 0.0
    %509 = vmatpush1.msra.mxu0 0.0
    %510 = vmatprep.subr.mxu0 0.0
    %511 = vmatpush1.msra.mxu0 0.0
    %512 = vmatprep.subr.mxu0 0.0
    %513 = vmatpush1.msra.mxu0 0.0
    %514 = vmatprep.subr.mxu0 0.0
    %515 = vmatpush1.msra.mxu0 0.0
    %516 = vmatprep.subr.mxu0 0.0
    %517 = vmatpush1.msra.mxu0 0.0
    %518 = vmatprep.subr.mxu0 0.0
    %519 = vmatpush1.msra.mxu0 0.0
    %520 = vmatprep.mubr.f32.mxu0 0.0
    %521 = vmatmul.mubr.f32.gmra.mrb[0].mxu0 %v451
    %v522 = vpop.f32.mrb[0].mxu0
    %v523 = vadd.f32 0.0, %v522
    %v524 = vpop.f32.mrb[0].mxu0
    %525 = vmatprep.mubr.f32.mxu0 0.0
    %526 = vmatmul.mubr.f32.gmra.mrb[0].mxu0 %v454
    %v527 = vpop.f32.mrb[0].mxu0
    %v528 = vadd.f32 0.0, %v527
    %v529 = vpop.f32.mrb[0].mxu0
    %530 = vdwg.mxu0
    %v532 = vsel %vm44, %v30, 0
    %v535 = vsel %vm44, %v31, 0
    %537 = vmatprep.subr.mxu0 0.0
    %538 = vmatpush1.msra.mxu0 %v42
    %539 = vmatprep.subr.mxu0 0.0
    %540 = vmatpush1.msra.mxu0 %v43
    %541 = vmatprep.subr.mxu0 0.0
    %542 = vmatpush1.msra.mxu0 0.0
    %543 = vmatprep.subr.mxu0 0.0
    %544 = vmatpush1.msra.mxu0 0.0
    %545 = vmatprep.subr.mxu0 0.0
    %546 = vmatpush1.msra.mxu0 0.0
    %547 = vmatprep.subr.mxu0 0.0
    %548 = vmatpush1.msra.mxu0 0.0
    %549 = vmatprep.subr.mxu0 0.0
    %550 = vmatpush1.msra.mxu0 0.0
    %551 = vmatprep.subr.mxu0 0.0
    %552 = vmatpush1.msra.mxu0 0.0
    %553 = vmatprep.subr.mxu0 0.0
    %554 = vmatpush1.msra.mxu0 0.0
    %555 = vmatprep.subr.mxu0 0.0
    %556 = vmatpush1.msra.mxu0 0.0
    %557 = vmatprep.subr.mxu0 0.0
    %558 = vmatpush1.msra.mxu0 0.0
    %559 = vmatprep.subr.mxu0 0.0
    %560 = vmatpush1.msra.mxu0 0.0
    %561 = vmatprep.subr.mxu0 0.0
    %562 = vmatpush1.msra.mxu0 0.0
    %563 = vmatprep.subr.mxu0 0.0
    %564 = vmatpush1.msra.mxu0 0.0
    %565 = vmatprep.subr.mxu0 0.0
    %566 = vmatpush1.msra.mxu0 0.0
    %567 = vmatprep.subr.mxu0 0.0
    %568 = vmatpush1.msra.mxu0 0.0
    %569 = vmatprep.subr.mxu0 0.0
    %570 = vmatpush1.msra.mxu0 0.0
    %571 = vmatprep.subr.mxu0 0.0
    %572 = vmatpush1.msra.mxu0 0.0
    %573 = vmatprep.subr.mxu0 0.0
    %574 = vmatpush1.msra.mxu0 0.0
    %575 = vmatprep.subr.mxu0 0.0
    %576 = vmatpush1.msra.mxu0 0.0
    %577 = vmatprep.subr.mxu0 0.0
    %578 = vmatpush1.msra.mxu0 0.0
    %579 = vmatprep.subr.mxu0 0.0
    %580 = vmatpush1.msra.mxu0 0.0
    %581 = vmatprep.subr.mxu0 0.0
    %582 = vmatpush1.msra.mxu0 0.0
    %583 = vmatprep.subr.mxu0 0.0
    %584 = vmatpush1.msra.mxu0 0.0
    %585 = vmatprep.subr.mxu0 0.0
    %586 = vmatpush1.msra.mxu0 0.0
    %587 = vmatprep.subr.mxu0 0.0
    %588 = vmatpush1.msra.mxu0 0.0
    %589 = vmatprep.subr.mxu0 0.0
    %590 = vmatpush1.msra.mxu0 0.0
    %591 = vmatprep.subr.mxu0 0.0
    %592 = vmatpush1.msra.mxu0 0.0
    %593 = vmatprep.subr.mxu0 0.0
    %594 = vmatpush1.msra.mxu0 0.0
    %595 = vmatprep.subr.mxu0 0.0
    %596 = vmatpush1.msra.mxu0 0.0
    %597 = vmatprep.subr.mxu0 0.0
    %598 = vmatpush1.msra.mxu0 0.0
    %599 = vmatprep.subr.mxu0 0.0
    %600 = vmatpush1.msra.mxu0 0.0
    %601 = vmatprep.mubr.f32.mxu0 0.0
    %602 = vmatmul.mubr.f32.gmra.mrb[0].mxu0 %v532
    %v603 = vpop.f32.mrb[0].mxu0
    %v604 = vadd.f32 0.0, %v603
    %v605 = vpop.f32.mrb[0].mxu0
    %606 = vmatprep.mubr.f32.mxu0 0.0
    %607 = vmatmul.mubr.f32.gmra.mrb[0].mxu0 %v535
    %v608 = vpop.f32.mrb[0].mxu0
    %v609 = vadd.f32 0.0, %v608
    %v610 = vpop.f32.mrb[0].mxu0
    %611 = vdwg.mxu0
    %v613 = vsel %vm44, %v32, 0
    %v616 = vsel %vm44, %v33, 0
    %618 = vmatprep.subr.mxu0 0.0
    %619 = vmatpush1.msra.mxu0 %v42
    %620 = vmatprep.subr.mxu0 0.0
    %621 = vmatpush1.msra.mxu0 %v43
    %622 = vmatprep.subr.mxu0 0.0
    %623 = vmatpush1.msra.mxu0 0.0
    %624 = vmatprep.subr.mxu0 0.0
    %625 = vmatpush1.msra.mxu0 0.0
    %626 = vmatprep.subr.mxu0 0.0
    %627 = vmatpush1.msra.mxu0 0.0
    %628 = vmatprep.subr.mxu0 0.0
    %629 = vmatpush1.msra.mxu0 0.0
    %630 = vmatprep.subr.mxu0 0.0
    %631 = vmatpush1.msra.mxu0 0.0
    %632 = vmatprep.subr.mxu0 0.0
    %633 = vmatpush1.msra.mxu0 0.0
    %634 = vmatprep.subr.mxu0 0.0
    %635 = vmatpush1.msra.mxu0 0.0
    %636 = vmatprep.subr.mxu0 0.0
    %637 = vmatpush1.msra.mxu0 0.0
    %638 = vmatprep.subr.mxu0 0.0
    %639 = vmatpush1.msra.mxu0 0.0
    %640 = vmatprep.subr.mxu0 0.0
    %641 = vmatpush1.msra.mxu0 0.0
    %642 = vmatprep.subr.mxu0 0.0
    %643 = vmatpush1.msra.mxu0 0.0
    %644 = vmatprep.subr.mxu0 0.0
    %645 = vmatpush1.msra.mxu0 0.0
    %646 = vmatprep.subr.mxu0 0.0
    %647 = vmatpush1.msra.mxu0 0.0
    %648 = vmatprep.subr.mxu0 0.0
    %649 = vmatpush1.msra.mxu0 0.0
    %650 = vmatprep.subr.mxu0 0.0
    %651 = vmatpush1.msra.mxu0 0.0
    %652 = vmatprep.subr.mxu0 0.0
    %653 = vmatpush1.msra.mxu0 0.0
    %654 = vmatprep.subr.mxu0 0.0
    %655 = vmatpush1.msra.mxu0 0.0
    %656 = vmatprep.subr.mxu0 0.0
    %657 = vmatpush1.msra.mxu0 0.0
    %658 = vmatprep.subr.mxu0 0.0
    %659 = vmatpush1.msra.mxu0 0.0
    %660 = vmatprep.subr.mxu0 0.0
    %661 = vmatpush1.msra.mxu0 0.0
    %662 = vmatprep.subr.mxu0 0.0
    %663 = vmatpush1.msra.mxu0 0.0
    %664 = vmatprep.subr.mxu0 0.0
    %665 = vmatpush1.msra.mxu0 0.0
    %666 = vmatprep.subr.mxu0 0.0
    %667 = vmatpush1.msra.mxu0 0.0
    %668 = vmatprep.subr.mxu0 0.0
    %669 = vmatpush1.msra.mxu0 0.0
    %670 = vmatprep.subr.mxu0 0.0
    %671 = vmatpush1.msra.mxu0 0.0
    %672 = vmatprep.subr.mxu0 0.0
    %673 = vmatpush1.msra.mxu0 0.0
    %674 = vmatprep.subr.mxu0 0.0
    %675 = vmatpush1.msra.mxu0 0.0
    %676 = vmatprep.subr.mxu0 0.0
    %677 = vmatpush1.msra.mxu0 0.0
    %678 = vmatprep.subr.mxu0 0.0
    %679 = vmatpush1.msra.mxu0 0.0
    %680 = vmatprep.subr.mxu0 0.0
    %681 = vmatpush1.msra.mxu0 0.0
    %682 = vmatprep.mubr.f32.mxu0 0.0
    %683 = vmatmul.mubr.f32.gmra.mrb[0].mxu0 %v613
    %v684 = vpop.f32.mrb[0].mxu0
    %v685 = vadd.f32 0.0, %v684
    %v686 = vpop.f32.mrb[0].mxu0
    %687 = vmatprep.mubr.f32.mxu0 0.0
    %688 = vmatmul.mubr.f32.gmra.mrb[0].mxu0 %v616
    %v689 = vpop.f32.mrb[0].mxu0
    %v690 = vadd.f32 0.0, %v689
    %v691 = vpop.f32.mrb[0].mxu0
    %692 = vdwg.mxu0
    %v694 = vsel %vm44, %v34, 0
    %v697 = vsel %vm44, %v35, 0
    %699 = vmatprep.subr.mxu0 0.0
    %700 = vmatpush1.msra.mxu0 %v42
    %701 = vmatprep.subr.mxu0 0.0
    %702 = vmatpush1.msra.mxu0 %v43
    %703 = vmatprep.subr.mxu0 0.0
    %704 = vmatpush1.msra.mxu0 0.0
    %705 = vmatprep.subr.mxu0 0.0
    %706 = vmatpush1.msra.mxu0 0.0
    %707 = vmatprep.subr.mxu0 0.0
    %708 = vmatpush1.msra.mxu0 0.0
    %709 = vmatprep.subr.mxu0 0.0
    %710 = vmatpush1.msra.mxu0 0.0
    %711 = vmatprep.subr.mxu0 0.0
    %712 = vmatpush1.msra.mxu0 0.0
    %713 = vmatprep.subr.mxu0 0.0
    %714 = vmatpush1.msra.mxu0 0.0
    %715 = vmatprep.subr.mxu0 0.0
    %716 = vmatpush1.msra.mxu0 0.0
    %717 = vmatprep.subr.mxu0 0.0
    %718 = vmatpush1.msra.mxu0 0.0
    %719 = vmatprep.subr.mxu0 0.0
    %720 = vmatpush1.msra.mxu0 0.0
    %721 = vmatprep.subr.mxu0 0.0
    %722 = vmatpush1.msra.mxu0 0.0
    %723 = vmatprep.subr.mxu0 0.0
    %724 = vmatpush1.msra.mxu0 0.0
    %725 = vmatprep.subr.mxu0 0.0
    %726 = vmatpush1.msra.mxu0 0.0
    %727 = vmatprep.subr.mxu0 0.0
    %728 = vmatpush1.msra.mxu0 0.0
    %729 = vmatprep.subr.mxu0 0.0
    %730 = vmatpush1.msra.mxu0 0.0
    %731 = vmatprep.subr.mxu0 0.0
    %732 = vmatpush1.msra.mxu0 0.0
    %733 = vmatprep.subr.mxu0 0.0
    %734 = vmatpush1.msra.mxu0 0.0
    %735 = vmatprep.subr.mxu0 0.0
    %736 = vmatpush1.msra.mxu0 0.0
    %737 = vmatprep.subr.mxu0 0.0
    %738 = vmatpush1.msra.mxu0 0.0
    %739 = vmatprep.subr.mxu0 0.0
    %740 = vmatpush1.msra.mxu0 0.0
    %741 = vmatprep.subr.mxu0 0.0
    %742 = vmatpush1.msra.mxu0 0.0
    %743 = vmatprep.subr.mxu0 0.0
    %744 = vmatpush1.msra.mxu0 0.0
    %745 = vmatprep.subr.mxu0 0.0
    %746 = vmatpush1.msra.mxu0 0.0
    %747 = vmatprep.subr.mxu0 0.0
    %748 = vmatpush1.msra.mxu0 0.0
    %749 = vmatprep.subr.mxu0 0.0
    %750 = vmatpush1.msra.mxu0 0.0
    %751 = vmatprep.subr.mxu0 0.0
    %752 = vmatpush1.msra.mxu0 0.0
    %753 = vmatprep.subr.mxu0 0.0
    %754 = vmatpush1.msra.mxu0 0.0
    %755 = vmatprep.subr.mxu0 0.0
    %756 = vmatpush1.msra.mxu0 0.0
    %757 = vmatprep.subr.mxu0 0.0
    %758 = vmatpush1.msra.mxu0 0.0
    %759 = vmatprep.subr.mxu0 0.0
    %760 = vmatpush1.msra.mxu0 0.0
    %761 = vmatprep.subr.mxu0 0.0
    %762 = vmatpush1.msra.mxu0 0.0
    %763 = vmatprep.mubr.f32.mxu0 0.0
    %764 = vmatmul.mubr.f32.gmra.mrb[0].mxu0 %v694
    %v765 = vpop.f32.mrb[0].mxu0
    %v766 = vadd.f32 0.0, %v765
    %v767 = vpop.f32.mrb[0].mxu0
    %768 = vmatprep.mubr.f32.mxu0 0.0
    %769 = vmatmul.mubr.f32.gmra.mrb[0].mxu0 %v697
    %v770 = vpop.f32.mrb[0].mxu0
    %v771 = vadd.f32 0.0, %v770
    %v772 = vpop.f32.mrb[0].mxu0
    %773 = vdwg.mxu0
    %v775 = vsel %vm44, %v36, 0
    %v778 = vsel %vm44, %v37, 0
    %780 = vmatprep.subr.mxu0 0.0
    %781 = vmatpush1.msra.mxu0 %v42
    %782 = vmatprep.subr.mxu0 0.0
    %783 = vmatpush1.msra.mxu0 %v43
    %784 = vmatprep.subr.mxu0 0.0
    %785 = vmatpush1.msra.mxu0 0.0
    %786 = vmatprep.subr.mxu0 0.0
    %787 = vmatpush1.msra.mxu0 0.0
    %788 = vmatprep.subr.mxu0 0.0
    %789 = vmatpush1.msra.mxu0 0.0
    %790 = vmatprep.subr.mxu0 0.0
    %791 = vmatpush1.msra.mxu0 0.0
    %792 = vmatprep.subr.mxu0 0.0
    %793 = vmatpush1.msra.mxu0 0.0
    %794 = vmatprep.subr.mxu0 0.0
    %795 = vmatpush1.msra.mxu0 0.0
    %796 = vmatprep.subr.mxu0 0.0
    %797 = vmatpush1.msra.mxu0 0.0
    %798 = vmatprep.subr.mxu0 0.0
    %799 = vmatpush1.msra.mxu0 0.0
    %800 = vmatprep.subr.mxu0 0.0
    %801 = vmatpush1.msra.mxu0 0.0
    %802 = vmatprep.subr.mxu0 0.0
    %803 = vmatpush1.msra.mxu0 0.0
    %804 = vmatprep.subr.mxu0 0.0
    %805 = vmatpush1.msra.mxu0 0.0
    %806 = vmatprep.subr.mxu0 0.0
    %807 = vmatpush1.msra.mxu0 0.0
    %808 = vmatprep.subr.mxu0 0.0
    %809 = vmatpush1.msra.mxu0 0.0
    %810 = vmatprep.subr.mxu0 0.0
    %811 = vmatpush1.msra.mxu0 0.0
    %812 = vmatprep.subr.mxu0 0.0
    %813 = vmatpush1.msra.mxu0 0.0
    %814 = vmatprep.subr.mxu0 0.0
    %815 = vmatpush1.msra.mxu0 0.0
    %816 = vmatprep.subr.mxu0 0.0
    %817 = vmatpush1.msra.mxu0 0.0
    %818 = vmatprep.subr.mxu0 0.0
    %819 = vmatpush1.msra.mxu0 0.0
    %820 = vmatprep.subr.mxu0 0.0
    %821 = vmatpush1.msra.mxu0 0.0
    %822 = vmatprep.subr.mxu0 0.0
    %823 = vmatpush1.msra.mxu0 0.0
    %824 = vmatprep.subr.mxu0 0.0
    %825 = vmatpush1.msra.mxu0 0.0
    %826 = vmatprep.subr.mxu0 0.0
    %827 = vmatpush1.msra.mxu0 0.0
    %828 = vmatprep.subr.mxu0 0.0
    %829 = vmatpush1.msra.mxu0 0.0
    %830 = vmatprep.subr.mxu0 0.0
    %831 = vmatpush1.msra.mxu0 0.0
    %832 = vmatprep.subr.mxu0 0.0
    %833 = vmatpush1.msra.mxu0 0.0
    %834 = vmatprep.subr.mxu0 0.0
    %835 = vmatpush1.msra.mxu0 0.0
    %836 = vmatprep.subr.mxu0 0.0
    %837 = vmatpush1.msra.mxu0 0.0
    %838 = vmatprep.subr.mxu0 0.0
    %839 = vmatpush1.msra.mxu0 0.0
    %840 = vmatprep.subr.mxu0 0.0
    %841 = vmatpush1.msra.mxu0 0.0
    %842 = vmatprep.subr.mxu0 0.0
    %843 = vmatpush1.msra.mxu0 0.0
    %844 = vmatprep.mubr.f32.mxu0 0.0
    %845 = vmatmul.mubr.f32.gmra.mrb[0].mxu0 %v775
    %v846 = vpop.f32.mrb[0].mxu0
    %v847 = vadd.f32 0.0, %v846
    %v848 = vpop.f32.mrb[0].mxu0
    %849 = vmatprep.mubr.f32.mxu0 0.0
    %850 = vmatmul.mubr.f32.gmra.mrb[0].mxu0 %v778
    %v851 = vpop.f32.mrb[0].mxu0
    %v852 = vadd.f32 0.0, %v851
    %v853 = vpop.f32.mrb[0].mxu0
    %854 = vdwg.mxu0
    %v856 = vsel %vm44, %v38, 0
    %v859 = vsel %vm44, %v39, 0
    %861 = vmatprep.subr.mxu0 0.0
    %862 = vmatpush1.msra.mxu0 %v42
    %863 = vmatprep.subr.mxu0 0.0
    %864 = vmatpush1.msra.mxu0 %v43
    %865 = vmatprep.subr.mxu0 0.0
    %866 = vmatpush1.msra.mxu0 0.0
    %867 = vmatprep.subr.mxu0 0.0
    %868 = vmatpush1.msra.mxu0 0.0
    %869 = vmatprep.subr.mxu0 0.0
    %870 = vmatpush1.msra.mxu0 0.0
    %871 = vmatprep.subr.mxu0 0.0
    %872 = vmatpush1.msra.mxu0 0.0
    %873 = vmatprep.subr.mxu0 0.0
    %874 = vmatpush1.msra.mxu0 0.0
    %875 = vmatprep.subr.mxu0 0.0
    %876 = vmatpush1.msra.mxu0 0.0
    %877 = vmatprep.subr.mxu0 0.0
    %878 = vmatpush1.msra.mxu0 0.0
    %879 = vmatprep.subr.mxu0 0.0
    %880 = vmatpush1.msra.mxu0 0.0
    %881 = vmatprep.subr.mxu0 0.0
    %882 = vmatpush1.msra.mxu0 0.0
    %883 = vmatprep.subr.mxu0 0.0
    %884 = vmatpush1.msra.mxu0 0.0
    %885 = vmatprep.subr.mxu0 0.0
    %886 = vmatpush1.msra.mxu0 0.0
    %887 = vmatprep.subr.mxu0 0.0
    %888 = vmatpush1.msra.mxu0 0.0
    %889 = vmatprep.subr.mxu0 0.0
    %890 = vmatpush1.msra.mxu0 0.0
    %891 = vmatprep.subr.mxu0 0.0
    %892 = vmatpush1.msra.mxu0 0.0
    %893 = vmatprep.subr.mxu0 0.0
    %894 = vmatpush1.msra.mxu0 0.0
    %895 = vmatprep.subr.mxu0 0.0
    %896 = vmatpush1.msra.mxu0 0.0
    %897 = vmatprep.subr.mxu0 0.0
    %898 = vmatpush1.msra.mxu0 0.0
    %899 = vmatprep.subr.mxu0 0.0
    %900 = vmatpush1.msra.mxu0 0.0
    %901 = vmatprep.subr.mxu0 0.0
    %902 = vmatpush1.msra.mxu0 0.0
    %903 = vmatprep.subr.mxu0 0.0
    %904 = vmatpush1.msra.mxu0 0.0
    %905 = vmatprep.subr.mxu0 0.0
    %906 = vmatpush1.msra.mxu0 0.0
    %907 = vmatprep.subr.mxu0 0.0
    %908 = vmatpush1.msra.mxu0 0.0
    %909 = vmatprep.subr.mxu0 0.0
    %910 = vmatpush1.msra.mxu0 0.0
    %911 = vmatprep.subr.mxu0 0.0
    %912 = vmatpush1.msra.mxu0 0.0
    %913 = vmatprep.subr.mxu0 0.0
    %914 = vmatpush1.msra.mxu0 0.0
    %915 = vmatprep.subr.mxu0 0.0
    %916 = vmatpush1.msra.mxu0 0.0
    %917 = vmatprep.subr.mxu0 0.0
    %918 = vmatpush1.msra.mxu0 0.0
    %919 = vmatprep.subr.mxu0 0.0
    %920 = vmatpush1.msra.mxu0 0.0
    %921 = vmatprep.subr.mxu0 0.0
    %922 = vmatpush1.msra.mxu0 0.0
    %923 = vmatprep.subr.mxu0 0.0
    %924 = vmatpush1.msra.mxu0 0.0
    %925 = vmatprep.mubr.f32.mxu0 0.0
    %926 = vmatmul.mubr.f32.gmra.mrb[0].mxu0 %v856
    %v927 = vpop.f32.mrb[0].mxu0
    %v928 = vadd.f32 0.0, %v927
    %v929 = vpop.f32.mrb[0].mxu0
    %930 = vmatprep.mubr.f32.mxu0 0.0
    %931 = vmatmul.mubr.f32.gmra.mrb[0].mxu0 %v859
    %v932 = vpop.f32.mrb[0].mxu0
    %v933 = vadd.f32 0.0, %v932
    %v934 = vpop.f32.mrb[0].mxu0
    %935 = vdwg.mxu0
    %v937 = vsel %vm44, %v40, 0
    %v940 = vsel %vm44, %v41, 0
    %942 = vmatprep.subr.mxu0 0.0
    %943 = vmatpush1.msra.mxu0 %v42
    %944 = vmatprep.subr.mxu0 0.0
    %945 = vmatpush1.msra.mxu0 %v43
    %946 = vmatprep.subr.mxu0 0.0
    %947 = vmatpush1.msra.mxu0 0.0
    %948 = vmatprep.subr.mxu0 0.0
    %949 = vmatpush1.msra.mxu0 0.0
    %950 = vmatprep.subr.mxu0 0.0
    %951 = vmatpush1.msra.mxu0 0.0
    %952 = vmatprep.subr.mxu0 0.0
    %953 = vmatpush1.msra.mxu0 0.0
    %954 = vmatprep.subr.mxu0 0.0
    %955 = vmatpush1.msra.mxu0 0.0
    %956 = vmatprep.subr.mxu0 0.0
    %957 = vmatpush1.msra.mxu0 0.0
    %958 = vmatprep.subr.mxu0 0.0
    %959 = vmatpush1.msra.mxu0 0.0
    %960 = vmatprep.subr.mxu0 0.0
    %961 = vmatpush1.msra.mxu0 0.0
    %962 = vmatprep.subr.mxu0 0.0
    %963 = vmatpush1.msra.mxu0 0.0
    %964 = vmatprep.subr.mxu0 0.0
    %965 = vmatpush1.msra.mxu0 0.0
    %966 = vmatprep.subr.mxu0 0.0
    %967 = vmatpush1.msra.mxu0 0.0
    %968 = vmatprep.subr.mxu0 0.0
    %969 = vmatpush1.msra.mxu0 0.0
    %970 = vmatprep.subr.mxu0 0.0
    %971 = vmatpush1.msra.mxu0 0.0
    %972 = vmatprep.subr.mxu0 0.0
    %973 = vmatpush1.msra.mxu0 0.0
    %974 = vmatprep.subr.mxu0 0.0
    %975 = vmatpush1.msra.mxu0 0.0
    %976 = vmatprep.subr.mxu0 0.0
    %977 = vmatpush1.msra.mxu0 0.0
    %978 = vmatprep.subr.mxu0 0.0
    %979 = vmatpush1.msra.mxu0 0.0
    %980 = vmatprep.subr.mxu0 0.0
    %981 = vmatpush1.msra.mxu0 0.0
    %982 = vmatprep.subr.mxu0 0.0
    %983 = vmatpush1.msra.mxu0 0.0
    %984 = vmatprep.subr.mxu0 0.0
    %985 = vmatpush1.msra.mxu0 0.0
    %986 = vmatprep.subr.mxu0 0.0
    %987 = vmatpush1.msra.mxu0 0.0
    %988 = vmatprep.subr.mxu0 0.0
    %989 = vmatpush1.msra.mxu0 0.0
    %990 = vmatprep.subr.mxu0 0.0
    %991 = vmatpush1.msra.mxu0 0.0
    %992 = vmatprep.subr.mxu0 0.0
    %993 = vmatpush1.msra.mxu0 0.0
    %994 = vmatprep.subr.mxu0 0.0
    %995 = vmatpush1.msra.mxu0 0.0
    %996 = vmatprep.subr.mxu0 0.0
    %997 = vmatpush1.msra.mxu0 0.0
    %998 = vmatprep.subr.mxu0 0.0
    %999 = vmatpush1.msra.mxu0 0.0
    %1000 = vmatprep.subr.mxu0 0.0
    %1001 = vmatpush1.msra.mxu0 0.0
    %1002 = vmatprep.subr.mxu0 0.0
    %1003 = vmatpush1.msra.mxu0 0.0
    %1004 = vmatprep.subr.mxu0 0.0
    %1005 = vmatpush1.msra.mxu0 0.0
    %1006 = vmatprep.mubr.f32.mxu0 0.0
    %1007 = vmatmul.mubr.f32.gmra.mrb[0].mxu0 %v937
    %v1008 = vpop.f32.mrb[0].mxu0
    %v1009 = vadd.f32 0.0, %v1008
    %v1010 = vpop.f32.mrb[0].mxu0
    %1011 = vmatprep.mubr.f32.mxu0 0.0
    %1012 = vmatmul.mubr.f32.gmra.mrb[0].mxu0 %v940
    %v1013 = vpop.f32.mrb[0].mxu0
    %v1014 = vadd.f32 0.0, %v1013
    %v1015 = vpop.f32.mrb[0].mxu0
    %1016 = vdwg.mxu0
    %v1017 = vld [vmem:[%s2] sm:$0xff]
    %v1018 = vld [vmem:[%s2 + $0x8] sm:$0xff]
    %v1019 = vld [vmem:[%s2 + $0x10] sm:$0xff]
    %v1020 = vld [vmem:[%s2 + $0x18] sm:$0xff]
    %v1022 = vsel %vm44, %v1017, 0
    %v1025 = vsel %vm44, %v1018, 0
    %v1028 = vsel %vm44, %v1019, 0
    %v1031 = vsel %vm44, %v1020, 0
    %1033 = vmatprep.subr.mxu0 0.0
    %1034 = vmatpush1.msra.mxu0 %v118
    %1035 = vmatprep.subr.mxu0 0.0
    %1036 = vmatpush1.msra.mxu0 %v123
    %1037 = vmatprep.subr.mxu0 0.0
    %1038 = vmatpush1.msra.mxu0 0.0
    %1039 = vmatprep.subr.mxu0 0.0
    %1040 = vmatpush1.msra.mxu0 0.0
    %1041 = vmatprep.subr.mxu0 0.0
    %1042 = vmatpush1.msra.mxu0 0.0
    %1043 = vmatprep.subr.mxu0 0.0
    %1044 = vmatpush1.msra.mxu0 0.0
    %1045 = vmatprep.subr.mxu0 0.0
    %1046 = vmatpush1.msra.mxu0 0.0
    %1047 = vmatprep.subr.mxu0 0.0
    %1048 = vmatpush1.msra.mxu0 0.0
    %1049 = vmatprep.subr.mxu0 0.0
    %1050 = vmatpush1.msra.mxu0 0.0
    %1051 = vmatprep.subr.mxu0 0.0
    %1052 = vmatpush1.msra.mxu0 0.0
    %1053 = vmatprep.subr.mxu0 0.0
    %1054 = vmatpush1.msra.mxu0 0.0
    %1055 = vmatprep.subr.mxu0 0.0
    %1056 = vmatpush1.msra.mxu0 0.0
    %1057 = vmatprep.subr.mxu0 0.0
    %1058 = vmatpush1.msra.mxu0 0.0
    %1059 = vmatprep.subr.mxu0 0.0
    %1060 = vmatpush1.msra.mxu0 0.0
    %1061 = vmatprep.subr.mxu0 0.0
    %1062 = vmatpush1.msra.mxu0 0.0
    %1063 = vmatprep.subr.mxu0 0.0
    %1064 = vmatpush1.msra.mxu0 0.0
    %1065 = vmatprep.subr.mxu0 0.0
    %1066 = vmatpush1.msra.mxu0 0.0
    %1067 = vmatprep.subr.mxu0 0.0
    %1068 = vmatpush1.msra.mxu0 0.0
    %1069 = vmatprep.subr.mxu0 0.0
    %1070 = vmatpush1.msra.mxu0 0.0
    %1071 = vmatprep.subr.mxu0 0.0
    %1072 = vmatpush1.msra.mxu0 0.0
    %1073 = vmatprep.subr.mxu0 0.0
    %1074 = vmatpush1.msra.mxu0 0.0
    %1075 = vmatprep.subr.mxu0 0.0
    %1076 = vmatpush1.msra.mxu0 0.0
    %1077 = vmatprep.subr.mxu0 0.0
    %1078 = vmatpush1.msra.mxu0 0.0
    %1079 = vmatprep.subr.mxu0 0.0
    %1080 = vmatpush1.msra.mxu0 0.0
    %1081 = vmatprep.subr.mxu0 0.0
    %1082 = vmatpush1.msra.mxu0 0.0
    %1083 = vmatprep.subr.mxu0 0.0
    %1084 = vmatpush1.msra.mxu0 0.0
    %1085 = vmatprep.subr.mxu0 0.0
    %1086 = vmatpush1.msra.mxu0 0.0
    %1087 = vmatprep.subr.mxu0 0.0
    %1088 = vmatpush1.msra.mxu0 0.0
    %1089 = vmatprep.subr.mxu0 0.0
    %1090 = vmatpush1.msra.mxu0 0.0
    %1091 = vmatprep.subr.mxu0 0.0
    %1092 = vmatpush1.msra.mxu0 0.0
    %1093 = vmatprep.subr.mxu0 0.0
    %1094 = vmatpush1.msra.mxu0 0.0
    %1095 = vmatprep.subr.mxu0 0.0
    %1096 = vmatpush1.msra.mxu0 0.0
    %1097 = vmatprep.mubr.f32.mxu0 0.0
    %1098 = vmatmul.mubr.f32.gmra.mrb[0].mxu0 %v1022
    %v1099 = vpop.f32.mrb[0].mxu0
    %v1100 = vadd.f32 0.0, %v1099
    %v1101 = vpop.f32.mrb[0].mxu0
    %1102 = vmatprep.mubr.f32.mxu0 0.0
    %1103 = vmatmul.mubr.f32.gmra.mrb[0].mxu0 %v1025
    %v1104 = vpop.f32.mrb[0].mxu0
    %v1105 = vadd.f32 0.0, %v1104
    %v1106 = vpop.f32.mrb[0].mxu0
    %1107 = vmatprep.mubr.f32.mxu0 0.0
    %1108 = vmatmul.mubr.f32.gmra.mrb[0].mxu0 %v1028
    %v1109 = vpop.f32.mrb[0].mxu0
    %v1110 = vadd.f32 0.0, %v1109
    %v1111 = vpop.f32.mrb[0].mxu0
    %1112 = vmatprep.mubr.f32.mxu0 0.0
    %1113 = vmatmul.mubr.f32.gmra.mrb[0].mxu0 %v1031
    %v1114 = vpop.f32.mrb[0].mxu0
    %v1115 = vadd.f32 0.0, %v1114
    %v1116 = vpop.f32.mrb[0].mxu0
    %1117 = vdwg.mxu0
    %1118 = vmatprep.subr.mxu0 0.0
    %1119 = vmatpush1.msra.mxu0 %v199
    %1120 = vmatprep.subr.mxu0 0.0
    %1121 = vmatpush1.msra.mxu0 %v204
    %1122 = vmatprep.subr.mxu0 0.0
    %1123 = vmatpush1.msra.mxu0 0.0
    %1124 = vmatprep.subr.mxu0 0.0
    %1125 = vmatpush1.msra.mxu0 0.0
    %1126 = vmatprep.subr.mxu0 0.0
    %1127 = vmatpush1.msra.mxu0 0.0
    %1128 = vmatprep.subr.mxu0 0.0
    %1129 = vmatpush1.msra.mxu0 0.0
    %1130 = vmatprep.subr.mxu0 0.0
    %1131 = vmatpush1.msra.mxu0 0.0
    %1132 = vmatprep.subr.mxu0 0.0
    %1133 = vmatpush1.msra.mxu0 0.0
    %1134 = vmatprep.subr.mxu0 0.0
    %1135 = vmatpush1.msra.mxu0 0.0
    %1136 = vmatprep.subr.mxu0 0.0
    %1137 = vmatpush1.msra.mxu0 0.0
    %1138 = vmatprep.subr.mxu0 0.0
    %1139 = vmatpush1.msra.mxu0 0.0
    %1140 = vmatprep.subr.mxu0 0.0
    %1141 = vmatpush1.msra.mxu0 0.0
    %1142 = vmatprep.subr.mxu0 0.0
    %1143 = vmatpush1.msra.mxu0 0.0
    %1144 = vmatprep.subr.mxu0 0.0
    %1145 = vmatpush1.msra.mxu0 0.0
    %1146 = vmatprep.subr.mxu0 0.0
    %1147 = vmatpush1.msra.mxu0 0.0
    %1148 = vmatprep.subr.mxu0 0.0
    %1149 = vmatpush1.msra.mxu0 0.0
    %1150 = vmatprep.subr.mxu0 0.0
    %1151 = vmatpush1.msra.mxu0 0.0
    %1152 = vmatprep.subr.mxu0 0.0
    %1153 = vmatpush1.msra.mxu0 0.0
    %1154 = vmatprep.subr.mxu0 0.0
    %1155 = vmatpush1.msra.mxu0 0.0
    %1156 = vmatprep.subr.mxu0 0.0
    %1157 = vmatpush1.msra.mxu0 0.0
    %1158 = vmatprep.subr.mxu0 0.0
    %1159 = vmatpush1.msra.mxu0 0.0
    %1160 = vmatprep.subr.mxu0 0.0
    %1161 = vmatpush1.msra.mxu0 0.0
    %1162 = vmatprep.subr.mxu0 0.0
    %1163 = vmatpush1.msra.mxu0 0.0
    %1164 = vmatprep.subr.mxu0 0.0
    %1165 = vmatpush1.msra.mxu0 0.0
    %1166 = vmatprep.subr.mxu0 0.0
    %1167 = vmatpush1.msra.mxu0 0.0
    %1168 = vmatprep.subr.mxu0 0.0
    %1169 = vmatpush1.msra.mxu0 0.0
    %1170 = vmatprep.subr.mxu0 0.0
    %1171 = vmatpush1.msra.mxu0 0.0
    %1172 = vmatprep.subr.mxu0 0.0
    %1173 = vmatpush1.msra.mxu0 0.0
    %1174 = vmatprep.subr.mxu0 0.0
    %1175 = vmatpush1.msra.mxu0 0.0
    %1176 = vmatprep.subr.mxu0 0.0
    %1177 = vmatpush1.msra.mxu0 0.0
    %1178 = vmatprep.subr.mxu0 0.0
    %1179 = vmatpush1.msra.mxu0 0.0
    %1180 = vmatprep.subr.mxu0 0.0
    %1181 = vmatpush1.msra.mxu0 0.0
    %1182 = vmatprep.mubr.f32.mxu0 0.0
    %1183 = vmatmul.mubr.f32.gmra.mrb[0].mxu0 %v1022
    %v1184 = vpop.f32.mrb[0].mxu0
    %v1185 = vadd.f32 0.0, %v1184
    %v1186 = vpop.f32.mrb[0].mxu0
    %1187 = vmatprep.mubr.f32.mxu0 0.0
    %1188 = vmatmul.mubr.f32.gmra.mrb[0].mxu0 %v1025
    %v1189 = vpop.f32.mrb[0].mxu0
    %v1190 = vadd.f32 0.0, %v1189
    %v1191 = vpop.f32.mrb[0].mxu0
    %1192 = vmatprep.mubr.f32.mxu0 0.0
    %1193 = vmatmul.mubr.f32.gmra.mrb[0].mxu0 %v1028
    %v1194 = vpop.f32.mrb[0].mxu0
    %v1195 = vadd.f32 0.0, %v1194
    %v1196 = vpop.f32.mrb[0].mxu0
    %1197 = vmatprep.mubr.f32.mxu0 0.0
    %1198 = vmatmul.mubr.f32.gmra.mrb[0].mxu0 %v1031
    %v1199 = vpop.f32.mrb[0].mxu0
    %v1200 = vadd.f32 0.0, %v1199
    %v1201 = vpop.f32.mrb[0].mxu0
    %1202 = vdwg.mxu0
    %1203 = vmatprep.subr.mxu0 0.0
    %1204 = vmatpush1.msra.mxu0 %v280
    %1205 = vmatprep.subr.mxu0 0.0
    %1206 = vmatpush1.msra.mxu0 %v285
    %1207 = vmatprep.subr.mxu0 0.0
    %1208 = vmatpush1.msra.mxu0 0.0
    %1209 = vmatprep.subr.mxu0 0.0
    %1210 = vmatpush1.msra.mxu0 0.0
    %1211 = vmatprep.subr.mxu0 0.0
    %1212 = vmatpush1.msra.mxu0 0.0
    %1213 = vmatprep.subr.mxu0 0.0
    %1214 = vmatpush1.msra.mxu0 0.0
    %1215 = vmatprep.subr.mxu0 0.0
    %1216 = vmatpush1.msra.mxu0 0.0
    %1217 = vmatprep.subr.mxu0 0.0
    %1218 = vmatpush1.msra.mxu0 0.0
    %1219 = vmatprep.subr.mxu0 0.0
    %1220 = vmatpush1.msra.mxu0 0.0
    %1221 = vmatprep.subr.mxu0 0.0
    %1222 = vmatpush1.msra.mxu0 0.0
    %1223 = vmatprep.subr.mxu0 0.0
    %1224 = vmatpush1.msra.mxu0 0.0
    %1225 = vmatprep.subr.mxu0 0.0
    %1226 = vmatpush1.msra.mxu0 0.0
    %1227 = vmatprep.subr.mxu0 0.0
    %1228 = vmatpush1.msra.mxu0 0.0
    %1229 = vmatprep.subr.mxu0 0.0
    %1230 = vmatpush1.msra.mxu0 0.0
    %1231 = vmatprep.subr.mxu0 0.0
    %1232 = vmatpush1.msra.mxu0 0.0
    %1233 = vmatprep.subr.mxu0 0.0
    %1234 = vmatpush1.msra.mxu0 0.0
    %1235 = vmatprep.subr.mxu0 0.0
    %1236 = vmatpush1.msra.mxu0 0.0
    %1237 = vmatprep.subr.mxu0 0.0
    %1238 = vmatpush1.msra.mxu0 0.0
    %1239 = vmatprep.subr.mxu0 0.0
    %1240 = vmatpush1.msra.mxu0 0.0
    %1241 = vmatprep.subr.mxu0 0.0
    %1242 = vmatpush1.msra.mxu0 0.0
    %1243 = vmatprep.subr.mxu0 0.0
    %1244 = vmatpush1.msra.mxu0 0.0
    %1245 = vmatprep.subr.mxu0 0.0
    %1246 = vmatpush1.msra.mxu0 0.0
    %1247 = vmatprep.subr.mxu0 0.0
    %1248 = vmatpush1.msra.mxu0 0.0
    %1249 = vmatprep.subr.mxu0 0.0
    %1250 = vmatpush1.msra.mxu0 0.0
    %1251 = vmatprep.subr.mxu0 0.0
    %1252 = vmatpush1.msra.mxu0 0.0
    %1253 = vmatprep.subr.mxu0 0.0
    %1254 = vmatpush1.msra.mxu0 0.0
    %1255 = vmatprep.subr.mxu0 0.0
    %1256 = vmatpush1.msra.mxu0 0.0
    %1257 = vmatprep.subr.mxu0 0.0
    %1258 = vmatpush1.msra.mxu0 0.0
    %1259 = vmatprep.subr.mxu0 0.0
    %1260 = vmatpush1.msra.mxu0 0.0
    %1261 = vmatprep.subr.mxu0 0.0
    %1262 = vmatpush1.msra.mxu0 0.0
    %1263 = vmatprep.subr.mxu0 0.0
    %1264 = vmatpush1.msra.mxu0 0.0
    %1265 = vmatprep.subr.mxu0 0.0
    %1266 = vmatpush1.msra.mxu0 0.0
    %1267 = vmatprep.mubr.f32.mxu0 0.0
    %1268 = vmatmul.mubr.f32.gmra.mrb[0].mxu0 %v1022
    %v1269 = vpop.f32.mrb[0].mxu0
    %v1270 = vadd.f32 0.0, %v1269
    %v1271 = vpop.f32.mrb[0].mxu0
    %1272 = vmatprep.mubr.f32.mxu0 0.0
    %1273 = vmatmul.mubr.f32.gmra.mrb[0].mxu0 %v1025
    %v1274 = vpop.f32.mrb[0].mxu0
    %v1275 = vadd.f32 0.0, %v1274
    %v1276 = vpop.f32.mrb[0].mxu0
    %1277 = vmatprep.mubr.f32.mxu0 0.0
    %1278 = vmatmul.mubr.f32.gmra.mrb[0].mxu0 %v1028
    %v1279 = vpop.f32.mrb[0].mxu0
    %v1280 = vadd.f32 0.0, %v1279
    %v1281 = vpop.f32.mrb[0].mxu0
    %1282 = vmatprep.mubr.f32.mxu0 0.0
    %1283 = vmatmul.mubr.f32.gmra.mrb[0].mxu0 %v1031
    %v1284 = vpop.f32.mrb[0].mxu0
    %v1285 = vadd.f32 0.0, %v1284
    %v1286 = vpop.f32.mrb[0].mxu0
    %1287 = vdwg.mxu0
    %1288 = vmatprep.subr.mxu0 0.0
    %1289 = vmatpush1.msra.mxu0 %v361
    %1290 = vmatprep.subr.mxu0 0.0
    %1291 = vmatpush1.msra.mxu0 %v366
    %1292 = vmatprep.subr.mxu0 0.0
    %1293 = vmatpush1.msra.mxu0 0.0
    %1294 = vmatprep.subr.mxu0 0.0
    %1295 = vmatpush1.msra.mxu0 0.0
    %1296 = vmatprep.subr.mxu0 0.0
    %1297 = vmatpush1.msra.mxu0 0.0
    %1298 = vmatprep.subr.mxu0 0.0
    %1299 = vmatpush1.msra.mxu0 0.0
    %1300 = vmatprep.subr.mxu0 0.0
    %1301 = vmatpush1.msra.mxu0 0.0
    %1302 = vmatprep.subr.mxu0 0.0
    %1303 = vmatpush1.msra.mxu0 0.0
    %1304 = vmatprep.subr.mxu0 0.0
    %1305 = vmatpush1.msra.mxu0 0.0
    %1306 = vmatprep.subr.mxu0 0.0
    %1307 = vmatpush1.msra.mxu0 0.0
    %1308 = vmatprep.subr.mxu0 0.0
    %1309 = vmatpush1.msra.mxu0 0.0
    %1310 = vmatprep.subr.mxu0 0.0
    %1311 = vmatpush1.msra.mxu0 0.0
    %1312 = vmatprep.subr.mxu0 0.0
    %1313 = vmatpush1.msra.mxu0 0.0
    %1314 = vmatprep.subr.mxu0 0.0
    %1315 = vmatpush1.msra.mxu0 0.0
    %1316 = vmatprep.subr.mxu0 0.0
    %1317 = vmatpush1.msra.mxu0 0.0
    %1318 = vmatprep.subr.mxu0 0.0
    %1319 = vmatpush1.msra.mxu0 0.0
    %1320 = vmatprep.subr.mxu0 0.0
    %1321 = vmatpush1.msra.mxu0 0.0
    %1322 = vmatprep.subr.mxu0 0.0
    %1323 = vmatpush1.msra.mxu0 0.0
    %1324 = vmatprep.subr.mxu0 0.0
    %1325 = vmatpush1.msra.mxu0 0.0
    %1326 = vmatprep.subr.mxu0 0.0
    %1327 = vmatpush1.msra.mxu0 0.0
    %1328 = vmatprep.subr.mxu0 0.0
    %1329 = vmatpush1.msra.mxu0 0.0
    %1330 = vmatprep.subr.mxu0 0.0
    %1331 = vmatpush1.msra.mxu0 0.0
    %1332 = vmatprep.subr.mxu0 0.0
    %1333 = vmatpush1.msra.mxu0 0.0
    %1334 = vmatprep.subr.mxu0 0.0
    %1335 = vmatpush1.msra.mxu0 0.0
    %1336 = vmatprep.subr.mxu0 0.0
    %1337 = vmatpush1.msra.mxu0 0.0
    %1338 = vmatprep.subr.mxu0 0.0
    %1339 = vmatpush1.msra.mxu0 0.0
    %1340 = vmatprep.subr.mxu0 0.0
    %1341 = vmatpush1.msra.mxu0 0.0
    %1342 = vmatprep.subr.mxu0 0.0
    %1343 = vmatpush1.msra.mxu0 0.0
    %1344 = vmatprep.subr.mxu0 0.0
    %1345 = vmatpush1.msra.mxu0 0.0
    %1346 = vmatprep.subr.mxu0 0.0
    %1347 = vmatpush1.msra.mxu0 0.0
    %1348 = vmatprep.subr.mxu0 0.0
    %1349 = vmatpush1.msra.mxu0 0.0
    %1350 = vmatprep.subr.mxu0 0.0
    %1351 = vmatpush1.msra.mxu0 0.0
    %1352 = vmatprep.mubr.f32.mxu0 0.0
    %1353 = vmatmul.mubr.f32.gmra.mrb[0].mxu0 %v1022
    %v1354 = vpop.f32.mrb[0].mxu0
    %v1355 = vadd.f32 0.0, %v1354
    %v1356 = vpop.f32.mrb[0].mxu0
    %1357 = vmatprep.mubr.f32.mxu0 0.0
    %1358 = vmatmul.mubr.f32.gmra.mrb[0].mxu0 %v1025
    %v1359 = vpop.f32.mrb[0].mxu0
    %v1360 = vadd.f32 0.0, %v1359
    %v1361 = vpop.f32.mrb[0].mxu0
    %1362 = vmatprep.mubr.f32.mxu0 0.0
    %1363 = vmatmul.mubr.f32.gmra.mrb[0].mxu0 %v1028
    %v1364 = vpop.f32.mrb[0].mxu0
    %v1365 = vadd.f32 0.0, %v1364
    %v1366 = vpop.f32.mrb[0].mxu0
    %1367 = vmatprep.mubr.f32.mxu0 0.0
    %1368 = vmatmul.mubr.f32.gmra.mrb[0].mxu0 %v1031
    %v1369 = vpop.f32.mrb[0].mxu0
    %v1370 = vadd.f32 0.0, %v1369
    %v1371 = vpop.f32.mrb[0].mxu0
    %1372 = vdwg.mxu0
    %1373 = vmatprep.subr.mxu0 0.0
    %1374 = vmatpush1.msra.mxu0 %v442
    %1375 = vmatprep.subr.mxu0 0.0
    %1376 = vmatpush1.msra.mxu0 %v447
    %1377 = vmatprep.subr.mxu0 0.0
    %1378 = vmatpush1.msra.mxu0 0.0
    %1379 = vmatprep.subr.mxu0 0.0
    %1380 = vmatpush1.msra.mxu0 0.0
    %1381 = vmatprep.subr.mxu0 0.0
    %1382 = vmatpush1.msra.mxu0 0.0
    %1383 = vmatprep.subr.mxu0 0.0
    %1384 = vmatpush1.msra.mxu0 0.0
    %1385 = vmatprep.subr.mxu0 0.0
    %1386 = vmatpush1.msra.mxu0 0.0
    %1387 = vmatprep.subr.mxu0 0.0
    %1388 = vmatpush1.msra.mxu0 0.0
    %1389 = vmatprep.subr.mxu0 0.0
    %1390 = vmatpush1.msra.mxu0 0.0
    %1391 = vmatprep.subr.mxu0 0.0
    %1392 = vmatpush1.msra.mxu0 0.0
    %1393 = vmatprep.subr.mxu0 0.0
    %1394 = vmatpush1.msra.mxu0 0.0
    %1395 = vmatprep.subr.mxu0 0.0
    %1396 = vmatpush1.msra.mxu0 0.0
    %1397 = vmatprep.subr.mxu0 0.0
    %1398 = vmatpush1.msra.mxu0 0.0
    %1399 = vmatprep.subr.mxu0 0.0
    %1400 = vmatpush1.msra.mxu0 0.0
    %1401 = vmatprep.subr.mxu0 0.0
    %1402 = vmatpush1.msra.mxu0 0.0
    %1403 = vmatprep.subr.mxu0 0.0
    %1404 = vmatpush1.msra.mxu0 0.0
    %1405 = vmatprep.subr.mxu0 0.0
    %1406 = vmatpush1.msra.mxu0 0.0
    %1407 = vmatprep.subr.mxu0 0.0
    %1408 = vmatpush1.msra.mxu0 0.0
    %1409 = vmatprep.subr.mxu0 0.0
    %1410 = vmatpush1.msra.mxu0 0.0
    %1411 = vmatprep.subr.mxu0 0.0
    %1412 = vmatpush1.msra.mxu0 0.0
    %1413 = vmatprep.subr.mxu0 0.0
    %1414 = vmatpush1.msra.mxu0 0.0
    %1415 = vmatprep.subr.mxu0 0.0
    %1416 = vmatpush1.msra.mxu0 0.0
    %1417 = vmatprep.subr.mxu0 0.0
    %1418 = vmatpush1.msra.mxu0 0.0
    %1419 = vmatprep.subr.mxu0 0.0
    %1420 = vmatpush1.msra.mxu0 0.0
    %1421 = vmatprep.subr.mxu0 0.0
    %1422 = vmatpush1.msra.mxu0 0.0
    %1423 = vmatprep.subr.mxu0 0.0
    %1424 = vmatpush1.msra.mxu0 0.0
    %1425 = vmatprep.subr.mxu0 0.0
    %1426 = vmatpush1.msra.mxu0 0.0
    %1427 = vmatprep.subr.mxu0 0.0
    %1428 = vmatpush1.msra.mxu0 0.0
    %1429 = vmatprep.subr.mxu0 0.0
    %1430 = vmatpush1.msra.mxu0 0.0
    %1431 = vmatprep.subr.mxu0 0.0
    %1432 = vmatpush1.msra.mxu0 0.0
    %1433 = vmatprep.subr.mxu0 0.0
    %1434 = vmatpush1.msra.mxu0 0.0
    %1435 = vmatprep.subr.mxu0 0.0
    %1436 = vmatpush1.msra.mxu0 0.0
    %1437 = vmatprep.mubr.f32.mxu0 0.0
    %1438 = vmatmul.mubr.f32.gmra.mrb[0].mxu0 %v1022
    %v1439 = vpop.f32.mrb[0].mxu0
    %v1440 = vadd.f32 0.0, %v1439
    %v1441 = vpop.f32.mrb[0].mxu0
    %1442 = vmatprep.mubr.f32.mxu0 0.0
    %1443 = vmatmul.mubr.f32.gmra.mrb[0].mxu0 %v1025
    %v1444 = vpop.f32.mrb[0].mxu0
    %v1445 = vadd.f32 0.0, %v1444
    %v1446 = vpop.f32.mrb[0].mxu0
    %1447 = vmatprep.mubr.f32.mxu0 0.0
    %1448 = vmatmul.mubr.f32.gmra.mrb[0].mxu0 %v1028
    %v1449 = vpop.f32.mrb[0].mxu0
    %v1450 = vadd.f32 0.0, %v1449
    %v1451 = vpop.f32.mrb[0].mxu0
    %1452 = vmatprep.mubr.f32.mxu0 0.0
    %1453 = vmatmul.mubr.f32.gmra.mrb[0].mxu0 %v1031
    %v1454 = vpop.f32.mrb[0].mxu0
    %v1455 = vadd.f32 0.0, %v1454
    %v1456 = vpop.f32.mrb[0].mxu0
    %1457 = vdwg.mxu0
    %1458 = vmatprep.subr.mxu0 0.0
    %1459 = vmatpush1.msra.mxu0 %v523
    %1460 = vmatprep.subr.mxu0 0.0
    %1461 = vmatpush1.msra.mxu0 %v528
    %1462 = vmatprep.subr.mxu0 0.0
    %1463 = vmatpush1.msra.mxu0 0.0
    %1464 = vmatprep.subr.mxu0 0.0
    %1465 = vmatpush1.msra.mxu0 0.0
    %1466 = vmatprep.subr.mxu0 0.0
    %1467 = vmatpush1.msra.mxu0 0.0
    %1468 = vmatprep.subr.mxu0 0.0
    %1469 = vmatpush1.msra.mxu0 0.0
    %1470 = vmatprep.subr.mxu0 0.0
    %1471 = vmatpush1.msra.mxu0 0.0
    %1472 = vmatprep.subr.mxu0 0.0
    %1473 = vmatpush1.msra.mxu0 0.0
    %1474 = vmatprep.subr.mxu0 0.0
    %1475 = vmatpush1.msra.mxu0 0.0
    %1476 = vmatprep.subr.mxu0 0.0
    %1477 = vmatpush1.msra.mxu0 0.0
    %1478 = vmatprep.subr.mxu0 0.0
    %1479 = vmatpush1.msra.mxu0 0.0
    %1480 = vmatprep.subr.mxu0 0.0
    %1481 = vmatpush1.msra.mxu0 0.0
    %1482 = vmatprep.subr.mxu0 0.0
    %1483 = vmatpush1.msra.mxu0 0.0
    %1484 = vmatprep.subr.mxu0 0.0
    %1485 = vmatpush1.msra.mxu0 0.0
    %1486 = vmatprep.subr.mxu0 0.0
    %1487 = vmatpush1.msra.mxu0 0.0
    %1488 = vmatprep.subr.mxu0 0.0
    %1489 = vmatpush1.msra.mxu0 0.0
    %1490 = vmatprep.subr.mxu0 0.0
    %1491 = vmatpush1.msra.mxu0 0.0
    %1492 = vmatprep.subr.mxu0 0.0
    %1493 = vmatpush1.msra.mxu0 0.0
    %1494 = vmatprep.subr.mxu0 0.0
    %1495 = vmatpush1.msra.mxu0 0.0
    %1496 = vmatprep.subr.mxu0 0.0
    %1497 = vmatpush1.msra.mxu0 0.0
    %1498 = vmatprep.subr.mxu0 0.0
    %1499 = vmatpush1.msra.mxu0 0.0
    %1500 = vmatprep.subr.mxu0 0.0
    %1501 = vmatpush1.msra.mxu0 0.0
    %1502 = vmatprep.subr.mxu0 0.0
    %1503 = vmatpush1.msra.mxu0 0.0
    %1504 = vmatprep.subr.mxu0 0.0
    %1505 = vmatpush1.msra.mxu0 0.0
    %1506 = vmatprep.subr.mxu0 0.0
    %1507 = vmatpush1.msra.mxu0 0.0
    %1508 = vmatprep.subr.mxu0 0.0
    %1509 = vmatpush1.msra.mxu0 0.0
    %1510 = vmatprep.subr.mxu0 0.0
    %1511 = vmatpush1.msra.mxu0 0.0
    %1512 = vmatprep.subr.mxu0 0.0
    %1513 = vmatpush1.msra.mxu0 0.0
    %1514 = vmatprep.subr.mxu0 0.0
    %1515 = vmatpush1.msra.mxu0 0.0
    %1516 = vmatprep.subr.mxu0 0.0
    %1517 = vmatpush1.msra.mxu0 0.0
    %1518 = vmatprep.subr.mxu0 0.0
    %1519 = vmatpush1.msra.mxu0 0.0
    %1520 = vmatprep.subr.mxu0 0.0
    %1521 = vmatpush1.msra.mxu0 0.0
    %1522 = vmatprep.mubr.f32.mxu0 0.0
    %1523 = vmatmul.mubr.f32.gmra.mrb[0].mxu0 %v1022
    %v1524 = vpop.f32.mrb[0].mxu0
    %v1525 = vadd.f32 0.0, %v1524
    %v1526 = vpop.f32.mrb[0].mxu0
    %1527 = vmatprep.mubr.f32.mxu0 0.0
    %1528 = vmatmul.mubr.f32.gmra.mrb[0].mxu0 %v1025
    %v1529 = vpop.f32.mrb[0].mxu0
    %v1530 = vadd.f32 0.0, %v1529
    %v1531 = vpop.f32.mrb[0].mxu0
    %1532 = vmatprep.mubr.f32.mxu0 0.0
    %1533 = vmatmul.mubr.f32.gmra.mrb[0].mxu0 %v1028
    %v1534 = vpop.f32.mrb[0].mxu0
    %v1535 = vadd.f32 0.0, %v1534
    %v1536 = vpop.f32.mrb[0].mxu0
    %1537 = vmatprep.mubr.f32.mxu0 0.0
    %1538 = vmatmul.mubr.f32.gmra.mrb[0].mxu0 %v1031
    %v1539 = vpop.f32.mrb[0].mxu0
    %v1540 = vadd.f32 0.0, %v1539
    %v1541 = vpop.f32.mrb[0].mxu0
    %1542 = vdwg.mxu0
    %1543 = vmatprep.subr.mxu0 0.0
    %1544 = vmatpush1.msra.mxu0 %v604
    %1545 = vmatprep.subr.mxu0 0.0
    %1546 = vmatpush1.msra.mxu0 %v609
    %1547 = vmatprep.subr.mxu0 0.0
    %1548 = vmatpush1.msra.mxu0 0.0
    %1549 = vmatprep.subr.mxu0 0.0
    %1550 = vmatpush1.msra.mxu0 0.0
    %1551 = vmatprep.subr.mxu0 0.0
    %1552 = vmatpush1.msra.mxu0 0.0
    %1553 = vmatprep.subr.mxu0 0.0
    %1554 = vmatpush1.msra.mxu0 0.0
    %1555 = vmatprep.subr.mxu0 0.0
    %1556 = vmatpush1.msra.mxu0 0.0
    %1557 = vmatprep.subr.mxu0 0.0
    %1558 = vmatpush1.msra.mxu0 0.0
    %1559 = vmatprep.subr.mxu0 0.0
    %1560 = vmatpush1.msra.mxu0 0.0
    %1561 = vmatprep.subr.mxu0 0.0
    %1562 = vmatpush1.msra.mxu0 0.0
    %1563 = vmatprep.subr.mxu0 0.0
    %1564 = vmatpush1.msra.mxu0 0.0
    %1565 = vmatprep.subr.mxu0 0.0
    %1566 = vmatpush1.msra.mxu0 0.0
    %1567 = vmatprep.subr.mxu0 0.0
    %1568 = vmatpush1.msra.mxu0 0.0
    %1569 = vmatprep.subr.mxu0 0.0
    %1570 = vmatpush1.msra.mxu0 0.0
    %1571 = vmatprep.subr.mxu0 0.0
    %1572 = vmatpush1.msra.mxu0 0.0
    %1573 = vmatprep.subr.mxu0 0.0
    %1574 = vmatpush1.msra.mxu0 0.0
    %1575 = vmatprep.subr.mxu0 0.0
    %1576 = vmatpush1.msra.mxu0 0.0
    %1577 = vmatprep.subr.mxu0 0.0
    %1578 = vmatpush1.msra.mxu0 0.0
    %1579 = vmatprep.subr.mxu0 0.0
    %1580 = vmatpush1.msra.mxu0 0.0
    %1581 = vmatprep.subr.mxu0 0.0
    %1582 = vmatpush1.msra.mxu0 0.0
    %1583 = vmatprep.subr.mxu0 0.0
    %1584 = vmatpush1.msra.mxu0 0.0
    %1585 = vmatprep.subr.mxu0 0.0
    %1586 = vmatpush1.msra.mxu0 0.0
    %1587 = vmatprep.subr.mxu0 0.0
    %1588 = vmatpush1.msra.mxu0 0.0
    %1589 = vmatprep.subr.mxu0 0.0
    %1590 = vmatpush1.msra.mxu0 0.0
    %1591 = vmatprep.subr.mxu0 0.0
    %1592 = vmatpush1.msra.mxu0 0.0
    %1593 = vmatprep.subr.mxu0 0.0
    %1594 = vmatpush1.msra.mxu0 0.0
    %1595 = vmatprep.subr.mxu0 0.0
    %1596 = vmatpush1.msra.mxu0 0.0
    %1597 = vmatprep.subr.mxu0 0.0
    %1598 = vmatpush1.msra.mxu0 0.0
    %1599 = vmatprep.subr.mxu0 0.0
    %1600 = vmatpush1.msra.mxu0 0.0
    %1601 = vmatprep.subr.mxu0 0.0
    %1602 = vmatpush1.msra.mxu0 0.0
    %1603 = vmatprep.subr.mxu0 0.0
    %1604 = vmatpush1.msra.mxu0 0.0
    %1605 = vmatprep.subr.mxu0 0.0
    %1606 = vmatpush1.msra.mxu0 0.0
    %1607 = vmatprep.mubr.f32.mxu0 0.0
    %1608 = vmatmul.mubr.f32.gmra.mrb[0].mxu0 %v1022
    %v1609 = vpop.f32.mrb[0].mxu0
    %v1610 = vadd.f32 0.0, %v1609
    %v1611 = vpop.f32.mrb[0].mxu0
    %1612 = vmatprep.mubr.f32.mxu0 0.0
    %1613 = vmatmul.mubr.f32.gmra.mrb[0].mxu0 %v1025
    %v1614 = vpop.f32.mrb[0].mxu0
    %v1615 = vadd.f32 0.0, %v1614
    %v1616 = vpop.f32.mrb[0].mxu0
    %1617 = vmatprep.mubr.f32.mxu0 0.0
    %1618 = vmatmul.mubr.f32.gmra.mrb[0].mxu0 %v1028
    %v1619 = vpop.f32.mrb[0].mxu0
    %v1620 = vadd.f32 0.0, %v1619
    %v1621 = vpop.f32.mrb[0].mxu0
    %1622 = vmatprep.mubr.f32.mxu0 0.0
    %1623 = vmatmul.mubr.f32.gmra.mrb[0].mxu0 %v1031
    %v1624 = vpop.f32.mrb[0].mxu0
    %v1625 = vadd.f32 0.0, %v1624
    %v1626 = vpop.f32.mrb[0].mxu0
    %1627 = vdwg.mxu0
    %1628 = vmatprep.subr.mxu0 0.0
    %1629 = vmatpush1.msra.mxu0 %v685
    %1630 = vmatprep.subr.mxu0 0.0
    %1631 = vmatpush1.msra.mxu0 %v690
    %1632 = vmatprep.subr.mxu0 0.0
    %1633 = vmatpush1.msra.mxu0 0.0
    %1634 = vmatprep.subr.mxu0 0.0
    %1635 = vmatpush1.msra.mxu0 0.0
    %1636 = vmatprep.subr.mxu0 0.0
    %1637 = vmatpush1.msra.mxu0 0.0
    %1638 = vmatprep.subr.mxu0 0.0
    %1639 = vmatpush1.msra.mxu0 0.0
    %1640 = vmatprep.subr.mxu0 0.0
    %1641 = vmatpush1.msra.mxu0 0.0
    %1642 = vmatprep.subr.mxu0 0.0
    %1643 = vmatpush1.msra.mxu0 0.0
    %1644 = vmatprep.subr.mxu0 0.0
    %1645 = vmatpush1.msra.mxu0 0.0
    %1646 = vmatprep.subr.mxu0 0.0
    %1647 = vmatpush1.msra.mxu0 0.0
    %1648 = vmatprep.subr.mxu0 0.0
    %1649 = vmatpush1.msra.mxu0 0.0
    %1650 = vmatprep.subr.mxu0 0.0
    %1651 = vmatpush1.msra.mxu0 0.0
    %1652 = vmatprep.subr.mxu0 0.0
    %1653 = vmatpush1.msra.mxu0 0.0
    %1654 = vmatprep.subr.mxu0 0.0
    %1655 = vmatpush1.msra.mxu0 0.0
    %1656 = vmatprep.subr.mxu0 0.0
    %1657 = vmatpush1.msra.mxu0 0.0
    %1658 = vmatprep.subr.mxu0 0.0
    %1659 = vmatpush1.msra.mxu0 0.0
    %1660 = vmatprep.subr.mxu0 0.0
    %1661 = vmatpush1.msra.mxu0 0.0
    %1662 = vmatprep.subr.mxu0 0.0
    %1663 = vmatpush1.msra.mxu0 0.0
    %1664 = vmatprep.subr.mxu0 0.0
    %1665 = vmatpush1.msra.mxu0 0.0
    %1666 = vmatprep.subr.mxu0 0.0
    %1667 = vmatpush1.msra.mxu0 0.0
    %1668 = vmatprep.subr.mxu0 0.0
    %1669 = vmatpush1.msra.mxu0 0.0
    %1670 = vmatprep.subr.mxu0 0.0
    %1671 = vmatpush1.msra.mxu0 0.0
    %1672 = vmatprep.subr.mxu0 0.0
    %1673 = vmatpush1.msra.mxu0 0.0
    %1674 = vmatprep.subr.mxu0 0.0
    %1675 = vmatpush1.msra.mxu0 0.0
    %1676 = vmatprep.subr.mxu0 0.0
    %1677 = vmatpush1.msra.mxu0 0.0
    %1678 = vmatprep.subr.mxu0 0.0
    %1679 = vmatpush1.msra.mxu0 0.0
    %1680 = vmatprep.subr.mxu0 0.0
    %1681 = vmatpush1.msra.mxu0 0.0
    %1682 = vmatprep.subr.mxu0 0.0
    %1683 = vmatpush1.msra.mxu0 0.0
    %1684 = vmatprep.subr.mxu0 0.0
    %1685 = vmatpush1.msra.mxu0 0.0
    %1686 = vmatprep.subr.mxu0 0.0
    %1687 = vmatpush1.msra.mxu0 0.0
    %1688 = vmatprep.subr.mxu0 0.0
    %1689 = vmatpush1.msra.mxu0 0.0
    %1690 = vmatprep.subr.mxu0 0.0
    %1691 = vmatpush1.msra.mxu0 0.0
    %1692 = vmatprep.mubr.f32.mxu0 0.0
    %1693 = vmatmul.mubr.f32.gmra.mrb[0].mxu0 %v1022
    %v1694 = vpop.f32.mrb[0].mxu0
    %v1695 = vadd.f32 0.0, %v1694
    %v1696 = vpop.f32.mrb[0].mxu0
    %1697 = vmatprep.mubr.f32.mxu0 0.0
    %1698 = vmatmul.mubr.f32.gmra.mrb[0].mxu0 %v1025
    %v1699 = vpop.f32.mrb[0].mxu0
    %v1700 = vadd.f32 0.0, %v1699
    %v1701 = vpop.f32.mrb[0].mxu0
    %1702 = vmatprep.mubr.f32.mxu0 0.0
    %1703 = vmatmul.mubr.f32.gmra.mrb[0].mxu0 %v1028
    %v1704 = vpop.f32.mrb[0].mxu0
    %v1705 = vadd.f32 0.0, %v1704
    %v1706 = vpop.f32.mrb[0].mxu0
    %1707 = vmatprep.mubr.f32.mxu0 0.0
    %1708 = vmatmul.mubr.f32.gmra.mrb[0].mxu0 %v1031
    %v1709 = vpop.f32.mrb[0].mxu0
    %v1710 = vadd.f32 0.0, %v1709
    %v1711 = vpop.f32.mrb[0].mxu0
    %1712 = vdwg.mxu0
    %1713 = vmatprep.subr.mxu0 0.0
    %1714 = vmatpush1.msra.mxu0 %v766
    %1715 = vmatprep.subr.mxu0 0.0
    %1716 = vmatpush1.msra.mxu0 %v771
    %1717 = vmatprep.subr.mxu0 0.0
    %1718 = vmatpush1.msra.mxu0 0.0
    %1719 = vmatprep.subr.mxu0 0.0
    %1720 = vmatpush1.msra.mxu0 0.0
    %1721 = vmatprep.subr.mxu0 0.0
    %1722 = vmatpush1.msra.mxu0 0.0
    %1723 = vmatprep.subr.mxu0 0.0
    %1724 = vmatpush1.msra.mxu0 0.0
    %1725 = vmatprep.subr.mxu0 0.0
    %1726 = vmatpush1.msra.mxu0 0.0
    %1727 = vmatprep.subr.mxu0 0.0
    %1728 = vmatpush1.msra.mxu0 0.0
    %1729 = vmatprep.subr.mxu0 0.0
    %1730 = vmatpush1.msra.mxu0 0.0
    %1731 = vmatprep.subr.mxu0 0.0
    %1732 = vmatpush1.msra.mxu0 0.0
    %1733 = vmatprep.subr.mxu0 0.0
    %1734 = vmatpush1.msra.mxu0 0.0
    %1735 = vmatprep.subr.mxu0 0.0
    %1736 = vmatpush1.msra.mxu0 0.0
    %1737 = vmatprep.subr.mxu0 0.0
    %1738 = vmatpush1.msra.mxu0 0.0
    %1739 = vmatprep.subr.mxu0 0.0
    %1740 = vmatpush1.msra.mxu0 0.0
    %1741 = vmatprep.subr.mxu0 0.0
    %1742 = vmatpush1.msra.mxu0 0.0
    %1743 = vmatprep.subr.mxu0 0.0
    %1744 = vmatpush1.msra.mxu0 0.0
    %1745 = vmatprep.subr.mxu0 0.0
    %1746 = vmatpush1.msra.mxu0 0.0
    %1747 = vmatprep.subr.mxu0 0.0
    %1748 = vmatpush1.msra.mxu0 0.0
    %1749 = vmatprep.subr.mxu0 0.0
    %1750 = vmatpush1.msra.mxu0 0.0
    %1751 = vmatprep.subr.mxu0 0.0
    %1752 = vmatpush1.msra.mxu0 0.0
    %1753 = vmatprep.subr.mxu0 0.0
    %1754 = vmatpush1.msra.mxu0 0.0
    %1755 = vmatprep.subr.mxu0 0.0
    %1756 = vmatpush1.msra.mxu0 0.0
    %1757 = vmatprep.subr.mxu0 0.0
    %1758 = vmatpush1.msra.mxu0 0.0
    %1759 = vmatprep.subr.mxu0 0.0
    %1760 = vmatpush1.msra.mxu0 0.0
    %1761 = vmatprep.subr.mxu0 0.0
    %1762 = vmatpush1.msra.mxu0 0.0
    %1763 = vmatprep.subr.mxu0 0.0
    %1764 = vmatpush1.msra.mxu0 0.0
    %1765 = vmatprep.subr.mxu0 0.0
    %1766 = vmatpush1.msra.mxu0 0.0
    %1767 = vmatprep.subr.mxu0 0.0
    %1768 = vmatpush1.msra.mxu0 0.0
    %1769 = vmatprep.subr.mxu0 0.0
    %1770 = vmatpush1.msra.mxu0 0.0
    %1771 = vmatprep.subr.mxu0 0.0
    %1772 = vmatpush1.msra.mxu0 0.0
    %1773 = vmatprep.subr.mxu0 0.0
    %1774 = vmatpush1.msra.mxu0 0.0
    %1775 = vmatprep.subr.mxu0 0.0
    %1776 = vmatpush1.msra.mxu0 0.0
    %1777 = vmatprep.mubr.f32.mxu0 0.0
    %1778 = vmatmul.mubr.f32.gmra.mrb[0].mxu0 %v1022
    %v1779 = vpop.f32.mrb[0].mxu0
    %v1780 = vadd.f32 0.0, %v1779
    %v1781 = vpop.f32.mrb[0].mxu0
    %1782 = vmatprep.mubr.f32.mxu0 0.0
    %1783 = vmatmul.mubr.f32.gmra.mrb[0].mxu0 %v1025
    %v1784 = vpop.f32.mrb[0].mxu0
    %v1785 = vadd.f32 0.0, %v1784
    %v1786 = vpop.f32.mrb[0].mxu0
    %1787 = vmatprep.mubr.f32.mxu0 0.0
    %1788 = vmatmul.mubr.f32.gmra.mrb[0].mxu0 %v1028
    %v1789 = vpop.f32.mrb[0].mxu0
    %v1790 = vadd.f32 0.0, %v1789
    %v1791 = vpop.f32.mrb[0].mxu0
    %1792 = vmatprep.mubr.f32.mxu0 0.0
    %1793 = vmatmul.mubr.f32.gmra.mrb[0].mxu0 %v1031
    %v1794 = vpop.f32.mrb[0].mxu0
    %v1795 = vadd.f32 0.0, %v1794
    %v1796 = vpop.f32.mrb[0].mxu0
    %1797 = vdwg.mxu0
    %1798 = vmatprep.subr.mxu0 0.0
    %1799 = vmatpush1.msra.mxu0 %v847
    %1800 = vmatprep.subr.mxu0 0.0
    %1801 = vmatpush1.msra.mxu0 %v852
    %1802 = vmatprep.subr.mxu0 0.0
    %1803 = vmatpush1.msra.mxu0 0.0
    %1804 = vmatprep.subr.mxu0 0.0
    %1805 = vmatpush1.msra.mxu0 0.0
    %1806 = vmatprep.subr.mxu0 0.0
    %1807 = vmatpush1.msra.mxu0 0.0
    %1808 = vmatprep.subr.mxu0 0.0
    %1809 = vmatpush1.msra.mxu0 0.0
    %1810 = vmatprep.subr.mxu0 0.0
    %1811 = vmatpush1.msra.mxu0 0.0
    %1812 = vmatprep.subr.mxu0 0.0
    %1813 = vmatpush1.msra.mxu0 0.0
    %1814 = vmatprep.subr.mxu0 0.0
    %1815 = vmatpush1.msra.mxu0 0.0
    %1816 = vmatprep.subr.mxu0 0.0
    %1817 = vmatpush1.msra.mxu0 0.0
    %1818 = vmatprep.subr.mxu0 0.0
    %1819 = vmatpush1.msra.mxu0 0.0
    %1820 = vmatprep.subr.mxu0 0.0
    %1821 = vmatpush1.msra.mxu0 0.0
    %1822 = vmatprep.subr.mxu0 0.0
    %1823 = vmatpush1.msra.mxu0 0.0
    %1824 = vmatprep.subr.mxu0 0.0
    %1825 = vmatpush1.msra.mxu0 0.0
    %1826 = vmatprep.subr.mxu0 0.0
    %1827 = vmatpush1.msra.mxu0 0.0
    %1828 = vmatprep.subr.mxu0 0.0
    %1829 = vmatpush1.msra.mxu0 0.0
    %1830 = vmatprep.subr.mxu0 0.0
    %1831 = vmatpush1.msra.mxu0 0.0
    %1832 = vmatprep.subr.mxu0 0.0
    %1833 = vmatpush1.msra.mxu0 0.0
    %1834 = vmatprep.subr.mxu0 0.0
    %1835 = vmatpush1.msra.mxu0 0.0
    %1836 = vmatprep.subr.mxu0 0.0
    %1837 = vmatpush1.msra.mxu0 0.0
    %1838 = vmatprep.subr.mxu0 0.0
    %1839 = vmatpush1.msra.mxu0 0.0
    %1840 = vmatprep.subr.mxu0 0.0
    %1841 = vmatpush1.msra.mxu0 0.0
    %1842 = vmatprep.subr.mxu0 0.0
    %1843 = vmatpush1.msra.mxu0 0.0
    %1844 = vmatprep.subr.mxu0 0.0
    %1845 = vmatpush1.msra.mxu0 0.0
    %1846 = vmatprep.subr.mxu0 0.0
    %1847 = vmatpush1.msra.mxu0 0.0
    %1848 = vmatprep.subr.mxu0 0.0
    %1849 = vmatpush1.msra.mxu0 0.0
    %1850 = vmatprep.subr.mxu0 0.0
    %1851 = vmatpush1.msra.mxu0 0.0
    %1852 = vmatprep.subr.mxu0 0.0
    %1853 = vmatpush1.msra.mxu0 0.0
    %1854 = vmatprep.subr.mxu0 0.0
    %1855 = vmatpush1.msra.mxu0 0.0
    %1856 = vmatprep.subr.mxu0 0.0
    %1857 = vmatpush1.msra.mxu0 0.0
    %1858 = vmatprep.subr.mxu0 0.0
    %1859 = vmatpush1.msra.mxu0 0.0
    %1860 = vmatprep.subr.mxu0 0.0
    %1861 = vmatpush1.msra.mxu0 0.0
    %1862 = vmatprep.mubr.f32.mxu0 0.0
    %1863 = vmatmul.mubr.f32.gmra.mrb[0].mxu0 %v1022
    %v1864 = vpop.f32.mrb[0].mxu0
    %v1865 = vadd.f32 0.0, %v1864
    %v1866 = vpop.f32.mrb[0].mxu0
    %1867 = vmatprep.mubr.f32.mxu0 0.0
    %1868 = vmatmul.mubr.f32.gmra.mrb[0].mxu0 %v1025
    %v1869 = vpop.f32.mrb[0].mxu0
    %v1870 = vadd.f32 0.0, %v1869
    %v1871 = vpop.f32.mrb[0].mxu0
    %1872 = vmatprep.mubr.f32.mxu0 0.0
    %1873 = vmatmul.mubr.f32.gmra.mrb[0].mxu0 %v1028
    %v1874 = vpop.f32.mrb[0].mxu0
    %v1875 = vadd.f32 0.0, %v1874
    %v1876 = vpop.f32.mrb[0].mxu0
    %1877 = vmatprep.mubr.f32.mxu0 0.0
    %1878 = vmatmul.mubr.f32.gmra.mrb[0].mxu0 %v1031
    %v1879 = vpop.f32.mrb[0].mxu0
    %v1880 = vadd.f32 0.0, %v1879
    %v1881 = vpop.f32.mrb[0].mxu0
    %1882 = vdwg.mxu0
    %1883 = vmatprep.subr.mxu0 0.0
    %1884 = vmatpush1.msra.mxu0 %v928
    %1885 = vmatprep.subr.mxu0 0.0
    %1886 = vmatpush1.msra.mxu0 %v933
    %1887 = vmatprep.subr.mxu0 0.0
    %1888 = vmatpush1.msra.mxu0 0.0
    %1889 = vmatprep.subr.mxu0 0.0
    %1890 = vmatpush1.msra.mxu0 0.0
    %1891 = vmatprep.subr.mxu0 0.0
    %1892 = vmatpush1.msra.mxu0 0.0
    %1893 = vmatprep.subr.mxu0 0.0
    %1894 = vmatpush1.msra.mxu0 0.0
    %1895 = vmatprep.subr.mxu0 0.0
    %1896 = vmatpush1.msra.mxu0 0.0
    %1897 = vmatprep.subr.mxu0 0.0
    %1898 = vmatpush1.msra.mxu0 0.0
    %1899 = vmatprep.subr.mxu0 0.0
    %1900 = vmatpush1.msra.mxu0 0.0
    %1901 = vmatprep.subr.mxu0 0.0
    %1902 = vmatpush1.msra.mxu0 0.0
    %1903 = vmatprep.subr.mxu0 0.0
    %1904 = vmatpush1.msra.mxu0 0.0
    %1905 = vmatprep.subr.mxu0 0.0
    %1906 = vmatpush1.msra.mxu0 0.0
    %1907 = vmatprep.subr.mxu0 0.0
    %1908 = vmatpush1.msra.mxu0 0.0
    %1909 = vmatprep.subr.mxu0 0.0
    %1910 = vmatpush1.msra.mxu0 0.0
    %1911 = vmatprep.subr.mxu0 0.0
    %1912 = vmatpush1.msra.mxu0 0.0
    %1913 = vmatprep.subr.mxu0 0.0
    %1914 = vmatpush1.msra.mxu0 0.0
    %1915 = vmatprep.subr.mxu0 0.0
    %1916 = vmatpush1.msra.mxu0 0.0
    %1917 = vmatprep.subr.mxu0 0.0
    %1918 = vmatpush1.msra.mxu0 0.0
    %1919 = vmatprep.subr.mxu0 0.0
    %1920 = vmatpush1.msra.mxu0 0.0
    %1921 = vmatprep.subr.mxu0 0.0
    %1922 = vmatpush1.msra.mxu0 0.0
    %1923 = vmatprep.subr.mxu0 0.0
    %1924 = vmatpush1.msra.mxu0 0.0
    %1925 = vmatprep.subr.mxu0 0.0
    %1926 = vmatpush1.msra.mxu0 0.0
    %1927 = vmatprep.subr.mxu0 0.0
    %1928 = vmatpush1.msra.mxu0 0.0
    %1929 = vmatprep.subr.mxu0 0.0
    %1930 = vmatpush1.msra.mxu0 0.0
    %1931 = vmatprep.subr.mxu0 0.0
    %1932 = vmatpush1.msra.mxu0 0.0
    %1933 = vmatprep.subr.mxu0 0.0
    %1934 = vmatpush1.msra.mxu0 0.0
    %1935 = vmatprep.subr.mxu0 0.0
    %1936 = vmatpush1.msra.mxu0 0.0
    %1937 = vmatprep.subr.mxu0 0.0
    %1938 = vmatpush1.msra.mxu0 0.0
    %1939 = vmatprep.subr.mxu0 0.0
    %1940 = vmatpush1.msra.mxu0 0.0
    %1941 = vmatprep.subr.mxu0 0.0
    %1942 = vmatpush1.msra.mxu0 0.0
    %1943 = vmatprep.subr.mxu0 0.0
    %1944 = vmatpush1.msra.mxu0 0.0
    %1945 = vmatprep.subr.mxu0 0.0
    %1946 = vmatpush1.msra.mxu0 0.0
    %1947 = vmatprep.mubr.f32.mxu0 0.0
    %1948 = vmatmul.mubr.f32.gmra.mrb[0].mxu0 %v1022
    %v1949 = vpop.f32.mrb[0].mxu0
    %v1950 = vadd.f32 0.0, %v1949
    %v1951 = vpop.f32.mrb[0].mxu0
    %1952 = vmatprep.mubr.f32.mxu0 0.0
    %1953 = vmatmul.mubr.f32.gmra.mrb[0].mxu0 %v1025
    %v1954 = vpop.f32.mrb[0].mxu0
    %v1955 = vadd.f32 0.0, %v1954
    %v1956 = vpop.f32.mrb[0].mxu0
    %1957 = vmatprep.mubr.f32.mxu0 0.0
    %1958 = vmatmul.mubr.f32.gmra.mrb[0].mxu0 %v1028
    %v1959 = vpop.f32.mrb[0].mxu0
    %v1960 = vadd.f32 0.0, %v1959
    %v1961 = vpop.f32.mrb[0].mxu0
    %1962 = vmatprep.mubr.f32.mxu0 0.0
    %1963 = vmatmul.mubr.f32.gmra.mrb[0].mxu0 %v1031
    %v1964 = vpop.f32.mrb[0].mxu0
    %v1965 = vadd.f32 0.0, %v1964
    %v1966 = vpop.f32.mrb[0].mxu0
    %1967 = vdwg.mxu0
    %1968 = vmatprep.subr.mxu0 0.0
    %1969 = vmatpush1.msra.mxu0 %v1009
    %1970 = vmatprep.subr.mxu0 0.0
    %1971 = vmatpush1.msra.mxu0 %v1014
    %1972 = vmatprep.subr.mxu0 0.0
    %1973 = vmatpush1.msra.mxu0 0.0
    %1974 = vmatprep.subr.mxu0 0.0
    %1975 = vmatpush1.msra.mxu0 0.0
    %1976 = vmatprep.subr.mxu0 0.0
    %1977 = vmatpush1.msra.mxu0 0.0
    %1978 = vmatprep.subr.mxu0 0.0
    %1979 = vmatpush1.msra.mxu0 0.0
    %1980 = vmatprep.subr.mxu0 0.0
    %1981 = vmatpush1.msra.mxu0 0.0
    %1982 = vmatprep.subr.mxu0 0.0
    %1983 = vmatpush1.msra.mxu0 0.0
    %1984 = vmatprep.subr.mxu0 0.0
    %1985 = vmatpush1.msra.mxu0 0.0
    %1986 = vmatprep.subr.mxu0 0.0
    %1987 = vmatpush1.msra.mxu0 0.0
    %1988 = vmatprep.subr.mxu0 0.0
    %1989 = vmatpush1.msra.mxu0 0.0
    %1990 = vmatprep.subr.mxu0 0.0
    %1991 = vmatpush1.msra.mxu0 0.0
    %1992 = vmatprep.subr.mxu0 0.0
    %1993 = vmatpush1.msra.mxu0 0.0
    %1994 = vmatprep.subr.mxu0 0.0
    %1995 = vmatpush1.msra.mxu0 0.0
    %1996 = vmatprep.subr.mxu0 0.0
    %1997 = vmatpush1.msra.mxu0 0.0
    %1998 = vmatprep.subr.mxu0 0.0
    %1999 = vmatpush1.msra.mxu0 0.0
    %2000 = vmatprep.subr.mxu0 0.0
    %2001 = vmatpush1.msra.mxu0 0.0
    %2002 = vmatprep.subr.mxu0 0.0
    %2003 = vmatpush1.msra.mxu0 0.0
    %2004 = vmatprep.subr.mxu0 0.0
    %2005 = vmatpush1.msra.mxu0 0.0
    %2006 = vmatprep.subr.mxu0 0.0
    %2007 = vmatpush1.msra.mxu0 0.0
    %2008 = vmatprep.subr.mxu0 0.0
    %2009 = vmatpush1.msra.mxu0 0.0
    %2010 = vmatprep.subr.mxu0 0.0
    %2011 = vmatpush1.msra.mxu0 0.0
    %2012 = vmatprep.subr.mxu0 0.0
    %2013 = vmatpush1.msra.mxu0 0.0
    %2014 = vmatprep.subr.mxu0 0.0
    %2015 = vmatpush1.msra.mxu0 0.0
    %2016 = vmatprep.subr.mxu0 0.0
    %2017 = vmatpush1.msra.mxu0 0.0
    %2018 = vmatprep.subr.mxu0 0.0
    %2019 = vmatpush1.msra.mxu0 0.0
    %2020 = vmatprep.subr.mxu0 0.0
    %2021 = vmatpush1.msra.mxu0 0.0
    %2022 = vmatprep.subr.mxu0 0.0
    %2023 = vmatpush1.msra.mxu0 0.0
    %2024 = vmatprep.subr.mxu0 0.0
    %2025 = vmatpush1.msra.mxu0 0.0
    %2026 = vmatprep.subr.mxu0 0.0
    %2027 = vmatpush1.msra.mxu0 0.0
    %2028 = vmatprep.subr.mxu0 0.0
    %2029 = vmatpush1.msra.mxu0 0.0
    %2030 = vmatprep.subr.mxu0 0.0
    %2031 = vmatpush1.msra.mxu0 0.0
    %2032 = vmatprep.mubr.f32.mxu0 0.0
    %2033 = vmatmul.mubr.f32.gmra.mrb[0].mxu0 %v1022
    %v2034 = vpop.f32.mrb[0].mxu0
    %v2035 = vadd.f32 0.0, %v2034
    %v2036 = vpop.f32.mrb[0].mxu0
    %2037 = vmatprep.mubr.f32.mxu0 0.0
    %2038 = vmatmul.mubr.f32.gmra.mrb[0].mxu0 %v1025
    %v2039 = vpop.f32.mrb[0].mxu0
    %v2040 = vadd.f32 0.0, %v2039
    %v2041 = vpop.f32.mrb[0].mxu0
    %2042 = vmatprep.mubr.f32.mxu0 0.0
    %2043 = vmatmul.mubr.f32.gmra.mrb[0].mxu0 %v1028
    %v2044 = vpop.f32.mrb[0].mxu0
    %v2045 = vadd.f32 0.0, %v2044
    %v2046 = vpop.f32.mrb[0].mxu0
    %2047 = vmatprep.mubr.f32.mxu0 0.0
    %2048 = vmatmul.mubr.f32.gmra.mrb[0].mxu0 %v1031
    %v2049 = vpop.f32.mrb[0].mxu0
    %v2050 = vadd.f32 0.0, %v2049
    %v2051 = vpop.f32.mrb[0].mxu0
    %2052 = vdwg.mxu0
    %v2053 = vld [vmem:[%s1] sm:$0xff]
    %v2054 = vld [vmem:[%s1 + $0x8] sm:$0xff]
    %v2055 = vld [vmem:[%s1 + $0x10] sm:$0xff]
    %v2056 = vld [vmem:[%s1 + $0x18] sm:$0xff]
    %v2057 = vld [vmem:[%s1 + $0x20] sm:$0xff]
    %v2058 = vld [vmem:[%s1 + $0x28] sm:$0xff]
    %v2059 = vld [vmem:[%s1 + $0x30] sm:$0xff]
    %v2060 = vld [vmem:[%s1 + $0x38] sm:$0xff]
    %v2061 = vld [vmem:[%s1 + $0x40] sm:$0xff]
    %v2062 = vld [vmem:[%s1 + $0x48] sm:$0xff]
    %v2063 = vld [vmem:[%s1 + $0x50] sm:$0xff]
    %v2064 = vld [vmem:[%s1 + $0x58] sm:$0xff]
    %v2065 = vld [vmem:[%s1 + $0x60] sm:$0xff]
    %v2066 = vld [vmem:[%s1 + $0x68] sm:$0xff]
    %v2067 = vld [vmem:[%s1 + $0x70] sm:$0xff]
    %v2068 = vld [vmem:[%s1 + $0x78] sm:$0xff]
    %v2069 = vld [vmem:[%s1 + $0x80] sm:$0xff]
    %v2070 = vld [vmem:[%s1 + $0x88] sm:$0xff]
    %v2071 = vld [vmem:[%s1 + $0x90] sm:$0xff]
    %v2072 = vld [vmem:[%s1 + $0x98] sm:$0xff]
    %v2073 = vld [vmem:[%s1 + $0xa0] sm:$0xff]
    %v2074 = vld [vmem:[%s1 + $0xa8] sm:$0xff]
    %v2075 = vld [vmem:[%s1 + $0xb0] sm:$0xff]
    %v2076 = vld [vmem:[%s1 + $0xb8] sm:$0xff]
    %v2077 = vmul.f32 %v1100, %v2053
    %v2078 = vmul.f32 %v1105, %v2054
    %v2079 = vmul.f32 %v1110, %v2055
    %v2080 = vmul.f32 %v1115, %v2056
    %v2081 = vmul.f32 %v1185, %v2057
    %v2082 = vmul.f32 %v1190, %v2058
    %v2083 = vmul.f32 %v1195, %v2059
    %v2084 = vmul.f32 %v1200, %v2060
    %v2085 = vmul.f32 %v1270, %v2061
    %v2086 = vmul.f32 %v1275, %v2062
    %v2087 = vmul.f32 %v1280, %v2063
    %v2088 = vmul.f32 %v1285, %v2064
    %v2089 = vmul.f32 %v1355, %v2065
    %v2090 = vmul.f32 %v1360, %v2066
    %v2091 = vmul.f32 %v1365, %v2067
    %v2092 = vmul.f32 %v1370, %v2068
    %v2093 = vmul.f32 %v1440, %v2069
    %v2094 = vmul.f32 %v1445, %v2070
    %v2095 = vmul.f32 %v1450, %v2071
    %v2096 = vmul.f32 %v1455, %v2072
    %v2097 = vmul.f32 %v1525, %v2073
    %v2098 = vmul.f32 %v1530, %v2074
    %v2099 = vmul.f32 %v1535, %v2075
    %v2100 = vmul.f32 %v1540, %v2076
    %v2101 = vadd.f32 %v2077, %v1610
    %v2102 = vadd.f32 %v2078, %v1615
    %v2103 = vadd.f32 %v2079, %v1620
    %v2104 = vadd.f32 %v2080, %v1625
    %v2105 = vadd.f32 %v2081, %v1695
    %v2106 = vadd.f32 %v2082, %v1700
    %v2107 = vadd.f32 %v2083, %v1705
    %v2108 = vadd.f32 %v2084, %v1710
    %v2109 = vadd.f32 %v2085, %v1780
    %v2110 = vadd.f32 %v2086, %v1785
    %v2111 = vadd.f32 %v2087, %v1790
    %v2112 = vadd.f32 %v2088, %v1795
    %v2113 = vadd.f32 %v2089, %v1865
    %v2114 = vadd.f32 %v2090, %v1870
    %v2115 = vadd.f32 %v2091, %v1875
    %v2116 = vadd.f32 %v2092, %v1880
    %v2117 = vadd.f32 %v2093, %v1950
    %v2118 = vadd.f32 %v2094, %v1955
    %v2119 = vadd.f32 %v2095, %v1960
    %v2120 = vadd.f32 %v2096, %v1965
    %v2121 = vadd.f32 %v2097, %v2035
    %v2122 = vadd.f32 %v2098, %v2040
    %v2123 = vadd.f32 %v2099, %v2045
    %v2124 = vadd.f32 %v2100, %v2050
    %vm2125 = vcmask 261120
    %2126 = vst.msk [vmem:[#allocation2] sm:$0xff] %vm2125, %v2101
    %2127 = vst.msk [vmem:[#allocation2 + $0x8] sm:$0xff] %vm2125, %v2102
    %2128 = vst.msk [vmem:[#allocation2 + $0x10] sm:$0xff] %vm2125, %v2103
    %2129 = vst.msk [vmem:[#allocation2 + $0x18] sm:$0xff] %vm2125, %v2104
    %2130 = vst.msk [vmem:[#allocation2 + $0x20] sm:$0xff] %vm2125, %v2105
    %2131 = vst.msk [vmem:[#allocation2 + $0x28] sm:$0xff] %vm2125, %v2106
    %2132 = vst.msk [vmem:[#allocation2 + $0x30] sm:$0xff] %vm2125, %v2107
    %2133 = vst.msk [vmem:[#allocation2 + $0x38] sm:$0xff] %vm2125, %v2108
    %2134 = vst.msk [vmem:[#allocation2 + $0x40] sm:$0xff] %vm2125, %v2109
    %2135 = vst.msk [vmem:[#allocation2 + $0x48] sm:$0xff] %vm2125, %v2110
    %2136 = vst.msk [vmem:[#allocation2 + $0x50] sm:$0xff] %vm2125, %v2111
    %2137 = vst.msk [vmem:[#allocation2 + $0x58] sm:$0xff] %vm2125, %v2112
    %2138 = vst.msk [vmem:[#allocation2 + $0x60] sm:$0xff] %vm2125, %v2113
    %2139 = vst.msk [vmem:[#allocation2 + $0x68] sm:$0xff] %vm2125, %v2114
    %2140 = vst.msk [vmem:[#allocation2 + $0x70] sm:$0xff] %vm2125, %v2115
    %2141 = vst.msk [vmem:[#allocation2 + $0x78] sm:$0xff] %vm2125, %v2116
    %2142 = vst.msk [vmem:[#allocation2 + $0x80] sm:$0xff] %vm2125, %v2117
    %2143 = vst.msk [vmem:[#allocation2 + $0x88] sm:$0xff] %vm2125, %v2118
    %2144 = vst.msk [vmem:[#allocation2 + $0x90] sm:$0xff] %vm2125, %v2119
    %2145 = vst.msk [vmem:[#allocation2 + $0x98] sm:$0xff] %vm2125, %v2120
    %2146 = vst.msk [vmem:[#allocation2 + $0xa0] sm:$0xff] %vm2125, %v2121
    %2147 = vst.msk [vmem:[#allocation2 + $0xa8] sm:$0xff] %vm2125, %v2122
    %2148 = vst.msk [vmem:[#allocation2 + $0xb0] sm:$0xff] %vm2125, %v2123
    %2149 = vst.msk [vmem:[#allocation2 + $0xb8] sm:$0xff] %vm2125, %v2124
    // Predicated region
    $region18: #{conv_guided_filter.5} parent=1 // pred_check
      _
    $region19: #{conv_guided_filter.5} parent=1 // pred_check_branch
      %2151 = sbr.rel (0) target = $region21
    $region20: #{conv_guided_filter.5} parent=1 // pred_region
      %s2153 = ssub.s32 3072, 3072
      %2154 = vsyncadd [#allocation3], %s2153
      %s2155 = sshll.u32 [#allocation2], 4
      %s2156 = int_to_ptr.vmem [resolvable:$true] %s2155
      %2161 = dma.vmem_to_hbm [thread:$0]  %s2156, 3072, %s4, [#allocation3], 128, 128, 8
    $region21: #{conv_guided_filter.5} parent=1 // pred_fallthru
      _
    // Predicated region
    $region22: #{conv_guided_filter.5} parent=1 // pred_check
      _
    $region23: #{conv_guided_filter.5} parent=1 // pred_check_branch
      %2163 = sbr.rel (0) target = $region25
    $region24: #{conv_guided_filter.5} parent=1 // pred_region
      %2164 = dma.done [#allocation3], 3072
    $region25: #{conv_guided_filter.5} parent=1 // pred_fallthru
      _
    %2165 = vsyncpa [#allocation3], 1

// kernel: conv_guided_filter.3
$region0: #{conv_guided_filter.3}
  #allocation0 [shape = 'u32[]', space=smem, size = 0x4, offset = 0x4, fixed_abs, tag = 'smem constant byte address 0x4 - core index']
  #allocation1 [shape = 'u32[144,128]{1,0:T(1,128)}', space=vmem, size = 0x12000, scoped, tag = 'internal scratch']
  %s0 = inlined_call_operand.hbm [shape: f32[6,16,16], index: 0, kind: input, shape index: {}]
  %s1 = inlined_call_operand.hbm [shape: f32[6,16,16], index: 1, kind: input, shape index: {}]
  %s2 = inlined_call_operand.vmem [shape: f32[16,16], index: 2, kind: input, shape index: {}, may-alias: {2,3}]
  %s3 = inlined_call_operand.vmem [shape: f32[16,16], index: 3, kind: input, shape index: {}, may-alias: {2,3}]
  %s4 = inlined_call_operand.vmem [shape: f32[1,16,16], index: 4, kind: input, shape index: {}]
  %s5 = inlined_call_operand.vmem [shape: f32[4,6,16,16], index: 5, kind: output, shape index: {}]
  %s6 = sld [smem:[#allocation0]]
  $region38: #{conv_guided_filter.3} parent=0
    _
  %s8 = ssub.s32 1, %s6
  %s9 = scalar_select 0, %s8, %s6
  $region1: #{conv_guided_filter.3} parent=0
    #allocation2 [shape = 'u8[49152]{0}', space=vmem, size = 0xc000, scoped, tag = 'input window, operand 0, single buffered']
    #allocation3 [shape = 's32[1]{0}', space=sflag, size = 0x4, scoped, tag = 'scoped memory for conv_guided_filter.3']
    #allocation4 [shape = 'u8[49152]{0}', space=vmem, size = 0xc000, scoped, tag = 'input window, operand 1, single buffered']
    #allocation5 [shape = 's32[1]{0}', space=sflag, size = 0x4, scoped, tag = 'scoped memory for conv_guided_filter.3']
    %10 = vsyncpa [#allocation3], 0
    %11 = vsyncpa [#allocation5], 0
    // Predicated region
    $region2: #{conv_guided_filter.3} parent=1 // pred_check
      _
    $region3: #{conv_guided_filter.3} parent=1 // pred_check_branch
      %13 = sbr.rel (0) target = $region5
    $region4: #{conv_guided_filter.3} parent=1 // pred_region
      %s15 = ssub.s32 1536, 1536
      %16 = vsyncadd [#allocation3], %s15
      %s17 = sshll.u32 [#allocation2], 4
      %s18 = int_to_ptr.vmem [resolvable:$true] %s17
      %23 = dma.hbm_to_vmem [thread:$0]  %s0, 1536, %s18, [#allocation3], 128, 128, 8
    $region5: #{conv_guided_filter.3} parent=1 // pred_fallthru
      _
    // Predicated region
    $region6: #{conv_guided_filter.3} parent=1 // pred_check
      _
    $region7: #{conv_guided_filter.3} parent=1 // pred_check_branch
      %25 = sbr.rel (0) target = $region9
    $region8: #{conv_guided_filter.3} parent=1 // pred_region
      %s27 = ssub.s32 1536, 1536
      %28 = vsyncadd [#allocation5], %s27
      %s29 = sshll.u32 [#allocation4], 4
      %s30 = int_to_ptr.vmem [resolvable:$true] %s29
      %35 = dma.hbm_to_vmem [thread:$0]  %s1, 1536, %s30, [#allocation5], 128, 128, 8
    $region9: #{conv_guided_filter.3} parent=1 // pred_fallthru
      _
    // Predicated region
    $region10: #{conv_guided_filter.3} parent=1 // pred_check
      _
    $region11: #{conv_guided_filter.3} parent=1 // pred_check_branch
      %37 = sbr.rel (0) target = $region13
    $region12: #{conv_guided_filter.3} parent=1 // pred_region
      _
    $region13: #{conv_guided_filter.3} parent=1 // pred_fallthru
      _
    // Predicated region
    $region14: #{conv_guided_filter.3} parent=1 // pred_check
      _
    $region15: #{conv_guided_filter.3} parent=1 // pred_check_branch
      %39 = sbr.rel (0) target = $region17
    $region16: #{conv_guided_filter.3} parent=1 // pred_region
      _
    $region17: #{conv_guided_filter.3} parent=1 // pred_fallthru
      _
    // Predicated region
    $region18: #{conv_guided_filter.3} parent=1 // pred_check
      _
    $region19: #{conv_guided_filter.3} parent=1 // pred_check_branch
      %41 = sbr.rel (0) target = $region21
    $region20: #{conv_guided_filter.3} parent=1 // pred_region
      _
    $region21: #{conv_guided_filter.3} parent=1 // pred_fallthru
      _
    // Predicated region
    $region22: #{conv_guided_filter.3} parent=1 // pred_check
      _
    $region23: #{conv_guided_filter.3} parent=1 // pred_check_branch
      %43 = sbr.rel (0) target = $region25
    $region24: #{conv_guided_filter.3} parent=1 // pred_region
      %44 = dma.done [#allocation3], 1536
    $region25: #{conv_guided_filter.3} parent=1 // pred_fallthru
      _
    // Predicated region
    $region26: #{conv_guided_filter.3} parent=1 // pred_check
      _
    $region27: #{conv_guided_filter.3} parent=1 // pred_check_branch
      %46 = sbr.rel (0) target = $region29
    $region28: #{conv_guided_filter.3} parent=1 // pred_region
      %47 = dma.done [#allocation5], 1536
    $region29: #{conv_guided_filter.3} parent=1 // pred_fallthru
      _
    %v48 = vld [vmem:[#allocation2] sm:$0xff]
    %v49 = vld [vmem:[#allocation2 + $0x8] sm:$0xff]
    %v50 = vld [vmem:[#allocation2 + $0x10] sm:$0xff]
    %v51 = vld [vmem:[#allocation2 + $0x18] sm:$0xff]
    %v52 = vld [vmem:[#allocation2 + $0x20] sm:$0xff]
    %v53 = vld [vmem:[#allocation2 + $0x28] sm:$0xff]
    %v54 = vld [vmem:[#allocation2 + $0x30] sm:$0xff]
    %v55 = vld [vmem:[#allocation2 + $0x38] sm:$0xff]
    %v56 = vld [vmem:[#allocation2 + $0x40] sm:$0xff]
    %v57 = vld [vmem:[#allocation2 + $0x48] sm:$0xff]
    %v58 = vld [vmem:[#allocation2 + $0x50] sm:$0xff]
    %v59 = vld [vmem:[#allocation2 + $0x58] sm:$0xff]
    %v60 = vld [vmem:[#allocation4] sm:$0xff]
    %v61 = vld [vmem:[#allocation4 + $0x8] sm:$0xff]
    %v62 = vld [vmem:[#allocation4 + $0x10] sm:$0xff]
    %v63 = vld [vmem:[#allocation4 + $0x18] sm:$0xff]
    %v64 = vld [vmem:[#allocation4 + $0x20] sm:$0xff]
    %v65 = vld [vmem:[#allocation4 + $0x28] sm:$0xff]
    %v66 = vld [vmem:[#allocation4 + $0x30] sm:$0xff]
    %v67 = vld [vmem:[#allocation4 + $0x38] sm:$0xff]
    %v68 = vld [vmem:[#allocation4 + $0x40] sm:$0xff]
    %v69 = vld [vmem:[#allocation4 + $0x48] sm:$0xff]
    %v70 = vld [vmem:[#allocation4 + $0x50] sm:$0xff]
    %v71 = vld [vmem:[#allocation4 + $0x58] sm:$0xff]
    %v72 = vld [vmem:[%s2] sm:$0xff]
    %v73 = vld [vmem:[%s2 + $0x8] sm:$0xff]
    %v74 = vld [vmem:[%s3] sm:$0xff]
    %v75 = vld [vmem:[%s3 + $0x8] sm:$0xff]
    %v76 = vld [vmem:[%s4] sm:$0xff]
    %v77 = vld [vmem:[%s4 + $0x8] sm:$0xff]
    %vm78 = vcmask 130048
    %v80 = vsel %vm78, %v48, 0
    %v83 = vsel %vm78, %v49, 0
    %85 = vmatprep.subr.mxu0 0.0
    %86 = vmatpush1.msra.mxu0 %v72
    %87 = vmatprep.subr.mxu0 0.0
    %88 = vmatpush1.msra.mxu0 %v73
    %89 = vmatprep.subr.mxu0 0.0
    %90 = vmatpush1.msra.mxu0 0.0
    %91 = vmatprep.subr.mxu0 0.0
    %92 = vmatpush1.msra.mxu0 0.0
    %93 = vmatprep.subr.mxu0 0.0
    %94 = vmatpush1.msra.mxu0 0.0
    %95 = vmatprep.subr.mxu0 0.0
    %96 = vmatpush1.msra.mxu0 0.0
    %97 = vmatprep.subr.mxu0 0.0
    %98 = vmatpush1.msra.mxu0 0.0
    %99 = vmatprep.subr.mxu0 0.0
    %100 = vmatpush1.msra.mxu0 0.0
    %101 = vmatprep.subr.mxu0 0.0
    %102 = vmatpush1.msra.mxu0 0.0
    %103 = vmatprep.subr.mxu0 0.0
    %104 = vmatpush1.msra.mxu0 0.0
    %105 = vmatprep.subr.mxu0 0.0
    %106 = vmatpush1.msra.mxu0 0.0
    %107 = vmatprep.subr.mxu0 0.0
    %108 = vmatpush1.msra.mxu0 0.0
    %109 = vmatprep.subr.mxu0 0.0
    %110 = vmatpush1.msra.mxu0 0.0
    %111 = vmatprep.subr.mxu0 0.0
    %112 = vmatpush1.msra.mxu0 0.0
    %113 = vmatprep.subr.mxu0 0.0
    %114 = vmatpush1.msra.mxu0 0.0
    %115 = vmatprep.subr.mxu0 0.0
    %116 = vmatpush1.msra.mxu0 0.0
    %117 = vmatprep.subr.mxu0 0.0
    %118 = vmatpush1.msra.mxu0 0.0
    %119 = vmatprep.subr.mxu0 0.0
    %120 = vmatpush1.msra.mxu0 0.0
    %121 = vmatprep.subr.mxu0 0.0
    %122 = vmatpush1.msra.mxu0 0.0
    %123 = vmatprep.subr.mxu0 0.0
    %124 = vmatpush1.msra.mxu0 0.0
    %125 = vmatprep.subr.mxu0 0.0
    %126 = vmatpush1.msra.mxu0 0.0
    %127 = vmatprep.subr.mxu0 0.0
    %128 = vmatpush1.msra.mxu0 0.0
    %129 = vmatprep.subr.mxu0 0.0
    %130 = vmatpush1.msra.mxu0 0.0
    %131 = vmatprep.subr.mxu0 0.0
    %132 = vmatpush1.msra.mxu0 0.0
    %133 = vmatprep.subr.mxu0 0.0
    %134 = vmatpush1.msra.mxu0 0.0
    %135 = vmatprep.subr.mxu0 0.0
    %136 = vmatpush1.msra.mxu0 0.0
    %137 = vmatprep.subr.mxu0 0.0
    %138 = vmatpush1.msra.mxu0 0.0
    %139 = vmatprep.subr.mxu0 0.0
    %140 = vmatpush1.msra.mxu0 0.0
    %141 = vmatprep.subr.mxu0 0.0
    %142 = vmatpush1.msra.mxu0 0.0
    %143 = vmatprep.subr.mxu0 0.0
    %144 = vmatpush1.msra.mxu0 0.0
    %145 = vmatprep.subr.mxu0 0.0
    %146 = vmatpush1.msra.mxu0 0.0
    %147 = vmatprep.subr.mxu0 0.0
    %148 = vmatpush1.msra.mxu0 0.0
    %149 = vmatprep.mubr.f32.mxu0 0.0
    %150 = vmatmul.mubr.f32.gmra.mrb[0].mxu0 %v80
    %v151 = vpop.f32.mrb[0].mxu0
    %v152 = vadd.f32 0.0, %v151
    %v153 = vpop.f32.mrb[0].mxu0
    %154 = vmatprep.mubr.f32.mxu0 0.0
    %155 = vmatmul.mubr.f32.gmra.mrb[0].mxu0 %v83
    %v156 = vpop.f32.mrb[0].mxu0
    %v157 = vadd.f32 0.0, %v156
    %v158 = vpop.f32.mrb[0].mxu0
    %159 = vdwg.mxu0
    %v161 = vsel %vm78, %v50, 0
    %v164 = vsel %vm78, %v51, 0
    %166 = vmatprep.subr.mxu0 0.0
    %167 = vmatpush1.msra.mxu0 %v72
    %168 = vmatprep.subr.mxu0 0.0
    %169 = vmatpush1.msra.mxu0 %v73
    %170 = vmatprep.subr.mxu0 0.0
    %171 = vmatpush1.msra.mxu0 0.0
    %172 = vmatprep.subr.mxu0 0.0
    %173 = vmatpush1.msra.mxu0 0.0
    %174 = vmatprep.subr.mxu0 0.0
    %175 = vmatpush1.msra.mxu0 0.0
    %176 = vmatprep.subr.mxu0 0.0
    %177 = vmatpush1.msra.mxu0 0.0
    %178 = vmatprep.subr.mxu0 0.0
    %179 = vmatpush1.msra.mxu0 0.0
    %180 = vmatprep.subr.mxu0 0.0
    %181 = vmatpush1.msra.mxu0 0.0
    %182 = vmatprep.subr.mxu0 0.0
    %183 = vmatpush1.msra.mxu0 0.0
    %184 = vmatprep.subr.mxu0 0.0
    %185 = vmatpush1.msra.mxu0 0.0
    %186 = vmatprep.subr.mxu0 0.0
    %187 = vmatpush1.msra.mxu0 0.0
    %188 = vmatprep.subr.mxu0 0.0
    %189 = vmatpush1.msra.mxu0 0.0
    %190 = vmatprep.subr.mxu0 0.0
    %191 = vmatpush1.msra.mxu0 0.0
    %192 = vmatprep.subr.mxu0 0.0
    %193 = vmatpush1.msra.mxu0 0.0
    %194 = vmatprep.subr.mxu0 0.0
    %195 = vmatpush1.msra.mxu0 0.0
    %196 = vmatprep.subr.mxu0 0.0
    %197 = vmatpush1.msra.mxu0 0.0
    %198 = vmatprep.subr.mxu0 0.0
    %199 = vmatpush1.msra.mxu0 0.0
    %200 = vmatprep.subr.mxu0 0.0
    %201 = vmatpush1.msra.mxu0 0.0
    %202 = vmatprep.subr.mxu0 0.0
    %203 = vmatpush1.msra.mxu0 0.0
    %204 = vmatprep.subr.mxu0 0.0
    %205 = vmatpush1.msra.mxu0 0.0
    %206 = vmatprep.subr.mxu0 0.0
    %207 = vmatpush1.msra.mxu0 0.0
    %208 = vmatprep.subr.mxu0 0.0
    %209 = vmatpush1.msra.mxu0 0.0
    %210 = vmatprep.subr.mxu0 0.0
    %211 = vmatpush1.msra.mxu0 0.0
    %212 = vmatprep.subr.mxu0 0.0
    %213 = vmatpush1.msra.mxu0 0.0
    %214 = vmatprep.subr.mxu0 0.0
    %215 = vmatpush1.msra.mxu0 0.0
    %216 = vmatprep.subr.mxu0 0.0
    %217 = vmatpush1.msra.mxu0 0.0
    %218 = vmatprep.subr.mxu0 0.0
    %219 = vmatpush1.msra.mxu0 0.0
    %220 = vmatprep.subr.mxu0 0.0
    %221 = vmatpush1.msra.mxu0 0.0
    %222 = vmatprep.subr.mxu0 0.0
    %223 = vmatpush1.msra.mxu0 0.0
    %224 = vmatprep.subr.mxu0 0.0
    %225 = vmatpush1.msra.mxu0 0.0
    %226 = vmatprep.subr.mxu0 0.0
    %227 = vmatpush1.msra.mxu0 0.0
    %228 = vmatprep.subr.mxu0 0.0
    %229 = vmatpush1.msra.mxu0 0.0
    %230 = vmatprep.mubr.f32.mxu0 0.0
    %231 = vmatmul.mubr.f32.gmra.mrb[0].mxu0 %v161
    %v232 = vpop.f32.mrb[0].mxu0
    %v233 = vadd.f32 0.0, %v232
    %v234 = vpop.f32.mrb[0].mxu0
    %235 = vmatprep.mubr.f32.mxu0 0.0
    %236 = vmatmul.mubr.f32.gmra.mrb[0].mxu0 %v164
    %v237 = vpop.f32.mrb[0].mxu0
    %v238 = vadd.f32 0.0, %v237
    %v239 = vpop.f32.mrb[0].mxu0
    %240 = vdwg.mxu0
    %v242 = vsel %vm78, %v52, 0
    %v245 = vsel %vm78, %v53, 0
    %247 = vmatprep.subr.mxu0 0.0
    %248 = vmatpush1.msra.mxu0 %v72
    %249 = vmatprep.subr.mxu0 0.0
    %250 = vmatpush1.msra.mxu0 %v73
    %251 = vmatprep.subr.mxu0 0.0
    %252 = vmatpush1.msra.mxu0 0.0
    %253 = vmatprep.subr.mxu0 0.0
    %254 = vmatpush1.msra.mxu0 0.0
    %255 = vmatprep.subr.mxu0 0.0
    %256 = vmatpush1.msra.mxu0 0.0
    %257 = vmatprep.subr.mxu0 0.0
    %258 = vmatpush1.msra.mxu0 0.0
    %259 = vmatprep.subr.mxu0 0.0
    %260 = vmatpush1.msra.mxu0 0.0
    %261 = vmatprep.subr.mxu0 0.0
    %262 = vmatpush1.msra.mxu0 0.0
    %263 = vmatprep.subr.mxu0 0.0
    %264 = vmatpush1.msra.mxu0 0.0
    %265 = vmatprep.subr.mxu0 0.0
    %266 = vmatpush1.msra.mxu0 0.0
    %267 = vmatprep.subr.mxu0 0.0
    %268 = vmatpush1.msra.mxu0 0.0
    %269 = vmatprep.subr.mxu0 0.0
    %270 = vmatpush1.msra.mxu0 0.0
    %271 = vmatprep.subr.mxu0 0.0
    %272 = vmatpush1.msra.mxu0 0.0
    %273 = vmatprep.subr.mxu0 0.0
    %274 = vmatpush1.msra.mxu0 0.0
    %275 = vmatprep.subr.mxu0 0.0
    %276 = vmatpush1.msra.mxu0 0.0
    %277 = vmatprep.subr.mxu0 0.0
    %278 = vmatpush1.msra.mxu0 0.0
    %279 = vmatprep.subr.mxu0 0.0
    %280 = vmatpush1.msra.mxu0 0.0
    %281 = vmatprep.subr.mxu0 0.0
    %282 = vmatpush1.msra.mxu0 0.0
    %283 = vmatprep.subr.mxu0 0.0
    %284 = vmatpush1.msra.mxu0 0.0
    %285 = vmatprep.subr.mxu0 0.0
    %286 = vmatpush1.msra.mxu0 0.0
    %287 = vmatprep.subr.mxu0 0.0
    %288 = vmatpush1.msra.mxu0 0.0
    %289 = vmatprep.subr.mxu0 0.0
    %290 = vmatpush1.msra.mxu0 0.0
    %291 = vmatprep.subr.mxu0 0.0
    %292 = vmatpush1.msra.mxu0 0.0
    %293 = vmatprep.subr.mxu0 0.0
    %294 = vmatpush1.msra.mxu0 0.0
    %295 = vmatprep.subr.mxu0 0.0
    %296 = vmatpush1.msra.mxu0 0.0
    %297 = vmatprep.subr.mxu0 0.0
    %298 = vmatpush1.msra.mxu0 0.0
    %299 = vmatprep.subr.mxu0 0.0
    %300 = vmatpush1.msra.mxu0 0.0
    %301 = vmatprep.subr.mxu0 0.0
    %302 = vmatpush1.msra.mxu0 0.0
    %303 = vmatprep.subr.mxu0 0.0
    %304 = vmatpush1.msra.mxu0 0.0
    %305 = vmatprep.subr.mxu0 0.0
    %306 = vmatpush1.msra.mxu0 0.0
    %307 = vmatprep.subr.mxu0 0.0
    %308 = vmatpush1.msra.mxu0 0.0
    %309 = vmatprep.subr.mxu0 0.0
    %310 = vmatpush1.msra.mxu0 0.0
    %311 = vmatprep.mubr.f32.mxu0 0.0
    %312 = vmatmul.mubr.f32.gmra.mrb[0].mxu0 %v242
    %v313 = vpop.f32.mrb[0].mxu0
    %v314 = vadd.f32 0.0, %v313
    %v315 = vpop.f32.mrb[0].mxu0
    %316 = vmatprep.mubr.f32.mxu0 0.0
    %317 = vmatmul.mubr.f32.gmra.mrb[0].mxu0 %v245
    %v318 = vpop.f32.mrb[0].mxu0
    %v319 = vadd.f32 0.0, %v318
    %v320 = vpop.f32.mrb[0].mxu0
    %321 = vdwg.mxu0
    %v323 = vsel %vm78, %v54, 0
    %v326 = vsel %vm78, %v55, 0
    %328 = vmatprep.subr.mxu0 0.0
    %329 = vmatpush1.msra.mxu0 %v72
    %330 = vmatprep.subr.mxu0 0.0
    %331 = vmatpush1.msra.mxu0 %v73
    %332 = vmatprep.subr.mxu0 0.0
    %333 = vmatpush1.msra.mxu0 0.0
    %334 = vmatprep.subr.mxu0 0.0
    %335 = vmatpush1.msra.mxu0 0.0
    %336 = vmatprep.subr.mxu0 0.0
    %337 = vmatpush1.msra.mxu0 0.0
    %338 = vmatprep.subr.mxu0 0.0
    %339 = vmatpush1.msra.mxu0 0.0
    %340 = vmatprep.subr.mxu0 0.0
    %341 = vmatpush1.msra.mxu0 0.0
    %342 = vmatprep.subr.mxu0 0.0
    %343 = vmatpush1.msra.mxu0 0.0
    %344 = vmatprep.subr.mxu0 0.0
    %345 = vmatpush1.msra.mxu0 0.0
    %346 = vmatprep.subr.mxu0 0.0
    %347 = vmatpush1.msra.mxu0 0.0
    %348 = vmatprep.subr.mxu0 0.0
    %349 = vmatpush1.msra.mxu0 0.0
    %350 = vmatprep.subr.mxu0 0.0
    %351 = vmatpush1.msra.mxu0 0.0
    %352 = vmatprep.subr.mxu0 0.0
    %353 = vmatpush1.msra.mxu0 0.0
    %354 = vmatprep.subr.mxu0 0.0
    %355 = vmatpush1.msra.mxu0 0.0
    %356 = vmatprep.subr.mxu0 0.0
    %357 = vmatpush1.msra.mxu0 0.0
    %358 = vmatprep.subr.mxu0 0.0
    %359 = vmatpush1.msra.mxu0 0.0
    %360 = vmatprep.subr.mxu0 0.0
    %361 = vmatpush1.msra.mxu0 0.0
    %362 = vmatprep.subr.mxu0 0.0
    %363 = vmatpush1.msra.mxu0 0.0
    %364 = vmatprep.subr.mxu0 0.0
    %365 = vmatpush1.msra.mxu0 0.0
    %366 = vmatprep.subr.mxu0 0.0
    %367 = vmatpush1.msra.mxu0 0.0
    %368 = vmatprep.subr.mxu0 0.0
    %369 = vmatpush1.msra.mxu0 0.0
    %370 = vmatprep.subr.mxu0 0.0
    %371 = vmatpush1.msra.mxu0 0.0
    %372 = vmatprep.subr.mxu0 0.0
    %373 = vmatpush1.msra.mxu0 0.0
    %374 = vmatprep.subr.mxu0 0.0
    %375 = vmatpush1.msra.mxu0 0.0
    %376 = vmatprep.subr.mxu0 0.0
    %377 = vmatpush1.msra.mxu0 0.0
    %378 = vmatprep.subr.mxu0 0.0
    %379 = vmatpush1.msra.mxu0 0.0
    %380 = vmatprep.subr.mxu0 0.0
    %381 = vmatpush1.msra.mxu0 0.0
    %382 = vmatprep.subr.mxu0 0.0
    %383 = vmatpush1.msra.mxu0 0.0
    %384 = vmatprep.subr.mxu0 0.0
    %385 = vmatpush1.msra.mxu0 0.0
    %386 = vmatprep.subr.mxu0 0.0
    %387 = vmatpush1.msra.mxu0 0.0
    %388 = vmatprep.subr.mxu0 0.0
    %389 = vmatpush1.msra.mxu0 0.0
    %390 = vmatprep.subr.mxu0 0.0
    %391 = vmatpush1.msra.mxu0 0.0
    %392 = vmatprep.mubr.f32.mxu0 0.0
    %393 = vmatmul.mubr.f32.gmra.mrb[0].mxu0 %v323
    %v394 = vpop.f32.mrb[0].mxu0
    %v395 = vadd.f32 0.0, %v394
    %v396 = vpop.f32.mrb[0].mxu0
    %397 = vmatprep.mubr.f32.mxu0 0.0
    %398 = vmatmul.mubr.f32.gmra.mrb[0].mxu0 %v326
    %v399 = vpop.f32.mrb[0].mxu0
    %v400 = vadd.f32 0.0, %v399
    %v401 = vpop.f32.mrb[0].mxu0
    %402 = vdwg.mxu0
    %v404 = vsel %vm78, %v56, 0
    %v407 = vsel %vm78, %v57, 0
    %409 = vmatprep.subr.mxu0 0.0
    %410 = vmatpush1.msra.mxu0 %v72
    %411 = vmatprep.subr.mxu0 0.0
    %412 = vmatpush1.msra.mxu0 %v73
    %413 = vmatprep.subr.mxu0 0.0
    %414 = vmatpush1.msra.mxu0 0.0
    %415 = vmatprep.subr.mxu0 0.0
    %416 = vmatpush1.msra.mxu0 0.0
    %417 = vmatprep.subr.mxu0 0.0
    %418 = vmatpush1.msra.mxu0 0.0
    %419 = vmatprep.subr.mxu0 0.0
    %420 = vmatpush1.msra.mxu0 0.0
    %421 = vmatprep.subr.mxu0 0.0
    %422 = vmatpush1.msra.mxu0 0.0
    %423 = vmatprep.subr.mxu0 0.0
    %424 = vmatpush1.msra.mxu0 0.0
    %425 = vmatprep.subr.mxu0 0.0
    %426 = vmatpush1.msra.mxu0 0.0
    %427 = vmatprep.subr.mxu0 0.0
    %428 = vmatpush1.msra.mxu0 0.0
    %429 = vmatprep.subr.mxu0 0.0
    %430 = vmatpush1.msra.mxu0 0.0
    %431 = vmatprep.subr.mxu0 0.0
    %432 = vmatpush1.msra.mxu0 0.0
    %433 = vmatprep.subr.mxu0 0.0
    %434 = vmatpush1.msra.mxu0 0.0
    %435 = vmatprep.subr.mxu0 0.0
    %436 = vmatpush1.msra.mxu0 0.0
    %437 = vmatprep.subr.mxu0 0.0
    %438 = vmatpush1.msra.mxu0 0.0
    %439 = vmatprep.subr.mxu0 0.0
    %440 = vmatpush1.msra.mxu0 0.0
    %441 = vmatprep.subr.mxu0 0.0
    %442 = vmatpush1.msra.mxu0 0.0
    %443 = vmatprep.subr.mxu0 0.0
    %444 = vmatpush1.msra.mxu0 0.0
    %445 = vmatprep.subr.mxu0 0.0
    %446 = vmatpush1.msra.mxu0 0.0
    %447 = vmatprep.subr.mxu0 0.0
    %448 = vmatpush1.msra.mxu0 0.0
    %449 = vmatprep.subr.mxu0 0.0
    %450 = vmatpush1.msra.mxu0 0.0
    %451 = vmatprep.subr.mxu0 0.0
    %452 = vmatpush1.msra.mxu0 0.0
    %453 = vmatprep.subr.mxu0 0.0
    %454 = vmatpush1.msra.mxu0 0.0
    %455 = vmatprep.subr.mxu0 0.0
    %456 = vmatpush1.msra.mxu0 0.0
    %457 = vmatprep.subr.mxu0 0.0
    %458 = vmatpush1.msra.mxu0 0.0
    %459 = vmatprep.subr.mxu0 0.0
    %460 = vmatpush1.msra.mxu0 0.0
    %461 = vmatprep.subr.mxu0 0.0
    %462 = vmatpush1.msra.mxu0 0.0
    %463 = vmatprep.subr.mxu0 0.0
    %464 = vmatpush1.msra.mxu0 0.0
    %465 = vmatprep.subr.mxu0 0.0
    %466 = vmatpush1.msra.mxu0 0.0
    %467 = vmatprep.subr.mxu0 0.0
    %468 = vmatpush1.msra.mxu0 0.0
    %469 = vmatprep.subr.mxu0 0.0
    %470 = vmatpush1.msra.mxu0 0.0
    %471 = vmatprep.subr.mxu0 0.0
    %472 = vmatpush1.msra.mxu0 0.0
    %473 = vmatprep.mubr.f32.mxu0 0.0
    %474 = vmatmul.mubr.f32.gmra.mrb[0].mxu0 %v404
    %v475 = vpop.f32.mrb[0].mxu0
    %v476 = vadd.f32 0.0, %v475
    %v477 = vpop.f32.mrb[0].mxu0
    %478 = vmatprep.mubr.f32.mxu0 0.0
    %479 = vmatmul.mubr.f32.gmra.mrb[0].mxu0 %v407
    %v480 = vpop.f32.mrb[0].mxu0
    %v481 = vadd.f32 0.0, %v480
    %v482 = vpop.f32.mrb[0].mxu0
    %483 = vdwg.mxu0
    %v485 = vsel %vm78, %v58, 0
    %v488 = vsel %vm78, %v59, 0
    %490 = vmatprep.subr.mxu0 0.0
    %491 = vmatpush1.msra.mxu0 %v72
    %492 = vmatprep.subr.mxu0 0.0
    %493 = vmatpush1.msra.mxu0 %v73
    %494 = vmatprep.subr.mxu0 0.0
    %495 = vmatpush1.msra.mxu0 0.0
    %496 = vmatprep.subr.mxu0 0.0
    %497 = vmatpush1.msra.mxu0 0.0
    %498 = vmatprep.subr.mxu0 0.0
    %499 = vmatpush1.msra.mxu0 0.0
    %500 = vmatprep.subr.mxu0 0.0
    %501 = vmatpush1.msra.mxu0 0.0
    %502 = vmatprep.subr.mxu0 0.0
    %503 = vmatpush1.msra.mxu0 0.0
    %504 = vmatprep.subr.mxu0 0.0
    %505 = vmatpush1.msra.mxu0 0.0
    %506 = vmatprep.subr.mxu0 0.0
    %507 = vmatpush1.msra.mxu0 0.0
    %508 = vmatprep.subr.mxu0 0.0
    %509 = vmatpush1.msra.mxu0 0.0
    %510 = vmatprep.subr.mxu0 0.0
    %511 = vmatpush1.msra.mxu0 0.0
    %512 = vmatprep.subr.mxu0 0.0
    %513 = vmatpush1.msra.mxu0 0.0
    %514 = vmatprep.subr.mxu0 0.0
    %515 = vmatpush1.msra.mxu0 0.0
    %516 = vmatprep.subr.mxu0 0.0
    %517 = vmatpush1.msra.mxu0 0.0
    %518 = vmatprep.subr.mxu0 0.0
    %519 = vmatpush1.msra.mxu0 0.0
    %520 = vmatprep.subr.mxu0 0.0
    %521 = vmatpush1.msra.mxu0 0.0
    %522 = vmatprep.subr.mxu0 0.0
    %523 = vmatpush1.msra.mxu0 0.0
    %524 = vmatprep.subr.mxu0 0.0
    %525 = vmatpush1.msra.mxu0 0.0
    %526 = vmatprep.subr.mxu0 0.0
    %527 = vmatpush1.msra.mxu0 0.0
    %528 = vmatprep.subr.mxu0 0.0
    %529 = vmatpush1.msra.mxu0 0.0
    %530 = vmatprep.subr.mxu0 0.0
    %531 = vmatpush1.msra.mxu0 0.0
    %532 = vmatprep.subr.mxu0 0.0
    %533 = vmatpush1.msra.mxu0 0.0
    %534 = vmatprep.subr.mxu0 0.0
    %535 = vmatpush1.msra.mxu0 0.0
    %536 = vmatprep.subr.mxu0 0.0
    %537 = vmatpush1.msra.mxu0 0.0
    %538 = vmatprep.subr.mxu0 0.0
    %539 = vmatpush1.msra.mxu0 0.0
    %540 = vmatprep.subr.mxu0 0.0
    %541 = vmatpush1.msra.mxu0 0.0
    %542 = vmatprep.subr.mxu0 0.0
    %543 = vmatpush1.msra.mxu0 0.0
    %544 = vmatprep.subr.mxu0 0.0
    %545 = vmatpush1.msra.mxu0 0.0
    %546 = vmatprep.subr.mxu0 0.0
    %547 = vmatpush1.msra.mxu0 0.0
    %548 = vmatprep.subr.mxu0 0.0
    %549 = vmatpush1.msra.mxu0 0.0
    %550 = vmatprep.subr.mxu0 0.0
    %551 = vmatpush1.msra.mxu0 0.0
    %552 = vmatprep.subr.mxu0 0.0
    %553 = vmatpush1.msra.mxu0 0.0
    %554 = vmatprep.mubr.f32.mxu0 0.0
    %555 = vmatmul.mubr.f32.gmra.mrb[0].mxu0 %v485
    %v556 = vpop.f32.mrb[0].mxu0
    %v557 = vadd.f32 0.0, %v556
    %v558 = vpop.f32.mrb[0].mxu0
    %559 = vmatprep.mubr.f32.mxu0 0.0
    %560 = vmatmul.mubr.f32.gmra.mrb[0].mxu0 %v488
    %v561 = vpop.f32.mrb[0].mxu0
    %v562 = vadd.f32 0.0, %v561
    %v563 = vpop.f32.mrb[0].mxu0
    %564 = vdwg.mxu0
    %v566 = vsel %vm78, %v74, 0
    %v569 = vsel %vm78, %v75, 0
    %571 = vmatprep.subr.mxu0 0.0
    %572 = vmatpush1.msra.mxu0 %v152
    %573 = vmatprep.subr.mxu0 0.0
    %574 = vmatpush1.msra.mxu0 %v157
    %575 = vmatprep.subr.mxu0 0.0
    %576 = vmatpush1.msra.mxu0 0.0
    %577 = vmatprep.subr.mxu0 0.0
    %578 = vmatpush1.msra.mxu0 0.0
    %579 = vmatprep.subr.mxu0 0.0
    %580 = vmatpush1.msra.mxu0 0.0
    %581 = vmatprep.subr.mxu0 0.0
    %582 = vmatpush1.msra.mxu0 0.0
    %583 = vmatprep.subr.mxu0 0.0
    %584 = vmatpush1.msra.mxu0 0.0
    %585 = vmatprep.subr.mxu0 0.0
    %586 = vmatpush1.msra.mxu0 0.0
    %587 = vmatprep.subr.mxu0 0.0
    %588 = vmatpush1.msra.mxu0 0.0
    %589 = vmatprep.subr.mxu0 0.0
    %590 = vmatpush1.msra.mxu0 0.0
    %591 = vmatprep.subr.mxu0 0.0
    %592 = vmatpush1.msra.mxu0 0.0
    %593 = vmatprep.subr.mxu0 0.0
    %594 = vmatpush1.msra.mxu0 0.0
    %595 = vmatprep.subr.mxu0 0.0
    %596 = vmatpush1.msra.mxu0 0.0
    %597 = vmatprep.subr.mxu0 0.0
    %598 = vmatpush1.msra.mxu0 0.0
    %599 = vmatprep.subr.mxu0 0.0
    %600 = vmatpush1.msra.mxu0 0.0
    %601 = vmatprep.subr.mxu0 0.0
    %602 = vmatpush1.msra.mxu0 0.0
    %603 = vmatprep.subr.mxu0 0.0
    %604 = vmatpush1.msra.mxu0 0.0
    %605 = vmatprep.subr.mxu0 0.0
    %606 = vmatpush1.msra.mxu0 0.0
    %607 = vmatprep.subr.mxu0 0.0
    %608 = vmatpush1.msra.mxu0 0.0
    %609 = vmatprep.subr.mxu0 0.0
    %610 = vmatpush1.msra.mxu0 0.0
    %611 = vmatprep.subr.mxu0 0.0
    %612 = vmatpush1.msra.mxu0 0.0
    %613 = vmatprep.subr.mxu0 0.0
    %614 = vmatpush1.msra.mxu0 0.0
    %615 = vmatprep.subr.mxu0 0.0
    %616 = vmatpush1.msra.mxu0 0.0
    %617 = vmatprep.subr.mxu0 0.0
    %618 = vmatpush1.msra.mxu0 0.0
    %619 = vmatprep.subr.mxu0 0.0
    %620 = vmatpush1.msra.mxu0 0.0
    %621 = vmatprep.subr.mxu0 0.0
    %622 = vmatpush1.msra.mxu0 0.0
    %623 = vmatprep.subr.mxu0 0.0
    %624 = vmatpush1.msra.mxu0 0.0
    %625 = vmatprep.subr.mxu0 0.0
    %626 = vmatpush1.msra.mxu0 0.0
    %627 = vmatprep.subr.mxu0 0.0
    %628 = vmatpush1.msra.mxu0 0.0
    %629 = vmatprep.subr.mxu0 0.0
    %630 = vmatpush1.msra.mxu0 0.0
    %631 = vmatprep.subr.mxu0 0.0
    %632 = vmatpush1.msra.mxu0 0.0
    %633 = vmatprep.subr.mxu0 0.0
    %634 = vmatpush1.msra.mxu0 0.0
    %635 = vmatprep.mubr.f32.mxu0 0.0
    %636 = vmatmul.mubr.f32.gmra.mrb[0].mxu0 %v566
    %v637 = vpop.f32.mrb[0].mxu0
    %v638 = vadd.f32 0.0, %v637
    %v639 = vpop.f32.mrb[0].mxu0
    %640 = vmatprep.mubr.f32.mxu0 0.0
    %641 = vmatmul.mubr.f32.gmra.mrb[0].mxu0 %v569
    %v642 = vpop.f32.mrb[0].mxu0
    %v643 = vadd.f32 0.0, %v642
    %v644 = vpop.f32.mrb[0].mxu0
    %645 = vdwg.mxu0
    %646 = vmatprep.subr.mxu0 0.0
    %647 = vmatpush1.msra.mxu0 %v233
    %648 = vmatprep.subr.mxu0 0.0
    %649 = vmatpush1.msra.mxu0 %v238
    %650 = vmatprep.subr.mxu0 0.0
    %651 = vmatpush1.msra.mxu0 0.0
    %652 = vmatprep.subr.mxu0 0.0
    %653 = vmatpush1.msra.mxu0 0.0
    %654 = vmatprep.subr.mxu0 0.0
    %655 = vmatpush1.msra.mxu0 0.0
    %656 = vmatprep.subr.mxu0 0.0
    %657 = vmatpush1.msra.mxu0 0.0
    %658 = vmatprep.subr.mxu0 0.0
    %659 = vmatpush1.msra.mxu0 0.0
    %660 = vmatprep.subr.mxu0 0.0
    %661 = vmatpush1.msra.mxu0 0.0
    %662 = vmatprep.subr.mxu0 0.0
    %663 = vmatpush1.msra.mxu0 0.0
    %664 = vmatprep.subr.mxu0 0.0
    %665 = vmatpush1.msra.mxu0 0.0
    %666 = vmatprep.subr.mxu0 0.0
    %667 = vmatpush1.msra.mxu0 0.0
    %668 = vmatprep.subr.mxu0 0.0
    %669 = vmatpush1.msra.mxu0 0.0
    %670 = vmatprep.subr.mxu0 0.0
    %671 = vmatpush1.msra.mxu0 0.0
    %672 = vmatprep.subr.mxu0 0.0
    %673 = vmatpush1.msra.mxu0 0.0
    %674 = vmatprep.subr.mxu0 0.0
    %675 = vmatpush1.msra.mxu0 0.0
    %676 = vmatprep.subr.mxu0 0.0
    %677 = vmatpush1.msra.mxu0 0.0
    %678 = vmatprep.subr.mxu0 0.0
    %679 = vmatpush1.msra.mxu0 0.0
    %680 = vmatprep.subr.mxu0 0.0
    %681 = vmatpush1.msra.mxu0 0.0
    %682 = vmatprep.subr.mxu0 0.0
    %683 = vmatpush1.msra.mxu0 0.0
    %684 = vmatprep.subr.mxu0 0.0
    %685 = vmatpush1.msra.mxu0 0.0
    %686 = vmatprep.subr.mxu0 0.0
    %687 = vmatpush1.msra.mxu0 0.0
    %688 = vmatprep.subr.mxu0 0.0
    %689 = vmatpush1.msra.mxu0 0.0
    %690 = vmatprep.subr.mxu0 0.0
    %691 = vmatpush1.msra.mxu0 0.0
    %692 = vmatprep.subr.mxu0 0.0
    %693 = vmatpush1.msra.mxu0 0.0
    %694 = vmatprep.subr.mxu0 0.0
    %695 = vmatpush1.msra.mxu0 0.0
    %696 = vmatprep.subr.mxu0 0.0
    %697 = vmatpush1.msra.mxu0 0.0
    %698 = vmatprep.subr.mxu0 0.0
    %699 = vmatpush1.msra.mxu0 0.0
    %700 = vmatprep.subr.mxu0 0.0
    %701 = vmatpush1.msra.mxu0 0.0
    %702 = vmatprep.subr.mxu0 0.0
    %703 = vmatpush1.msra.mxu0 0.0
    %704 = vmatprep.subr.mxu0 0.0
    %705 = vmatpush1.msra.mxu0 0.0
    %706 = vmatprep.subr.mxu0 0.0
    %707 = vmatpush1.msra.mxu0 0.0
    %708 = vmatprep.subr.mxu0 0.0
    %709 = vmatpush1.msra.mxu0 0.0
    %710 = vmatprep.mubr.f32.mxu0 0.0
    %711 = vmatmul.mubr.f32.gmra.mrb[0].mxu0 %v566
    %v712 = vpop.f32.mrb[0].mxu0
    %v713 = vadd.f32 0.0, %v712
    %v714 = vpop.f32.mrb[0].mxu0
    %715 = vmatprep.mubr.f32.mxu0 0.0
    %716 = vmatmul.mubr.f32.gmra.mrb[0].mxu0 %v569
    %v717 = vpop.f32.mrb[0].mxu0
    %v718 = vadd.f32 0.0, %v717
    %v719 = vpop.f32.mrb[0].mxu0
    %720 = vdwg.mxu0
    %721 = vmatprep.subr.mxu0 0.0
    %722 = vmatpush1.msra.mxu0 %v314
    %723 = vmatprep.subr.mxu0 0.0
    %724 = vmatpush1.msra.mxu0 %v319
    %725 = vmatprep.subr.mxu0 0.0
    %726 = vmatpush1.msra.mxu0 0.0
    %727 = vmatprep.subr.mxu0 0.0
    %728 = vmatpush1.msra.mxu0 0.0
    %729 = vmatprep.subr.mxu0 0.0
    %730 = vmatpush1.msra.mxu0 0.0
    %731 = vmatprep.subr.mxu0 0.0
    %732 = vmatpush1.msra.mxu0 0.0
    %733 = vmatprep.subr.mxu0 0.0
    %734 = vmatpush1.msra.mxu0 0.0
    %735 = vmatprep.subr.mxu0 0.0
    %736 = vmatpush1.msra.mxu0 0.0
    %737 = vmatprep.subr.mxu0 0.0
    %738 = vmatpush1.msra.mxu0 0.0
    %739 = vmatprep.subr.mxu0 0.0
    %740 = vmatpush1.msra.mxu0 0.0
    %741 = vmatprep.subr.mxu0 0.0
    %742 = vmatpush1.msra.mxu0 0.0
    %743 = vmatprep.subr.mxu0 0.0
    %744 = vmatpush1.msra.mxu0 0.0
    %745 = vmatprep.subr.mxu0 0.0
    %746 = vmatpush1.msra.mxu0 0.0
    %747 = vmatprep.subr.mxu0 0.0
    %748 = vmatpush1.msra.mxu0 0.0
    %749 = vmatprep.subr.mxu0 0.0
    %750 = vmatpush1.msra.mxu0 0.0
    %751 = vmatprep.subr.mxu0 0.0
    %752 = vmatpush1.msra.mxu0 0.0
    %753 = vmatprep.subr.mxu0 0.0
    %754 = vmatpush1.msra.mxu0 0.0
    %755 = vmatprep.subr.mxu0 0.0
    %756 = vmatpush1.msra.mxu0 0.0
    %757 = vmatprep.subr.mxu0 0.0
    %758 = vmatpush1.msra.mxu0 0.0
    %759 = vmatprep.subr.mxu0 0.0
    %760 = vmatpush1.msra.mxu0 0.0
    %761 = vmatprep.subr.mxu0 0.0
    %762 = vmatpush1.msra.mxu0 0.0
    %763 = vmatprep.subr.mxu0 0.0
    %764 = vmatpush1.msra.mxu0 0.0
    %765 = vmatprep.subr.mxu0 0.0
    %766 = vmatpush1.msra.mxu0 0.0
    %767 = vmatprep.subr.mxu0 0.0
    %768 = vmatpush1.msra.mxu0 0.0
    %769 = vmatprep.subr.mxu0 0.0
    %770 = vmatpush1.msra.mxu0 0.0
    %771 = vmatprep.subr.mxu0 0.0
    %772 = vmatpush1.msra.mxu0 0.0
    %773 = vmatprep.subr.mxu0 0.0
    %774 = vmatpush1.msra.mxu0 0.0
    %775 = vmatprep.subr.mxu0 0.0
    %776 = vmatpush1.msra.mxu0 0.0
    %777 = vmatprep.subr.mxu0 0.0
    %778 = vmatpush1.msra.mxu0 0.0
    %779 = vmatprep.subr.mxu0 0.0
    %780 = vmatpush1.msra.mxu0 0.0
    %781 = vmatprep.subr.mxu0 0.0
    %782 = vmatpush1.msra.mxu0 0.0
    %783 = vmatprep.subr.mxu0 0.0
    %784 = vmatpush1.msra.mxu0 0.0
    %785 = vmatprep.mubr.f32.mxu0 0.0
    %786 = vmatmul.mubr.f32.gmra.mrb[0].mxu0 %v566
    %v787 = vpop.f32.mrb[0].mxu0
    %v788 = vadd.f32 0.0, %v787
    %v789 = vpop.f32.mrb[0].mxu0
    %790 = vmatprep.mubr.f32.mxu0 0.0
    %791 = vmatmul.mubr.f32.gmra.mrb[0].mxu0 %v569
    %v792 = vpop.f32.mrb[0].mxu0
    %v793 = vadd.f32 0.0, %v792
    %v794 = vpop.f32.mrb[0].mxu0
    %795 = vdwg.mxu0
    %796 = vmatprep.subr.mxu0 0.0
    %797 = vmatpush1.msra.mxu0 %v395
    %798 = vmatprep.subr.mxu0 0.0
    %799 = vmatpush1.msra.mxu0 %v400
    %800 = vmatprep.subr.mxu0 0.0
    %801 = vmatpush1.msra.mxu0 0.0
    %802 = vmatprep.subr.mxu0 0.0
    %803 = vmatpush1.msra.mxu0 0.0
    %804 = vmatprep.subr.mxu0 0.0
    %805 = vmatpush1.msra.mxu0 0.0
    %806 = vmatprep.subr.mxu0 0.0
    %807 = vmatpush1.msra.mxu0 0.0
    %808 = vmatprep.subr.mxu0 0.0
    %809 = vmatpush1.msra.mxu0 0.0
    %810 = vmatprep.subr.mxu0 0.0
    %811 = vmatpush1.msra.mxu0 0.0
    %812 = vmatprep.subr.mxu0 0.0
    %813 = vmatpush1.msra.mxu0 0.0
    %814 = vmatprep.subr.mxu0 0.0
    %815 = vmatpush1.msra.mxu0 0.0
    %816 = vmatprep.subr.mxu0 0.0
    %817 = vmatpush1.msra.mxu0 0.0
    %818 = vmatprep.subr.mxu0 0.0
    %819 = vmatpush1.msra.mxu0 0.0
    %820 = vmatprep.subr.mxu0 0.0
    %821 = vmatpush1.msra.mxu0 0.0
    %822 = vmatprep.subr.mxu0 0.0
    %823 = vmatpush1.msra.mxu0 0.0
    %824 = vmatprep.subr.mxu0 0.0
    %825 = vmatpush1.msra.mxu0 0.0
    %826 = vmatprep.subr.mxu0 0.0
    %827 = vmatpush1.msra.mxu0 0.0
    %828 = vmatprep.subr.mxu0 0.0
    %829 = vmatpush1.msra.mxu0 0.0
    %830 = vmatprep.subr.mxu0 0.0
    %831 = vmatpush1.msra.mxu0 0.0
    %832 = vmatprep.subr.mxu0 0.0
    %833 = vmatpush1.msra.mxu0 0.0
    %834 = vmatprep.subr.mxu0 0.0
    %835 = vmatpush1.msra.mxu0 0.0
    %836 = vmatprep.subr.mxu0 0.0
    %837 = vmatpush1.msra.mxu0 0.0
    %838 = vmatprep.subr.mxu0 0.0
    %839 = vmatpush1.msra.mxu0 0.0
    %840 = vmatprep.subr.mxu0 0.0
    %841 = vmatpush1.msra.mxu0 0.0
    %842 = vmatprep.subr.mxu0 0.0
    %843 = vmatpush1.msra.mxu0 0.0
    %844 = vmatprep.subr.mxu0 0.0
    %845 = vmatpush1.msra.mxu0 0.0
    %846 = vmatprep.subr.mxu0 0.0
    %847 = vmatpush1.msra.mxu0 0.0
    %848 = vmatprep.subr.mxu0 0.0
    %849 = vmatpush1.msra.mxu0 0.0
    %850 = vmatprep.subr.mxu0 0.0
    %851 = vmatpush1.msra.mxu0 0.0
    %852 = vmatprep.subr.mxu0 0.0
    %853 = vmatpush1.msra.mxu0 0.0
    %854 = vmatprep.subr.mxu0 0.0
    %855 = vmatpush1.msra.mxu0 0.0
    %856 = vmatprep.subr.mxu0 0.0
    %857 = vmatpush1.msra.mxu0 0.0
    %858 = vmatprep.subr.mxu0 0.0
    %859 = vmatpush1.msra.mxu0 0.0
    %860 = vmatprep.mubr.f32.mxu0 0.0
    %861 = vmatmul.mubr.f32.gmra.mrb[0].mxu0 %v566
    %v862 = vpop.f32.mrb[0].mxu0
    %v863 = vadd.f32 0.0, %v862
    %v864 = vpop.f32.mrb[0].mxu0
    %865 = vmatprep.mubr.f32.mxu0 0.0
    %866 = vmatmul.mubr.f32.gmra.mrb[0].mxu0 %v569
    %v867 = vpop.f32.mrb[0].mxu0
    %v868 = vadd.f32 0.0, %v867
    %v869 = vpop.f32.mrb[0].mxu0
    %870 = vdwg.mxu0
    %871 = vmatprep.subr.mxu0 0.0
    %872 = vmatpush1.msra.mxu0 %v476
    %873 = vmatprep.subr.mxu0 0.0
    %874 = vmatpush1.msra.mxu0 %v481
    %875 = vmatprep.subr.mxu0 0.0
    %876 = vmatpush1.msra.mxu0 0.0
    %877 = vmatprep.subr.mxu0 0.0
    %878 = vmatpush1.msra.mxu0 0.0
    %879 = vmatprep.subr.mxu0 0.0
    %880 = vmatpush1.msra.mxu0 0.0
    %881 = vmatprep.subr.mxu0 0.0
    %882 = vmatpush1.msra.mxu0 0.0
    %883 = vmatprep.subr.mxu0 0.0
    %884 = vmatpush1.msra.mxu0 0.0
    %885 = vmatprep.subr.mxu0 0.0
    %886 = vmatpush1.msra.mxu0 0.0
    %887 = vmatprep.subr.mxu0 0.0
    %888 = vmatpush1.msra.mxu0 0.0
    %889 = vmatprep.subr.mxu0 0.0
    %890 = vmatpush1.msra.mxu0 0.0
    %891 = vmatprep.subr.mxu0 0.0
    %892 = vmatpush1.msra.mxu0 0.0
    %893 = vmatprep.subr.mxu0 0.0
    %894 = vmatpush1.msra.mxu0 0.0
    %895 = vmatprep.subr.mxu0 0.0
    %896 = vmatpush1.msra.mxu0 0.0
    %897 = vmatprep.subr.mxu0 0.0
    %898 = vmatpush1.msra.mxu0 0.0
    %899 = vmatprep.subr.mxu0 0.0
    %900 = vmatpush1.msra.mxu0 0.0
    %901 = vmatprep.subr.mxu0 0.0
    %902 = vmatpush1.msra.mxu0 0.0
    %903 = vmatprep.subr.mxu0 0.0
    %904 = vmatpush1.msra.mxu0 0.0
    %905 = vmatprep.subr.mxu0 0.0
    %906 = vmatpush1.msra.mxu0 0.0
    %907 = vmatprep.subr.mxu0 0.0
    %908 = vmatpush1.msra.mxu0 0.0
    %909 = vmatprep.subr.mxu0 0.0
    %910 = vmatpush1.msra.mxu0 0.0
    %911 = vmatprep.subr.mxu0 0.0
    %912 = vmatpush1.msra.mxu0 0.0
    %913 = vmatprep.subr.mxu0 0.0
    %914 = vmatpush1.msra.mxu0 0.0
    %915 = vmatprep.subr.mxu0 0.0
    %916 = vmatpush1.msra.mxu0 0.0
    %917 = vmatprep.subr.mxu0 0.0
    %918 = vmatpush1.msra.mxu0 0.0
    %919 = vmatprep.subr.mxu0 0.0
    %920 = vmatpush1.msra.mxu0 0.0
    %921 = vmatprep.subr.mxu0 0.0
    %922 = vmatpush1.msra.mxu0 0.0
    %923 = vmatprep.subr.mxu0 0.0
    %924 = vmatpush1.msra.mxu0 0.0
    %925 = vmatprep.subr.mxu0 0.0
    %926 = vmatpush1.msra.mxu0 0.0
    %927 = vmatprep.subr.mxu0 0.0
    %928 = vmatpush1.msra.mxu0 0.0
    %929 = vmatprep.subr.mxu0 0.0
    %930 = vmatpush1.msra.mxu0 0.0
    %931 = vmatprep.subr.mxu0 0.0
    %932 = vmatpush1.msra.mxu0 0.0
    %933 = vmatprep.subr.mxu0 0.0
    %934 = vmatpush1.msra.mxu0 0.0
    %935 = vmatprep.mubr.f32.mxu0 0.0
    %936 = vmatmul.mubr.f32.gmra.mrb[0].mxu0 %v566
    %v937 = vpop.f32.mrb[0].mxu0
    %v938 = vadd.f32 0.0, %v937
    %v939 = vpop.f32.mrb[0].mxu0
    %940 = vmatprep.mubr.f32.mxu0 0.0
    %941 = vmatmul.mubr.f32.gmra.mrb[0].mxu0 %v569
    %v942 = vpop.f32.mrb[0].mxu0
    %v943 = vadd.f32 0.0, %v942
    %v944 = vpop.f32.mrb[0].mxu0
    %945 = vdwg.mxu0
    %946 = vmatprep.subr.mxu0 0.0
    %947 = vmatpush1.msra.mxu0 %v557
    %948 = vmatprep.subr.mxu0 0.0
    %949 = vmatpush1.msra.mxu0 %v562
    %950 = vmatprep.subr.mxu0 0.0
    %951 = vmatpush1.msra.mxu0 0.0
    %952 = vmatprep.subr.mxu0 0.0
    %953 = vmatpush1.msra.mxu0 0.0
    %954 = vmatprep.subr.mxu0 0.0
    %955 = vmatpush1.msra.mxu0 0.0
    %956 = vmatprep.subr.mxu0 0.0
    %957 = vmatpush1.msra.mxu0 0.0
    %958 = vmatprep.subr.mxu0 0.0
    %959 = vmatpush1.msra.mxu0 0.0
    %960 = vmatprep.subr.mxu0 0.0
    %961 = vmatpush1.msra.mxu0 0.0
    %962 = vmatprep.subr.mxu0 0.0
    %963 = vmatpush1.msra.mxu0 0.0
    %964 = vmatprep.subr.mxu0 0.0
    %965 = vmatpush1.msra.mxu0 0.0
    %966 = vmatprep.subr.mxu0 0.0
    %967 = vmatpush1.msra.mxu0 0.0
    %968 = vmatprep.subr.mxu0 0.0
    %969 = vmatpush1.msra.mxu0 0.0
    %970 = vmatprep.subr.mxu0 0.0
    %971 = vmatpush1.msra.mxu0 0.0
    %972 = vmatprep.subr.mxu0 0.0
    %973 = vmatpush1.msra.mxu0 0.0
    %974 = vmatprep.subr.mxu0 0.0
    %975 = vmatpush1.msra.mxu0 0.0
    %976 = vmatprep.subr.mxu0 0.0
    %977 = vmatpush1.msra.mxu0 0.0
    %978 = vmatprep.subr.mxu0 0.0
    %979 = vmatpush1.msra.mxu0 0.0
    %980 = vmatprep.subr.mxu0 0.0
    %981 = vmatpush1.msra.mxu0 0.0
    %982 = vmatprep.subr.mxu0 0.0
    %983 = vmatpush1.msra.mxu0 0.0
    %984 = vmatprep.subr.mxu0 0.0
    %985 = vmatpush1.msra.mxu0 0.0
    %986 = vmatprep.subr.mxu0 0.0
    %987 = vmatpush1.msra.mxu0 0.0
    %988 = vmatprep.subr.mxu0 0.0
    %989 = vmatpush1.msra.mxu0 0.0
    %990 = vmatprep.subr.mxu0 0.0
    %991 = vmatpush1.msra.mxu0 0.0
    %992 = vmatprep.subr.mxu0 0.0
    %993 = vmatpush1.msra.mxu0 0.0
    %994 = vmatprep.subr.mxu0 0.0
    %995 = vmatpush1.msra.mxu0 0.0
    %996 = vmatprep.subr.mxu0 0.0
    %997 = vmatpush1.msra.mxu0 0.0
    %998 = vmatprep.subr.mxu0 0.0
    %999 = vmatpush1.msra.mxu0 0.0
    %1000 = vmatprep.subr.mxu0 0.0
    %1001 = vmatpush1.msra.mxu0 0.0
    %1002 = vmatprep.subr.mxu0 0.0
    %1003 = vmatpush1.msra.mxu0 0.0
    %1004 = vmatprep.subr.mxu0 0.0
    %1005 = vmatpush1.msra.mxu0 0.0
    %1006 = vmatprep.subr.mxu0 0.0
    %1007 = vmatpush1.msra.mxu0 0.0
    %1008 = vmatprep.subr.mxu0 0.0
    %1009 = vmatpush1.msra.mxu0 0.0
    %1010 = vmatprep.mubr.f32.mxu0 0.0
    %1011 = vmatmul.mubr.f32.gmra.mrb[0].mxu0 %v566
    %v1012 = vpop.f32.mrb[0].mxu0
    %v1013 = vadd.f32 0.0, %v1012
    %v1014 = vpop.f32.mrb[0].mxu0
    %1015 = vmatprep.mubr.f32.mxu0 0.0
    %1016 = vmatmul.mubr.f32.gmra.mrb[0].mxu0 %v569
    %v1017 = vpop.f32.mrb[0].mxu0
    %v1018 = vadd.f32 0.0, %v1017
    %v1019 = vpop.f32.mrb[0].mxu0
    %1020 = vdwg.mxu0
    %v1021 = vmul.f32 %v638, %v76
    %v1022 = vmul.f32 %v643, %v77
    %v1023 = vmul.f32 %v713, %v76
    %v1024 = vmul.f32 %v718, %v77
    %v1025 = vmul.f32 %v788, %v76
    %v1026 = vmul.f32 %v793, %v77
    %v1027 = vmul.f32 %v863, %v76
    %v1028 = vmul.f32 %v868, %v77
    %v1029 = vmul.f32 %v938, %v76
    %v1030 = vmul.f32 %v943, %v77
    %v1031 = vmul.f32 %v1013, %v76
    %v1032 = vmul.f32 %v1018, %v77
    %v1034 = vsel %vm78, %v60, 0
    %v1037 = vsel %vm78, %v61, 0
    %1039 = vmatprep.subr.mxu0 0.0
    %1040 = vmatpush1.msra.mxu0 %v72
    %1041 = vmatprep.subr.mxu0 0.0
    %1042 = vmatpush1.msra.mxu0 %v73
    %1043 = vmatprep.subr.mxu0 0.0
    %1044 = vmatpush1.msra.mxu0 0.0
    %1045 = vmatprep.subr.mxu0 0.0
    %1046 = vmatpush1.msra.mxu0 0.0
    %1047 = vmatprep.subr.mxu0 0.0
    %1048 = vmatpush1.msra.mxu0 0.0
    %1049 = vmatprep.subr.mxu0 0.0
    %1050 = vmatpush1.msra.mxu0 0.0
    %1051 = vmatprep.subr.mxu0 0.0
    %1052 = vmatpush1.msra.mxu0 0.0
    %1053 = vmatprep.subr.mxu0 0.0
    %1054 = vmatpush1.msra.mxu0 0.0
    %1055 = vmatprep.subr.mxu0 0.0
    %1056 = vmatpush1.msra.mxu0 0.0
    %1057 = vmatprep.subr.mxu0 0.0
    %1058 = vmatpush1.msra.mxu0 0.0
    %1059 = vmatprep.subr.mxu0 0.0
    %1060 = vmatpush1.msra.mxu0 0.0
    %1061 = vmatprep.subr.mxu0 0.0
    %1062 = vmatpush1.msra.mxu0 0.0
    %1063 = vmatprep.subr.mxu0 0.0
    %1064 = vmatpush1.msra.mxu0 0.0
    %1065 = vmatprep.subr.mxu0 0.0
    %1066 = vmatpush1.msra.mxu0 0.0
    %1067 = vmatprep.subr.mxu0 0.0
    %1068 = vmatpush1.msra.mxu0 0.0
    %1069 = vmatprep.subr.mxu0 0.0
    %1070 = vmatpush1.msra.mxu0 0.0
    %1071 = vmatprep.subr.mxu0 0.0
    %1072 = vmatpush1.msra.mxu0 0.0
    %1073 = vmatprep.subr.mxu0 0.0
    %1074 = vmatpush1.msra.mxu0 0.0
    %1075 = vmatprep.subr.mxu0 0.0
    %1076 = vmatpush1.msra.mxu0 0.0
    %1077 = vmatprep.subr.mxu0 0.0
    %1078 = vmatpush1.msra.mxu0 0.0
    %1079 = vmatprep.subr.mxu0 0.0
    %1080 = vmatpush1.msra.mxu0 0.0
    %1081 = vmatprep.subr.mxu0 0.0
    %1082 = vmatpush1.msra.mxu0 0.0
    %1083 = vmatprep.subr.mxu0 0.0
    %1084 = vmatpush1.msra.mxu0 0.0
    %1085 = vmatprep.subr.mxu0 0.0
    %1086 = vmatpush1.msra.mxu0 0.0
    %1087 = vmatprep.subr.mxu0 0.0
    %1088 = vmatpush1.msra.mxu0 0.0
    %1089 = vmatprep.subr.mxu0 0.0
    %1090 = vmatpush1.msra.mxu0 0.0
    %1091 = vmatprep.subr.mxu0 0.0
    %1092 = vmatpush1.msra.mxu0 0.0
    %1093 = vmatprep.subr.mxu0 0.0
    %1094 = vmatpush1.msra.mxu0 0.0
    %1095 = vmatprep.subr.mxu0 0.0
    %1096 = vmatpush1.msra.mxu0 0.0
    %1097 = vmatprep.subr.mxu0 0.0
    %1098 = vmatpush1.msra.mxu0 0.0
    %1099 = vmatprep.subr.mxu0 0.0
    %1100 = vmatpush1.msra.mxu0 0.0
    %1101 = vmatprep.subr.mxu0 0.0
    %1102 = vmatpush1.msra.mxu0 0.0
    %1103 = vmatprep.mubr.f32.mxu0 0.0
    %1104 = vmatmul.mubr.f32.gmra.mrb[0].mxu0 %v1034
    %v1105 = vpop.f32.mrb[0].mxu0
    %v1106 = vadd.f32 0.0, %v1105
    %v1107 = vpop.f32.mrb[0].mxu0
    %1108 = vmatprep.mubr.f32.mxu0 0.0
    %1109 = vmatmul.mubr.f32.gmra.mrb[0].mxu0 %v1037
    %v1110 = vpop.f32.mrb[0].mxu0
    %v1111 = vadd.f32 0.0, %v1110
    %v1112 = vpop.f32.mrb[0].mxu0
    %1113 = vdwg.mxu0
    %v1115 = vsel %vm78, %v62, 0
    %v1118 = vsel %vm78, %v63, 0
    %1120 = vmatprep.subr.mxu0 0.0
    %1121 = vmatpush1.msra.mxu0 %v72
    %1122 = vmatprep.subr.mxu0 0.0
    %1123 = vmatpush1.msra.mxu0 %v73
    %1124 = vmatprep.subr.mxu0 0.0
    %1125 = vmatpush1.msra.mxu0 0.0
    %1126 = vmatprep.subr.mxu0 0.0
    %1127 = vmatpush1.msra.mxu0 0.0
    %1128 = vmatprep.subr.mxu0 0.0
    %1129 = vmatpush1.msra.mxu0 0.0
    %1130 = vmatprep.subr.mxu0 0.0
    %1131 = vmatpush1.msra.mxu0 0.0
    %1132 = vmatprep.subr.mxu0 0.0
    %1133 = vmatpush1.msra.mxu0 0.0
    %1134 = vmatprep.subr.mxu0 0.0
    %1135 = vmatpush1.msra.mxu0 0.0
    %1136 = vmatprep.subr.mxu0 0.0
    %1137 = vmatpush1.msra.mxu0 0.0
    %1138 = vmatprep.subr.mxu0 0.0
    %1139 = vmatpush1.msra.mxu0 0.0
    %1140 = vmatprep.subr.mxu0 0.0
    %1141 = vmatpush1.msra.mxu0 0.0
    %1142 = vmatprep.subr.mxu0 0.0
    %1143 = vmatpush1.msra.mxu0 0.0
    %1144 = vmatprep.subr.mxu0 0.0
    %1145 = vmatpush1.msra.mxu0 0.0
    %1146 = vmatprep.subr.mxu0 0.0
    %1147 = vmatpush1.msra.mxu0 0.0
    %1148 = vmatprep.subr.mxu0 0.0
    %1149 = vmatpush1.msra.mxu0 0.0
    %1150 = vmatprep.subr.mxu0 0.0
    %1151 = vmatpush1.msra.mxu0 0.0
    %1152 = vmatprep.subr.mxu0 0.0
    %1153 = vmatpush1.msra.mxu0 0.0
    %1154 = vmatprep.subr.mxu0 0.0
    %1155 = vmatpush1.msra.mxu0 0.0
    %1156 = vmatprep.subr.mxu0 0.0
    %1157 = vmatpush1.msra.mxu0 0.0
    %1158 = vmatprep.subr.mxu0 0.0
    %1159 = vmatpush1.msra.mxu0 0.0
    %1160 = vmatprep.subr.mxu0 0.0
    %1161 = vmatpush1.msra.mxu0 0.0
    %1162 = vmatprep.subr.mxu0 0.0
    %1163 = vmatpush1.msra.mxu0 0.0
    %1164 = vmatprep.subr.mxu0 0.0
    %1165 = vmatpush1.msra.mxu0 0.0
    %1166 = vmatprep.subr.mxu0 0.0
    %1167 = vmatpush1.msra.mxu0 0.0
    %1168 = vmatprep.subr.mxu0 0.0
    %1169 = vmatpush1.msra.mxu0 0.0
    %1170 = vmatprep.subr.mxu0 0.0
    %1171 = vmatpush1.msra.mxu0 0.0
    %1172 = vmatprep.subr.mxu0 0.0
    %1173 = vmatpush1.msra.mxu0 0.0
    %1174 = vmatprep.subr.mxu0 0.0
    %1175 = vmatpush1.msra.mxu0 0.0
    %1176 = vmatprep.subr.mxu0 0.0
    %1177 = vmatpush1.msra.mxu0 0.0
    %1178 = vmatprep.subr.mxu0 0.0
    %1179 = vmatpush1.msra.mxu0 0.0
    %1180 = vmatprep.subr.mxu0 0.0
    %1181 = vmatpush1.msra.mxu0 0.0
    %1182 = vmatprep.subr.mxu0 0.0
    %1183 = vmatpush1.msra.mxu0 0.0
    %1184 = vmatprep.mubr.f32.mxu0 0.0
    %1185 = vmatmul.mubr.f32.gmra.mrb[0].mxu0 %v1115
    %v1186 = vpop.f32.mrb[0].mxu0
    %v1187 = vadd.f32 0.0, %v1186
    %v1188 = vpop.f32.mrb[0].mxu0
    %1189 = vmatprep.mubr.f32.mxu0 0.0
    %1190 = vmatmul.mubr.f32.gmra.mrb[0].mxu0 %v1118
    %v1191 = vpop.f32.mrb[0].mxu0
    %v1192 = vadd.f32 0.0, %v1191
    %v1193 = vpop.f32.mrb[0].mxu0
    %1194 = vdwg.mxu0
    %v1196 = vsel %vm78, %v64, 0
    %v1199 = vsel %vm78, %v65, 0
    %1201 = vmatprep.subr.mxu0 0.0
    %1202 = vmatpush1.msra.mxu0 %v72
    %1203 = vmatprep.subr.mxu0 0.0
    %1204 = vmatpush1.msra.mxu0 %v73
    %1205 = vmatprep.subr.mxu0 0.0
    %1206 = vmatpush1.msra.mxu0 0.0
    %1207 = vmatprep.subr.mxu0 0.0
    %1208 = vmatpush1.msra.mxu0 0.0
    %1209 = vmatprep.subr.mxu0 0.0
    %1210 = vmatpush1.msra.mxu0 0.0
    %1211 = vmatprep.subr.mxu0 0.0
    %1212 = vmatpush1.msra.mxu0 0.0
    %1213 = vmatprep.subr.mxu0 0.0
    %1214 = vmatpush1.msra.mxu0 0.0
    %1215 = vmatprep.subr.mxu0 0.0
    %1216 = vmatpush1.msra.mxu0 0.0
    %1217 = vmatprep.subr.mxu0 0.0
    %1218 = vmatpush1.msra.mxu0 0.0
    %1219 = vmatprep.subr.mxu0 0.0
    %1220 = vmatpush1.msra.mxu0 0.0
    %1221 = vmatprep.subr.mxu0 0.0
    %1222 = vmatpush1.msra.mxu0 0.0
    %1223 = vmatprep.subr.mxu0 0.0
    %1224 = vmatpush1.msra.mxu0 0.0
    %1225 = vmatprep.subr.mxu0 0.0
    %1226 = vmatpush1.msra.mxu0 0.0
    %1227 = vmatprep.subr.mxu0 0.0
    %1228 = vmatpush1.msra.mxu0 0.0
    %1229 = vmatprep.subr.mxu0 0.0
    %1230 = vmatpush1.msra.mxu0 0.0
    %1231 = vmatprep.subr.mxu0 0.0
    %1232 = vmatpush1.msra.mxu0 0.0
    %1233 = vmatprep.subr.mxu0 0.0
    %1234 = vmatpush1.msra.mxu0 0.0
    %1235 = vmatprep.subr.mxu0 0.0
    %1236 = vmatpush1.msra.mxu0 0.0
    %1237 = vmatprep.subr.mxu0 0.0
    %1238 = vmatpush1.msra.mxu0 0.0
    %1239 = vmatprep.subr.mxu0 0.0
    %1240 = vmatpush1.msra.mxu0 0.0
    %1241 = vmatprep.subr.mxu0 0.0
    %1242 = vmatpush1.msra.mxu0 0.0
    %1243 = vmatprep.subr.mxu0 0.0
    %1244 = vmatpush1.msra.mxu0 0.0
    %1245 = vmatprep.subr.mxu0 0.0
    %1246 = vmatpush1.msra.mxu0 0.0
    %1247 = vmatprep.subr.mxu0 0.0
    %1248 = vmatpush1.msra.mxu0 0.0
    %1249 = vmatprep.subr.mxu0 0.0
    %1250 = vmatpush1.msra.mxu0 0.0
    %1251 = vmatprep.subr.mxu0 0.0
    %1252 = vmatpush1.msra.mxu0 0.0
    %1253 = vmatprep.subr.mxu0 0.0
    %1254 = vmatpush1.msra.mxu0 0.0
    %1255 = vmatprep.subr.mxu0 0.0
    %1256 = vmatpush1.msra.mxu0 0.0
    %1257 = vmatprep.subr.mxu0 0.0
    %1258 = vmatpush1.msra.mxu0 0.0
    %1259 = vmatprep.subr.mxu0 0.0
    %1260 = vmatpush1.msra.mxu0 0.0
    %1261 = vmatprep.subr.mxu0 0.0
    %1262 = vmatpush1.msra.mxu0 0.0
    %1263 = vmatprep.subr.mxu0 0.0
    %1264 = vmatpush1.msra.mxu0 0.0
    %1265 = vmatprep.mubr.f32.mxu0 0.0
    %1266 = vmatmul.mubr.f32.gmra.mrb[0].mxu0 %v1196
    %v1267 = vpop.f32.mrb[0].mxu0
    %v1268 = vadd.f32 0.0, %v1267
    %v1269 = vpop.f32.mrb[0].mxu0
    %1270 = vmatprep.mubr.f32.mxu0 0.0
    %1271 = vmatmul.mubr.f32.gmra.mrb[0].mxu0 %v1199
    %v1272 = vpop.f32.mrb[0].mxu0
    %v1273 = vadd.f32 0.0, %v1272
    %v1274 = vpop.f32.mrb[0].mxu0
    %1275 = vdwg.mxu0
    %v1277 = vsel %vm78, %v66, 0
    %v1280 = vsel %vm78, %v67, 0
    %1282 = vmatprep.subr.mxu0 0.0
    %1283 = vmatpush1.msra.mxu0 %v72
    %1284 = vmatprep.subr.mxu0 0.0
    %1285 = vmatpush1.msra.mxu0 %v73
    %1286 = vmatprep.subr.mxu0 0.0
    %1287 = vmatpush1.msra.mxu0 0.0
    %1288 = vmatprep.subr.mxu0 0.0
    %1289 = vmatpush1.msra.mxu0 0.0
    %1290 = vmatprep.subr.mxu0 0.0
    %1291 = vmatpush1.msra.mxu0 0.0
    %1292 = vmatprep.subr.mxu0 0.0
    %1293 = vmatpush1.msra.mxu0 0.0
    %1294 = vmatprep.subr.mxu0 0.0
    %1295 = vmatpush1.msra.mxu0 0.0
    %1296 = vmatprep.subr.mxu0 0.0
    %1297 = vmatpush1.msra.mxu0 0.0
    %1298 = vmatprep.subr.mxu0 0.0
    %1299 = vmatpush1.msra.mxu0 0.0
    %1300 = vmatprep.subr.mxu0 0.0
    %1301 = vmatpush1.msra.mxu0 0.0
    %1302 = vmatprep.subr.mxu0 0.0
    %1303 = vmatpush1.msra.mxu0 0.0
    %1304 = vmatprep.subr.mxu0 0.0
    %1305 = vmatpush1.msra.mxu0 0.0
    %1306 = vmatprep.subr.mxu0 0.0
    %1307 = vmatpush1.msra.mxu0 0.0
    %1308 = vmatprep.subr.mxu0 0.0
    %1309 = vmatpush1.msra.mxu0 0.0
    %1310 = vmatprep.subr.mxu0 0.0
    %1311 = vmatpush1.msra.mxu0 0.0
    %1312 = vmatprep.subr.mxu0 0.0
    %1313 = vmatpush1.msra.mxu0 0.0
    %1314 = vmatprep.subr.mxu0 0.0
    %1315 = vmatpush1.msra.mxu0 0.0
    %1316 = vmatprep.subr.mxu0 0.0
    %1317 = vmatpush1.msra.mxu0 0.0
    %1318 = vmatprep.subr.mxu0 0.0
    %1319 = vmatpush1.msra.mxu0 0.0
    %1320 = vmatprep.subr.mxu0 0.0
    %1321 = vmatpush1.msra.mxu0 0.0
    %1322 = vmatprep.subr.mxu0 0.0
    %1323 = vmatpush1.msra.mxu0 0.0
    %1324 = vmatprep.subr.mxu0 0.0
    %1325 = vmatpush1.msra.mxu0 0.0
    %1326 = vmatprep.subr.mxu0 0.0
    %1327 = vmatpush1.msra.mxu0 0.0
    %1328 = vmatprep.subr.mxu0 0.0
    %1329 = vmatpush1.msra.mxu0 0.0
    %1330 = vmatprep.subr.mxu0 0.0
    %1331 = vmatpush1.msra.mxu0 0.0
    %1332 = vmatprep.subr.mxu0 0.0
    %1333 = vmatpush1.msra.mxu0 0.0
    %1334 = vmatprep.subr.mxu0 0.0
    %1335 = vmatpush1.msra.mxu0 0.0
    %1336 = vmatprep.subr.mxu0 0.0
    %1337 = vmatpush1.msra.mxu0 0.0
    %1338 = vmatprep.subr.mxu0 0.0
    %1339 = vmatpush1.msra.mxu0 0.0
    %1340 = vmatprep.subr.mxu0 0.0
    %1341 = vmatpush1.msra.mxu0 0.0
    %1342 = vmatprep.subr.mxu0 0.0
    %1343 = vmatpush1.msra.mxu0 0.0
    %1344 = vmatprep.subr.mxu0 0.0
    %1345 = vmatpush1.msra.mxu0 0.0
    %1346 = vmatprep.mubr.f32.mxu0 0.0
    %1347 = vmatmul.mubr.f32.gmra.mrb[0].mxu0 %v1277
    %v1348 = vpop.f32.mrb[0].mxu0
    %v1349 = vadd.f32 0.0, %v1348
    %v1350 = vpop.f32.mrb[0].mxu0
    %1351 = vmatprep.mubr.f32.mxu0 0.0
    %1352 = vmatmul.mubr.f32.gmra.mrb[0].mxu0 %v1280
    %v1353 = vpop.f32.mrb[0].mxu0
    %v1354 = vadd.f32 0.0, %v1353
    %v1355 = vpop.f32.mrb[0].mxu0
    %1356 = vdwg.mxu0
    %v1358 = vsel %vm78, %v68, 0
    %v1361 = vsel %vm78, %v69, 0
    %1363 = vmatprep.subr.mxu0 0.0
    %1364 = vmatpush1.msra.mxu0 %v72
    %1365 = vmatprep.subr.mxu0 0.0
    %1366 = vmatpush1.msra.mxu0 %v73
    %1367 = vmatprep.subr.mxu0 0.0
    %1368 = vmatpush1.msra.mxu0 0.0
    %1369 = vmatprep.subr.mxu0 0.0
    %1370 = vmatpush1.msra.mxu0 0.0
    %1371 = vmatprep.subr.mxu0 0.0
    %1372 = vmatpush1.msra.mxu0 0.0
    %1373 = vmatprep.subr.mxu0 0.0
    %1374 = vmatpush1.msra.mxu0 0.0
    %1375 = vmatprep.subr.mxu0 0.0
    %1376 = vmatpush1.msra.mxu0 0.0
    %1377 = vmatprep.subr.mxu0 0.0
    %1378 = vmatpush1.msra.mxu0 0.0
    %1379 = vmatprep.subr.mxu0 0.0
    %1380 = vmatpush1.msra.mxu0 0.0
    %1381 = vmatprep.subr.mxu0 0.0
    %1382 = vmatpush1.msra.mxu0 0.0
    %1383 = vmatprep.subr.mxu0 0.0
    %1384 = vmatpush1.msra.mxu0 0.0
    %1385 = vmatprep.subr.mxu0 0.0
    %1386 = vmatpush1.msra.mxu0 0.0
    %1387 = vmatprep.subr.mxu0 0.0
    %1388 = vmatpush1.msra.mxu0 0.0
    %1389 = vmatprep.subr.mxu0 0.0
    %1390 = vmatpush1.msra.mxu0 0.0
    %1391 = vmatprep.subr.mxu0 0.0
    %1392 = vmatpush1.msra.mxu0 0.0
    %1393 = vmatprep.subr.mxu0 0.0
    %1394 = vmatpush1.msra.mxu0 0.0
    %1395 = vmatprep.subr.mxu0 0.0
    %1396 = vmatpush1.msra.mxu0 0.0
    %1397 = vmatprep.subr.mxu0 0.0
    %1398 = vmatpush1.msra.mxu0 0.0
    %1399 = vmatprep.subr.mxu0 0.0
    %1400 = vmatpush1.msra.mxu0 0.0
    %1401 = vmatprep.subr.mxu0 0.0
    %1402 = vmatpush1.msra.mxu0 0.0
    %1403 = vmatprep.subr.mxu0 0.0
    %1404 = vmatpush1.msra.mxu0 0.0
    %1405 = vmatprep.subr.mxu0 0.0
    %1406 = vmatpush1.msra.mxu0 0.0
    %1407 = vmatprep.subr.mxu0 0.0
    %1408 = vmatpush1.msra.mxu0 0.0
    %1409 = vmatprep.subr.mxu0 0.0
    %1410 = vmatpush1.msra.mxu0 0.0
    %1411 = vmatprep.subr.mxu0 0.0
    %1412 = vmatpush1.msra.mxu0 0.0
    %1413 = vmatprep.subr.mxu0 0.0
    %1414 = vmatpush1.msra.mxu0 0.0
    %1415 = vmatprep.subr.mxu0 0.0
    %1416 = vmatpush1.msra.mxu0 0.0
    %1417 = vmatprep.subr.mxu0 0.0
    %1418 = vmatpush1.msra.mxu0 0.0
    %1419 = vmatprep.subr.mxu0 0.0
    %1420 = vmatpush1.msra.mxu0 0.0
    %1421 = vmatprep.subr.mxu0 0.0
    %1422 = vmatpush1.msra.mxu0 0.0
    %1423 = vmatprep.subr.mxu0 0.0
    %1424 = vmatpush1.msra.mxu0 0.0
    %1425 = vmatprep.subr.mxu0 0.0
    %1426 = vmatpush1.msra.mxu0 0.0
    %1427 = vmatprep.mubr.f32.mxu0 0.0
    %1428 = vmatmul.mubr.f32.gmra.mrb[0].mxu0 %v1358
    %v1429 = vpop.f32.mrb[0].mxu0
    %v1430 = vadd.f32 0.0, %v1429
    %v1431 = vpop.f32.mrb[0].mxu0
    %1432 = vmatprep.mubr.f32.mxu0 0.0
    %1433 = vmatmul.mubr.f32.gmra.mrb[0].mxu0 %v1361
    %v1434 = vpop.f32.mrb[0].mxu0
    %v1435 = vadd.f32 0.0, %v1434
    %v1436 = vpop.f32.mrb[0].mxu0
    %1437 = vdwg.mxu0
    %v1439 = vsel %vm78, %v70, 0
    %v1442 = vsel %vm78, %v71, 0
    %1444 = vmatprep.subr.mxu0 0.0
    %1445 = vmatpush1.msra.mxu0 %v72
    %1446 = vmatprep.subr.mxu0 0.0
    %1447 = vmatpush1.msra.mxu0 %v73
    %1448 = vmatprep.subr.mxu0 0.0
    %1449 = vmatpush1.msra.mxu0 0.0
    %1450 = vmatprep.subr.mxu0 0.0
    %1451 = vmatpush1.msra.mxu0 0.0
    %1452 = vmatprep.subr.mxu0 0.0
    %1453 = vmatpush1.msra.mxu0 0.0
    %1454 = vmatprep.subr.mxu0 0.0
    %1455 = vmatpush1.msra.mxu0 0.0
    %1456 = vmatprep.subr.mxu0 0.0
    %1457 = vmatpush1.msra.mxu0 0.0
    %1458 = vmatprep.subr.mxu0 0.0
    %1459 = vmatpush1.msra.mxu0 0.0
    %1460 = vmatprep.subr.mxu0 0.0
    %1461 = vmatpush1.msra.mxu0 0.0
    %1462 = vmatprep.subr.mxu0 0.0
    %1463 = vmatpush1.msra.mxu0 0.0
    %1464 = vmatprep.subr.mxu0 0.0
    %1465 = vmatpush1.msra.mxu0 0.0
    %1466 = vmatprep.subr.mxu0 0.0
    %1467 = vmatpush1.msra.mxu0 0.0
    %1468 = vmatprep.subr.mxu0 0.0
    %1469 = vmatpush1.msra.mxu0 0.0
    %1470 = vmatprep.subr.mxu0 0.0
    %1471 = vmatpush1.msra.mxu0 0.0
    %1472 = vmatprep.subr.mxu0 0.0
    %1473 = vmatpush1.msra.mxu0 0.0
    %1474 = vmatprep.subr.mxu0 0.0
    %1475 = vmatpush1.msra.mxu0 0.0
    %1476 = vmatprep.subr.mxu0 0.0
    %1477 = vmatpush1.msra.mxu0 0.0
    %1478 = vmatprep.subr.mxu0 0.0
    %1479 = vmatpush1.msra.mxu0 0.0
    %1480 = vmatprep.subr.mxu0 0.0
    %1481 = vmatpush1.msra.mxu0 0.0
    %1482 = vmatprep.subr.mxu0 0.0
    %1483 = vmatpush1.msra.mxu0 0.0
    %1484 = vmatprep.subr.mxu0 0.0
    %1485 = vmatpush1.msra.mxu0 0.0
    %1486 = vmatprep.subr.mxu0 0.0
    %1487 = vmatpush1.msra.mxu0 0.0
    %1488 = vmatprep.subr.mxu0 0.0
    %1489 = vmatpush1.msra.mxu0 0.0
    %1490 = vmatprep.subr.mxu0 0.0
    %1491 = vmatpush1.msra.mxu0 0.0
    %1492 = vmatprep.subr.mxu0 0.0
    %1493 = vmatpush1.msra.mxu0 0.0
    %1494 = vmatprep.subr.mxu0 0.0
    %1495 = vmatpush1.msra.mxu0 0.0
    %1496 = vmatprep.subr.mxu0 0.0
    %1497 = vmatpush1.msra.mxu0 0.0
    %1498 = vmatprep.subr.mxu0 0.0
    %1499 = vmatpush1.msra.mxu0 0.0
    %1500 = vmatprep.subr.mxu0 0.0
    %1501 = vmatpush1.msra.mxu0 0.0
    %1502 = vmatprep.subr.mxu0 0.0
    %1503 = vmatpush1.msra.mxu0 0.0
    %1504 = vmatprep.subr.mxu0 0.0
    %1505 = vmatpush1.msra.mxu0 0.0
    %1506 = vmatprep.subr.mxu0 0.0
    %1507 = vmatpush1.msra.mxu0 0.0
    %1508 = vmatprep.mubr.f32.mxu0 0.0
    %1509 = vmatmul.mubr.f32.gmra.mrb[0].mxu0 %v1439
    %v1510 = vpop.f32.mrb[0].mxu0
    %v1511 = vadd.f32 0.0, %v1510
    %v1512 = vpop.f32.mrb[0].mxu0
    %1513 = vmatprep.mubr.f32.mxu0 0.0
    %1514 = vmatmul.mubr.f32.gmra.mrb[0].mxu0 %v1442
    %v1515 = vpop.f32.mrb[0].mxu0
    %v1516 = vadd.f32 0.0, %v1515
    %v1517 = vpop.f32.mrb[0].mxu0
    %1518 = vdwg.mxu0
    %1519 = vmatprep.subr.mxu0 0.0
    %1520 = vmatpush1.msra.mxu0 %v1106
    %1521 = vmatprep.subr.mxu0 0.0
    %1522 = vmatpush1.msra.mxu0 %v1111
    %1523 = vmatprep.subr.mxu0 0.0
    %1524 = vmatpush1.msra.mxu0 0.0
    %1525 = vmatprep.subr.mxu0 0.0
    %1526 = vmatpush1.msra.mxu0 0.0
    %1527 = vmatprep.subr.mxu0 0.0
    %1528 = vmatpush1.msra.mxu0 0.0
    %1529 = vmatprep.subr.mxu0 0.0
    %1530 = vmatpush1.msra.mxu0 0.0
    %1531 = vmatprep.subr.mxu0 0.0
    %1532 = vmatpush1.msra.mxu0 0.0
    %1533 = vmatprep.subr.mxu0 0.0
    %1534 = vmatpush1.msra.mxu0 0.0
    %1535 = vmatprep.subr.mxu0 0.0
    %1536 = vmatpush1.msra.mxu0 0.0
    %1537 = vmatprep.subr.mxu0 0.0
    %1538 = vmatpush1.msra.mxu0 0.0
    %1539 = vmatprep.subr.mxu0 0.0
    %1540 = vmatpush1.msra.mxu0 0.0
    %1541 = vmatprep.subr.mxu0 0.0
    %1542 = vmatpush1.msra.mxu0 0.0
    %1543 = vmatprep.subr.mxu0 0.0
    %1544 = vmatpush1.msra.mxu0 0.0
    %1545 = vmatprep.subr.mxu0 0.0
    %1546 = vmatpush1.msra.mxu0 0.0
    %1547 = vmatprep.subr.mxu0 0.0
    %1548 = vmatpush1.msra.mxu0 0.0
    %1549 = vmatprep.subr.mxu0 0.0
    %1550 = vmatpush1.msra.mxu0 0.0
    %1551 = vmatprep.subr.mxu0 0.0
    %1552 = vmatpush1.msra.mxu0 0.0
    %1553 = vmatprep.subr.mxu0 0.0
    %1554 = vmatpush1.msra.mxu0 0.0
    %1555 = vmatprep.subr.mxu0 0.0
    %1556 = vmatpush1.msra.mxu0 0.0
    %1557 = vmatprep.subr.mxu0 0.0
    %1558 = vmatpush1.msra.mxu0 0.0
    %1559 = vmatprep.subr.mxu0 0.0
    %1560 = vmatpush1.msra.mxu0 0.0
    %1561 = vmatprep.subr.mxu0 0.0
    %1562 = vmatpush1.msra.mxu0 0.0
    %1563 = vmatprep.subr.mxu0 0.0
    %1564 = vmatpush1.msra.mxu0 0.0
    %1565 = vmatprep.subr.mxu0 0.0
    %1566 = vmatpush1.msra.mxu0 0.0
    %1567 = vmatprep.subr.mxu0 0.0
    %1568 = vmatpush1.msra.mxu0 0.0
    %1569 = vmatprep.subr.mxu0 0.0
    %1570 = vmatpush1.msra.mxu0 0.0
    %1571 = vmatprep.subr.mxu0 0.0
    %1572 = vmatpush1.msra.mxu0 0.0
    %1573 = vmatprep.subr.mxu0 0.0
    %1574 = vmatpush1.msra.mxu0 0.0
    %1575 = vmatprep.subr.mxu0 0.0
    %1576 = vmatpush1.msra.mxu0 0.0
    %1577 = vmatprep.subr.mxu0 0.0
    %1578 = vmatpush1.msra.mxu0 0.0
    %1579 = vmatprep.subr.mxu0 0.0
    %1580 = vmatpush1.msra.mxu0 0.0
    %1581 = vmatprep.subr.mxu0 0.0
    %1582 = vmatpush1.msra.mxu0 0.0
    %1583 = vmatprep.mubr.f32.mxu0 0.0
    %1584 = vmatmul.mubr.f32.gmra.mrb[0].mxu0 %v566
    %v1585 = vpop.f32.mrb[0].mxu0
    %v1586 = vadd.f32 0.0, %v1585
    %v1587 = vpop.f32.mrb[0].mxu0
    %1588 = vmatprep.mubr.f32.mxu0 0.0
    %1589 = vmatmul.mubr.f32.gmra.mrb[0].mxu0 %v569
    %v1590 = vpop.f32.mrb[0].mxu0
    %v1591 = vadd.f32 0.0, %v1590
    %v1592 = vpop.f32.mrb[0].mxu0
    %1593 = vdwg.mxu0
    %1594 = vmatprep.subr.mxu0 0.0
    %1595 = vmatpush1.msra.mxu0 %v1187
    %1596 = vmatprep.subr.mxu0 0.0
    %1597 = vmatpush1.msra.mxu0 %v1192
    %1598 = vmatprep.subr.mxu0 0.0
    %1599 = vmatpush1.msra.mxu0 0.0
    %1600 = vmatprep.subr.mxu0 0.0
    %1601 = vmatpush1.msra.mxu0 0.0
    %1602 = vmatprep.subr.mxu0 0.0
    %1603 = vmatpush1.msra.mxu0 0.0
    %1604 = vmatprep.subr.mxu0 0.0
    %1605 = vmatpush1.msra.mxu0 0.0
    %1606 = vmatprep.subr.mxu0 0.0
    %1607 = vmatpush1.msra.mxu0 0.0
    %1608 = vmatprep.subr.mxu0 0.0
    %1609 = vmatpush1.msra.mxu0 0.0
    %1610 = vmatprep.subr.mxu0 0.0
    %1611 = vmatpush1.msra.mxu0 0.0
    %1612 = vmatprep.subr.mxu0 0.0
    %1613 = vmatpush1.msra.mxu0 0.0
    %1614 = vmatprep.subr.mxu0 0.0
    %1615 = vmatpush1.msra.mxu0 0.0
    %1616 = vmatprep.subr.mxu0 0.0
    %1617 = vmatpush1.msra.mxu0 0.0
    %1618 = vmatprep.subr.mxu0 0.0
    %1619 = vmatpush1.msra.mxu0 0.0
    %1620 = vmatprep.subr.mxu0 0.0
    %1621 = vmatpush1.msra.mxu0 0.0
    %1622 = vmatprep.subr.mxu0 0.0
    %1623 = vmatpush1.msra.mxu0 0.0
    %1624 = vmatprep.subr.mxu0 0.0
    %1625 = vmatpush1.msra.mxu0 0.0
    %1626 = vmatprep.subr.mxu0 0.0
    %1627 = vmatpush1.msra.mxu0 0.0
    %1628 = vmatprep.subr.mxu0 0.0
    %1629 = vmatpush1.msra.mxu0 0.0
    %1630 = vmatprep.subr.mxu0 0.0
    %1631 = vmatpush1.msra.mxu0 0.0
    %1632 = vmatprep.subr.mxu0 0.0
    %1633 = vmatpush1.msra.mxu0 0.0
    %1634 = vmatprep.subr.mxu0 0.0
    %1635 = vmatpush1.msra.mxu0 0.0
    %1636 = vmatprep.subr.mxu0 0.0
    %1637 = vmatpush1.msra.mxu0 0.0
    %1638 = vmatprep.subr.mxu0 0.0
    %1639 = vmatpush1.msra.mxu0 0.0
    %1640 = vmatprep.subr.mxu0 0.0
    %1641 = vmatpush1.msra.mxu0 0.0
    %1642 = vmatprep.subr.mxu0 0.0
    %1643 = vmatpush1.msra.mxu0 0.0
    %1644 = vmatprep.subr.mxu0 0.0
    %1645 = vmatpush1.msra.mxu0 0.0
    %1646 = vmatprep.subr.mxu0 0.0
    %1647 = vmatpush1.msra.mxu0 0.0
    %1648 = vmatprep.subr.mxu0 0.0
    %1649 = vmatpush1.msra.mxu0 0.0
    %1650 = vmatprep.subr.mxu0 0.0
    %1651 = vmatpush1.msra.mxu0 0.0
    %1652 = vmatprep.subr.mxu0 0.0
    %1653 = vmatpush1.msra.mxu0 0.0
    %1654 = vmatprep.subr.mxu0 0.0
    %1655 = vmatpush1.msra.mxu0 0.0
    %1656 = vmatprep.subr.mxu0 0.0
    %1657 = vmatpush1.msra.mxu0 0.0
    %1658 = vmatprep.mubr.f32.mxu0 0.0
    %1659 = vmatmul.mubr.f32.gmra.mrb[0].mxu0 %v566
    %v1660 = vpop.f32.mrb[0].mxu0
    %v1661 = vadd.f32 0.0, %v1660
    %v1662 = vpop.f32.mrb[0].mxu0
    %1663 = vmatprep.mubr.f32.mxu0 0.0
    %1664 = vmatmul.mubr.f32.gmra.mrb[0].mxu0 %v569
    %v1665 = vpop.f32.mrb[0].mxu0
    %v1666 = vadd.f32 0.0, %v1665
    %v1667 = vpop.f32.mrb[0].mxu0
    %1668 = vdwg.mxu0
    %1669 = vmatprep.subr.mxu0 0.0
    %1670 = vmatpush1.msra.mxu0 %v1268
    %1671 = vmatprep.subr.mxu0 0.0
    %1672 = vmatpush1.msra.mxu0 %v1273
    %1673 = vmatprep.subr.mxu0 0.0
    %1674 = vmatpush1.msra.mxu0 0.0
    %1675 = vmatprep.subr.mxu0 0.0
    %1676 = vmatpush1.msra.mxu0 0.0
    %1677 = vmatprep.subr.mxu0 0.0
    %1678 = vmatpush1.msra.mxu0 0.0
    %1679 = vmatprep.subr.mxu0 0.0
    %1680 = vmatpush1.msra.mxu0 0.0
    %1681 = vmatprep.subr.mxu0 0.0
    %1682 = vmatpush1.msra.mxu0 0.0
    %1683 = vmatprep.subr.mxu0 0.0
    %1684 = vmatpush1.msra.mxu0 0.0
    %1685 = vmatprep.subr.mxu0 0.0
    %1686 = vmatpush1.msra.mxu0 0.0
    %1687 = vmatprep.subr.mxu0 0.0
    %1688 = vmatpush1.msra.mxu0 0.0
    %1689 = vmatprep.subr.mxu0 0.0
    %1690 = vmatpush1.msra.mxu0 0.0
    %1691 = vmatprep.subr.mxu0 0.0
    %1692 = vmatpush1.msra.mxu0 0.0
    %1693 = vmatprep.subr.mxu0 0.0
    %1694 = vmatpush1.msra.mxu0 0.0
    %1695 = vmatprep.subr.mxu0 0.0
    %1696 = vmatpush1.msra.mxu0 0.0
    %1697 = vmatprep.subr.mxu0 0.0
    %1698 = vmatpush1.msra.mxu0 0.0
    %1699 = vmatprep.subr.mxu0 0.0
    %1700 = vmatpush1.msra.mxu0 0.0
    %1701 = vmatprep.subr.mxu0 0.0
    %1702 = vmatpush1.msra.mxu0 0.0
    %1703 = vmatprep.subr.mxu0 0.0
    %1704 = vmatpush1.msra.mxu0 0.0
    %1705 = vmatprep.subr.mxu0 0.0
    %1706 = vmatpush1.msra.mxu0 0.0
    %1707 = vmatprep.subr.mxu0 0.0
    %1708 = vmatpush1.msra.mxu0 0.0
    %1709 = vmatprep.subr.mxu0 0.0
    %1710 = vmatpush1.msra.mxu0 0.0
    %1711 = vmatprep.subr.mxu0 0.0
    %1712 = vmatpush1.msra.mxu0 0.0
    %1713 = vmatprep.subr.mxu0 0.0
    %1714 = vmatpush1.msra.mxu0 0.0
    %1715 = vmatprep.subr.mxu0 0.0
    %1716 = vmatpush1.msra.mxu0 0.0
    %1717 = vmatprep.subr.mxu0 0.0
    %1718 = vmatpush1.msra.mxu0 0.0
    %1719 = vmatprep.subr.mxu0 0.0
    %1720 = vmatpush1.msra.mxu0 0.0
    %1721 = vmatprep.subr.mxu0 0.0
    %1722 = vmatpush1.msra.mxu0 0.0
    %1723 = vmatprep.subr.mxu0 0.0
    %1724 = vmatpush1.msra.mxu0 0.0
    %1725 = vmatprep.subr.mxu0 0.0
    %1726 = vmatpush1.msra.mxu0 0.0
    %1727 = vmatprep.subr.mxu0 0.0
    %1728 = vmatpush1.msra.mxu0 0.0
    %1729 = vmatprep.subr.mxu0 0.0
    %1730 = vmatpush1.msra.mxu0 0.0
    %1731 = vmatprep.subr.mxu0 0.0
    %1732 = vmatpush1.msra.mxu0 0.0
    %1733 = vmatprep.mubr.f32.mxu0 0.0
    %1734 = vmatmul.mubr.f32.gmra.mrb[0].mxu0 %v566
    %v1735 = vpop.f32.mrb[0].mxu0
    %v1736 = vadd.f32 0.0, %v1735
    %v1737 = vpop.f32.mrb[0].mxu0
    %1738 = vmatprep.mubr.f32.mxu0 0.0
    %1739 = vmatmul.mubr.f32.gmra.mrb[0].mxu0 %v569
    %v1740 = vpop.f32.mrb[0].mxu0
    %v1741 = vadd.f32 0.0, %v1740
    %v1742 = vpop.f32.mrb[0].mxu0
    %1743 = vdwg.mxu0
    %1744 = vmatprep.subr.mxu0 0.0
    %1745 = vmatpush1.msra.mxu0 %v1349
    %1746 = vmatprep.subr.mxu0 0.0
    %1747 = vmatpush1.msra.mxu0 %v1354
    %1748 = vmatprep.subr.mxu0 0.0
    %1749 = vmatpush1.msra.mxu0 0.0
    %1750 = vmatprep.subr.mxu0 0.0
    %1751 = vmatpush1.msra.mxu0 0.0
    %1752 = vmatprep.subr.mxu0 0.0
    %1753 = vmatpush1.msra.mxu0 0.0
    %1754 = vmatprep.subr.mxu0 0.0
    %1755 = vmatpush1.msra.mxu0 0.0
    %1756 = vmatprep.subr.mxu0 0.0
    %1757 = vmatpush1.msra.mxu0 0.0
    %1758 = vmatprep.subr.mxu0 0.0
    %1759 = vmatpush1.msra.mxu0 0.0
    %1760 = vmatprep.subr.mxu0 0.0
    %1761 = vmatpush1.msra.mxu0 0.0
    %1762 = vmatprep.subr.mxu0 0.0
    %1763 = vmatpush1.msra.mxu0 0.0
    %1764 = vmatprep.subr.mxu0 0.0
    %1765 = vmatpush1.msra.mxu0 0.0
    %1766 = vmatprep.subr.mxu0 0.0
    %1767 = vmatpush1.msra.mxu0 0.0
    %1768 = vmatprep.subr.mxu0 0.0
    %1769 = vmatpush1.msra.mxu0 0.0
    %1770 = vmatprep.subr.mxu0 0.0
    %1771 = vmatpush1.msra.mxu0 0.0
    %1772 = vmatprep.subr.mxu0 0.0
    %1773 = vmatpush1.msra.mxu0 0.0
    %1774 = vmatprep.subr.mxu0 0.0
    %1775 = vmatpush1.msra.mxu0 0.0
    %1776 = vmatprep.subr.mxu0 0.0
    %1777 = vmatpush1.msra.mxu0 0.0
    %1778 = vmatprep.subr.mxu0 0.0
    %1779 = vmatpush1.msra.mxu0 0.0
    %1780 = vmatprep.subr.mxu0 0.0
    %1781 = vmatpush1.msra.mxu0 0.0
    %1782 = vmatprep.subr.mxu0 0.0
    %1783 = vmatpush1.msra.mxu0 0.0
    %1784 = vmatprep.subr.mxu0 0.0
    %1785 = vmatpush1.msra.mxu0 0.0
    %1786 = vmatprep.subr.mxu0 0.0
    %1787 = vmatpush1.msra.mxu0 0.0
    %1788 = vmatprep.subr.mxu0 0.0
    %1789 = vmatpush1.msra.mxu0 0.0
    %1790 = vmatprep.subr.mxu0 0.0
    %1791 = vmatpush1.msra.mxu0 0.0
    %1792 = vmatprep.subr.mxu0 0.0
    %1793 = vmatpush1.msra.mxu0 0.0
    %1794 = vmatprep.subr.mxu0 0.0
    %1795 = vmatpush1.msra.mxu0 0.0
    %1796 = vmatprep.subr.mxu0 0.0
    %1797 = vmatpush1.msra.mxu0 0.0
    %1798 = vmatprep.subr.mxu0 0.0
    %1799 = vmatpush1.msra.mxu0 0.0
    %1800 = vmatprep.subr.mxu0 0.0
    %1801 = vmatpush1.msra.mxu0 0.0
    %1802 = vmatprep.subr.mxu0 0.0
    %1803 = vmatpush1.msra.mxu0 0.0
    %1804 = vmatprep.subr.mxu0 0.0
    %1805 = vmatpush1.msra.mxu0 0.0
    %1806 = vmatprep.subr.mxu0 0.0
    %1807 = vmatpush1.msra.mxu0 0.0
    %1808 = vmatprep.mubr.f32.mxu0 0.0
    %1809 = vmatmul.mubr.f32.gmra.mrb[0].mxu0 %v566
    %v1810 = vpop.f32.mrb[0].mxu0
    %v1811 = vadd.f32 0.0, %v1810
    %v1812 = vpop.f32.mrb[0].mxu0
    %1813 = vmatprep.mubr.f32.mxu0 0.0
    %1814 = vmatmul.mubr.f32.gmra.mrb[0].mxu0 %v569
    %v1815 = vpop.f32.mrb[0].mxu0
    %v1816 = vadd.f32 0.0, %v1815
    %v1817 = vpop.f32.mrb[0].mxu0
    %1818 = vdwg.mxu0
    %1819 = vmatprep.subr.mxu0 0.0
    %1820 = vmatpush1.msra.mxu0 %v1430
    %1821 = vmatprep.subr.mxu0 0.0
    %1822 = vmatpush1.msra.mxu0 %v1435
    %1823 = vmatprep.subr.mxu0 0.0
    %1824 = vmatpush1.msra.mxu0 0.0
    %1825 = vmatprep.subr.mxu0 0.0
    %1826 = vmatpush1.msra.mxu0 0.0
    %1827 = vmatprep.subr.mxu0 0.0
    %1828 = vmatpush1.msra.mxu0 0.0
    %1829 = vmatprep.subr.mxu0 0.0
    %1830 = vmatpush1.msra.mxu0 0.0
    %1831 = vmatprep.subr.mxu0 0.0
    %1832 = vmatpush1.msra.mxu0 0.0
    %1833 = vmatprep.subr.mxu0 0.0
    %1834 = vmatpush1.msra.mxu0 0.0
    %1835 = vmatprep.subr.mxu0 0.0
    %1836 = vmatpush1.msra.mxu0 0.0
    %1837 = vmatprep.subr.mxu0 0.0
    %1838 = vmatpush1.msra.mxu0 0.0
    %1839 = vmatprep.subr.mxu0 0.0
    %1840 = vmatpush1.msra.mxu0 0.0
    %1841 = vmatprep.subr.mxu0 0.0
    %1842 = vmatpush1.msra.mxu0 0.0
    %1843 = vmatprep.subr.mxu0 0.0
    %1844 = vmatpush1.msra.mxu0 0.0
    %1845 = vmatprep.subr.mxu0 0.0
    %1846 = vmatpush1.msra.mxu0 0.0
    %1847 = vmatprep.subr.mxu0 0.0
    %1848 = vmatpush1.msra.mxu0 0.0
    %1849 = vmatprep.subr.mxu0 0.0
    %1850 = vmatpush1.msra.mxu0 0.0
    %1851 = vmatprep.subr.mxu0 0.0
    %1852 = vmatpush1.msra.mxu0 0.0
    %1853 = vmatprep.subr.mxu0 0.0
    %1854 = vmatpush1.msra.mxu0 0.0
    %1855 = vmatprep.subr.mxu0 0.0
    %1856 = vmatpush1.msra.mxu0 0.0
    %1857 = vmatprep.subr.mxu0 0.0
    %1858 = vmatpush1.msra.mxu0 0.0
    %1859 = vmatprep.subr.mxu0 0.0
    %1860 = vmatpush1.msra.mxu0 0.0
    %1861 = vmatprep.subr.mxu0 0.0
    %1862 = vmatpush1.msra.mxu0 0.0
    %1863 = vmatprep.subr.mxu0 0.0
    %1864 = vmatpush1.msra.mxu0 0.0
    %1865 = vmatprep.subr.mxu0 0.0
    %1866 = vmatpush1.msra.mxu0 0.0
    %1867 = vmatprep.subr.mxu0 0.0
    %1868 = vmatpush1.msra.mxu0 0.0
    %1869 = vmatprep.subr.mxu0 0.0
    %1870 = vmatpush1.msra.mxu0 0.0
    %1871 = vmatprep.subr.mxu0 0.0
    %1872 = vmatpush1.msra.mxu0 0.0
    %1873 = vmatprep.subr.mxu0 0.0
    %1874 = vmatpush1.msra.mxu0 0.0
    %1875 = vmatprep.subr.mxu0 0.0
    %1876 = vmatpush1.msra.mxu0 0.0
    %1877 = vmatprep.subr.mxu0 0.0
    %1878 = vmatpush1.msra.mxu0 0.0
    %1879 = vmatprep.subr.mxu0 0.0
    %1880 = vmatpush1.msra.mxu0 0.0
    %1881 = vmatprep.subr.mxu0 0.0
    %1882 = vmatpush1.msra.mxu0 0.0
    %1883 = vmatprep.mubr.f32.mxu0 0.0
    %1884 = vmatmul.mubr.f32.gmra.mrb[0].mxu0 %v566
    %v1885 = vpop.f32.mrb[0].mxu0
    %v1886 = vadd.f32 0.0, %v1885
    %v1887 = vpop.f32.mrb[0].mxu0
    %1888 = vmatprep.mubr.f32.mxu0 0.0
    %1889 = vmatmul.mubr.f32.gmra.mrb[0].mxu0 %v569
    %v1890 = vpop.f32.mrb[0].mxu0
    %v1891 = vadd.f32 0.0, %v1890
    %v1892 = vpop.f32.mrb[0].mxu0
    %1893 = vdwg.mxu0
    %1894 = vmatprep.subr.mxu0 0.0
    %1895 = vmatpush1.msra.mxu0 %v1511
    %1896 = vmatprep.subr.mxu0 0.0
    %1897 = vmatpush1.msra.mxu0 %v1516
    %1898 = vmatprep.subr.mxu0 0.0
    %1899 = vmatpush1.msra.mxu0 0.0
    %1900 = vmatprep.subr.mxu0 0.0
    %1901 = vmatpush1.msra.mxu0 0.0
    %1902 = vmatprep.subr.mxu0 0.0
    %1903 = vmatpush1.msra.mxu0 0.0
    %1904 = vmatprep.subr.mxu0 0.0
    %1905 = vmatpush1.msra.mxu0 0.0
    %1906 = vmatprep.subr.mxu0 0.0
    %1907 = vmatpush1.msra.mxu0 0.0
    %1908 = vmatprep.subr.mxu0 0.0
    %1909 = vmatpush1.msra.mxu0 0.0
    %1910 = vmatprep.subr.mxu0 0.0
    %1911 = vmatpush1.msra.mxu0 0.0
    %1912 = vmatprep.subr.mxu0 0.0
    %1913 = vmatpush1.msra.mxu0 0.0
    %1914 = vmatprep.subr.mxu0 0.0
    %1915 = vmatpush1.msra.mxu0 0.0
    %1916 = vmatprep.subr.mxu0 0.0
    %1917 = vmatpush1.msra.mxu0 0.0
    %1918 = vmatprep.subr.mxu0 0.0
    %1919 = vmatpush1.msra.mxu0 0.0
    %1920 = vmatprep.subr.mxu0 0.0
    %1921 = vmatpush1.msra.mxu0 0.0
    %1922 = vmatprep.subr.mxu0 0.0
    %1923 = vmatpush1.msra.mxu0 0.0
    %1924 = vmatprep.subr.mxu0 0.0
    %1925 = vmatpush1.msra.mxu0 0.0
    %1926 = vmatprep.subr.mxu0 0.0
    %1927 = vmatpush1.msra.mxu0 0.0
    %1928 = vmatprep.subr.mxu0 0.0
    %1929 = vmatpush1.msra.mxu0 0.0
    %1930 = vmatprep.subr.mxu0 0.0
    %1931 = vmatpush1.msra.mxu0 0.0
    %1932 = vmatprep.subr.mxu0 0.0
    %1933 = vmatpush1.msra.mxu0 0.0
    %1934 = vmatprep.subr.mxu0 0.0
    %1935 = vmatpush1.msra.mxu0 0.0
    %1936 = vmatprep.subr.mxu0 0.0
    %1937 = vmatpush1.msra.mxu0 0.0
    %1938 = vmatprep.subr.mxu0 0.0
    %1939 = vmatpush1.msra.mxu0 0.0
    %1940 = vmatprep.subr.mxu0 0.0
    %1941 = vmatpush1.msra.mxu0 0.0
    %1942 = vmatprep.subr.mxu0 0.0
    %1943 = vmatpush1.msra.mxu0 0.0
    %1944 = vmatprep.subr.mxu0 0.0
    %1945 = vmatpush1.msra.mxu0 0.0
    %1946 = vmatprep.subr.mxu0 0.0
    %1947 = vmatpush1.msra.mxu0 0.0
    %1948 = vmatprep.subr.mxu0 0.0
    %1949 = vmatpush1.msra.mxu0 0.0
    %1950 = vmatprep.subr.mxu0 0.0
    %1951 = vmatpush1.msra.mxu0 0.0
    %1952 = vmatprep.subr.mxu0 0.0
    %1953 = vmatpush1.msra.mxu0 0.0
    %1954 = vmatprep.subr.mxu0 0.0
    %1955 = vmatpush1.msra.mxu0 0.0
    %1956 = vmatprep.subr.mxu0 0.0
    %1957 = vmatpush1.msra.mxu0 0.0
    %1958 = vmatprep.mubr.f32.mxu0 0.0
    %1959 = vmatmul.mubr.f32.gmra.mrb[0].mxu0 %v566
    %v1960 = vpop.f32.mrb[0].mxu0
    %v1961 = vadd.f32 0.0, %v1960
    %v1962 = vpop.f32.mrb[0].mxu0
    %1963 = vmatprep.mubr.f32.mxu0 0.0
    %1964 = vmatmul.mubr.f32.gmra.mrb[0].mxu0 %v569
    %v1965 = vpop.f32.mrb[0].mxu0
    %v1966 = vadd.f32 0.0, %v1965
    %v1967 = vpop.f32.mrb[0].mxu0
    %1968 = vdwg.mxu0
    %v1969 = vmul.f32 %v1586, %v76
    %v1970 = vmul.f32 %v1591, %v77
    %v1971 = vmul.f32 %v1661, %v76
    %v1972 = vmul.f32 %v1666, %v77
    %v1973 = vmul.f32 %v1736, %v76
    %v1974 = vmul.f32 %v1741, %v77
    %v1975 = vmul.f32 %v1811, %v76
    %v1976 = vmul.f32 %v1816, %v77
    %v1977 = vmul.f32 %v1886, %v76
    %v1978 = vmul.f32 %v1891, %v77
    %v1979 = vmul.f32 %v1961, %v76
    %v1980 = vmul.f32 %v1966, %v77
    %v1981 = vmul.f32 %v48, %v60
    %v1982 = vmul.f32 %v49, %v61
    %v1983 = vmul.f32 %v50, %v62
    %v1984 = vmul.f32 %v51, %v63
    %v1985 = vmul.f32 %v52, %v64
    %v1986 = vmul.f32 %v53, %v65
    %v1987 = vmul.f32 %v54, %v66
    %v1988 = vmul.f32 %v55, %v67
    %v1989 = vmul.f32 %v56, %v68
    %v1990 = vmul.f32 %v57, %v69
    %v1991 = vmul.f32 %v58, %v70
    %v1992 = vmul.f32 %v59, %v71
    %v1994 = vsel %vm78, %v1981, 0
    %v1997 = vsel %vm78, %v1982, 0
    %1999 = vmatprep.subr.mxu0 0.0
    %2000 = vmatpush1.msra.mxu0 %v72
    %2001 = vmatprep.subr.mxu0 0.0
    %2002 = vmatpush1.msra.mxu0 %v73
    %2003 = vmatprep.subr.mxu0 0.0
    %2004 = vmatpush1.msra.mxu0 0.0
    %2005 = vmatprep.subr.mxu0 0.0
    %2006 = vmatpush1.msra.mxu0 0.0
    %2007 = vmatprep.subr.mxu0 0.0
    %2008 = vmatpush1.msra.mxu0 0.0
    %2009 = vmatprep.subr.mxu0 0.0
    %2010 = vmatpush1.msra.mxu0 0.0
    %2011 = vmatprep.subr.mxu0 0.0
    %2012 = vmatpush1.msra.mxu0 0.0
    %2013 = vmatprep.subr.mxu0 0.0
    %2014 = vmatpush1.msra.mxu0 0.0
    %2015 = vmatprep.subr.mxu0 0.0
    %2016 = vmatpush1.msra.mxu0 0.0
    %2017 = vmatprep.subr.mxu0 0.0
    %2018 = vmatpush1.msra.mxu0 0.0
    %2019 = vmatprep.subr.mxu0 0.0
    %2020 = vmatpush1.msra.mxu0 0.0
    %2021 = vmatprep.subr.mxu0 0.0
    %2022 = vmatpush1.msra.mxu0 0.0
    %2023 = vmatprep.subr.mxu0 0.0
    %2024 = vmatpush1.msra.mxu0 0.0
    %2025 = vmatprep.subr.mxu0 0.0
    %2026 = vmatpush1.msra.mxu0 0.0
    %2027 = vmatprep.subr.mxu0 0.0
    %2028 = vmatpush1.msra.mxu0 0.0
    %2029 = vmatprep.subr.mxu0 0.0
    %2030 = vmatpush1.msra.mxu0 0.0
    %2031 = vmatprep.subr.mxu0 0.0
    %2032 = vmatpush1.msra.mxu0 0.0
    %2033 = vmatprep.subr.mxu0 0.0
    %2034 = vmatpush1.msra.mxu0 0.0
    %2035 = vmatprep.subr.mxu0 0.0
    %2036 = vmatpush1.msra.mxu0 0.0
    %2037 = vmatprep.subr.mxu0 0.0
    %2038 = vmatpush1.msra.mxu0 0.0
    %2039 = vmatprep.subr.mxu0 0.0
    %2040 = vmatpush1.msra.mxu0 0.0
    %2041 = vmatprep.subr.mxu0 0.0
    %2042 = vmatpush1.msra.mxu0 0.0
    %2043 = vmatprep.subr.mxu0 0.0
    %2044 = vmatpush1.msra.mxu0 0.0
    %2045 = vmatprep.subr.mxu0 0.0
    %2046 = vmatpush1.msra.mxu0 0.0
    %2047 = vmatprep.subr.mxu0 0.0
    %2048 = vmatpush1.msra.mxu0 0.0
    %2049 = vmatprep.subr.mxu0 0.0
    %2050 = vmatpush1.msra.mxu0 0.0
    %2051 = vmatprep.subr.mxu0 0.0
    %2052 = vmatpush1.msra.mxu0 0.0
    %2053 = vmatprep.subr.mxu0 0.0
    %2054 = vmatpush1.msra.mxu0 0.0
    %2055 = vmatprep.subr.mxu0 0.0
    %2056 = vmatpush1.msra.mxu0 0.0
    %2057 = vmatprep.subr.mxu0 0.0
    %2058 = vmatpush1.msra.mxu0 0.0
    %2059 = vmatprep.subr.mxu0 0.0
    %2060 = vmatpush1.msra.mxu0 0.0
    %2061 = vmatprep.subr.mxu0 0.0
    %2062 = vmatpush1.msra.mxu0 0.0
    %2063 = vmatprep.mubr.f32.mxu0 0.0
    %2064 = vmatmul.mubr.f32.gmra.mrb[0].mxu0 %v1994
    %v2065 = vpop.f32.mrb[0].mxu0
    %v2066 = vadd.f32 0.0, %v2065
    %v2067 = vpop.f32.mrb[0].mxu0
    %2068 = vmatprep.mubr.f32.mxu0 0.0
    %2069 = vmatmul.mubr.f32.gmra.mrb[0].mxu0 %v1997
    %v2070 = vpop.f32.mrb[0].mxu0
    %v2071 = vadd.f32 0.0, %v2070
    %v2072 = vpop.f32.mrb[0].mxu0
    %2073 = vdwg.mxu0
    %v2075 = vsel %vm78, %v1983, 0
    %v2078 = vsel %vm78, %v1984, 0
    %2080 = vmatprep.subr.mxu0 0.0
    %2081 = vmatpush1.msra.mxu0 %v72
    %2082 = vmatprep.subr.mxu0 0.0
    %2083 = vmatpush1.msra.mxu0 %v73
    %2084 = vmatprep.subr.mxu0 0.0
    %2085 = vmatpush1.msra.mxu0 0.0
    %2086 = vmatprep.subr.mxu0 0.0
    %2087 = vmatpush1.msra.mxu0 0.0
    %2088 = vmatprep.subr.mxu0 0.0
    %2089 = vmatpush1.msra.mxu0 0.0
    %2090 = vmatprep.subr.mxu0 0.0
    %2091 = vmatpush1.msra.mxu0 0.0
    %2092 = vmatprep.subr.mxu0 0.0
    %2093 = vmatpush1.msra.mxu0 0.0
    %2094 = vmatprep.subr.mxu0 0.0
    %2095 = vmatpush1.msra.mxu0 0.0
    %2096 = vmatprep.subr.mxu0 0.0
    %2097 = vmatpush1.msra.mxu0 0.0
    %2098 = vmatprep.subr.mxu0 0.0
    %2099 = vmatpush1.msra.mxu0 0.0
    %2100 = vmatprep.subr.mxu0 0.0
    %2101 = vmatpush1.msra.mxu0 0.0
    %2102 = vmatprep.subr.mxu0 0.0
    %2103 = vmatpush1.msra.mxu0 0.0
    %2104 = vmatprep.subr.mxu0 0.0
    %2105 = vmatpush1.msra.mxu0 0.0
    %2106 = vmatprep.subr.mxu0 0.0
    %2107 = vmatpush1.msra.mxu0 0.0
    %2108 = vmatprep.subr.mxu0 0.0
    %2109 = vmatpush1.msra.mxu0 0.0
    %2110 = vmatprep.subr.mxu0 0.0
    %2111 = vmatpush1.msra.mxu0 0.0
    %2112 = vmatprep.subr.mxu0 0.0
    %2113 = vmatpush1.msra.mxu0 0.0
    %2114 = vmatprep.subr.mxu0 0.0
    %2115 = vmatpush1.msra.mxu0 0.0
    %2116 = vmatprep.subr.mxu0 0.0
    %2117 = vmatpush1.msra.mxu0 0.0
    %2118 = vmatprep.subr.mxu0 0.0
    %2119 = vmatpush1.msra.mxu0 0.0
    %2120 = vmatprep.subr.mxu0 0.0
    %2121 = vmatpush1.msra.mxu0 0.0
    %2122 = vmatprep.subr.mxu0 0.0
    %2123 = vmatpush1.msra.mxu0 0.0
    %2124 = vmatprep.subr.mxu0 0.0
    %2125 = vmatpush1.msra.mxu0 0.0
    %2126 = vmatprep.subr.mxu0 0.0
    %2127 = vmatpush1.msra.mxu0 0.0
    %2128 = vmatprep.subr.mxu0 0.0
    %2129 = vmatpush1.msra.mxu0 0.0
    %2130 = vmatprep.subr.mxu0 0.0
    %2131 = vmatpush1.msra.mxu0 0.0
    %2132 = vmatprep.subr.mxu0 0.0
    %2133 = vmatpush1.msra.mxu0 0.0
    %2134 = vmatprep.subr.mxu0 0.0
    %2135 = vmatpush1.msra.mxu0 0.0
    %2136 = vmatprep.subr.mxu0 0.0
    %2137 = vmatpush1.msra.mxu0 0.0
    %2138 = vmatprep.subr.mxu0 0.0
    %2139 = vmatpush1.msra.mxu0 0.0
    %2140 = vmatprep.subr.mxu0 0.0
    %2141 = vmatpush1.msra.mxu0 0.0
    %2142 = vmatprep.subr.mxu0 0.0
    %2143 = vmatpush1.msra.mxu0 0.0
    %2144 = vmatprep.mubr.f32.mxu0 0.0
    %2145 = vmatmul.mubr.f32.gmra.mrb[0].mxu0 %v2075
    %v2146 = vpop.f32.mrb[0].mxu0
    %v2147 = vadd.f32 0.0, %v2146
    %v2148 = vpop.f32.mrb[0].mxu0
    %2149 = vmatprep.mubr.f32.mxu0 0.0
    %2150 = vmatmul.mubr.f32.gmra.mrb[0].mxu0 %v2078
    %v2151 = vpop.f32.mrb[0].mxu0
    %v2152 = vadd.f32 0.0, %v2151
    %v2153 = vpop.f32.mrb[0].mxu0
    %2154 = vdwg.mxu0
    %v2156 = vsel %vm78, %v1985, 0
    %v2159 = vsel %vm78, %v1986, 0
    %2161 = vmatprep.subr.mxu0 0.0
    %2162 = vmatpush1.msra.mxu0 %v72
    %2163 = vmatprep.subr.mxu0 0.0
    %2164 = vmatpush1.msra.mxu0 %v73
    %2165 = vmatprep.subr.mxu0 0.0
    %2166 = vmatpush1.msra.mxu0 0.0
    %2167 = vmatprep.subr.mxu0 0.0
    %2168 = vmatpush1.msra.mxu0 0.0
    %2169 = vmatprep.subr.mxu0 0.0
    %2170 = vmatpush1.msra.mxu0 0.0
    %2171 = vmatprep.subr.mxu0 0.0
    %2172 = vmatpush1.msra.mxu0 0.0
    %2173 = vmatprep.subr.mxu0 0.0
    %2174 = vmatpush1.msra.mxu0 0.0
    %2175 = vmatprep.subr.mxu0 0.0
    %2176 = vmatpush1.msra.mxu0 0.0
    %2177 = vmatprep.subr.mxu0 0.0
    %2178 = vmatpush1.msra.mxu0 0.0
    %2179 = vmatprep.subr.mxu0 0.0
    %2180 = vmatpush1.msra.mxu0 0.0
    %2181 = vmatprep.subr.mxu0 0.0
    %2182 = vmatpush1.msra.mxu0 0.0
    %2183 = vmatprep.subr.mxu0 0.0
    %2184 = vmatpush1.msra.mxu0 0.0
    %2185 = vmatprep.subr.mxu0 0.0
    %2186 = vmatpush1.msra.mxu0 0.0
    %2187 = vmatprep.subr.mxu0 0.0
    %2188 = vmatpush1.msra.mxu0 0.0
    %2189 = vmatprep.subr.mxu0 0.0
    %2190 = vmatpush1.msra.mxu0 0.0
    %2191 = vmatprep.subr.mxu0 0.0
    %2192 = vmatpush1.msra.mxu0 0.0
    %2193 = vmatprep.subr.mxu0 0.0
    %2194 = vmatpush1.msra.mxu0 0.0
    %2195 = vmatprep.subr.mxu0 0.0
    %2196 = vmatpush1.msra.mxu0 0.0
    %2197 = vmatprep.subr.mxu0 0.0
    %2198 = vmatpush1.msra.mxu0 0.0
    %2199 = vmatprep.subr.mxu0 0.0
    %2200 = vmatpush1.msra.mxu0 0.0
    %2201 = vmatprep.subr.mxu0 0.0
    %2202 = vmatpush1.msra.mxu0 0.0
    %2203 = vmatprep.subr.mxu0 0.0
    %2204 = vmatpush1.msra.mxu0 0.0
    %2205 = vmatprep.subr.mxu0 0.0
    %2206 = vmatpush1.msra.mxu0 0.0
    %2207 = vmatprep.subr.mxu0 0.0
    %2208 = vmatpush1.msra.mxu0 0.0
    %2209 = vmatprep.subr.mxu0 0.0
    %2210 = vmatpush1.msra.mxu0 0.0
    %2211 = vmatprep.subr.mxu0 0.0
    %2212 = vmatpush1.msra.mxu0 0.0
    %2213 = vmatprep.subr.mxu0 0.0
    %2214 = vmatpush1.msra.mxu0 0.0
    %2215 = vmatprep.subr.mxu0 0.0
    %2216 = vmatpush1.msra.mxu0 0.0
    %2217 = vmatprep.subr.mxu0 0.0
    %2218 = vmatpush1.msra.mxu0 0.0
    %2219 = vmatprep.subr.mxu0 0.0
    %2220 = vmatpush1.msra.mxu0 0.0
    %2221 = vmatprep.subr.mxu0 0.0
    %2222 = vmatpush1.msra.mxu0 0.0
    %2223 = vmatprep.subr.mxu0 0.0
    %2224 = vmatpush1.msra.mxu0 0.0
    %2225 = vmatprep.mubr.f32.mxu0 0.0
    %2226 = vmatmul.mubr.f32.gmra.mrb[0].mxu0 %v2156
    %v2227 = vpop.f32.mrb[0].mxu0
    %v2228 = vadd.f32 0.0, %v2227
    %v2229 = vpop.f32.mrb[0].mxu0
    %2230 = vmatprep.mubr.f32.mxu0 0.0
    %2231 = vmatmul.mubr.f32.gmra.mrb[0].mxu0 %v2159
    %v2232 = vpop.f32.mrb[0].mxu0
    %v2233 = vadd.f32 0.0, %v2232
    %v2234 = vpop.f32.mrb[0].mxu0
    %2235 = vdwg.mxu0
    %v2237 = vsel %vm78, %v1987, 0
    %v2240 = vsel %vm78, %v1988, 0
    %2242 = vmatprep.subr.mxu0 0.0
    %2243 = vmatpush1.msra.mxu0 %v72
    %2244 = vmatprep.subr.mxu0 0.0
    %2245 = vmatpush1.msra.mxu0 %v73
    %2246 = vmatprep.subr.mxu0 0.0
    %2247 = vmatpush1.msra.mxu0 0.0
    %2248 = vmatprep.subr.mxu0 0.0
    %2249 = vmatpush1.msra.mxu0 0.0
    %2250 = vmatprep.subr.mxu0 0.0
    %2251 = vmatpush1.msra.mxu0 0.0
    %2252 = vmatprep.subr.mxu0 0.0
    %2253 = vmatpush1.msra.mxu0 0.0
    %2254 = vmatprep.subr.mxu0 0.0
    %2255 = vmatpush1.msra.mxu0 0.0
    %2256 = vmatprep.subr.mxu0 0.0
    %2257 = vmatpush1.msra.mxu0 0.0
    %2258 = vmatprep.subr.mxu0 0.0
    %2259 = vmatpush1.msra.mxu0 0.0
    %2260 = vmatprep.subr.mxu0 0.0
    %2261 = vmatpush1.msra.mxu0 0.0
    %2262 = vmatprep.subr.mxu0 0.0
    %2263 = vmatpush1.msra.mxu0 0.0
    %2264 = vmatprep.subr.mxu0 0.0
    %2265 = vmatpush1.msra.mxu0 0.0
    %2266 = vmatprep.subr.mxu0 0.0
    %2267 = vmatpush1.msra.mxu0 0.0
    %2268 = vmatprep.subr.mxu0 0.0
    %2269 = vmatpush1.msra.mxu0 0.0
    %2270 = vmatprep.subr.mxu0 0.0
    %2271 = vmatpush1.msra.mxu0 0.0
    %2272 = vmatprep.subr.mxu0 0.0
    %2273 = vmatpush1.msra.mxu0 0.0
    %2274 = vmatprep.subr.mxu0 0.0
    %2275 = vmatpush1.msra.mxu0 0.0
    %2276 = vmatprep.subr.mxu0 0.0
    %2277 = vmatpush1.msra.mxu0 0.0
    %2278 = vmatprep.subr.mxu0 0.0
    %2279 = vmatpush1.msra.mxu0 0.0
    %2280 = vmatprep.subr.mxu0 0.0
    %2281 = vmatpush1.msra.mxu0 0.0
    %2282 = vmatprep.subr.mxu0 0.0
    %2283 = vmatpush1.msra.mxu0 0.0
    %2284 = vmatprep.subr.mxu0 0.0
    %2285 = vmatpush1.msra.mxu0 0.0
    %2286 = vmatprep.subr.mxu0 0.0
    %2287 = vmatpush1.msra.mxu0 0.0
    %2288 = vmatprep.subr.mxu0 0.0
    %2289 = vmatpush1.msra.mxu0 0.0
    %2290 = vmatprep.subr.mxu0 0.0
    %2291 = vmatpush1.msra.mxu0 0.0
    %2292 = vmatprep.subr.mxu0 0.0
    %2293 = vmatpush1.msra.mxu0 0.0
    %2294 = vmatprep.subr.mxu0 0.0
    %2295 = vmatpush1.msra.mxu0 0.0
    %2296 = vmatprep.subr.mxu0 0.0
    %2297 = vmatpush1.msra.mxu0 0.0
    %2298 = vmatprep.subr.mxu0 0.0
    %2299 = vmatpush1.msra.mxu0 0.0
    %2300 = vmatprep.subr.mxu0 0.0
    %2301 = vmatpush1.msra.mxu0 0.0
    %2302 = vmatprep.subr.mxu0 0.0
    %2303 = vmatpush1.msra.mxu0 0.0
    %2304 = vmatprep.subr.mxu0 0.0
    %2305 = vmatpush1.msra.mxu0 0.0
    %2306 = vmatprep.mubr.f32.mxu0 0.0
    %2307 = vmatmul.mubr.f32.gmra.mrb[0].mxu0 %v2237
    %v2308 = vpop.f32.mrb[0].mxu0
    %v2309 = vadd.f32 0.0, %v2308
    %v2310 = vpop.f32.mrb[0].mxu0
    %2311 = vmatprep.mubr.f32.mxu0 0.0
    %2312 = vmatmul.mubr.f32.gmra.mrb[0].mxu0 %v2240
    %v2313 = vpop.f32.mrb[0].mxu0
    %v2314 = vadd.f32 0.0, %v2313
    %v2315 = vpop.f32.mrb[0].mxu0
    %2316 = vdwg.mxu0
    %v2318 = vsel %vm78, %v1989, 0
    %v2321 = vsel %vm78, %v1990, 0
    %2323 = vmatprep.subr.mxu0 0.0
    %2324 = vmatpush1.msra.mxu0 %v72
    %2325 = vmatprep.subr.mxu0 0.0
    %2326 = vmatpush1.msra.mxu0 %v73
    %2327 = vmatprep.subr.mxu0 0.0
    %2328 = vmatpush1.msra.mxu0 0.0
    %2329 = vmatprep.subr.mxu0 0.0
    %2330 = vmatpush1.msra.mxu0 0.0
    %2331 = vmatprep.subr.mxu0 0.0
    %2332 = vmatpush1.msra.mxu0 0.0
    %2333 = vmatprep.subr.mxu0 0.0
    %2334 = vmatpush1.msra.mxu0 0.0
    %2335 = vmatprep.subr.mxu0 0.0
    %2336 = vmatpush1.msra.mxu0 0.0
    %2337 = vmatprep.subr.mxu0 0.0
    %2338 = vmatpush1.msra.mxu0 0.0
    %2339 = vmatprep.subr.mxu0 0.0
    %2340 = vmatpush1.msra.mxu0 0.0
    %2341 = vmatprep.subr.mxu0 0.0
    %2342 = vmatpush1.msra.mxu0 0.0
    %2343 = vmatprep.subr.mxu0 0.0
    %2344 = vmatpush1.msra.mxu0 0.0
    %2345 = vmatprep.subr.mxu0 0.0
    %2346 = vmatpush1.msra.mxu0 0.0
    %2347 = vmatprep.subr.mxu0 0.0
    %2348 = vmatpush1.msra.mxu0 0.0
    %2349 = vmatprep.subr.mxu0 0.0
    %2350 = vmatpush1.msra.mxu0 0.0
    %2351 = vmatprep.subr.mxu0 0.0
    %2352 = vmatpush1.msra.mxu0 0.0
    %2353 = vmatprep.subr.mxu0 0.0
    %2354 = vmatpush1.msra.mxu0 0.0
    %2355 = vmatprep.subr.mxu0 0.0
    %2356 = vmatpush1.msra.mxu0 0.0
    %2357 = vmatprep.subr.mxu0 0.0
    %2358 = vmatpush1.msra.mxu0 0.0
    %2359 = vmatprep.subr.mxu0 0.0
    %2360 = vmatpush1.msra.mxu0 0.0
    %2361 = vmatprep.subr.mxu0 0.0
    %2362 = vmatpush1.msra.mxu0 0.0
    %2363 = vmatprep.subr.mxu0 0.0
    %2364 = vmatpush1.msra.mxu0 0.0
    %2365 = vmatprep.subr.mxu0 0.0
    %2366 = vmatpush1.msra.mxu0 0.0
    %2367 = vmatprep.subr.mxu0 0.0
    %2368 = vmatpush1.msra.mxu0 0.0
    %2369 = vmatprep.subr.mxu0 0.0
    %2370 = vmatpush1.msra.mxu0 0.0
    %2371 = vmatprep.subr.mxu0 0.0
    %2372 = vmatpush1.msra.mxu0 0.0
    %2373 = vmatprep.subr.mxu0 0.0
    %2374 = vmatpush1.msra.mxu0 0.0
    %2375 = vmatprep.subr.mxu0 0.0
    %2376 = vmatpush1.msra.mxu0 0.0
    %2377 = vmatprep.subr.mxu0 0.0
    %2378 = vmatpush1.msra.mxu0 0.0
    %2379 = vmatprep.subr.mxu0 0.0
    %2380 = vmatpush1.msra.mxu0 0.0
    %2381 = vmatprep.subr.mxu0 0.0
    %2382 = vmatpush1.msra.mxu0 0.0
    %2383 = vmatprep.subr.mxu0 0.0
    %2384 = vmatpush1.msra.mxu0 0.0
    %2385 = vmatprep.subr.mxu0 0.0
    %2386 = vmatpush1.msra.mxu0 0.0
    %2387 = vmatprep.mubr.f32.mxu0 0.0
    %2388 = vmatmul.mubr.f32.gmra.mrb[0].mxu0 %v2318
    %v2389 = vpop.f32.mrb[0].mxu0
    %v2390 = vadd.f32 0.0, %v2389
    %v2391 = vpop.f32.mrb[0].mxu0
    %2392 = vmatprep.mubr.f32.mxu0 0.0
    %2393 = vmatmul.mubr.f32.gmra.mrb[0].mxu0 %v2321
    %v2394 = vpop.f32.mrb[0].mxu0
    %v2395 = vadd.f32 0.0, %v2394
    %v2396 = vpop.f32.mrb[0].mxu0
    %2397 = vdwg.mxu0
    %v2399 = vsel %vm78, %v1991, 0
    %v2402 = vsel %vm78, %v1992, 0
    %2404 = vmatprep.subr.mxu0 0.0
    %2405 = vmatpush1.msra.mxu0 %v72
    %2406 = vmatprep.subr.mxu0 0.0
    %2407 = vmatpush1.msra.mxu0 %v73
    %2408 = vmatprep.subr.mxu0 0.0
    %2409 = vmatpush1.msra.mxu0 0.0
    %2410 = vmatprep.subr.mxu0 0.0
    %2411 = vmatpush1.msra.mxu0 0.0
    %2412 = vmatprep.subr.mxu0 0.0
    %2413 = vmatpush1.msra.mxu0 0.0
    %2414 = vmatprep.subr.mxu0 0.0
    %2415 = vmatpush1.msra.mxu0 0.0
    %2416 = vmatprep.subr.mxu0 0.0
    %2417 = vmatpush1.msra.mxu0 0.0
    %2418 = vmatprep.subr.mxu0 0.0
    %2419 = vmatpush1.msra.mxu0 0.0
    %2420 = vmatprep.subr.mxu0 0.0
    %2421 = vmatpush1.msra.mxu0 0.0
    %2422 = vmatprep.subr.mxu0 0.0
    %2423 = vmatpush1.msra.mxu0 0.0
    %2424 = vmatprep.subr.mxu0 0.0
    %2425 = vmatpush1.msra.mxu0 0.0
    %2426 = vmatprep.subr.mxu0 0.0
    %2427 = vmatpush1.msra.mxu0 0.0
    %2428 = vmatprep.subr.mxu0 0.0
    %2429 = vmatpush1.msra.mxu0 0.0
    %2430 = vmatprep.subr.mxu0 0.0
    %2431 = vmatpush1.msra.mxu0 0.0
    %2432 = vmatprep.subr.mxu0 0.0
    %2433 = vmatpush1.msra.mxu0 0.0
    %2434 = vmatprep.subr.mxu0 0.0
    %2435 = vmatpush1.msra.mxu0 0.0
    %2436 = vmatprep.subr.mxu0 0.0
    %2437 = vmatpush1.msra.mxu0 0.0
    %2438 = vmatprep.subr.mxu0 0.0
    %2439 = vmatpush1.msra.mxu0 0.0
    %2440 = vmatprep.subr.mxu0 0.0
    %2441 = vmatpush1.msra.mxu0 0.0
    %2442 = vmatprep.subr.mxu0 0.0
    %2443 = vmatpush1.msra.mxu0 0.0
    %2444 = vmatprep.subr.mxu0 0.0
    %2445 = vmatpush1.msra.mxu0 0.0
    %2446 = vmatprep.subr.mxu0 0.0
    %2447 = vmatpush1.msra.mxu0 0.0
    %2448 = vmatprep.subr.mxu0 0.0
    %2449 = vmatpush1.msra.mxu0 0.0
    %2450 = vmatprep.subr.mxu0 0.0
    %2451 = vmatpush1.msra.mxu0 0.0
    %2452 = vmatprep.subr.mxu0 0.0
    %2453 = vmatpush1.msra.mxu0 0.0
    %2454 = vmatprep.subr.mxu0 0.0
    %2455 = vmatpush1.msra.mxu0 0.0
    %2456 = vmatprep.subr.mxu0 0.0
    %2457 = vmatpush1.msra.mxu0 0.0
    %2458 = vmatprep.subr.mxu0 0.0
    %2459 = vmatpush1.msra.mxu0 0.0
    %2460 = vmatprep.subr.mxu0 0.0
    %2461 = vmatpush1.msra.mxu0 0.0
    %2462 = vmatprep.subr.mxu0 0.0
    %2463 = vmatpush1.msra.mxu0 0.0
    %2464 = vmatprep.subr.mxu0 0.0
    %2465 = vmatpush1.msra.mxu0 0.0
    %2466 = vmatprep.subr.mxu0 0.0
    %2467 = vmatpush1.msra.mxu0 0.0
    %2468 = vmatprep.mubr.f32.mxu0 0.0
    %2469 = vmatmul.mubr.f32.gmra.mrb[0].mxu0 %v2399
    %v2470 = vpop.f32.mrb[0].mxu0
    %v2471 = vadd.f32 0.0, %v2470
    %v2472 = vpop.f32.mrb[0].mxu0
    %2473 = vmatprep.mubr.f32.mxu0 0.0
    %2474 = vmatmul.mubr.f32.gmra.mrb[0].mxu0 %v2402
    %v2475 = vpop.f32.mrb[0].mxu0
    %v2476 = vadd.f32 0.0, %v2475
    %v2477 = vpop.f32.mrb[0].mxu0
    %2478 = vdwg.mxu0
    %2479 = vmatprep.subr.mxu0 0.0
    %2480 = vmatpush1.msra.mxu0 %v2066
    %2481 = vmatprep.subr.mxu0 0.0
    %2482 = vmatpush1.msra.mxu0 %v2071
    %2483 = vmatprep.subr.mxu0 0.0
    %2484 = vmatpush1.msra.mxu0 0.0
    %2485 = vmatprep.subr.mxu0 0.0
    %2486 = vmatpush1.msra.mxu0 0.0
    %2487 = vmatprep.subr.mxu0 0.0
    %2488 = vmatpush1.msra.mxu0 0.0
    %2489 = vmatprep.subr.mxu0 0.0
    %2490 = vmatpush1.msra.mxu0 0.0
    %2491 = vmatprep.subr.mxu0 0.0
    %2492 = vmatpush1.msra.mxu0 0.0
    %2493 = vmatprep.subr.mxu0 0.0
    %2494 = vmatpush1.msra.mxu0 0.0
    %2495 = vmatprep.subr.mxu0 0.0
    %2496 = vmatpush1.msra.mxu0 0.0
    %2497 = vmatprep.subr.mxu0 0.0
    %2498 = vmatpush1.msra.mxu0 0.0
    %2499 = vmatprep.subr.mxu0 0.0
    %2500 = vmatpush1.msra.mxu0 0.0
    %2501 = vmatprep.subr.mxu0 0.0
    %2502 = vmatpush1.msra.mxu0 0.0
    %2503 = vmatprep.subr.mxu0 0.0
    %2504 = vmatpush1.msra.mxu0 0.0
    %2505 = vmatprep.subr.mxu0 0.0
    %2506 = vmatpush1.msra.mxu0 0.0
    %2507 = vmatprep.subr.mxu0 0.0
    %2508 = vmatpush1.msra.mxu0 0.0
    %2509 = vmatprep.subr.mxu0 0.0
    %2510 = vmatpush1.msra.mxu0 0.0
    %2511 = vmatprep.subr.mxu0 0.0
    %2512 = vmatpush1.msra.mxu0 0.0
    %2513 = vmatprep.subr.mxu0 0.0
    %2514 = vmatpush1.msra.mxu0 0.0
    %2515 = vmatprep.subr.mxu0 0.0
    %2516 = vmatpush1.msra.mxu0 0.0
    %2517 = vmatprep.subr.mxu0 0.0
    %2518 = vmatpush1.msra.mxu0 0.0
    %2519 = vmatprep.subr.mxu0 0.0
    %2520 = vmatpush1.msra.mxu0 0.0
    %2521 = vmatprep.subr.mxu0 0.0
    %2522 = vmatpush1.msra.mxu0 0.0
    %2523 = vmatprep.subr.mxu0 0.0
    %2524 = vmatpush1.msra.mxu0 0.0
    %2525 = vmatprep.subr.mxu0 0.0
    %2526 = vmatpush1.msra.mxu0 0.0
    %2527 = vmatprep.subr.mxu0 0.0
    %2528 = vmatpush1.msra.mxu0 0.0
    %2529 = vmatprep.subr.mxu0 0.0
    %2530 = vmatpush1.msra.mxu0 0.0
    %2531 = vmatprep.subr.mxu0 0.0
    %2532 = vmatpush1.msra.mxu0 0.0
    %2533 = vmatprep.subr.mxu0 0.0
    %2534 = vmatpush1.msra.mxu0 0.0
    %2535 = vmatprep.subr.mxu0 0.0
    %2536 = vmatpush1.msra.mxu0 0.0
    %2537 = vmatprep.subr.mxu0 0.0
    %2538 = vmatpush1.msra.mxu0 0.0
    %2539 = vmatprep.subr.mxu0 0.0
    %2540 = vmatpush1.msra.mxu0 0.0
    %2541 = vmatprep.subr.mxu0 0.0
    %2542 = vmatpush1.msra.mxu0 0.0
    %2543 = vmatprep.mubr.f32.mxu0 0.0
    %2544 = vmatmul.mubr.f32.gmra.mrb[0].mxu0 %v566
    %v2545 = vpop.f32.mrb[0].mxu0
    %v2546 = vadd.f32 0.0, %v2545
    %v2547 = vpop.f32.mrb[0].mxu0
    %2548 = vmatprep.mubr.f32.mxu0 0.0
    %2549 = vmatmul.mubr.f32.gmra.mrb[0].mxu0 %v569
    %v2550 = vpop.f32.mrb[0].mxu0
    %v2551 = vadd.f32 0.0, %v2550
    %v2552 = vpop.f32.mrb[0].mxu0
    %2553 = vdwg.mxu0
    %2554 = vmatprep.subr.mxu0 0.0
    %2555 = vmatpush1.msra.mxu0 %v2147
    %2556 = vmatprep.subr.mxu0 0.0
    %2557 = vmatpush1.msra.mxu0 %v2152
    %2558 = vmatprep.subr.mxu0 0.0
    %2559 = vmatpush1.msra.mxu0 0.0
    %2560 = vmatprep.subr.mxu0 0.0
    %2561 = vmatpush1.msra.mxu0 0.0
    %2562 = vmatprep.subr.mxu0 0.0
    %2563 = vmatpush1.msra.mxu0 0.0
    %2564 = vmatprep.subr.mxu0 0.0
    %2565 = vmatpush1.msra.mxu0 0.0
    %2566 = vmatprep.subr.mxu0 0.0
    %2567 = vmatpush1.msra.mxu0 0.0
    %2568 = vmatprep.subr.mxu0 0.0
    %2569 = vmatpush1.msra.mxu0 0.0
    %2570 = vmatprep.subr.mxu0 0.0
    %2571 = vmatpush1.msra.mxu0 0.0
    %2572 = vmatprep.subr.mxu0 0.0
    %2573 = vmatpush1.msra.mxu0 0.0
    %2574 = vmatprep.subr.mxu0 0.0
    %2575 = vmatpush1.msra.mxu0 0.0
    %2576 = vmatprep.subr.mxu0 0.0
    %2577 = vmatpush1.msra.mxu0 0.0
    %2578 = vmatprep.subr.mxu0 0.0
    %2579 = vmatpush1.msra.mxu0 0.0
    %2580 = vmatprep.subr.mxu0 0.0
    %2581 = vmatpush1.msra.mxu0 0.0
    %2582 = vmatprep.subr.mxu0 0.0
    %2583 = vmatpush1.msra.mxu0 0.0
    %2584 = vmatprep.subr.mxu0 0.0
    %2585 = vmatpush1.msra.mxu0 0.0
    %2586 = vmatprep.subr.mxu0 0.0
    %2587 = vmatpush1.msra.mxu0 0.0
    %2588 = vmatprep.subr.mxu0 0.0
    %2589 = vmatpush1.msra.mxu0 0.0
    %2590 = vmatprep.subr.mxu0 0.0
    %2591 = vmatpush1.msra.mxu0 0.0
    %2592 = vmatprep.subr.mxu0 0.0
    %2593 = vmatpush1.msra.mxu0 0.0
    %2594 = vmatprep.subr.mxu0 0.0
    %2595 = vmatpush1.msra.mxu0 0.0
    %2596 = vmatprep.subr.mxu0 0.0
    %2597 = vmatpush1.msra.mxu0 0.0
    %2598 = vmatprep.subr.mxu0 0.0
    %2599 = vmatpush1.msra.mxu0 0.0
    %2600 = vmatprep.subr.mxu0 0.0
    %2601 = vmatpush1.msra.mxu0 0.0
    %2602 = vmatprep.subr.mxu0 0.0
    %2603 = vmatpush1.msra.mxu0 0.0
    %2604 = vmatprep.subr.mxu0 0.0
    %2605 = vmatpush1.msra.mxu0 0.0
    %2606 = vmatprep.subr.mxu0 0.0
    %2607 = vmatpush1.msra.mxu0 0.0
    %2608 = vmatprep.subr.mxu0 0.0
    %2609 = vmatpush1.msra.mxu0 0.0
    %2610 = vmatprep.subr.mxu0 0.0
    %2611 = vmatpush1.msra.mxu0 0.0
    %2612 = vmatprep.subr.mxu0 0.0
    %2613 = vmatpush1.msra.mxu0 0.0
    %2614 = vmatprep.subr.mxu0 0.0
    %2615 = vmatpush1.msra.mxu0 0.0
    %2616 = vmatprep.subr.mxu0 0.0
    %2617 = vmatpush1.msra.mxu0 0.0
    %2618 = vmatprep.mubr.f32.mxu0 0.0
    %2619 = vmatmul.mubr.f32.gmra.mrb[0].mxu0 %v566
    %v2620 = vpop.f32.mrb[0].mxu0
    %v2621 = vadd.f32 0.0, %v2620
    %v2622 = vpop.f32.mrb[0].mxu0
    %2623 = vmatprep.mubr.f32.mxu0 0.0
    %2624 = vmatmul.mubr.f32.gmra.mrb[0].mxu0 %v569
    %v2625 = vpop.f32.mrb[0].mxu0
    %v2626 = vadd.f32 0.0, %v2625
    %v2627 = vpop.f32.mrb[0].mxu0
    %2628 = vdwg.mxu0
    %2629 = vmatprep.subr.mxu0 0.0
    %2630 = vmatpush1.msra.mxu0 %v2228
    %2631 = vmatprep.subr.mxu0 0.0
    %2632 = vmatpush1.msra.mxu0 %v2233
    %2633 = vmatprep.subr.mxu0 0.0
    %2634 = vmatpush1.msra.mxu0 0.0
    %2635 = vmatprep.subr.mxu0 0.0
    %2636 = vmatpush1.msra.mxu0 0.0
    %2637 = vmatprep.subr.mxu0 0.0
    %2638 = vmatpush1.msra.mxu0 0.0
    %2639 = vmatprep.subr.mxu0 0.0
    %2640 = vmatpush1.msra.mxu0 0.0
    %2641 = vmatprep.subr.mxu0 0.0
    %2642 = vmatpush1.msra.mxu0 0.0
    %2643 = vmatprep.subr.mxu0 0.0
    %2644 = vmatpush1.msra.mxu0 0.0
    %2645 = vmatprep.subr.mxu0 0.0
    %2646 = vmatpush1.msra.mxu0 0.0
    %2647 = vmatprep.subr.mxu0 0.0
    %2648 = vmatpush1.msra.mxu0 0.0
    %2649 = vmatprep.subr.mxu0 0.0
    %2650 = vmatpush1.msra.mxu0 0.0
    %2651 = vmatprep.subr.mxu0 0.0
    %2652 = vmatpush1.msra.mxu0 0.0
    %2653 = vmatprep.subr.mxu0 0.0
    %2654 = vmatpush1.msra.mxu0 0.0
    %2655 = vmatprep.subr.mxu0 0.0
    %2656 = vmatpush1.msra.mxu0 0.0
    %2657 = vmatprep.subr.mxu0 0.0
    %2658 = vmatpush1.msra.mxu0 0.0
    %2659 = vmatprep.subr.mxu0 0.0
    %2660 = vmatpush1.msra.mxu0 0.0
    %2661 = vmatprep.subr.mxu0 0.0
    %2662 = vmatpush1.msra.mxu0 0.0
    %2663 = vmatprep.subr.mxu0 0.0
    %2664 = vmatpush1.msra.mxu0 0.0
    %2665 = vmatprep.subr.mxu0 0.0
    %2666 = vmatpush1.msra.mxu0 0.0
    %2667 = vmatprep.subr.mxu0 0.0
    %2668 = vmatpush1.msra.mxu0 0.0
    %2669 = vmatprep.subr.mxu0 0.0
    %2670 = vmatpush1.msra.mxu0 0.0
    %2671 = vmatprep.subr.mxu0 0.0
    %2672 = vmatpush1.msra.mxu0 0.0
    %2673 = vmatprep.subr.mxu0 0.0
    %2674 = vmatpush1.msra.mxu0 0.0
    %2675 = vmatprep.subr.mxu0 0.0
    %2676 = vmatpush1.msra.mxu0 0.0
    %2677 = vmatprep.subr.mxu0 0.0
    %2678 = vmatpush1.msra.mxu0 0.0
    %2679 = vmatprep.subr.mxu0 0.0
    %2680 = vmatpush1.msra.mxu0 0.0
    %2681 = vmatprep.subr.mxu0 0.0
    %2682 = vmatpush1.msra.mxu0 0.0
    %2683 = vmatprep.subr.mxu0 0.0
    %2684 = vmatpush1.msra.mxu0 0.0
    %2685 = vmatprep.subr.mxu0 0.0
    %2686 = vmatpush1.msra.mxu0 0.0
    %2687 = vmatprep.subr.mxu0 0.0
    %2688 = vmatpush1.msra.mxu0 0.0
    %2689 = vmatprep.subr.mxu0 0.0
    %2690 = vmatpush1.msra.mxu0 0.0
    %2691 = vmatprep.subr.mxu0 0.0
    %2692 = vmatpush1.msra.mxu0 0.0
    %2693 = vmatprep.mubr.f32.mxu0 0.0
    %2694 = vmatmul.mubr.f32.gmra.mrb[0].mxu0 %v566
    %v2695 = vpop.f32.mrb[0].mxu0
    %v2696 = vadd.f32 0.0, %v2695
    %v2697 = vpop.f32.mrb[0].mxu0
    %2698 = vmatprep.mubr.f32.mxu0 0.0
    %2699 = vmatmul.mubr.f32.gmra.mrb[0].mxu0 %v569
    %v2700 = vpop.f32.mrb[0].mxu0
    %v2701 = vadd.f32 0.0, %v2700
    %v2702 = vpop.f32.mrb[0].mxu0
    %2703 = vdwg.mxu0
    %2704 = vmatprep.subr.mxu0 0.0
    %2705 = vmatpush1.msra.mxu0 %v2309
    %2706 = vmatprep.subr.mxu0 0.0
    %2707 = vmatpush1.msra.mxu0 %v2314
    %2708 = vmatprep.subr.mxu0 0.0
    %2709 = vmatpush1.msra.mxu0 0.0
    %2710 = vmatprep.subr.mxu0 0.0
    %2711 = vmatpush1.msra.mxu0 0.0
    %2712 = vmatprep.subr.mxu0 0.0
    %2713 = vmatpush1.msra.mxu0 0.0
    %2714 = vmatprep.subr.mxu0 0.0
    %2715 = vmatpush1.msra.mxu0 0.0
    %2716 = vmatprep.subr.mxu0 0.0
    %2717 = vmatpush1.msra.mxu0 0.0
    %2718 = vmatprep.subr.mxu0 0.0
    %2719 = vmatpush1.msra.mxu0 0.0
    %2720 = vmatprep.subr.mxu0 0.0
    %2721 = vmatpush1.msra.mxu0 0.0
    %2722 = vmatprep.subr.mxu0 0.0
    %2723 = vmatpush1.msra.mxu0 0.0
    %2724 = vmatprep.subr.mxu0 0.0
    %2725 = vmatpush1.msra.mxu0 0.0
    %2726 = vmatprep.subr.mxu0 0.0
    %2727 = vmatpush1.msra.mxu0 0.0
    %2728 = vmatprep.subr.mxu0 0.0
    %2729 = vmatpush1.msra.mxu0 0.0
    %2730 = vmatprep.subr.mxu0 0.0
    %2731 = vmatpush1.msra.mxu0 0.0
    %2732 = vmatprep.subr.mxu0 0.0
    %2733 = vmatpush1.msra.mxu0 0.0
    %2734 = vmatprep.subr.mxu0 0.0
    %2735 = vmatpush1.msra.mxu0 0.0
    %2736 = vmatprep.subr.mxu0 0.0
    %2737 = vmatpush1.msra.mxu0 0.0
    %2738 = vmatprep.subr.mxu0 0.0
    %2739 = vmatpush1.msra.mxu0 0.0
    %2740 = vmatprep.subr.mxu0 0.0
    %2741 = vmatpush1.msra.mxu0 0.0
    %2742 = vmatprep.subr.mxu0 0.0
    %2743 = vmatpush1.msra.mxu0 0.0
    %2744 = vmatprep.subr.mxu0 0.0
    %2745 = vmatpush1.msra.mxu0 0.0
    %2746 = vmatprep.subr.mxu0 0.0
    %2747 = vmatpush1.msra.mxu0 0.0
    %2748 = vmatprep.subr.mxu0 0.0
    %2749 = vmatpush1.msra.mxu0 0.0
    %2750 = vmatprep.subr.mxu0 0.0
    %2751 = vmatpush1.msra.mxu0 0.0
    %2752 = vmatprep.subr.mxu0 0.0
    %2753 = vmatpush1.msra.mxu0 0.0
    %2754 = vmatprep.subr.mxu0 0.0
    %2755 = vmatpush1.msra.mxu0 0.0
    %2756 = vmatprep.subr.mxu0 0.0
    %2757 = vmatpush1.msra.mxu0 0.0
    %2758 = vmatprep.subr.mxu0 0.0
    %2759 = vmatpush1.msra.mxu0 0.0
    %2760 = vmatprep.subr.mxu0 0.0
    %2761 = vmatpush1.msra.mxu0 0.0
    %2762 = vmatprep.subr.mxu0 0.0
    %2763 = vmatpush1.msra.mxu0 0.0
    %2764 = vmatprep.subr.mxu0 0.0
    %2765 = vmatpush1.msra.mxu0 0.0
    %2766 = vmatprep.subr.mxu0 0.0
    %2767 = vmatpush1.msra.mxu0 0.0
    %2768 = vmatprep.mubr.f32.mxu0 0.0
    %2769 = vmatmul.mubr.f32.gmra.mrb[0].mxu0 %v566
    %v2770 = vpop.f32.mrb[0].mxu0
    %v2771 = vadd.f32 0.0, %v2770
    %v2772 = vpop.f32.mrb[0].mxu0
    %2773 = vmatprep.mubr.f32.mxu0 0.0
    %2774 = vmatmul.mubr.f32.gmra.mrb[0].mxu0 %v569
    %v2775 = vpop.f32.mrb[0].mxu0
    %v2776 = vadd.f32 0.0, %v2775
    %v2777 = vpop.f32.mrb[0].mxu0
    %2778 = vdwg.mxu0
    %2779 = vmatprep.subr.mxu0 0.0
    %2780 = vmatpush1.msra.mxu0 %v2390
    %2781 = vmatprep.subr.mxu0 0.0
    %2782 = vmatpush1.msra.mxu0 %v2395
    %2783 = vmatprep.subr.mxu0 0.0
    %2784 = vmatpush1.msra.mxu0 0.0
    %2785 = vmatprep.subr.mxu0 0.0
    %2786 = vmatpush1.msra.mxu0 0.0
    %2787 = vmatprep.subr.mxu0 0.0
    %2788 = vmatpush1.msra.mxu0 0.0
    %2789 = vmatprep.subr.mxu0 0.0
    %2790 = vmatpush1.msra.mxu0 0.0
    %2791 = vmatprep.subr.mxu0 0.0
    %2792 = vmatpush1.msra.mxu0 0.0
    %2793 = vmatprep.subr.mxu0 0.0
    %2794 = vmatpush1.msra.mxu0 0.0
    %2795 = vmatprep.subr.mxu0 0.0
    %2796 = vmatpush1.msra.mxu0 0.0
    %2797 = vmatprep.subr.mxu0 0.0
    %2798 = vmatpush1.msra.mxu0 0.0
    %2799 = vmatprep.subr.mxu0 0.0
    %2800 = vmatpush1.msra.mxu0 0.0
    %2801 = vmatprep.subr.mxu0 0.0
    %2802 = vmatpush1.msra.mxu0 0.0
    %2803 = vmatprep.subr.mxu0 0.0
    %2804 = vmatpush1.msra.mxu0 0.0
    %2805 = vmatprep.subr.mxu0 0.0
    %2806 = vmatpush1.msra.mxu0 0.0
    %2807 = vmatprep.subr.mxu0 0.0
    %2808 = vmatpush1.msra.mxu0 0.0
    %2809 = vmatprep.subr.mxu0 0.0
    %2810 = vmatpush1.msra.mxu0 0.0
    %2811 = vmatprep.subr.mxu0 0.0
    %2812 = vmatpush1.msra.mxu0 0.0
    %2813 = vmatprep.subr.mxu0 0.0
    %2814 = vmatpush1.msra.mxu0 0.0
    %2815 = vmatprep.subr.mxu0 0.0
    %2816 = vmatpush1.msra.mxu0 0.0
    %2817 = vmatprep.subr.mxu0 0.0
    %2818 = vmatpush1.msra.mxu0 0.0
    %2819 = vmatprep.subr.mxu0 0.0
    %2820 = vmatpush1.msra.mxu0 0.0
    %2821 = vmatprep.subr.mxu0 0.0
    %2822 = vmatpush1.msra.mxu0 0.0
    %2823 = vmatprep.subr.mxu0 0.0
    %2824 = vmatpush1.msra.mxu0 0.0
    %2825 = vmatprep.subr.mxu0 0.0
    %2826 = vmatpush1.msra.mxu0 0.0
    %2827 = vmatprep.subr.mxu0 0.0
    %2828 = vmatpush1.msra.mxu0 0.0
    %2829 = vmatprep.subr.mxu0 0.0
    %2830 = vmatpush1.msra.mxu0 0.0
    %2831 = vmatprep.subr.mxu0 0.0
    %2832 = vmatpush1.msra.mxu0 0.0
    %2833 = vmatprep.subr.mxu0 0.0
    %2834 = vmatpush1.msra.mxu0 0.0
    %2835 = vmatprep.subr.mxu0 0.0
    %2836 = vmatpush1.msra.mxu0 0.0
    %2837 = vmatprep.subr.mxu0 0.0
    %2838 = vmatpush1.msra.mxu0 0.0
    %2839 = vmatprep.subr.mxu0 0.0
    %2840 = vmatpush1.msra.mxu0 0.0
    %2841 = vmatprep.subr.mxu0 0.0
    %2842 = vmatpush1.msra.mxu0 0.0
    %2843 = vmatprep.mubr.f32.mxu0 0.0
    %2844 = vmatmul.mubr.f32.gmra.mrb[0].mxu0 %v566
    %v2845 = vpop.f32.mrb[0].mxu0
    %v2846 = vadd.f32 0.0, %v2845
    %v2847 = vpop.f32.mrb[0].mxu0
    %2848 = vmatprep.mubr.f32.mxu0 0.0
    %2849 = vmatmul.mubr.f32.gmra.mrb[0].mxu0 %v569
    %v2850 = vpop.f32.mrb[0].mxu0
    %v2851 = vadd.f32 0.0, %v2850
    %v2852 = vpop.f32.mrb[0].mxu0
    %2853 = vdwg.mxu0
    %2854 = vmatprep.subr.mxu0 0.0
    %2855 = vmatpush1.msra.mxu0 %v2471
    %2856 = vmatprep.subr.mxu0 0.0
    %2857 = vmatpush1.msra.mxu0 %v2476
    %2858 = vmatprep.subr.mxu0 0.0
    %2859 = vmatpush1.msra.mxu0 0.0
    %2860 = vmatprep.subr.mxu0 0.0
    %2861 = vmatpush1.msra.mxu0 0.0
    %2862 = vmatprep.subr.mxu0 0.0
    %2863 = vmatpush1.msra.mxu0 0.0
    %2864 = vmatprep.subr.mxu0 0.0
    %2865 = vmatpush1.msra.mxu0 0.0
    %2866 = vmatprep.subr.mxu0 0.0
    %2867 = vmatpush1.msra.mxu0 0.0
    %2868 = vmatprep.subr.mxu0 0.0
    %2869 = vmatpush1.msra.mxu0 0.0
    %2870 = vmatprep.subr.mxu0 0.0
    %2871 = vmatpush1.msra.mxu0 0.0
    %2872 = vmatprep.subr.mxu0 0.0
    %2873 = vmatpush1.msra.mxu0 0.0
    %2874 = vmatprep.subr.mxu0 0.0
    %2875 = vmatpush1.msra.mxu0 0.0
    %2876 = vmatprep.subr.mxu0 0.0
    %2877 = vmatpush1.msra.mxu0 0.0
    %2878 = vmatprep.subr.mxu0 0.0
    %2879 = vmatpush1.msra.mxu0 0.0
    %2880 = vmatprep.subr.mxu0 0.0
    %2881 = vmatpush1.msra.mxu0 0.0
    %2882 = vmatprep.subr.mxu0 0.0
    %2883 = vmatpush1.msra.mxu0 0.0
    %2884 = vmatprep.subr.mxu0 0.0
    %2885 = vmatpush1.msra.mxu0 0.0
    %2886 = vmatprep.subr.mxu0 0.0
    %2887 = vmatpush1.msra.mxu0 0.0
    %2888 = vmatprep.subr.mxu0 0.0
    %2889 = vmatpush1.msra.mxu0 0.0
    %2890 = vmatprep.subr.mxu0 0.0
    %2891 = vmatpush1.msra.mxu0 0.0
    %2892 = vmatprep.subr.mxu0 0.0
    %2893 = vmatpush1.msra.mxu0 0.0
    %2894 = vmatprep.subr.mxu0 0.0
    %2895 = vmatpush1.msra.mxu0 0.0
    %2896 = vmatprep.subr.mxu0 0.0
    %2897 = vmatpush1.msra.mxu0 0.0
    %2898 = vmatprep.subr.mxu0 0.0
    %2899 = vmatpush1.msra.mxu0 0.0
    %2900 = vmatprep.subr.mxu0 0.0
    %2901 = vmatpush1.msra.mxu0 0.0
    %2902 = vmatprep.subr.mxu0 0.0
    %2903 = vmatpush1.msra.mxu0 0.0
    %2904 = vmatprep.subr.mxu0 0.0
    %2905 = vmatpush1.msra.mxu0 0.0
    %2906 = vmatprep.subr.mxu0 0.0
    %2907 = vmatpush1.msra.mxu0 0.0
    %2908 = vmatprep.subr.mxu0 0.0
    %2909 = vmatpush1.msra.mxu0 0.0
    %2910 = vmatprep.subr.mxu0 0.0
    %2911 = vmatpush1.msra.mxu0 0.0
    %2912 = vmatprep.subr.mxu0 0.0
    %2913 = vmatpush1.msra.mxu0 0.0
    %2914 = vmatprep.subr.mxu0 0.0
    %2915 = vmatpush1.msra.mxu0 0.0
    %2916 = vmatprep.subr.mxu0 0.0
    %2917 = vmatpush1.msra.mxu0 0.0
    %2918 = vmatprep.mubr.f32.mxu0 0.0
    %2919 = vmatmul.mubr.f32.gmra.mrb[0].mxu0 %v566
    %v2920 = vpop.f32.mrb[0].mxu0
    %v2921 = vadd.f32 0.0, %v2920
    %v2922 = vpop.f32.mrb[0].mxu0
    %2923 = vmatprep.mubr.f32.mxu0 0.0
    %2924 = vmatmul.mubr.f32.gmra.mrb[0].mxu0 %v569
    %v2925 = vpop.f32.mrb[0].mxu0
    %v2926 = vadd.f32 0.0, %v2925
    %v2927 = vpop.f32.mrb[0].mxu0
    %2928 = vdwg.mxu0
    %v2929 = vmul.f32 %v2546, %v76
    %v2930 = vmul.f32 %v2551, %v77
    %v2931 = vmul.f32 %v2621, %v76
    %v2932 = vmul.f32 %v2626, %v77
    %v2933 = vmul.f32 %v2696, %v76
    %v2934 = vmul.f32 %v2701, %v77
    %v2935 = vmul.f32 %v2771, %v76
    %v2936 = vmul.f32 %v2776, %v77
    %v2937 = vmul.f32 %v2846, %v76
    %v2938 = vmul.f32 %v2851, %v77
    %v2939 = vmul.f32 %v2921, %v76
    %v2940 = vmul.f32 %v2926, %v77
    %v2941 = vmul.f32 %v1021, %v1969
    %v2942 = vmul.f32 %v1022, %v1970
    %v2943 = vmul.f32 %v1023, %v1971
    %v2944 = vmul.f32 %v1024, %v1972
    %v2945 = vmul.f32 %v1025, %v1973
    %v2946 = vmul.f32 %v1026, %v1974
    %v2947 = vmul.f32 %v1027, %v1975
    %v2948 = vmul.f32 %v1028, %v1976
    %v2949 = vmul.f32 %v1029, %v1977
    %v2950 = vmul.f32 %v1030, %v1978
    %v2951 = vmul.f32 %v1031, %v1979
    %v2952 = vmul.f32 %v1032, %v1980
    %v2953 = vsub.f32 %v2929, %v2941
    %v2954 = vsub.f32 %v2930, %v2942
    %v2955 = vsub.f32 %v2931, %v2943
    %v2956 = vsub.f32 %v2932, %v2944
    %v2957 = vsub.f32 %v2933, %v2945
    %v2958 = vsub.f32 %v2934, %v2946
    %v2959 = vsub.f32 %v2935, %v2947
    %v2960 = vsub.f32 %v2936, %v2948
    %v2961 = vsub.f32 %v2937, %v2949
    %v2962 = vsub.f32 %v2938, %v2950
    %v2963 = vsub.f32 %v2939, %v2951
    %v2964 = vsub.f32 %v2940, %v2952
    %v2965 = vmul.f32 %v48, %v48
    %v2966 = vmul.f32 %v49, %v49
    %v2967 = vmul.f32 %v50, %v50
    %v2968 = vmul.f32 %v51, %v51
    %v2969 = vmul.f32 %v52, %v52
    %v2970 = vmul.f32 %v53, %v53
    %v2971 = vmul.f32 %v54, %v54
    %v2972 = vmul.f32 %v55, %v55
    %v2973 = vmul.f32 %v56, %v56
    %v2974 = vmul.f32 %v57, %v57
    %v2975 = vmul.f32 %v58, %v58
    %v2976 = vmul.f32 %v59, %v59
    %v2978 = vsel %vm78, %v2965, 0
    %v2981 = vsel %vm78, %v2966, 0
    %2983 = vmatprep.subr.mxu0 0.0
    %2984 = vmatpush1.msra.mxu0 %v72
    %2985 = vmatprep.subr.mxu0 0.0
    %2986 = vmatpush1.msra.mxu0 %v73
    %2987 = vmatprep.subr.mxu0 0.0
    %2988 = vmatpush1.msra.mxu0 0.0
    %2989 = vmatprep.subr.mxu0 0.0
    %2990 = vmatpush1.msra.mxu0 0.0
    %2991 = vmatprep.subr.mxu0 0.0
    %2992 = vmatpush1.msra.mxu0 0.0
    %2993 = vmatprep.subr.mxu0 0.0
    %2994 = vmatpush1.msra.mxu0 0.0
    %2995 = vmatprep.subr.mxu0 0.0
    %2996 = vmatpush1.msra.mxu0 0.0
    %2997 = vmatprep.subr.mxu0 0.0
    %2998 = vmatpush1.msra.mxu0 0.0
    %2999 = vmatprep.subr.mxu0 0.0
    %3000 = vmatpush1.msra.mxu0 0.0
    %3001 = vmatprep.subr.mxu0 0.0
    %3002 = vmatpush1.msra.mxu0 0.0
    %3003 = vmatprep.subr.mxu0 0.0
    %3004 = vmatpush1.msra.mxu0 0.0
    %3005 = vmatprep.subr.mxu0 0.0
    %3006 = vmatpush1.msra.mxu0 0.0
    %3007 = vmatprep.subr.mxu0 0.0
    %3008 = vmatpush1.msra.mxu0 0.0
    %3009 = vmatprep.subr.mxu0 0.0
    %3010 = vmatpush1.msra.mxu0 0.0
    %3011 = vmatprep.subr.mxu0 0.0
    %3012 = vmatpush1.msra.mxu0 0.0
    %3013 = vmatprep.subr.mxu0 0.0
    %3014 = vmatpush1.msra.mxu0 0.0
    %3015 = vmatprep.subr.mxu0 0.0
    %3016 = vmatpush1.msra.mxu0 0.0
    %3017 = vmatprep.subr.mxu0 0.0
    %3018 = vmatpush1.msra.mxu0 0.0
    %3019 = vmatprep.subr.mxu0 0.0
    %3020 = vmatpush1.msra.mxu0 0.0
    %3021 = vmatprep.subr.mxu0 0.0
    %3022 = vmatpush1.msra.mxu0 0.0
    %3023 = vmatprep.subr.mxu0 0.0
    %3024 = vmatpush1.msra.mxu0 0.0
    %3025 = vmatprep.subr.mxu0 0.0
    %3026 = vmatpush1.msra.mxu0 0.0
    %3027 = vmatprep.subr.mxu0 0.0
    %3028 = vmatpush1.msra.mxu0 0.0
    %3029 = vmatprep.subr.mxu0 0.0
    %3030 = vmatpush1.msra.mxu0 0.0
    %3031 = vmatprep.subr.mxu0 0.0
    %3032 = vmatpush1.msra.mxu0 0.0
    %3033 = vmatprep.subr.mxu0 0.0
    %3034 = vmatpush1.msra.mxu0 0.0
    %3035 = vmatprep.subr.mxu0 0.0
    %3036 = vmatpush1.msra.mxu0 0.0
    %3037 = vmatprep.subr.mxu0 0.0
    %3038 = vmatpush1.msra.mxu0 0.0
    %3039 = vmatprep.subr.mxu0 0.0
    %3040 = vmatpush1.msra.mxu0 0.0
    %3041 = vmatprep.subr.mxu0 0.0
    %3042 = vmatpush1.msra.mxu0 0.0
    %3043 = vmatprep.subr.mxu0 0.0
    %3044 = vmatpush1.msra.mxu0 0.0
    %3045 = vmatprep.subr.mxu0 0.0
    %3046 = vmatpush1.msra.mxu0 0.0
    %3047 = vmatprep.mubr.f32.mxu0 0.0
    %3048 = vmatmul.mubr.f32.gmra.mrb[0].mxu0 %v2978
    %v3049 = vpop.f32.mrb[0].mxu0
    %v3050 = vadd.f32 0.0, %v3049
    %v3051 = vpop.f32.mrb[0].mxu0
    %3052 = vmatprep.mubr.f32.mxu0 0.0
    %3053 = vmatmul.mubr.f32.gmra.mrb[0].mxu0 %v2981
    %v3054 = vpop.f32.mrb[0].mxu0
    %v3055 = vadd.f32 0.0, %v3054
    %v3056 = vpop.f32.mrb[0].mxu0
    %3057 = vdwg.mxu0
    %v3059 = vsel %vm78, %v2967, 0
    %v3062 = vsel %vm78, %v2968, 0
    %3064 = vmatprep.subr.mxu0 0.0
    %3065 = vmatpush1.msra.mxu0 %v72
    %3066 = vmatprep.subr.mxu0 0.0
    %3067 = vmatpush1.msra.mxu0 %v73
    %3068 = vmatprep.subr.mxu0 0.0
    %3069 = vmatpush1.msra.mxu0 0.0
    %3070 = vmatprep.subr.mxu0 0.0
    %3071 = vmatpush1.msra.mxu0 0.0
    %3072 = vmatprep.subr.mxu0 0.0
    %3073 = vmatpush1.msra.mxu0 0.0
    %3074 = vmatprep.subr.mxu0 0.0
    %3075 = vmatpush1.msra.mxu0 0.0
    %3076 = vmatprep.subr.mxu0 0.0
    %3077 = vmatpush1.msra.mxu0 0.0
    %3078 = vmatprep.subr.mxu0 0.0
    %3079 = vmatpush1.msra.mxu0 0.0
    %3080 = vmatprep.subr.mxu0 0.0
    %3081 = vmatpush1.msra.mxu0 0.0
    %3082 = vmatprep.subr.mxu0 0.0
    %3083 = vmatpush1.msra.mxu0 0.0
    %3084 = vmatprep.subr.mxu0 0.0
    %3085 = vmatpush1.msra.mxu0 0.0
    %3086 = vmatprep.subr.mxu0 0.0
    %3087 = vmatpush1.msra.mxu0 0.0
    %3088 = vmatprep.subr.mxu0 0.0
    %3089 = vmatpush1.msra.mxu0 0.0
    %3090 = vmatprep.subr.mxu0 0.0
    %3091 = vmatpush1.msra.mxu0 0.0
    %3092 = vmatprep.subr.mxu0 0.0
    %3093 = vmatpush1.msra.mxu0 0.0
    %3094 = vmatprep.subr.mxu0 0.0
    %3095 = vmatpush1.msra.mxu0 0.0
    %3096 = vmatprep.subr.mxu0 0.0
    %3097 = vmatpush1.msra.mxu0 0.0
    %3098 = vmatprep.subr.mxu0 0.0
    %3099 = vmatpush1.msra.mxu0 0.0
    %3100 = vmatprep.subr.mxu0 0.0
    %3101 = vmatpush1.msra.mxu0 0.0
    %3102 = vmatprep.subr.mxu0 0.0
    %3103 = vmatpush1.msra.mxu0 0.0
    %3104 = vmatprep.subr.mxu0 0.0
    %3105 = vmatpush1.msra.mxu0 0.0
    %3106 = vmatprep.subr.mxu0 0.0
    %3107 = vmatpush1.msra.mxu0 0.0
    %3108 = vmatprep.subr.mxu0 0.0
    %3109 = vmatpush1.msra.mxu0 0.0
    %3110 = vmatprep.subr.mxu0 0.0
    %3111 = vmatpush1.msra.mxu0 0.0
    %3112 = vmatprep.subr.mxu0 0.0
    %3113 = vmatpush1.msra.mxu0 0.0
    %3114 = vmatprep.subr.mxu0 0.0
    %3115 = vmatpush1.msra.mxu0 0.0
    %3116 = vmatprep.subr.mxu0 0.0
    %3117 = vmatpush1.msra.mxu0 0.0
    %3118 = vmatprep.subr.mxu0 0.0
    %3119 = vmatpush1.msra.mxu0 0.0
    %3120 = vmatprep.subr.mxu0 0.0
    %3121 = vmatpush1.msra.mxu0 0.0
    %3122 = vmatprep.subr.mxu0 0.0
    %3123 = vmatpush1.msra.mxu0 0.0
    %3124 = vmatprep.subr.mxu0 0.0
    %3125 = vmatpush1.msra.mxu0 0.0
    %3126 = vmatprep.subr.mxu0 0.0
    %3127 = vmatpush1.msra.mxu0 0.0
    %3128 = vmatprep.mubr.f32.mxu0 0.0
    %3129 = vmatmul.mubr.f32.gmra.mrb[0].mxu0 %v3059
    %v3130 = vpop.f32.mrb[0].mxu0
    %v3131 = vadd.f32 0.0, %v3130
    %v3132 = vpop.f32.mrb[0].mxu0
    %3133 = vmatprep.mubr.f32.mxu0 0.0
    %3134 = vmatmul.mubr.f32.gmra.mrb[0].mxu0 %v3062
    %v3135 = vpop.f32.mrb[0].mxu0
    %v3136 = vadd.f32 0.0, %v3135
    %v3137 = vpop.f32.mrb[0].mxu0
    %3138 = vdwg.mxu0
    %v3140 = vsel %vm78, %v2969, 0
    %v3143 = vsel %vm78, %v2970, 0
    %3145 = vmatprep.subr.mxu0 0.0
    %3146 = vmatpush1.msra.mxu0 %v72
    %3147 = vmatprep.subr.mxu0 0.0
    %3148 = vmatpush1.msra.mxu0 %v73
    %3149 = vmatprep.subr.mxu0 0.0
    %3150 = vmatpush1.msra.mxu0 0.0
    %3151 = vmatprep.subr.mxu0 0.0
    %3152 = vmatpush1.msra.mxu0 0.0
    %3153 = vmatprep.subr.mxu0 0.0
    %3154 = vmatpush1.msra.mxu0 0.0
    %3155 = vmatprep.subr.mxu0 0.0
    %3156 = vmatpush1.msra.mxu0 0.0
    %3157 = vmatprep.subr.mxu0 0.0
    %3158 = vmatpush1.msra.mxu0 0.0
    %3159 = vmatprep.subr.mxu0 0.0
    %3160 = vmatpush1.msra.mxu0 0.0
    %3161 = vmatprep.subr.mxu0 0.0
    %3162 = vmatpush1.msra.mxu0 0.0
    %3163 = vmatprep.subr.mxu0 0.0
    %3164 = vmatpush1.msra.mxu0 0.0
    %3165 = vmatprep.subr.mxu0 0.0
    %3166 = vmatpush1.msra.mxu0 0.0
    %3167 = vmatprep.subr.mxu0 0.0
    %3168 = vmatpush1.msra.mxu0 0.0
    %3169 = vmatprep.subr.mxu0 0.0
    %3170 = vmatpush1.msra.mxu0 0.0
    %3171 = vmatprep.subr.mxu0 0.0
    %3172 = vmatpush1.msra.mxu0 0.0
    %3173 = vmatprep.subr.mxu0 0.0
    %3174 = vmatpush1.msra.mxu0 0.0
    %3175 = vmatprep.subr.mxu0 0.0
    %3176 = vmatpush1.msra.mxu0 0.0
    %3177 = vmatprep.subr.mxu0 0.0
    %3178 = vmatpush1.msra.mxu0 0.0
    %3179 = vmatprep.subr.mxu0 0.0
    %3180 = vmatpush1.msra.mxu0 0.0
    %3181 = vmatprep.subr.mxu0 0.0
    %3182 = vmatpush1.msra.mxu0 0.0
    %3183 = vmatprep.subr.mxu0 0.0
    %3184 = vmatpush1.msra.mxu0 0.0
    %3185 = vmatprep.subr.mxu0 0.0
    %3186 = vmatpush1.msra.mxu0 0.0
    %3187 = vmatprep.subr.mxu0 0.0
    %3188 = vmatpush1.msra.mxu0 0.0
    %3189 = vmatprep.subr.mxu0 0.0
    %3190 = vmatpush1.msra.mxu0 0.0
    %3191 = vmatprep.subr.mxu0 0.0
    %3192 = vmatpush1.msra.mxu0 0.0
    %3193 = vmatprep.subr.mxu0 0.0
    %3194 = vmatpush1.msra.mxu0 0.0
    %3195 = vmatprep.subr.mxu0 0.0
    %3196 = vmatpush1.msra.mxu0 0.0
    %3197 = vmatprep.subr.mxu0 0.0
    %3198 = vmatpush1.msra.mxu0 0.0
    %3199 = vmatprep.subr.mxu0 0.0
    %3200 = vmatpush1.msra.mxu0 0.0
    %3201 = vmatprep.subr.mxu0 0.0
    %3202 = vmatpush1.msra.mxu0 0.0
    %3203 = vmatprep.subr.mxu0 0.0
    %3204 = vmatpush1.msra.mxu0 0.0
    %3205 = vmatprep.subr.mxu0 0.0
    %3206 = vmatpush1.msra.mxu0 0.0
    %3207 = vmatprep.subr.mxu0 0.0
    %3208 = vmatpush1.msra.mxu0 0.0
    %3209 = vmatprep.mubr.f32.mxu0 0.0
    %3210 = vmatmul.mubr.f32.gmra.mrb[0].mxu0 %v3140
    %v3211 = vpop.f32.mrb[0].mxu0
    %v3212 = vadd.f32 0.0, %v3211
    %v3213 = vpop.f32.mrb[0].mxu0
    %3214 = vmatprep.mubr.f32.mxu0 0.0
    %3215 = vmatmul.mubr.f32.gmra.mrb[0].mxu0 %v3143
    %v3216 = vpop.f32.mrb[0].mxu0
    %v3217 = vadd.f32 0.0, %v3216
    %v3218 = vpop.f32.mrb[0].mxu0
    %3219 = vdwg.mxu0
    %v3221 = vsel %vm78, %v2971, 0
    %v3224 = vsel %vm78, %v2972, 0
    %3226 = vmatprep.subr.mxu0 0.0
    %3227 = vmatpush1.msra.mxu0 %v72
    %3228 = vmatprep.subr.mxu0 0.0
    %3229 = vmatpush1.msra.mxu0 %v73
    %3230 = vmatprep.subr.mxu0 0.0
    %3231 = vmatpush1.msra.mxu0 0.0
    %3232 = vmatprep.subr.mxu0 0.0
    %3233 = vmatpush1.msra.mxu0 0.0
    %3234 = vmatprep.subr.mxu0 0.0
    %3235 = vmatpush1.msra.mxu0 0.0
    %3236 = vmatprep.subr.mxu0 0.0
    %3237 = vmatpush1.msra.mxu0 0.0
    %3238 = vmatprep.subr.mxu0 0.0
    %3239 = vmatpush1.msra.mxu0 0.0
    %3240 = vmatprep.subr.mxu0 0.0
    %3241 = vmatpush1.msra.mxu0 0.0
    %3242 = vmatprep.subr.mxu0 0.0
    %3243 = vmatpush1.msra.mxu0 0.0
    %3244 = vmatprep.subr.mxu0 0.0
    %3245 = vmatpush1.msra.mxu0 0.0
    %3246 = vmatprep.subr.mxu0 0.0
    %3247 = vmatpush1.msra.mxu0 0.0
    %3248 = vmatprep.subr.mxu0 0.0
    %3249 = vmatpush1.msra.mxu0 0.0
    %3250 = vmatprep.subr.mxu0 0.0
    %3251 = vmatpush1.msra.mxu0 0.0
    %3252 = vmatprep.subr.mxu0 0.0
    %3253 = vmatpush1.msra.mxu0 0.0
    %3254 = vmatprep.subr.mxu0 0.0
    %3255 = vmatpush1.msra.mxu0 0.0
    %3256 = vmatprep.subr.mxu0 0.0
    %3257 = vmatpush1.msra.mxu0 0.0
    %3258 = vmatprep.subr.mxu0 0.0
    %3259 = vmatpush1.msra.mxu0 0.0
    %3260 = vmatprep.subr.mxu0 0.0
    %3261 = vmatpush1.msra.mxu0 0.0
    %3262 = vmatprep.subr.mxu0 0.0
    %3263 = vmatpush1.msra.mxu0 0.0
    %3264 = vmatprep.subr.mxu0 0.0
    %3265 = vmatpush1.msra.mxu0 0.0
    %3266 = vmatprep.subr.mxu0 0.0
    %3267 = vmatpush1.msra.mxu0 0.0
    %3268 = vmatprep.subr.mxu0 0.0
    %3269 = vmatpush1.msra.mxu0 0.0
    %3270 = vmatprep.subr.mxu0 0.0
    %3271 = vmatpush1.msra.mxu0 0.0
    %3272 = vmatprep.subr.mxu0 0.0
    %3273 = vmatpush1.msra.mxu0 0.0
    %3274 = vmatprep.subr.mxu0 0.0
    %3275 = vmatpush1.msra.mxu0 0.0
    %3276 = vmatprep.subr.mxu0 0.0
    %3277 = vmatpush1.msra.mxu0 0.0
    %3278 = vmatprep.subr.mxu0 0.0
    %3279 = vmatpush1.msra.mxu0 0.0
    %3280 = vmatprep.subr.mxu0 0.0
    %3281 = vmatpush1.msra.mxu0 0.0
    %3282 = vmatprep.subr.mxu0 0.0
    %3283 = vmatpush1.msra.mxu0 0.0
    %3284 = vmatprep.subr.mxu0 0.0
    %3285 = vmatpush1.msra.mxu0 0.0
    %3286 = vmatprep.subr.mxu0 0.0
    %3287 = vmatpush1.msra.mxu0 0.0
    %3288 = vmatprep.subr.mxu0 0.0
    %3289 = vmatpush1.msra.mxu0 0.0
    %3290 = vmatprep.mubr.f32.mxu0 0.0
    %3291 = vmatmul.mubr.f32.gmra.mrb[0].mxu0 %v3221
    %v3292 = vpop.f32.mrb[0].mxu0
    %v3293 = vadd.f32 0.0, %v3292
    %v3294 = vpop.f32.mrb[0].mxu0
    %3295 = vmatprep.mubr.f32.mxu0 0.0
    %3296 = vmatmul.mubr.f32.gmra.mrb[0].mxu0 %v3224
    %v3297 = vpop.f32.mrb[0].mxu0
    %v3298 = vadd.f32 0.0, %v3297
    %v3299 = vpop.f32.mrb[0].mxu0
    %3300 = vdwg.mxu0
    %v3302 = vsel %vm78, %v2973, 0
    %v3305 = vsel %vm78, %v2974, 0
    %3307 = vmatprep.subr.mxu0 0.0
    %3308 = vmatpush1.msra.mxu0 %v72
    %3309 = vmatprep.subr.mxu0 0.0
    %3310 = vmatpush1.msra.mxu0 %v73
    %3311 = vmatprep.subr.mxu0 0.0
    %3312 = vmatpush1.msra.mxu0 0.0
    %3313 = vmatprep.subr.mxu0 0.0
    %3314 = vmatpush1.msra.mxu0 0.0
    %3315 = vmatprep.subr.mxu0 0.0
    %3316 = vmatpush1.msra.mxu0 0.0
    %3317 = vmatprep.subr.mxu0 0.0
    %3318 = vmatpush1.msra.mxu0 0.0
    %3319 = vmatprep.subr.mxu0 0.0
    %3320 = vmatpush1.msra.mxu0 0.0
    %3321 = vmatprep.subr.mxu0 0.0
    %3322 = vmatpush1.msra.mxu0 0.0
    %3323 = vmatprep.subr.mxu0 0.0
    %3324 = vmatpush1.msra.mxu0 0.0
    %3325 = vmatprep.subr.mxu0 0.0
    %3326 = vmatpush1.msra.mxu0 0.0
    %3327 = vmatprep.subr.mxu0 0.0
    %3328 = vmatpush1.msra.mxu0 0.0
    %3329 = vmatprep.subr.mxu0 0.0
    %3330 = vmatpush1.msra.mxu0 0.0
    %3331 = vmatprep.subr.mxu0 0.0
    %3332 = vmatpush1.msra.mxu0 0.0
    %3333 = vmatprep.subr.mxu0 0.0
    %3334 = vmatpush1.msra.mxu0 0.0
    %3335 = vmatprep.subr.mxu0 0.0
    %3336 = vmatpush1.msra.mxu0 0.0
    %3337 = vmatprep.subr.mxu0 0.0
    %3338 = vmatpush1.msra.mxu0 0.0
    %3339 = vmatprep.subr.mxu0 0.0
    %3340 = vmatpush1.msra.mxu0 0.0
    %3341 = vmatprep.subr.mxu0 0.0
    %3342 = vmatpush1.msra.mxu0 0.0
    %3343 = vmatprep.subr.mxu0 0.0
    %3344 = vmatpush1.msra.mxu0 0.0
    %3345 = vmatprep.subr.mxu0 0.0
    %3346 = vmatpush1.msra.mxu0 0.0
    %3347 = vmatprep.subr.mxu0 0.0
    %3348 = vmatpush1.msra.mxu0 0.0
    %3349 = vmatprep.subr.mxu0 0.0
    %3350 = vmatpush1.msra.mxu0 0.0
    %3351 = vmatprep.subr.mxu0 0.0
    %3352 = vmatpush1.msra.mxu0 0.0
    %3353 = vmatprep.subr.mxu0 0.0
    %3354 = vmatpush1.msra.mxu0 0.0
    %3355 = vmatprep.subr.mxu0 0.0
    %3356 = vmatpush1.msra.mxu0 0.0
    %3357 = vmatprep.subr.mxu0 0.0
    %3358 = vmatpush1.msra.mxu0 0.0
    %3359 = vmatprep.subr.mxu0 0.0
    %3360 = vmatpush1.msra.mxu0 0.0
    %3361 = vmatprep.subr.mxu0 0.0
    %3362 = vmatpush1.msra.mxu0 0.0
    %3363 = vmatprep.subr.mxu0 0.0
    %3364 = vmatpush1.msra.mxu0 0.0
    %3365 = vmatprep.subr.mxu0 0.0
    %3366 = vmatpush1.msra.mxu0 0.0
    %3367 = vmatprep.subr.mxu0 0.0
    %3368 = vmatpush1.msra.mxu0 0.0
    %3369 = vmatprep.subr.mxu0 0.0
    %3370 = vmatpush1.msra.mxu0 0.0
    %3371 = vmatprep.mubr.f32.mxu0 0.0
    %3372 = vmatmul.mubr.f32.gmra.mrb[0].mxu0 %v3302
    %v3373 = vpop.f32.mrb[0].mxu0
    %v3374 = vadd.f32 0.0, %v3373
    %v3375 = vpop.f32.mrb[0].mxu0
    %3376 = vmatprep.mubr.f32.mxu0 0.0
    %3377 = vmatmul.mubr.f32.gmra.mrb[0].mxu0 %v3305
    %v3378 = vpop.f32.mrb[0].mxu0
    %v3379 = vadd.f32 0.0, %v3378
    %v3380 = vpop.f32.mrb[0].mxu0
    %3381 = vdwg.mxu0
    %v3383 = vsel %vm78, %v2975, 0
    %v3386 = vsel %vm78, %v2976, 0
    %3388 = vmatprep.subr.mxu0 0.0
    %3389 = vmatpush1.msra.mxu0 %v72
    %3390 = vmatprep.subr.mxu0 0.0
    %3391 = vmatpush1.msra.mxu0 %v73
    %3392 = vmatprep.subr.mxu0 0.0
    %3393 = vmatpush1.msra.mxu0 0.0
    %3394 = vmatprep.subr.mxu0 0.0
    %3395 = vmatpush1.msra.mxu0 0.0
    %3396 = vmatprep.subr.mxu0 0.0
    %3397 = vmatpush1.msra.mxu0 0.0
    %3398 = vmatprep.subr.mxu0 0.0
    %3399 = vmatpush1.msra.mxu0 0.0
    %3400 = vmatprep.subr.mxu0 0.0
    %3401 = vmatpush1.msra.mxu0 0.0
    %3402 = vmatprep.subr.mxu0 0.0
    %3403 = vmatpush1.msra.mxu0 0.0
    %3404 = vmatprep.subr.mxu0 0.0
    %3405 = vmatpush1.msra.mxu0 0.0
    %3406 = vmatprep.subr.mxu0 0.0
    %3407 = vmatpush1.msra.mxu0 0.0
    %3408 = vmatprep.subr.mxu0 0.0
    %3409 = vmatpush1.msra.mxu0 0.0
    %3410 = vmatprep.subr.mxu0 0.0
    %3411 = vmatpush1.msra.mxu0 0.0
    %3412 = vmatprep.subr.mxu0 0.0
    %3413 = vmatpush1.msra.mxu0 0.0
    %3414 = vmatprep.subr.mxu0 0.0
    %3415 = vmatpush1.msra.mxu0 0.0
    %3416 = vmatprep.subr.mxu0 0.0
    %3417 = vmatpush1.msra.mxu0 0.0
    %3418 = vmatprep.subr.mxu0 0.0
    %3419 = vmatpush1.msra.mxu0 0.0
    %3420 = vmatprep.subr.mxu0 0.0
    %3421 = vmatpush1.msra.mxu0 0.0
    %3422 = vmatprep.subr.mxu0 0.0
    %3423 = vmatpush1.msra.mxu0 0.0
    %3424 = vmatprep.subr.mxu0 0.0
    %3425 = vmatpush1.msra.mxu0 0.0
    %3426 = vmatprep.subr.mxu0 0.0
    %3427 = vmatpush1.msra.mxu0 0.0
    %3428 = vmatprep.subr.mxu0 0.0
    %3429 = vmatpush1.msra.mxu0 0.0
    %3430 = vmatprep.subr.mxu0 0.0
    %3431 = vmatpush1.msra.mxu0 0.0
    %3432 = vmatprep.subr.mxu0 0.0
    %3433 = vmatpush1.msra.mxu0 0.0
    %3434 = vmatprep.subr.mxu0 0.0
    %3435 = vmatpush1.msra.mxu0 0.0
    %3436 = vmatprep.subr.mxu0 0.0
    %3437 = vmatpush1.msra.mxu0 0.0
    %3438 = vmatprep.subr.mxu0 0.0
    %3439 = vmatpush1.msra.mxu0 0.0
    %3440 = vmatprep.subr.mxu0 0.0
    %3441 = vmatpush1.msra.mxu0 0.0
    %3442 = vmatprep.subr.mxu0 0.0
    %3443 = vmatpush1.msra.mxu0 0.0
    %3444 = vmatprep.subr.mxu0 0.0
    %3445 = vmatpush1.msra.mxu0 0.0
    %3446 = vmatprep.subr.mxu0 0.0
    %3447 = vmatpush1.msra.mxu0 0.0
    %3448 = vmatprep.subr.mxu0 0.0
    %3449 = vmatpush1.msra.mxu0 0.0
    %3450 = vmatprep.subr.mxu0 0.0
    %3451 = vmatpush1.msra.mxu0 0.0
    %3452 = vmatprep.mubr.f32.mxu0 0.0
    %3453 = vmatmul.mubr.f32.gmra.mrb[0].mxu0 %v3383
    %v3454 = vpop.f32.mrb[0].mxu0
    %v3455 = vadd.f32 0.0, %v3454
    %v3456 = vpop.f32.mrb[0].mxu0
    %3457 = vmatprep.mubr.f32.mxu0 0.0
    %3458 = vmatmul.mubr.f32.gmra.mrb[0].mxu0 %v3386
    %v3459 = vpop.f32.mrb[0].mxu0
    %v3460 = vadd.f32 0.0, %v3459
    %v3461 = vpop.f32.mrb[0].mxu0
    %3462 = vdwg.mxu0
    %3463 = vmatprep.subr.mxu0 0.0
    %3464 = vmatpush1.msra.mxu0 %v3050
    %3465 = vmatprep.subr.mxu0 0.0
    %3466 = vmatpush1.msra.mxu0 %v3055
    %3467 = vmatprep.subr.mxu0 0.0
    %3468 = vmatpush1.msra.mxu0 0.0
    %3469 = vmatprep.subr.mxu0 0.0
    %3470 = vmatpush1.msra.mxu0 0.0
    %3471 = vmatprep.subr.mxu0 0.0
    %3472 = vmatpush1.msra.mxu0 0.0
    %3473 = vmatprep.subr.mxu0 0.0
    %3474 = vmatpush1.msra.mxu0 0.0
    %3475 = vmatprep.subr.mxu0 0.0
    %3476 = vmatpush1.msra.mxu0 0.0
    %3477 = vmatprep.subr.mxu0 0.0
    %3478 = vmatpush1.msra.mxu0 0.0
    %3479 = vmatprep.subr.mxu0 0.0
    %3480 = vmatpush1.msra.mxu0 0.0
    %3481 = vmatprep.subr.mxu0 0.0
    %3482 = vmatpush1.msra.mxu0 0.0
    %3483 = vmatprep.subr.mxu0 0.0
    %3484 = vmatpush1.msra.mxu0 0.0
    %3485 = vmatprep.subr.mxu0 0.0
    %3486 = vmatpush1.msra.mxu0 0.0
    %3487 = vmatprep.subr.mxu0 0.0
    %3488 = vmatpush1.msra.mxu0 0.0
    %3489 = vmatprep.subr.mxu0 0.0
    %3490 = vmatpush1.msra.mxu0 0.0
    %3491 = vmatprep.subr.mxu0 0.0
    %3492 = vmatpush1.msra.mxu0 0.0
    %3493 = vmatprep.subr.mxu0 0.0
    %3494 = vmatpush1.msra.mxu0 0.0
    %3495 = vmatprep.subr.mxu0 0.0
    %3496 = vmatpush1.msra.mxu0 0.0
    %3497 = vmatprep.subr.mxu0 0.0
    %3498 = vmatpush1.msra.mxu0 0.0
    %3499 = vmatprep.subr.mxu0 0.0
    %3500 = vmatpush1.msra.mxu0 0.0
    %3501 = vmatprep.subr.mxu0 0.0
    %3502 = vmatpush1.msra.mxu0 0.0
    %3503 = vmatprep.subr.mxu0 0.0
    %3504 = vmatpush1.msra.mxu0 0.0
    %3505 = vmatprep.subr.mxu0 0.0
    %3506 = vmatpush1.msra.mxu0 0.0
    %3507 = vmatprep.subr.mxu0 0.0
    %3508 = vmatpush1.msra.mxu0 0.0
    %3509 = vmatprep.subr.mxu0 0.0
    %3510 = vmatpush1.msra.mxu0 0.0
    %3511 = vmatprep.subr.mxu0 0.0
    %3512 = vmatpush1.msra.mxu0 0.0
    %3513 = vmatprep.subr.mxu0 0.0
    %3514 = vmatpush1.msra.mxu0 0.0
    %3515 = vmatprep.subr.mxu0 0.0
    %3516 = vmatpush1.msra.mxu0 0.0
    %3517 = vmatprep.subr.mxu0 0.0
    %3518 = vmatpush1.msra.mxu0 0.0
    %3519 = vmatprep.subr.mxu0 0.0
    %3520 = vmatpush1.msra.mxu0 0.0
    %3521 = vmatprep.subr.mxu0 0.0
    %3522 = vmatpush1.msra.mxu0 0.0
    %3523 = vmatprep.subr.mxu0 0.0
    %3524 = vmatpush1.msra.mxu0 0.0
    %3525 = vmatprep.subr.mxu0 0.0
    %3526 = vmatpush1.msra.mxu0 0.0
    %3527 = vmatprep.mubr.f32.mxu0 0.0
    %3528 = vmatmul.mubr.f32.gmra.mrb[0].mxu0 %v566
    %v3529 = vpop.f32.mrb[0].mxu0
    %v3530 = vadd.f32 0.0, %v3529
    %v3531 = vpop.f32.mrb[0].mxu0
    %3532 = vmatprep.mubr.f32.mxu0 0.0
    %3533 = vmatmul.mubr.f32.gmra.mrb[0].mxu0 %v569
    %v3534 = vpop.f32.mrb[0].mxu0
    %v3535 = vadd.f32 0.0, %v3534
    %v3536 = vpop.f32.mrb[0].mxu0
    %3537 = vdwg.mxu0
    %3538 = vmatprep.subr.mxu0 0.0
    %3539 = vmatpush1.msra.mxu0 %v3131
    %3540 = vmatprep.subr.mxu0 0.0
    %3541 = vmatpush1.msra.mxu0 %v3136
    %3542 = vmatprep.subr.mxu0 0.0
    %3543 = vmatpush1.msra.mxu0 0.0
    %3544 = vmatprep.subr.mxu0 0.0
    %3545 = vmatpush1.msra.mxu0 0.0
    %3546 = vmatprep.subr.mxu0 0.0
    %3547 = vmatpush1.msra.mxu0 0.0
    %3548 = vmatprep.subr.mxu0 0.0
    %3549 = vmatpush1.msra.mxu0 0.0
    %3550 = vmatprep.subr.mxu0 0.0
    %3551 = vmatpush1.msra.mxu0 0.0
    %3552 = vmatprep.subr.mxu0 0.0
    %3553 = vmatpush1.msra.mxu0 0.0
    %3554 = vmatprep.subr.mxu0 0.0
    %3555 = vmatpush1.msra.mxu0 0.0
    %3556 = vmatprep.subr.mxu0 0.0
    %3557 = vmatpush1.msra.mxu0 0.0
    %3558 = vmatprep.subr.mxu0 0.0
    %3559 = vmatpush1.msra.mxu0 0.0
    %3560 = vmatprep.subr.mxu0 0.0
    %3561 = vmatpush1.msra.mxu0 0.0
    %3562 = vmatprep.subr.mxu0 0.0
    %3563 = vmatpush1.msra.mxu0 0.0
    %3564 = vmatprep.subr.mxu0 0.0
    %3565 = vmatpush1.msra.mxu0 0.0
    %3566 = vmatprep.subr.mxu0 0.0
    %3567 = vmatpush1.msra.mxu0 0.0
    %3568 = vmatprep.subr.mxu0 0.0
    %3569 = vmatpush1.msra.mxu0 0.0
    %3570 = vmatprep.subr.mxu0 0.0
    %3571 = vmatpush1.msra.mxu0 0.0
    %3572 = vmatprep.subr.mxu0 0.0
    %3573 = vmatpush1.msra.mxu0 0.0
    %3574 = vmatprep.subr.mxu0 0.0
    %3575 = vmatpush1.msra.mxu0 0.0
    %3576 = vmatprep.subr.mxu0 0.0
    %3577 = vmatpush1.msra.mxu0 0.0
    %3578 = vmatprep.subr.mxu0 0.0
    %3579 = vmatpush1.msra.mxu0 0.0
    %3580 = vmatprep.subr.mxu0 0.0
    %3581 = vmatpush1.msra.mxu0 0.0
    %3582 = vmatprep.subr.mxu0 0.0
    %3583 = vmatpush1.msra.mxu0 0.0
    %3584 = vmatprep.subr.mxu0 0.0
    %3585 = vmatpush1.msra.mxu0 0.0
    %3586 = vmatprep.subr.mxu0 0.0
    %3587 = vmatpush1.msra.mxu0 0.0
    %3588 = vmatprep.subr.mxu0 0.0
    %3589 = vmatpush1.msra.mxu0 0.0
    %3590 = vmatprep.subr.mxu0 0.0
    %3591 = vmatpush1.msra.mxu0 0.0
    %3592 = vmatprep.subr.mxu0 0.0
    %3593 = vmatpush1.msra.mxu0 0.0
    %3594 = vmatprep.subr.mxu0 0.0
    %3595 = vmatpush1.msra.mxu0 0.0
    %3596 = vmatprep.subr.mxu0 0.0
    %3597 = vmatpush1.msra.mxu0 0.0
    %3598 = vmatprep.subr.mxu0 0.0
    %3599 = vmatpush1.msra.mxu0 0.0
    %3600 = vmatprep.subr.mxu0 0.0
    %3601 = vmatpush1.msra.mxu0 0.0
    %3602 = vmatprep.mubr.f32.mxu0 0.0
    %3603 = vmatmul.mubr.f32.gmra.mrb[0].mxu0 %v566
    %v3604 = vpop.f32.mrb[0].mxu0
    %v3605 = vadd.f32 0.0, %v3604
    %v3606 = vpop.f32.mrb[0].mxu0
    %3607 = vmatprep.mubr.f32.mxu0 0.0
    %3608 = vmatmul.mubr.f32.gmra.mrb[0].mxu0 %v569
    %v3609 = vpop.f32.mrb[0].mxu0
    %v3610 = vadd.f32 0.0, %v3609
    %v3611 = vpop.f32.mrb[0].mxu0
    %3612 = vdwg.mxu0
    %3613 = vmatprep.subr.mxu0 0.0
    %3614 = vmatpush1.msra.mxu0 %v3212
    %3615 = vmatprep.subr.mxu0 0.0
    %3616 = vmatpush1.msra.mxu0 %v3217
    %3617 = vmatprep.subr.mxu0 0.0
    %3618 = vmatpush1.msra.mxu0 0.0
    %3619 = vmatprep.subr.mxu0 0.0
    %3620 = vmatpush1.msra.mxu0 0.0
    %3621 = vmatprep.subr.mxu0 0.0
    %3622 = vmatpush1.msra.mxu0 0.0
    %3623 = vmatprep.subr.mxu0 0.0
    %3624 = vmatpush1.msra.mxu0 0.0
    %3625 = vmatprep.subr.mxu0 0.0
    %3626 = vmatpush1.msra.mxu0 0.0
    %3627 = vmatprep.subr.mxu0 0.0
    %3628 = vmatpush1.msra.mxu0 0.0
    %3629 = vmatprep.subr.mxu0 0.0
    %3630 = vmatpush1.msra.mxu0 0.0
    %3631 = vmatprep.subr.mxu0 0.0
    %3632 = vmatpush1.msra.mxu0 0.0
    %3633 = vmatprep.subr.mxu0 0.0
    %3634 = vmatpush1.msra.mxu0 0.0
    %3635 = vmatprep.subr.mxu0 0.0
    %3636 = vmatpush1.msra.mxu0 0.0
    %3637 = vmatprep.subr.mxu0 0.0
    %3638 = vmatpush1.msra.mxu0 0.0
    %3639 = vmatprep.subr.mxu0 0.0
    %3640 = vmatpush1.msra.mxu0 0.0
    %3641 = vmatprep.subr.mxu0 0.0
    %3642 = vmatpush1.msra.mxu0 0.0
    %3643 = vmatprep.subr.mxu0 0.0
    %3644 = vmatpush1.msra.mxu0 0.0
    %3645 = vmatprep.subr.mxu0 0.0
    %3646 = vmatpush1.msra.mxu0 0.0
    %3647 = vmatprep.subr.mxu0 0.0
    %3648 = vmatpush1.msra.mxu0 0.0
    %3649 = vmatprep.subr.mxu0 0.0
    %3650 = vmatpush1.msra.mxu0 0.0
    %3651 = vmatprep.subr.mxu0 0.0
    %3652 = vmatpush1.msra.mxu0 0.0
    %3653 = vmatprep.subr.mxu0 0.0
    %3654 = vmatpush1.msra.mxu0 0.0
    %3655 = vmatprep.subr.mxu0 0.0
    %3656 = vmatpush1.msra.mxu0 0.0
    %3657 = vmatprep.subr.mxu0 0.0
    %3658 = vmatpush1.msra.mxu0 0.0
    %3659 = vmatprep.subr.mxu0 0.0
    %3660 = vmatpush1.msra.mxu0 0.0
    %3661 = vmatprep.subr.mxu0 0.0
    %3662 = vmatpush1.msra.mxu0 0.0
    %3663 = vmatprep.subr.mxu0 0.0
    %3664 = vmatpush1.msra.mxu0 0.0
    %3665 = vmatprep.subr.mxu0 0.0
    %3666 = vmatpush1.msra.mxu0 0.0
    %3667 = vmatprep.subr.mxu0 0.0
    %3668 = vmatpush1.msra.mxu0 0.0
    %3669 = vmatprep.subr.mxu0 0.0
    %3670 = vmatpush1.msra.mxu0 0.0
    %3671 = vmatprep.subr.mxu0 0.0
    %3672 = vmatpush1.msra.mxu0 0.0
    %3673 = vmatprep.subr.mxu0 0.0
    %3674 = vmatpush1.msra.mxu0 0.0
    %3675 = vmatprep.subr.mxu0 0.0
    %3676 = vmatpush1.msra.mxu0 0.0
    %3677 = vmatprep.mubr.f32.mxu0 0.0
    %3678 = vmatmul.mubr.f32.gmra.mrb[0].mxu0 %v566
    %v3679 = vpop.f32.mrb[0].mxu0
    %v3680 = vadd.f32 0.0, %v3679
    %v3681 = vpop.f32.mrb[0].mxu0
    %3682 = vmatprep.mubr.f32.mxu0 0.0
    %3683 = vmatmul.mubr.f32.gmra.mrb[0].mxu0 %v569
    %v3684 = vpop.f32.mrb[0].mxu0
    %v3685 = vadd.f32 0.0, %v3684
    %v3686 = vpop.f32.mrb[0].mxu0
    %3687 = vdwg.mxu0
    %3688 = vmatprep.subr.mxu0 0.0
    %3689 = vmatpush1.msra.mxu0 %v3293
    %3690 = vmatprep.subr.mxu0 0.0
    %3691 = vmatpush1.msra.mxu0 %v3298
    %3692 = vmatprep.subr.mxu0 0.0
    %3693 = vmatpush1.msra.mxu0 0.0
    %3694 = vmatprep.subr.mxu0 0.0
    %3695 = vmatpush1.msra.mxu0 0.0
    %3696 = vmatprep.subr.mxu0 0.0
    %3697 = vmatpush1.msra.mxu0 0.0
    %3698 = vmatprep.subr.mxu0 0.0
    %3699 = vmatpush1.msra.mxu0 0.0
    %3700 = vmatprep.subr.mxu0 0.0
    %3701 = vmatpush1.msra.mxu0 0.0
    %3702 = vmatprep.subr.mxu0 0.0
    %3703 = vmatpush1.msra.mxu0 0.0
    %3704 = vmatprep.subr.mxu0 0.0
    %3705 = vmatpush1.msra.mxu0 0.0
    %3706 = vmatprep.subr.mxu0 0.0
    %3707 = vmatpush1.msra.mxu0 0.0
    %3708 = vmatprep.subr.mxu0 0.0
    %3709 = vmatpush1.msra.mxu0 0.0
    %3710 = vmatprep.subr.mxu0 0.0
    %3711 = vmatpush1.msra.mxu0 0.0
    %3712 = vmatprep.subr.mxu0 0.0
    %3713 = vmatpush1.msra.mxu0 0.0
    %3714 = vmatprep.subr.mxu0 0.0
    %3715 = vmatpush1.msra.mxu0 0.0
    %3716 = vmatprep.subr.mxu0 0.0
    %3717 = vmatpush1.msra.mxu0 0.0
    %3718 = vmatprep.subr.mxu0 0.0
    %3719 = vmatpush1.msra.mxu0 0.0
    %3720 = vmatprep.subr.mxu0 0.0
    %3721 = vmatpush1.msra.mxu0 0.0
    %3722 = vmatprep.subr.mxu0 0.0
    %3723 = vmatpush1.msra.mxu0 0.0
    %3724 = vmatprep.subr.mxu0 0.0
    %3725 = vmatpush1.msra.mxu0 0.0
    %3726 = vmatprep.subr.mxu0 0.0
    %3727 = vmatpush1.msra.mxu0 0.0
    %3728 = vmatprep.subr.mxu0 0.0
    %3729 = vmatpush1.msra.mxu0 0.0
    %3730 = vmatprep.subr.mxu0 0.0
    %3731 = vmatpush1.msra.mxu0 0.0
    %3732 = vmatprep.subr.mxu0 0.0
    %3733 = vmatpush1.msra.mxu0 0.0
    %3734 = vmatprep.subr.mxu0 0.0
    %3735 = vmatpush1.msra.mxu0 0.0
    %3736 = vmatprep.subr.mxu0 0.0
    %3737 = vmatpush1.msra.mxu0 0.0
    %3738 = vmatprep.subr.mxu0 0.0
    %3739 = vmatpush1.msra.mxu0 0.0
    %3740 = vmatprep.subr.mxu0 0.0
    %3741 = vmatpush1.msra.mxu0 0.0
    %3742 = vmatprep.subr.mxu0 0.0
    %3743 = vmatpush1.msra.mxu0 0.0
    %3744 = vmatprep.subr.mxu0 0.0
    %3745 = vmatpush1.msra.mxu0 0.0
    %3746 = vmatprep.subr.mxu0 0.0
    %3747 = vmatpush1.msra.mxu0 0.0
    %3748 = vmatprep.subr.mxu0 0.0
    %3749 = vmatpush1.msra.mxu0 0.0
    %3750 = vmatprep.subr.mxu0 0.0
    %3751 = vmatpush1.msra.mxu0 0.0
    %3752 = vmatprep.mubr.f32.mxu0 0.0
    %3753 = vmatmul.mubr.f32.gmra.mrb[0].mxu0 %v566
    %v3754 = vpop.f32.mrb[0].mxu0
    %v3755 = vadd.f32 0.0, %v3754
    %v3756 = vpop.f32.mrb[0].mxu0
    %3757 = vmatprep.mubr.f32.mxu0 0.0
    %3758 = vmatmul.mubr.f32.gmra.mrb[0].mxu0 %v569
    %v3759 = vpop.f32.mrb[0].mxu0
    %v3760 = vadd.f32 0.0, %v3759
    %v3761 = vpop.f32.mrb[0].mxu0
    %3762 = vdwg.mxu0
    %3763 = vmatprep.subr.mxu0 0.0
    %3764 = vmatpush1.msra.mxu0 %v3374
    %3765 = vmatprep.subr.mxu0 0.0
    %3766 = vmatpush1.msra.mxu0 %v3379
    %3767 = vmatprep.subr.mxu0 0.0
    %3768 = vmatpush1.msra.mxu0 0.0
    %3769 = vmatprep.subr.mxu0 0.0
    %3770 = vmatpush1.msra.mxu0 0.0
    %3771 = vmatprep.subr.mxu0 0.0
    %3772 = vmatpush1.msra.mxu0 0.0
    %3773 = vmatprep.subr.mxu0 0.0
    %3774 = vmatpush1.msra.mxu0 0.0
    %3775 = vmatprep.subr.mxu0 0.0
    %3776 = vmatpush1.msra.mxu0 0.0
    %3777 = vmatprep.subr.mxu0 0.0
    %3778 = vmatpush1.msra.mxu0 0.0
    %3779 = vmatprep.subr.mxu0 0.0
    %3780 = vmatpush1.msra.mxu0 0.0
    %3781 = vmatprep.subr.mxu0 0.0
    %3782 = vmatpush1.msra.mxu0 0.0
    %3783 = vmatprep.subr.mxu0 0.0
    %3784 = vmatpush1.msra.mxu0 0.0
    %3785 = vmatprep.subr.mxu0 0.0
    %3786 = vmatpush1.msra.mxu0 0.0
    %3787 = vmatprep.subr.mxu0 0.0
    %3788 = vmatpush1.msra.mxu0 0.0
    %3789 = vmatprep.subr.mxu0 0.0
    %3790 = vmatpush1.msra.mxu0 0.0
    %3791 = vmatprep.subr.mxu0 0.0
    %3792 = vmatpush1.msra.mxu0 0.0
    %3793 = vmatprep.subr.mxu0 0.0
    %3794 = vmatpush1.msra.mxu0 0.0
    %3795 = vmatprep.subr.mxu0 0.0
    %3796 = vmatpush1.msra.mxu0 0.0
    %3797 = vmatprep.subr.mxu0 0.0
    %3798 = vmatpush1.msra.mxu0 0.0
    %3799 = vmatprep.subr.mxu0 0.0
    %3800 = vmatpush1.msra.mxu0 0.0
    %3801 = vmatprep.subr.mxu0 0.0
    %3802 = vmatpush1.msra.mxu0 0.0
    %3803 = vmatprep.subr.mxu0 0.0
    %3804 = vmatpush1.msra.mxu0 0.0
    %3805 = vmatprep.subr.mxu0 0.0
    %3806 = vmatpush1.msra.mxu0 0.0
    %3807 = vmatprep.subr.mxu0 0.0
    %3808 = vmatpush1.msra.mxu0 0.0
    %3809 = vmatprep.subr.mxu0 0.0
    %3810 = vmatpush1.msra.mxu0 0.0
    %3811 = vmatprep.subr.mxu0 0.0
    %3812 = vmatpush1.msra.mxu0 0.0
    %3813 = vmatprep.subr.mxu0 0.0
    %3814 = vmatpush1.msra.mxu0 0.0
    %3815 = vmatprep.subr.mxu0 0.0
    %3816 = vmatpush1.msra.mxu0 0.0
    %3817 = vmatprep.subr.mxu0 0.0
    %3818 = vmatpush1.msra.mxu0 0.0
    %3819 = vmatprep.subr.mxu0 0.0
    %3820 = vmatpush1.msra.mxu0 0.0
    %3821 = vmatprep.subr.mxu0 0.0
    %3822 = vmatpush1.msra.mxu0 0.0
    %3823 = vmatprep.subr.mxu0 0.0
    %3824 = vmatpush1.msra.mxu0 0.0
    %3825 = vmatprep.subr.mxu0 0.0
    %3826 = vmatpush1.msra.mxu0 0.0
    %3827 = vmatprep.mubr.f32.mxu0 0.0
    %3828 = vmatmul.mubr.f32.gmra.mrb[0].mxu0 %v566
    %v3829 = vpop.f32.mrb[0].mxu0
    %v3830 = vadd.f32 0.0, %v3829
    %v3831 = vpop.f32.mrb[0].mxu0
    %3832 = vmatprep.mubr.f32.mxu0 0.0
    %3833 = vmatmul.mubr.f32.gmra.mrb[0].mxu0 %v569
    %v3834 = vpop.f32.mrb[0].mxu0
    %v3835 = vadd.f32 0.0, %v3834
    %v3836 = vpop.f32.mrb[0].mxu0
    %3837 = vdwg.mxu0
    %3838 = vmatprep.subr.mxu0 0.0
    %3839 = vmatpush1.msra.mxu0 %v3455
    %3840 = vmatprep.subr.mxu0 0.0
    %3841 = vmatpush1.msra.mxu0 %v3460
    %3842 = vmatprep.subr.mxu0 0.0
    %3843 = vmatpush1.msra.mxu0 0.0
    %3844 = vmatprep.subr.mxu0 0.0
    %3845 = vmatpush1.msra.mxu0 0.0
    %3846 = vmatprep.subr.mxu0 0.0
    %3847 = vmatpush1.msra.mxu0 0.0
    %3848 = vmatprep.subr.mxu0 0.0
    %3849 = vmatpush1.msra.mxu0 0.0
    %3850 = vmatprep.subr.mxu0 0.0
    %3851 = vmatpush1.msra.mxu0 0.0
    %3852 = vmatprep.subr.mxu0 0.0
    %3853 = vmatpush1.msra.mxu0 0.0
    %3854 = vmatprep.subr.mxu0 0.0
    %3855 = vmatpush1.msra.mxu0 0.0
    %3856 = vmatprep.subr.mxu0 0.0
    %3857 = vmatpush1.msra.mxu0 0.0
    %3858 = vmatprep.subr.mxu0 0.0
    %3859 = vmatpush1.msra.mxu0 0.0
    %3860 = vmatprep.subr.mxu0 0.0
    %3861 = vmatpush1.msra.mxu0 0.0
    %3862 = vmatprep.subr.mxu0 0.0
    %3863 = vmatpush1.msra.mxu0 0.0
    %3864 = vmatprep.subr.mxu0 0.0
    %3865 = vmatpush1.msra.mxu0 0.0
    %3866 = vmatprep.subr.mxu0 0.0
    %3867 = vmatpush1.msra.mxu0 0.0
    %3868 = vmatprep.subr.mxu0 0.0
    %3869 = vmatpush1.msra.mxu0 0.0
    %3870 = vmatprep.subr.mxu0 0.0
    %3871 = vmatpush1.msra.mxu0 0.0
    %3872 = vmatprep.subr.mxu0 0.0
    %3873 = vmatpush1.msra.mxu0 0.0
    %3874 = vmatprep.subr.mxu0 0.0
    %3875 = vmatpush1.msra.mxu0 0.0
    %3876 = vmatprep.subr.mxu0 0.0
    %3877 = vmatpush1.msra.mxu0 0.0
    %3878 = vmatprep.subr.mxu0 0.0
    %3879 = vmatpush1.msra.mxu0 0.0
    %3880 = vmatprep.subr.mxu0 0.0
    %3881 = vmatpush1.msra.mxu0 0.0
    %3882 = vmatprep.subr.mxu0 0.0
    %3883 = vmatpush1.msra.mxu0 0.0
    %3884 = vmatprep.subr.mxu0 0.0
    %3885 = vmatpush1.msra.mxu0 0.0
    %3886 = vmatprep.subr.mxu0 0.0
    %3887 = vmatpush1.msra.mxu0 0.0
    %3888 = vmatprep.subr.mxu0 0.0
    %3889 = vmatpush1.msra.mxu0 0.0
    %3890 = vmatprep.subr.mxu0 0.0
    %3891 = vmatpush1.msra.mxu0 0.0
    %3892 = vmatprep.subr.mxu0 0.0
    %3893 = vmatpush1.msra.mxu0 0.0
    %3894 = vmatprep.subr.mxu0 0.0
    %3895 = vmatpush1.msra.mxu0 0.0
    %3896 = vmatprep.subr.mxu0 0.0
    %3897 = vmatpush1.msra.mxu0 0.0
    %3898 = vmatprep.subr.mxu0 0.0
    %3899 = vmatpush1.msra.mxu0 0.0
    %3900 = vmatprep.subr.mxu0 0.0
    %3901 = vmatpush1.msra.mxu0 0.0
    %3902 = vmatprep.mubr.f32.mxu0 0.0
    %3903 = vmatmul.mubr.f32.gmra.mrb[0].mxu0 %v566
    %v3904 = vpop.f32.mrb[0].mxu0
    %v3905 = vadd.f32 0.0, %v3904
    %v3906 = vpop.f32.mrb[0].mxu0
    %3907 = vmatprep.mubr.f32.mxu0 0.0
    %3908 = vmatmul.mubr.f32.gmra.mrb[0].mxu0 %v569
    %v3909 = vpop.f32.mrb[0].mxu0
    %v3910 = vadd.f32 0.0, %v3909
    %v3911 = vpop.f32.mrb[0].mxu0
    %3912 = vdwg.mxu0
    %v3913 = vmul.f32 %v3530, %v76
    %v3914 = vmul.f32 %v3535, %v77
    %v3915 = vmul.f32 %v3605, %v76
    %v3916 = vmul.f32 %v3610, %v77
    %v3917 = vmul.f32 %v3680, %v76
    %v3918 = vmul.f32 %v3685, %v77
    %v3919 = vmul.f32 %v3755, %v76
    %v3920 = vmul.f32 %v3760, %v77
    %v3921 = vmul.f32 %v3830, %v76
    %v3922 = vmul.f32 %v3835, %v77
    %v3923 = vmul.f32 %v3905, %v76
    %v3924 = vmul.f32 %v3910, %v77
    %v3925 = vmul.f32 %v1021, %v1021
    %v3926 = vmul.f32 %v1022, %v1022
    %v3927 = vmul.f32 %v1023, %v1023
    %v3928 = vmul.f32 %v1024, %v1024
    %v3929 = vmul.f32 %v1025, %v1025
    %v3930 = vmul.f32 %v1026, %v1026
    %v3931 = vmul.f32 %v1027, %v1027
    %v3932 = vmul.f32 %v1028, %v1028
    %v3933 = vmul.f32 %v1029, %v1029
    %v3934 = vmul.f32 %v1030, %v1030
    %v3935 = vmul.f32 %v1031, %v1031
    %v3936 = vmul.f32 %v1032, %v1032
    %v3937 = vsub.f32 %v3913, %v3925
    %v3938 = vsub.f32 %v3914, %v3926
    %v3939 = vsub.f32 %v3915, %v3927
    %v3940 = vsub.f32 %v3916, %v3928
    %v3941 = vsub.f32 %v3917, %v3929
    %v3942 = vsub.f32 %v3918, %v3930
    %v3943 = vsub.f32 %v3919, %v3931
    %v3944 = vsub.f32 %v3920, %v3932
    %v3945 = vsub.f32 %v3921, %v3933
    %v3946 = vsub.f32 %v3922, %v3934
    %v3947 = vsub.f32 %v3923, %v3935
    %v3948 = vsub.f32 %v3924, %v3936
    %3949 = vst.msk [vmem:[%s5] sm:$0xff] %vm78, %v1021
    %3950 = vst.msk [vmem:[%s5 + $0x8] sm:$0xff] %vm78, %v1022
    %3951 = vst.msk [vmem:[%s5 + $0x10] sm:$0xff] %vm78, %v1023
    %3952 = vst.msk [vmem:[%s5 + $0x18] sm:$0xff] %vm78, %v1024
    %3953 = vst.msk [vmem:[%s5 + $0x20] sm:$0xff] %vm78, %v1025
    %3954 = vst.msk [vmem:[%s5 + $0x28] sm:$0xff] %vm78, %v1026
    %3955 = vst.msk [vmem:[%s5 + $0x30] sm:$0xff] %vm78, %v1027
    %3956 = vst.msk [vmem:[%s5 + $0x38] sm:$0xff] %vm78, %v1028
    %3957 = vst.msk [vmem:[%s5 + $0x40] sm:$0xff] %vm78, %v1029
    %3958 = vst.msk [vmem:[%s5 + $0x48] sm:$0xff] %vm78, %v1030
    %3959 = vst.msk [vmem:[%s5 + $0x50] sm:$0xff] %vm78, %v1031
    %3960 = vst.msk [vmem:[%s5 + $0x58] sm:$0xff] %vm78, %v1032
    %s3961 = scalar_lea.vmem %s5, 96
    %3962 = vst.msk [vmem:[%s3961] sm:$0xff] %vm78, %v1969
    %3963 = vst.msk [vmem:[%s3961 + $0x8] sm:$0xff] %vm78, %v1970
    %3964 = vst.msk [vmem:[%s3961 + $0x10] sm:$0xff] %vm78, %v1971
    %3965 = vst.msk [vmem:[%s3961 + $0x18] sm:$0xff] %vm78, %v1972
    %3966 = vst.msk [vmem:[%s3961 + $0x20] sm:$0xff] %vm78, %v1973
    %3967 = vst.msk [vmem:[%s3961 + $0x28] sm:$0xff] %vm78, %v1974
    %3968 = vst.msk [vmem:[%s3961 + $0x30] sm:$0xff] %vm78, %v1975
    %3969 = vst.msk [vmem:[%s3961 + $0x38] sm:$0xff] %vm78, %v1976
    %3970 = vst.msk [vmem:[%s3961 + $0x40] sm:$0xff] %vm78, %v1977
    %3971 = vst.msk [vmem:[%s3961 + $0x48] sm:$0xff] %vm78, %v1978
    %3972 = vst.msk [vmem:[%s3961 + $0x50] sm:$0xff] %vm78, %v1979
    %3973 = vst.msk [vmem:[%s3961 + $0x58] sm:$0xff] %vm78, %v1980
    %s3974 = scalar_lea.vmem %s5, 192
    %3975 = vst.msk [vmem:[%s3974] sm:$0xff] %vm78, %v2953
    %3976 = vst.msk [vmem:[%s3974 + $0x8] sm:$0xff] %vm78, %v2954
    %3977 = vst.msk [vmem:[%s3974 + $0x10] sm:$0xff] %vm78, %v2955
    %3978 = vst.msk [vmem:[%s3974 + $0x18] sm:$0xff] %vm78, %v2956
    %3979 = vst.msk [vmem:[%s3974 + $0x20] sm:$0xff] %vm78, %v2957
    %3980 = vst.msk [vmem:[%s3974 + $0x28] sm:$0xff] %vm78, %v2958
    %3981 = vst.msk [vmem:[%s3974 + $0x30] sm:$0xff] %vm78, %v2959
    %3982 = vst.msk [vmem:[%s3974 + $0x38] sm:$0xff] %vm78, %v2960
    %3983 = vst.msk [vmem:[%s3974 + $0x40] sm:$0xff] %vm78, %v2961
    %3984 = vst.msk [vmem:[%s3974 + $0x48] sm:$0xff] %vm78, %v2962
    %3985 = vst.msk [vmem:[%s3974 + $0x50] sm:$0xff] %vm78, %v2963
    %3986 = vst.msk [vmem:[%s3974 + $0x58] sm:$0xff] %vm78, %v2964
    %s3987 = scalar_lea.vmem %s5, 288
    %3988 = vst.msk [vmem:[%s3987] sm:$0xff] %vm78, %v3937
    %3989 = vst.msk [vmem:[%s3987 + $0x8] sm:$0xff] %vm78, %v3938
    %3990 = vst.msk [vmem:[%s3987 + $0x10] sm:$0xff] %vm78, %v3939
    %3991 = vst.msk [vmem:[%s3987 + $0x18] sm:$0xff] %vm78, %v3940
    %3992 = vst.msk [vmem:[%s3987 + $0x20] sm:$0xff] %vm78, %v3941
    %3993 = vst.msk [vmem:[%s3987 + $0x28] sm:$0xff] %vm78, %v3942
    %3994 = vst.msk [vmem:[%s3987 + $0x30] sm:$0xff] %vm78, %v3943
    %3995 = vst.msk [vmem:[%s3987 + $0x38] sm:$0xff] %vm78, %v3944
    %3996 = vst.msk [vmem:[%s3987 + $0x40] sm:$0xff] %vm78, %v3945
    %3997 = vst.msk [vmem:[%s3987 + $0x48] sm:$0xff] %vm78, %v3946
    %3998 = vst.msk [vmem:[%s3987 + $0x50] sm:$0xff] %vm78, %v3947
    %3999 = vst.msk [vmem:[%s3987 + $0x58] sm:$0xff] %vm78, %v3948
    // Predicated region
    $region30: #{conv_guided_filter.3} parent=1 // pred_check
      _
    $region31: #{conv_guided_filter.3} parent=1 // pred_check_branch
      %4001 = sbr.rel (0) target = $region33
    $region32: #{conv_guided_filter.3} parent=1 // pred_region
      _
    $region33: #{conv_guided_filter.3} parent=1 // pred_fallthru
      _
    // Predicated region
    $region34: #{conv_guided_filter.3} parent=1 // pred_check
      _
    $region35: #{conv_guided_filter.3} parent=1 // pred_check_branch
      %4003 = sbr.rel (0) target = $region37
    $region36: #{conv_guided_filter.3} parent=1 // pred_region
      _
    $region37: #{conv_guided_filter.3} parent=1 // pred_fallthru
      _
    %4004 = vsyncpa [#allocation3], 1
    %4005 = vsyncpa [#allocation5], 1

</llo_original>
